<compile_context>
chip_gen: v7x
topology: tpu7x:2x2x1
jax: 0.10.0
libtpu: 0.0.40
codegen_flags: <defaults>
</compile_context>

<pallas_src>
import jax
import jax.numpy as jnp
from jax.experimental import pallas as pl
from jax.experimental.pallas import tpu as pltpu

INPUT_SIZE = 32
SEQ_LEN = 32
HIDDEN = 128
OUTPUT_SIZE = 10
PAD = 8  # sublane padding per timestep slab


def lstm_kernel(x_ref, wih0_ref, bias_ref, wcomb_ref, wfc_ref, bfc_ref,
                out_ref, g_scr):
    B = out_ref.shape[0]
    T = x_ref.shape[0] // PAD - 1
    H = HIDDEN

    w_comb = wcomb_ref[...]                                  # (256, 1024) bf16

    # Hoisted layer-0 input projection for ALL timesteps (+ one trailing
    # bias-only slab for the epilogue wavefront step).  Row t*PAD + b holds
    # (timestep t, batch b); rows B..PAD-1 of each slab are padding.
    g_scr[...] = (jnp.dot(x_ref[...], wih0_ref[...],
                          preferred_element_type=jnp.float32)
                  + bias_ref[...])                           # ((T+1)*8, 1024) f32

    def cell(z, c):
        # z: (B, 8H) gates ordered [i0 i1 f0 f1 o0 o1 g0 g1]; c: (B, 2H) = [c0|c1].
        sig = jax.nn.sigmoid(z[:, :6 * H])
        i = sig[:, 0:2 * H]
        f = sig[:, 2 * H:4 * H]
        o = sig[:, 4 * H:6 * H]
        g = jnp.tanh(z[:, 6 * H:8 * H])
        c_new = f * c + i * g
        h_new = o * jnp.tanh(c_new)                          # (B, 2H) = [h0|h1]
        return h_new, c_new

    # Prologue (layer 0 @ t=0): hh = 0 so the gates are just the projection slab.
    # Only the layer-0 half of the fused state is valid -> mask the layer-1 half.
    lane = jax.lax.broadcasted_iota(jnp.int32, (1, 2 * H), 1)
    l0mask = (lane < H).astype(jnp.float32)
    h_f, c = cell(g_scr[pl.ds(0, B), :], jnp.zeros((B, 2 * H), jnp.float32))
    hh = (h_f * l0mask).astype(jnp.bfloat16)
    c = c * l0mask

    # Wavefront: iteration s computes layer0@t=s and layer1@t=s-1 with a single
    # (B,256)@(256,1024) matmul.  At s == T the layer-0 half is dead padding.
    def step(s, carry):
        hh, c = carry
        row = pl.multiple_of(s * PAD, PAD)
        z = (jnp.dot(hh, w_comb, preferred_element_type=jnp.float32)
             + g_scr[pl.ds(row, B), :])
        h_f, c = cell(z, c)
        return h_f.astype(jnp.bfloat16), c

    hh, c = jax.lax.fori_loop(1, T + 1, step, (hh, c), unroll=True)

    # fc head on the layer-1 hidden state at the final timestep.
    h1 = hh[:, H:2 * H]                                      # (B, 128) bf16
    out_ref[...] = (jnp.dot(h1, wfc_ref[...],
                            preferred_element_type=jnp.float32)
                    + bfc_ref[...])


def lstm_forward(x, kernel_params):
    # Reproduce the PyTorch forward: x.reshape(-1, 32, 32) batch-first, zero (h0, c0).
    x = jnp.asarray(x, jnp.float32).reshape(-1, SEQ_LEN, INPUT_SIZE)   # (B, T, F)
    B, T, F = x.shape

    # Time-major, each timestep slab padded to PAD=8 rows (sublane alignment),
    # plus one extra all-zero slab for the epilogue wavefront step.  bf16 input.
    x_tb = jnp.transpose(x, (1, 0, 2)).astype(jnp.bfloat16)            # (T, B, F)
    x_pad = jnp.zeros((T + 1, PAD, F), jnp.bfloat16)
    x_pad = x_pad.at[:T, :B, :].set(x_tb)
    x_pad = x_pad.reshape((T + 1) * PAD, F)

    wih0_wide, bias_wide, w_comb, wfc, bfc = kernel_params
    vmem = pl.BlockSpec(memory_space=pltpu.MemorySpace.VMEM)
    out = pl.pallas_call(
        lstm_kernel,
        out_shape=jax.ShapeDtypeStruct((B, OUTPUT_SIZE), jnp.float32),
        in_specs=[vmem] * 6,
        out_specs=vmem,
        scratch_shapes=[pltpu.VMEM(((T + 1) * PAD, 8 * HIDDEN), jnp.float32)],
    )(x_pad, wih0_wide, bias_wide, w_comb, wfc, bfc)
    return out


def init_params(key):
    """Synthetic parameters in PyTorch nn.LSTM / nn.Linear layout (raw), plus the
    kernel-side packing: gate order [i,f,g,o] -> [i,f,o,g], layer-0/layer-1 gate
    columns interleaved as [i0 i1 f0 f1 o0 o1 g0 g1], recurrent + layer-1 weights
    fused into one (256, 1024) block matrix, biases fused, matmul weights bf16."""
    ks = jax.random.split(key, 9)
    H = HIDDEN
    scale = 1.0 / jnp.sqrt(H)

    def u(k, shape):
        return jax.random.uniform(k, shape, jnp.float32, -scale, scale)

    w_ih0 = u(ks[0], (4 * H, INPUT_SIZE))
    w_hh0 = u(ks[1], (4 * H, H))
    b_ih0 = u(ks[2], (4 * H,))
    b_hh0 = u(ks[3], (4 * H,))
    w_ih1 = u(ks[4], (4 * H, H))
    w_hh1 = u(ks[5], (4 * H, H))
    b_ih1 = u(ks[6], (4 * H,))
    b_hh1 = u(ks[7], (4 * H,))
    w_fc = u(ks[8], (OUTPUT_SIZE, H))
    b_fc = jnp.zeros((OUTPUT_SIZE,), jnp.float32)

    raw = (w_ih0, w_hh0, b_ih0, b_hh0, w_ih1, w_hh1, b_ih1, b_hh1, w_fc, b_fc)

    def gate_blocks(w):           # (4H, K) -> four (K, H) blocks in order i, f, o, g
        wt = jnp.transpose(w)
        return wt[:, 0:H], wt[:, H:2 * H], wt[:, 3 * H:4 * H], wt[:, 2 * H:3 * H]

    def gate_bias(b_ih, b_hh):    # fused bias, split per gate in order i, f, o, g
        b = b_ih + b_hh
        return b[0:H], b[H:2 * H], b[3 * H:4 * H], b[2 * H:3 * H]

    # Layer-0 input weight, widened to the interleaved 1024-column gate layout
    # (zeros in the layer-1 column blocks).
    xi, xf, xo, xg = gate_blocks(w_ih0)                      # (32, 128) each
    zx = jnp.zeros((INPUT_SIZE, H), jnp.float32)
    wih0_wide = jnp.concatenate([xi, zx, xf, zx, xo, zx, xg, zx], axis=1)  # (32,1024)

    # Combined recurrent weight: rows 0:128 multiply h0, rows 128:256 multiply h1.
    r_i, r_f, r_o, r_g = gate_blocks(w_hh0)                  # layer-0 recurrent
    a_i, a_f, a_o, a_g = gate_blocks(w_ih1)                  # layer-1 input (from h0)
    c_i, c_f, c_o, c_g = gate_blocks(w_hh1)                  # layer-1 recurrent
    zh = jnp.zeros((H, H), jnp.float32)
    top = jnp.concatenate([r_i, a_i, r_f, a_f, r_o, a_o, r_g, a_g], axis=1)
    bot = jnp.concatenate([zh, c_i, zh, c_f, zh, c_o, zh, c_g], axis=1)
    w_comb = jnp.concatenate([top, bot], axis=0)             # (256, 1024)

    bi0, bf0, bo0, bg0 = gate_bias(b_ih0, b_hh0)
    bi1, bf1, bo1, bg1 = gate_bias(b_ih1, b_hh1)
    bias_wide = jnp.concatenate(
        [bi0, bi1, bf0, bf1, bo0, bo1, bg0, bg1])[None, :]   # (1, 1024) f32

    kernel_params = (
        wih0_wide.astype(jnp.bfloat16),                      # (32, 1024)  bf16
        bias_wide,                                           # (1, 1024)   f32
        w_comb.astype(jnp.bfloat16),                         # (256, 1024) bf16
        jnp.transpose(w_fc).astype(jnp.bfloat16),            # (128, 10)   bf16
        b_fc[None, :],                                       # (1, 10)     f32
    )
    return kernel_params, raw


def reference_forward(x, raw_params):
    """Pure-JAX reference in PyTorch nn.LSTM layout (gate rows [i, f, g, o]),
    using the same bf16-input / f32-accumulate matmuls as the kernel."""
    (w_ih0, w_hh0, b_ih0, b_hh0, w_ih1, w_hh1, b_ih1, b_hh1, w_fc, b_fc) = raw_params
    x = jnp.asarray(x, jnp.float32).reshape(-1, SEQ_LEN, INPUT_SIZE)
    B = x.shape[0]
    H = HIDDEN

    def cell(xt, h, c, w_ih, w_hh, b_ih, b_hh):
        gates = (jnp.dot(xt.astype(jnp.bfloat16), w_ih.T.astype(jnp.bfloat16),
                         preferred_element_type=jnp.float32)
                 + jnp.dot(h.astype(jnp.bfloat16), w_hh.T.astype(jnp.bfloat16),
                           preferred_element_type=jnp.float32)
                 + (b_ih + b_hh))
        i = jax.nn.sigmoid(gates[:, 0 * H:1 * H])
        f = jax.nn.sigmoid(gates[:, 1 * H:2 * H])
        g = jnp.tanh(gates[:, 2 * H:3 * H])
        o = jax.nn.sigmoid(gates[:, 3 * H:4 * H])
        c = f * c + i * g
        return o * jnp.tanh(c), c

    def step(carry, xt):
        h0, c0, h1, c1 = carry
        h0, c0 = cell(xt, h0, c0, w_ih0, w_hh0, b_ih0, b_hh0)
        h1, c1 = cell(h0, h1, c1, w_ih1, w_hh1, b_ih1, b_hh1)
        return (h0, c0, h1, c1), None

    init = tuple(jnp.zeros((B, H), jnp.float32) for _ in range(4))
    (h0, c0, h1, c1), _ = jax.lax.scan(step, init, jnp.transpose(x, (1, 0, 2)))
    return (jnp.dot(h1.astype(jnp.bfloat16), w_fc.T.astype(jnp.bfloat16),
                    preferred_element_type=jnp.float32) + b_fc)


if __name__ == "__main__":
    key = jax.random.PRNGKey(0)
    k_param, k_x = jax.random.split(key)
    kernel_params, raw_params = init_params(k_param)

    # Input (2, 4, 16, 16) -> reshape(-1, 32, 32): batch=2, seq=32, feat=32
    x = jax.random.normal(k_x, (2, 4, 16, 16), jnp.float32)

    out = lstm_forward(x, kernel_params)
    out = jax.block_until_ready(out)

    ref = reference_forward(x, raw_params)
    assert out.shape == (2, OUTPUT_SIZE)
    assert jnp.allclose(out, ref, rtol=5e-3, atol=5e-3), (
        f"max abs err {jnp.max(jnp.abs(out - ref))}")

    print("KERNEL_OK")
</pallas_src>

<mosaic_0001>
module attributes {stable_mosaic.version = 11 : i64} {
  func.func @lstm_kernel(%arg0: memref<264x32xbf16, #tpu.memory_space<vmem>>, %arg1: memref<32x1024xbf16, #tpu.memory_space<vmem>>, %arg2: memref<1x1024xf32, #tpu.memory_space<vmem>>, %arg3: memref<256x1024xbf16, #tpu.memory_space<vmem>>, %arg4: memref<128x10xbf16, #tpu.memory_space<vmem>>, %arg5: memref<1x10xf32, #tpu.memory_space<vmem>>, %arg6: memref<2x10xf32, #tpu.memory_space<vmem>>, %arg7: memref<264x1024xf32, #tpu.memory_space<vmem>>) attributes {dimension_semantics = [], scalar_prefetch = 0 : i64, scratch_operands = 1 : i64, tpu.core_type = #tpu.core_type<tc>} {
    %c0 = arith.constant 0 : index
    %c0_0 = arith.constant 0 : index
    %0 = vector.load %arg3[%c0, %c0_0] : memref<256x1024xbf16, #tpu.memory_space<vmem>>, vector<256x1024xbf16>
    %c0_1 = arith.constant 0 : index
    %c0_2 = arith.constant 0 : index
    %1 = vector.load %arg0[%c0_1, %c0_2] : memref<264x32xbf16, #tpu.memory_space<vmem>>, vector<264x32xbf16>
    %c0_3 = arith.constant 0 : index
    %c0_4 = arith.constant 0 : index
    %2 = vector.load %arg1[%c0_3, %c0_4] : memref<32x1024xbf16, #tpu.memory_space<vmem>>, vector<32x1024xbf16>
    %cst = arith.constant dense<0.000000e+00> : vector<264x1024xf32>
    %3 = tpu.matmul %1, %2, %cst {dimension_numbers = #tpu.dot_dimension_numbers<[1], [0], [0], [1], [0, 0, 1, 1], [], []>} : vector<264x32xbf16>, vector<32x1024xbf16>, vector<264x1024xf32> -> vector<264x1024xf32>
    %c0_5 = arith.constant 0 : index
    %c0_6 = arith.constant 0 : index
    %4 = vector.load %arg2[%c0_5, %c0_6] : memref<1x1024xf32, #tpu.memory_space<vmem>>, vector<1x1024xf32>
    %5 = vector.broadcast %4 : vector<1x1024xf32> to vector<264x1024xf32>
    %6 = arith.addf %3, %5 : vector<264x1024xf32>
    %c0_7 = arith.constant 0 : index
    %c0_8 = arith.constant 0 : index
    %7 = vector.load %arg7[%c0_7, %c0_8] : memref<264x1024xf32, #tpu.memory_space<vmem>>, vector<264x1024xf32>
    tpu.vector_store %arg7[%c0_7, %c0_8], %6 {strides = array<i32>} : memref<264x1024xf32, #tpu.memory_space<vmem>>, vector<264x1024xf32>,
    %8 = tpu.iota {dimensions = array<i32: 1>} : vector<1x256xi32>
    %c128_i32 = arith.constant 128 : i32
    %9 = vector.broadcast %c128_i32 : i32 to vector<1x256xi32>
    %10 = arith.cmpi slt, %8, %9 : vector<1x256xi32>
    %11 = arith.extui %10 : vector<1x256xi1> to vector<1x256xi32>
    %12 = arith.sitofp %11 : vector<1x256xi32> to vector<1x256xf32>
    %c0_9 = arith.constant 0 : index
    %c0_10 = arith.constant 0 : index
    %13 = vector.load %arg7[%c0_9, %c0_10] : memref<264x1024xf32, #tpu.memory_space<vmem>>, vector<2x1024xf32>
    %cst_11 = arith.constant 0.000000e+00 : f32
    %14 = vector.broadcast %cst_11 : f32 to vector<2x256xf32>
    %15 = vector.extract_strided_slice %13 {offsets = [0, 0], sizes = [2, 768], strides = [1, 1]} : vector<2x1024xf32> to vector<2x768xf32>
    %16 = arith.negf %15 : vector<2x768xf32>
    %17 = math.exp %16 : vector<2x768xf32>
    %cst_12 = arith.constant 1.000000e+00 : f32
    %18 = vector.broadcast %cst_12 : f32 to vector<2x768xf32>
    %19 = arith.addf %18, %17 : vector<2x768xf32>
    %20 = arith.divf %18, %19 : vector<2x768xf32>
    %21 = vector.extract_strided_slice %20 {offsets = [0, 0], sizes = [2, 256], strides = [1, 1]} : vector<2x768xf32> to vector<2x256xf32>
    %22 = vector.extract_strided_slice %20 {offsets = [0, 256], sizes = [2, 256], strides = [1, 1]} : vector<2x768xf32> to vector<2x256xf32>
    %23 = vector.extract_strided_slice %20 {offsets = [0, 512], sizes = [2, 256], strides = [1, 1]} : vector<2x768xf32> to vector<2x256xf32>
    %24 = vector.extract_strided_slice %13 {offsets = [0, 768], sizes = [2, 256], strides = [1, 1]} : vector<2x1024xf32> to vector<2x256xf32>
    %25 = math.tanh %24 : vector<2x256xf32>
    %26 = arith.mulf %22, %14 : vector<2x256xf32>
    %27 = arith.mulf %21, %25 : vector<2x256xf32>
    %28 = arith.addf %26, %27 : vector<2x256xf32>
    %29 = math.tanh %28 : vector<2x256xf32>
    %30 = arith.mulf %23, %29 : vector<2x256xf32>
    %31 = vector.broadcast %12 : vector<1x256xf32> to vector<2x256xf32>
    %32 = arith.mulf %30, %31 : vector<2x256xf32>
    %33 = arith.truncf %32 : vector<2x256xf32> to vector<2x256xbf16>
    %34 = vector.broadcast %12 : vector<1x256xf32> to vector<2x256xf32>
    %35 = arith.mulf %28, %34 : vector<2x256xf32>
    %c1_i32 = arith.constant 1 : i32
    %c8_i32 = arith.constant 8 : i32
    %36 = arith.muli %c1_i32, %c8_i32 : i32
    %37 = tpu.assume_multiple %36, 8 : i32
    %cst_13 = arith.constant dense<0.000000e+00> : vector<2x1024xf32>
    %38 = tpu.matmul %33, %0, %cst_13 {dimension_numbers = #tpu.dot_dimension_numbers<[1], [0], [0], [1], [0, 0, 1, 1], [], []>} : vector<2x256xbf16>, vector<256x1024xbf16>, vector<2x1024xf32> -> vector<2x1024xf32>
    %39 = arith.index_cast %37 : i32 to index
    %c0_14 = arith.constant 0 : index
    %40 = vector.load %arg7[%39, %c0_14] : memref<264x1024xf32, #tpu.memory_space<vmem>>, vector<2x1024xf32>
    %41 = arith.addf %38, %40 : vector<2x1024xf32>
    %42 = vector.extract_strided_slice %41 {offsets = [0, 0], sizes = [2, 768], strides = [1, 1]} : vector<2x1024xf32> to vector<2x768xf32>
    %43 = arith.negf %42 : vector<2x768xf32>
    %44 = math.exp %43 : vector<2x768xf32>
    %cst_15 = arith.constant 1.000000e+00 : f32
    %45 = vector.broadcast %cst_15 : f32 to vector<2x768xf32>
    %46 = arith.addf %45, %44 : vector<2x768xf32>
    %47 = arith.divf %45, %46 : vector<2x768xf32>
    %48 = vector.extract_strided_slice %47 {offsets = [0, 0], sizes = [2, 256], strides = [1, 1]} : vector<2x768xf32> to vector<2x256xf32>
    %49 = vector.extract_strided_slice %47 {offsets = [0, 256], sizes = [2, 256], strides = [1, 1]} : vector<2x768xf32> to vector<2x256xf32>
    %50 = vector.extract_strided_slice %47 {offsets = [0, 512], sizes = [2, 256], strides = [1, 1]} : vector<2x768xf32> to vector<2x256xf32>
    %51 = vector.extract_strided_slice %41 {offsets = [0, 768], sizes = [2, 256], strides = [1, 1]} : vector<2x1024xf32> to vector<2x256xf32>
    %52 = math.tanh %51 : vector<2x256xf32>
    %53 = arith.mulf %49, %35 : vector<2x256xf32>
    %54 = arith.mulf %48, %52 : vector<2x256xf32>
    %55 = arith.addf %53, %54 : vector<2x256xf32>
    %56 = math.tanh %55 : vector<2x256xf32>
    %57 = arith.mulf %50, %56 : vector<2x256xf32>
    %58 = arith.truncf %57 : vector<2x256xf32> to vector<2x256xbf16>
    %c2_i32 = arith.constant 2 : i32
    %c8_i32_16 = arith.constant 8 : i32
    %59 = arith.muli %c2_i32, %c8_i32_16 : i32
    %60 = tpu.assume_multiple %59, 8 : i32
    %cst_17 = arith.constant dense<0.000000e+00> : vector<2x1024xf32>
    %61 = tpu.matmul %58, %0, %cst_17 {dimension_numbers = #tpu.dot_dimension_numbers<[1], [0], [0], [1], [0, 0, 1, 1], [], []>} : vector<2x256xbf16>, vector<256x1024xbf16>, vector<2x1024xf32> -> vector<2x1024xf32>
    %62 = arith.index_cast %60 : i32 to index
    %c0_18 = arith.constant 0 : index
    %63 = vector.load %arg7[%62, %c0_18] : memref<264x1024xf32, #tpu.memory_space<vmem>>, vector<2x1024xf32>
    %64 = arith.addf %61, %63 : vector<2x1024xf32>
    %65 = vector.extract_strided_slice %64 {offsets = [0, 0], sizes = [2, 768], strides = [1, 1]} : vector<2x1024xf32> to vector<2x768xf32>
    %66 = arith.negf %65 : vector<2x768xf32>
    %67 = math.exp %66 : vector<2x768xf32>
    %cst_19 = arith.constant 1.000000e+00 : f32
    %68 = vector.broadcast %cst_19 : f32 to vector<2x768xf32>
    %69 = arith.addf %68, %67 : vector<2x768xf32>
    %70 = arith.divf %68, %69 : vector<2x768xf32>
    %71 = vector.extract_strided_slice %70 {offsets = [0, 0], sizes = [2, 256], strides = [1, 1]} : vector<2x768xf32> to vector<2x256xf32>
    %72 = vector.extract_strided_slice %70 {offsets = [0, 256], sizes = [2, 256], strides = [1, 1]} : vector<2x768xf32> to vector<2x256xf32>
    %73 = vector.extract_strided_slice %70 {offsets = [0, 512], sizes = [2, 256], strides = [1, 1]} : vector<2x768xf32> to vector<2x256xf32>
    %74 = vector.extract_strided_slice %64 {offsets = [0, 768], sizes = [2, 256], strides = [1, 1]} : vector<2x1024xf32> to vector<2x256xf32>
    %75 = math.tanh %74 : vector<2x256xf32>
    %76 = arith.mulf %72, %55 : vector<2x256xf32>
    %77 = arith.mulf %71, %75 : vector<2x256xf32>
    %78 = arith.addf %76, %77 : vector<2x256xf32>
    %79 = math.tanh %78 : vector<2x256xf32>
    %80 = arith.mulf %73, %79 : vector<2x256xf32>
    %81 = arith.truncf %80 : vector<2x256xf32> to vector<2x256xbf16>
    %c3_i32 = arith.constant 3 : i32
    %c8_i32_20 = arith.constant 8 : i32
    %82 = arith.muli %c3_i32, %c8_i32_20 : i32
    %83 = tpu.assume_multiple %82, 8 : i32
    %cst_21 = arith.constant dense<0.000000e+00> : vector<2x1024xf32>
    %84 = tpu.matmul %81, %0, %cst_21 {dimension_numbers = #tpu.dot_dimension_numbers<[1], [0], [0], [1], [0, 0, 1, 1], [], []>} : vector<2x256xbf16>, vector<256x1024xbf16>, vector<2x1024xf32> -> vector<2x1024xf32>
    %85 = arith.index_cast %83 : i32 to index
    %c0_22 = arith.constant 0 : index
    %86 = vector.load %arg7[%85, %c0_22] : memref<264x1024xf32, #tpu.memory_space<vmem>>, vector<2x1024xf32>
    %87 = arith.addf %84, %86 : vector<2x1024xf32>
    %88 = vector.extract_strided_slice %87 {offsets = [0, 0], sizes = [2, 768], strides = [1, 1]} : vector<2x1024xf32> to vector<2x768xf32>
    %89 = arith.negf %88 : vector<2x768xf32>
    %90 = math.exp %89 : vector<2x768xf32>
    %cst_23 = arith.constant 1.000000e+00 : f32
    %91 = vector.broadcast %cst_23 : f32 to vector<2x768xf32>
    %92 = arith.addf %91, %90 : vector<2x768xf32>
    %93 = arith.divf %91, %92 : vector<2x768xf32>
    %94 = vector.extract_strided_slice %93 {offsets = [0, 0], sizes = [2, 256], strides = [1, 1]} : vector<2x768xf32> to vector<2x256xf32>
    %95 = vector.extract_strided_slice %93 {offsets = [0, 256], sizes = [2, 256], strides = [1, 1]} : vector<2x768xf32> to vector<2x256xf32>
    %96 = vector.extract_strided_slice %93 {offsets = [0, 512], sizes = [2, 256], strides = [1, 1]} : vector<2x768xf32> to vector<2x256xf32>
    %97 = vector.extract_strided_slice %87 {offsets = [0, 768], sizes = [2, 256], strides = [1, 1]} : vector<2x1024xf32> to vector<2x256xf32>
    %98 = math.tanh %97 : vector<2x256xf32>
    %99 = arith.mulf %95, %78 : vector<2x256xf32>
    %100 = arith.mulf %94, %98 : vector<2x256xf32>
    %101 = arith.addf %99, %100 : vector<2x256xf32>
    %102 = math.tanh %101 : vector<2x256xf32>
    %103 = arith.mulf %96, %102 : vector<2x256xf32>
    %104 = arith.truncf %103 : vector<2x256xf32> to vector<2x256xbf16>
    %c4_i32 = arith.constant 4 : i32
    %c8_i32_24 = arith.constant 8 : i32
    %105 = arith.muli %c4_i32, %c8_i32_24 : i32
    %106 = tpu.assume_multiple %105, 8 : i32
    %cst_25 = arith.constant dense<0.000000e+00> : vector<2x1024xf32>
    %107 = tpu.matmul %104, %0, %cst_25 {dimension_numbers = #tpu.dot_dimension_numbers<[1], [0], [0], [1], [0, 0, 1, 1], [], []>} : vector<2x256xbf16>, vector<256x1024xbf16>, vector<2x1024xf32> -> vector<2x1024xf32>
    %108 = arith.index_cast %106 : i32 to index
    %c0_26 = arith.constant 0 : index
    %109 = vector.load %arg7[%108, %c0_26] : memref<264x1024xf32, #tpu.memory_space<vmem>>, vector<2x1024xf32>
    %110 = arith.addf %107, %109 : vector<2x1024xf32>
    %111 = vector.extract_strided_slice %110 {offsets = [0, 0], sizes = [2, 768], strides = [1, 1]} : vector<2x1024xf32> to vector<2x768xf32>
    %112 = arith.negf %111 : vector<2x768xf32>
    %113 = math.exp %112 : vector<2x768xf32>
    %cst_27 = arith.constant 1.000000e+00 : f32
    %114 = vector.broadcast %cst_27 : f32 to vector<2x768xf32>
    %115 = arith.addf %114, %113 : vector<2x768xf32>
    %116 = arith.divf %114, %115 : vector<2x768xf32>
    %117 = vector.extract_strided_slice %116 {offsets = [0, 0], sizes = [2, 256], strides = [1, 1]} : vector<2x768xf32> to vector<2x256xf32>
    %118 = vector.extract_strided_slice %116 {offsets = [0, 256], sizes = [2, 256], strides = [1, 1]} : vector<2x768xf32> to vector<2x256xf32>
    %119 = vector.extract_strided_slice %116 {offsets = [0, 512], sizes = [2, 256], strides = [1, 1]} : vector<2x768xf32> to vector<2x256xf32>
    %120 = vector.extract_strided_slice %110 {offsets = [0, 768], sizes = [2, 256], strides = [1, 1]} : vector<2x1024xf32> to vector<2x256xf32>
    %121 = math.tanh %120 : vector<2x256xf32>
    %122 = arith.mulf %118, %101 : vector<2x256xf32>
    %123 = arith.mulf %117, %121 : vector<2x256xf32>
    %124 = arith.addf %122, %123 : vector<2x256xf32>
    %125 = math.tanh %124 : vector<2x256xf32>
    %126 = arith.mulf %119, %125 : vector<2x256xf32>
    %127 = arith.truncf %126 : vector<2x256xf32> to vector<2x256xbf16>
    %c5_i32 = arith.constant 5 : i32
    %c8_i32_28 = arith.constant 8 : i32
    %128 = arith.muli %c5_i32, %c8_i32_28 : i32
    %129 = tpu.assume_multiple %128, 8 : i32
    %cst_29 = arith.constant dense<0.000000e+00> : vector<2x1024xf32>
    %130 = tpu.matmul %127, %0, %cst_29 {dimension_numbers = #tpu.dot_dimension_numbers<[1], [0], [0], [1], [0, 0, 1, 1], [], []>} : vector<2x256xbf16>, vector<256x1024xbf16>, vector<2x1024xf32> -> vector<2x1024xf32>
    %131 = arith.index_cast %129 : i32 to index
    %c0_30 = arith.constant 0 : index
    %132 = vector.load %arg7[%131, %c0_30] : memref<264x1024xf32, #tpu.memory_space<vmem>>, vector<2x1024xf32>
    %133 = arith.addf %130, %132 : vector<2x1024xf32>
    %134 = vector.extract_strided_slice %133 {offsets = [0, 0], sizes = [2, 768], strides = [1, 1]} : vector<2x1024xf32> to vector<2x768xf32>
    %135 = arith.negf %134 : vector<2x768xf32>
    %136 = math.exp %135 : vector<2x768xf32>
    %cst_31 = arith.constant 1.000000e+00 : f32
    %137 = vector.broadcast %cst_31 : f32 to vector<2x768xf32>
    %138 = arith.addf %137, %136 : vector<2x768xf32>
    %139 = arith.divf %137, %138 : vector<2x768xf32>
    %140 = vector.extract_strided_slice %139 {offsets = [0, 0], sizes = [2, 256], strides = [1, 1]} : vector<2x768xf32> to vector<2x256xf32>
    %141 = vector.extract_strided_slice %139 {offsets = [0, 256], sizes = [2, 256], strides = [1, 1]} : vector<2x768xf32> to vector<2x256xf32>
    %142 = vector.extract_strided_slice %139 {offsets = [0, 512], sizes = [2, 256], strides = [1, 1]} : vector<2x768xf32> to vector<2x256xf32>
    %143 = vector.extract_strided_slice %133 {offsets = [0, 768], sizes = [2, 256], strides = [1, 1]} : vector<2x1024xf32> to vector<2x256xf32>
    %144 = math.tanh %143 : vector<2x256xf32>
    %145 = arith.mulf %141, %124 : vector<2x256xf32>
    %146 = arith.mulf %140, %144 : vector<2x256xf32>
    %147 = arith.addf %145, %146 : vector<2x256xf32>
    %148 = math.tanh %147 : vector<2x256xf32>
    %149 = arith.mulf %142, %148 : vector<2x256xf32>
    %150 = arith.truncf %149 : vector<2x256xf32> to vector<2x256xbf16>
    %c6_i32 = arith.constant 6 : i32
    %c8_i32_32 = arith.constant 8 : i32
    %151 = arith.muli %c6_i32, %c8_i32_32 : i32
    %152 = tpu.assume_multiple %151, 8 : i32
    %cst_33 = arith.constant dense<0.000000e+00> : vector<2x1024xf32>
    %153 = tpu.matmul %150, %0, %cst_33 {dimension_numbers = #tpu.dot_dimension_numbers<[1], [0], [0], [1], [0, 0, 1, 1], [], []>} : vector<2x256xbf16>, vector<256x1024xbf16>, vector<2x1024xf32> -> vector<2x1024xf32>
    %154 = arith.index_cast %152 : i32 to index
    %c0_34 = arith.constant 0 : index
    %155 = vector.load %arg7[%154, %c0_34] : memref<264x1024xf32, #tpu.memory_space<vmem>>, vector<2x1024xf32>
    %156 = arith.addf %153, %155 : vector<2x1024xf32>
    %157 = vector.extract_strided_slice %156 {offsets = [0, 0], sizes = [2, 768], strides = [1, 1]} : vector<2x1024xf32> to vector<2x768xf32>
    %158 = arith.negf %157 : vector<2x768xf32>
    %159 = math.exp %158 : vector<2x768xf32>
    %cst_35 = arith.constant 1.000000e+00 : f32
    %160 = vector.broadcast %cst_35 : f32 to vector<2x768xf32>
    %161 = arith.addf %160, %159 : vector<2x768xf32>
    %162 = arith.divf %160, %161 : vector<2x768xf32>
    %163 = vector.extract_strided_slice %162 {offsets = [0, 0], sizes = [2, 256], strides = [1, 1]} : vector<2x768xf32> to vector<2x256xf32>
    %164 = vector.extract_strided_slice %162 {offsets = [0, 256], sizes = [2, 256], strides = [1, 1]} : vector<2x768xf32> to vector<2x256xf32>
    %165 = vector.extract_strided_slice %162 {offsets = [0, 512], sizes = [2, 256], strides = [1, 1]} : vector<2x768xf32> to vector<2x256xf32>
    %166 = vector.extract_strided_slice %156 {offsets = [0, 768], sizes = [2, 256], strides = [1, 1]} : vector<2x1024xf32> to vector<2x256xf32>
    %167 = math.tanh %166 : vector<2x256xf32>
    %168 = arith.mulf %164, %147 : vector<2x256xf32>
    %169 = arith.mulf %163, %167 : vector<2x256xf32>
    %170 = arith.addf %168, %169 : vector<2x256xf32>
    %171 = math.tanh %170 : vector<2x256xf32>
    %172 = arith.mulf %165, %171 : vector<2x256xf32>
    %173 = arith.truncf %172 : vector<2x256xf32> to vector<2x256xbf16>
    %c7_i32 = arith.constant 7 : i32
    %c8_i32_36 = arith.constant 8 : i32
    %174 = arith.muli %c7_i32, %c8_i32_36 : i32
    %175 = tpu.assume_multiple %174, 8 : i32
    %cst_37 = arith.constant dense<0.000000e+00> : vector<2x1024xf32>
    %176 = tpu.matmul %173, %0, %cst_37 {dimension_numbers = #tpu.dot_dimension_numbers<[1], [0], [0], [1], [0, 0, 1, 1], [], []>} : vector<2x256xbf16>, vector<256x1024xbf16>, vector<2x1024xf32> -> vector<2x1024xf32>
    %177 = arith.index_cast %175 : i32 to index
    %c0_38 = arith.constant 0 : index
    %178 = vector.load %arg7[%177, %c0_38] : memref<264x1024xf32, #tpu.memory_space<vmem>>, vector<2x1024xf32>
    %179 = arith.addf %176, %178 : vector<2x1024xf32>
    %180 = vector.extract_strided_slice %179 {offsets = [0, 0], sizes = [2, 768], strides = [1, 1]} : vector<2x1024xf32> to vector<2x768xf32>
    %181 = arith.negf %180 : vector<2x768xf32>
    %182 = math.exp %181 : vector<2x768xf32>
    %cst_39 = arith.constant 1.000000e+00 : f32
    %183 = vector.broadcast %cst_39 : f32 to vector<2x768xf32>
    %184 = arith.addf %183, %182 : vector<2x768xf32>
    %185 = arith.divf %183, %184 : vector<2x768xf32>
    %186 = vector.extract_strided_slice %185 {offsets = [0, 0], sizes = [2, 256], strides = [1, 1]} : vector<2x768xf32> to vector<2x256xf32>
    %187 = vector.extract_strided_slice %185 {offsets = [0, 256], sizes = [2, 256], strides = [1, 1]} : vector<2x768xf32> to vector<2x256xf32>
    %188 = vector.extract_strided_slice %185 {offsets = [0, 512], sizes = [2, 256], strides = [1, 1]} : vector<2x768xf32> to vector<2x256xf32>
    %189 = vector.extract_strided_slice %179 {offsets = [0, 768], sizes = [2, 256], strides = [1, 1]} : vector<2x1024xf32> to vector<2x256xf32>
    %190 = math.tanh %189 : vector<2x256xf32>
    %191 = arith.mulf %187, %170 : vector<2x256xf32>
    %192 = arith.mulf %186, %190 : vector<2x256xf32>
    %193 = arith.addf %191, %192 : vector<2x256xf32>
    %194 = math.tanh %193 : vector<2x256xf32>
    %195 = arith.mulf %188, %194 : vector<2x256xf32>
    %196 = arith.truncf %195 : vector<2x256xf32> to vector<2x256xbf16>
    %c8_i32_40 = arith.constant 8 : i32
    %c8_i32_41 = arith.constant 8 : i32
    %197 = arith.muli %c8_i32_40, %c8_i32_41 : i32
    %198 = tpu.assume_multiple %197, 8 : i32
    %cst_42 = arith.constant dense<0.000000e+00> : vector<2x1024xf32>
    %199 = tpu.matmul %196, %0, %cst_42 {dimension_numbers = #tpu.dot_dimension_numbers<[1], [0], [0], [1], [0, 0, 1, 1], [], []>} : vector<2x256xbf16>, vector<256x1024xbf16>, vector<2x1024xf32> -> vector<2x1024xf32>
    %200 = arith.index_cast %198 : i32 to index
    %c0_43 = arith.constant 0 : index
    %201 = vector.load %arg7[%200, %c0_43] : memref<264x1024xf32, #tpu.memory_space<vmem>>, vector<2x1024xf32>
    %202 = arith.addf %199, %201 : vector<2x1024xf32>
    %203 = vector.extract_strided_slice %202 {offsets = [0, 0], sizes = [2, 768], strides = [1, 1]} : vector<2x1024xf32> to vector<2x768xf32>
    %204 = arith.negf %203 : vector<2x768xf32>
    %205 = math.exp %204 : vector<2x768xf32>
    %cst_44 = arith.constant 1.000000e+00 : f32
    %206 = vector.broadcast %cst_44 : f32 to vector<2x768xf32>
    %207 = arith.addf %206, %205 : vector<2x768xf32>
    %208 = arith.divf %206, %207 : vector<2x768xf32>
    %209 = vector.extract_strided_slice %208 {offsets = [0, 0], sizes = [2, 256], strides = [1, 1]} : vector<2x768xf32> to vector<2x256xf32>
    %210 = vector.extract_strided_slice %208 {offsets = [0, 256], sizes = [2, 256], strides = [1, 1]} : vector<2x768xf32> to vector<2x256xf32>
    %211 = vector.extract_strided_slice %208 {offsets = [0, 512], sizes = [2, 256], strides = [1, 1]} : vector<2x768xf32> to vector<2x256xf32>
    %212 = vector.extract_strided_slice %202 {offsets = [0, 768], sizes = [2, 256], strides = [1, 1]} : vector<2x1024xf32> to vector<2x256xf32>
    %213 = math.tanh %212 : vector<2x256xf32>
    %214 = arith.mulf %210, %193 : vector<2x256xf32>
    %215 = arith.mulf %209, %213 : vector<2x256xf32>
    %216 = arith.addf %214, %215 : vector<2x256xf32>
    %217 = math.tanh %216 : vector<2x256xf32>
    %218 = arith.mulf %211, %217 : vector<2x256xf32>
    %219 = arith.truncf %218 : vector<2x256xf32> to vector<2x256xbf16>
    %c9_i32 = arith.constant 9 : i32
    %c8_i32_45 = arith.constant 8 : i32
    %220 = arith.muli %c9_i32, %c8_i32_45 : i32
    %221 = tpu.assume_multiple %220, 8 : i32
    %cst_46 = arith.constant dense<0.000000e+00> : vector<2x1024xf32>
    %222 = tpu.matmul %219, %0, %cst_46 {dimension_numbers = #tpu.dot_dimension_numbers<[1], [0], [0], [1], [0, 0, 1, 1], [], []>} : vector<2x256xbf16>, vector<256x1024xbf16>, vector<2x1024xf32> -> vector<2x1024xf32>
    %223 = arith.index_cast %221 : i32 to index
    %c0_47 = arith.constant 0 : index
    %224 = vector.load %arg7[%223, %c0_47] : memref<264x1024xf32, #tpu.memory_space<vmem>>, vector<2x1024xf32>
    %225 = arith.addf %222, %224 : vector<2x1024xf32>
    %226 = vector.extract_strided_slice %225 {offsets = [0, 0], sizes = [2, 768], strides = [1, 1]} : vector<2x1024xf32> to vector<2x768xf32>
    %227 = arith.negf %226 : vector<2x768xf32>
    %228 = math.exp %227 : vector<2x768xf32>
    %cst_48 = arith.constant 1.000000e+00 : f32
    %229 = vector.broadcast %cst_48 : f32 to vector<2x768xf32>
    %230 = arith.addf %229, %228 : vector<2x768xf32>
    %231 = arith.divf %229, %230 : vector<2x768xf32>
    %232 = vector.extract_strided_slice %231 {offsets = [0, 0], sizes = [2, 256], strides = [1, 1]} : vector<2x768xf32> to vector<2x256xf32>
    %233 = vector.extract_strided_slice %231 {offsets = [0, 256], sizes = [2, 256], strides = [1, 1]} : vector<2x768xf32> to vector<2x256xf32>
    %234 = vector.extract_strided_slice %231 {offsets = [0, 512], sizes = [2, 256], strides = [1, 1]} : vector<2x768xf32> to vector<2x256xf32>
    %235 = vector.extract_strided_slice %225 {offsets = [0, 768], sizes = [2, 256], strides = [1, 1]} : vector<2x1024xf32> to vector<2x256xf32>
    %236 = math.tanh %235 : vector<2x256xf32>
    %237 = arith.mulf %233, %216 : vector<2x256xf32>
    %238 = arith.mulf %232, %236 : vector<2x256xf32>
    %239 = arith.addf %237, %238 : vector<2x256xf32>
    %240 = math.tanh %239 : vector<2x256xf32>
    %241 = arith.mulf %234, %240 : vector<2x256xf32>
    %242 = arith.truncf %241 : vector<2x256xf32> to vector<2x256xbf16>
    %c10_i32 = arith.constant 10 : i32
    %c8_i32_49 = arith.constant 8 : i32
    %243 = arith.muli %c10_i32, %c8_i32_49 : i32
    %244 = tpu.assume_multiple %243, 8 : i32
    %cst_50 = arith.constant dense<0.000000e+00> : vector<2x1024xf32>
    %245 = tpu.matmul %242, %0, %cst_50 {dimension_numbers = #tpu.dot_dimension_numbers<[1], [0], [0], [1], [0, 0, 1, 1], [], []>} : vector<2x256xbf16>, vector<256x1024xbf16>, vector<2x1024xf32> -> vector<2x1024xf32>
    %246 = arith.index_cast %244 : i32 to index
    %c0_51 = arith.constant 0 : index
    %247 = vector.load %arg7[%246, %c0_51] : memref<264x1024xf32, #tpu.memory_space<vmem>>, vector<2x1024xf32>
    %248 = arith.addf %245, %247 : vector<2x1024xf32>
    %249 = vector.extract_strided_slice %248 {offsets = [0, 0], sizes = [2, 768], strides = [1, 1]} : vector<2x1024xf32> to vector<2x768xf32>
    %250 = arith.negf %249 : vector<2x768xf32>
    %251 = math.exp %250 : vector<2x768xf32>
    %cst_52 = arith.constant 1.000000e+00 : f32
    %252 = vector.broadcast %cst_52 : f32 to vector<2x768xf32>
    %253 = arith.addf %252, %251 : vector<2x768xf32>
    %254 = arith.divf %252, %253 : vector<2x768xf32>
    %255 = vector.extract_strided_slice %254 {offsets = [0, 0], sizes = [2, 256], strides = [1, 1]} : vector<2x768xf32> to vector<2x256xf32>
    %256 = vector.extract_strided_slice %254 {offsets = [0, 256], sizes = [2, 256], strides = [1, 1]} : vector<2x768xf32> to vector<2x256xf32>
    %257 = vector.extract_strided_slice %254 {offsets = [0, 512], sizes = [2, 256], strides = [1, 1]} : vector<2x768xf32> to vector<2x256xf32>
    %258 = vector.extract_strided_slice %248 {offsets = [0, 768], sizes = [2, 256], strides = [1, 1]} : vector<2x1024xf32> to vector<2x256xf32>
    %259 = math.tanh %258 : vector<2x256xf32>
    %260 = arith.mulf %256, %239 : vector<2x256xf32>
    %261 = arith.mulf %255, %259 : vector<2x256xf32>
    %262 = arith.addf %260, %261 : vector<2x256xf32>
    %263 = math.tanh %262 : vector<2x256xf32>
    %264 = arith.mulf %257, %263 : vector<2x256xf32>
    %265 = arith.truncf %264 : vector<2x256xf32> to vector<2x256xbf16>
    %c11_i32 = arith.constant 11 : i32
    %c8_i32_53 = arith.constant 8 : i32
    %266 = arith.muli %c11_i32, %c8_i32_53 : i32
    %267 = tpu.assume_multiple %266, 8 : i32
    %cst_54 = arith.constant dense<0.000000e+00> : vector<2x1024xf32>
    %268 = tpu.matmul %265, %0, %cst_54 {dimension_numbers = #tpu.dot_dimension_numbers<[1], [0], [0], [1], [0, 0, 1, 1], [], []>} : vector<2x256xbf16>, vector<256x1024xbf16>, vector<2x1024xf32> -> vector<2x1024xf32>
    %269 = arith.index_cast %267 : i32 to index
    %c0_55 = arith.constant 0 : index
    %270 = vector.load %arg7[%269, %c0_55] : memref<264x1024xf32, #tpu.memory_space<vmem>>, vector<2x1024xf32>
    %271 = arith.addf %268, %270 : vector<2x1024xf32>
    %272 = vector.extract_strided_slice %271 {offsets = [0, 0], sizes = [2, 768], strides = [1, 1]} : vector<2x1024xf32> to vector<2x768xf32>
    %273 = arith.negf %272 : vector<2x768xf32>
    %274 = math.exp %273 : vector<2x768xf32>
    %cst_56 = arith.constant 1.000000e+00 : f32
    %275 = vector.broadcast %cst_56 : f32 to vector<2x768xf32>
    %276 = arith.addf %275, %274 : vector<2x768xf32>
    %277 = arith.divf %275, %276 : vector<2x768xf32>
    %278 = vector.extract_strided_slice %277 {offsets = [0, 0], sizes = [2, 256], strides = [1, 1]} : vector<2x768xf32> to vector<2x256xf32>
    %279 = vector.extract_strided_slice %277 {offsets = [0, 256], sizes = [2, 256], strides = [1, 1]} : vector<2x768xf32> to vector<2x256xf32>
    %280 = vector.extract_strided_slice %277 {offsets = [0, 512], sizes = [2, 256], strides = [1, 1]} : vector<2x768xf32> to vector<2x256xf32>
    %281 = vector.extract_strided_slice %271 {offsets = [0, 768], sizes = [2, 256], strides = [1, 1]} : vector<2x1024xf32> to vector<2x256xf32>
    %282 = math.tanh %281 : vector<2x256xf32>
    %283 = arith.mulf %279, %262 : vector<2x256xf32>
    %284 = arith.mulf %278, %282 : vector<2x256xf32>
    %285 = arith.addf %283, %284 : vector<2x256xf32>
    %286 = math.tanh %285 : vector<2x256xf32>
    %287 = arith.mulf %280, %286 : vector<2x256xf32>
    %288 = arith.truncf %287 : vector<2x256xf32> to vector<2x256xbf16>
    %c12_i32 = arith.constant 12 : i32
    %c8_i32_57 = arith.constant 8 : i32
    %289 = arith.muli %c12_i32, %c8_i32_57 : i32
    %290 = tpu.assume_multiple %289, 8 : i32
    %cst_58 = arith.constant dense<0.000000e+00> : vector<2x1024xf32>
    %291 = tpu.matmul %288, %0, %cst_58 {dimension_numbers = #tpu.dot_dimension_numbers<[1], [0], [0], [1], [0, 0, 1, 1], [], []>} : vector<2x256xbf16>, vector<256x1024xbf16>, vector<2x1024xf32> -> vector<2x1024xf32>
    %292 = arith.index_cast %290 : i32 to index
    %c0_59 = arith.constant 0 : index
    %293 = vector.load %arg7[%292, %c0_59] : memref<264x1024xf32, #tpu.memory_space<vmem>>, vector<2x1024xf32>
    %294 = arith.addf %291, %293 : vector<2x1024xf32>
    %295 = vector.extract_strided_slice %294 {offsets = [0, 0], sizes = [2, 768], strides = [1, 1]} : vector<2x1024xf32> to vector<2x768xf32>
    %296 = arith.negf %295 : vector<2x768xf32>
    %297 = math.exp %296 : vector<2x768xf32>
    %cst_60 = arith.constant 1.000000e+00 : f32
    %298 = vector.broadcast %cst_60 : f32 to vector<2x768xf32>
    %299 = arith.addf %298, %297 : vector<2x768xf32>
    %300 = arith.divf %298, %299 : vector<2x768xf32>
    %301 = vector.extract_strided_slice %300 {offsets = [0, 0], sizes = [2, 256], strides = [1, 1]} : vector<2x768xf32> to vector<2x256xf32>
    %302 = vector.extract_strided_slice %300 {offsets = [0, 256], sizes = [2, 256], strides = [1, 1]} : vector<2x768xf32> to vector<2x256xf32>
    %303 = vector.extract_strided_slice %300 {offsets = [0, 512], sizes = [2, 256], strides = [1, 1]} : vector<2x768xf32> to vector<2x256xf32>
    %304 = vector.extract_strided_slice %294 {offsets = [0, 768], sizes = [2, 256], strides = [1, 1]} : vector<2x1024xf32> to vector<2x256xf32>
    %305 = math.tanh %304 : vector<2x256xf32>
    %306 = arith.mulf %302, %285 : vector<2x256xf32>
    %307 = arith.mulf %301, %305 : vector<2x256xf32>
    %308 = arith.addf %306, %307 : vector<2x256xf32>
    %309 = math.tanh %308 : vector<2x256xf32>
    %310 = arith.mulf %303, %309 : vector<2x256xf32>
    %311 = arith.truncf %310 : vector<2x256xf32> to vector<2x256xbf16>
    %c13_i32 = arith.constant 13 : i32
    %c8_i32_61 = arith.constant 8 : i32
    %312 = arith.muli %c13_i32, %c8_i32_61 : i32
    %313 = tpu.assume_multiple %312, 8 : i32
    %cst_62 = arith.constant dense<0.000000e+00> : vector<2x1024xf32>
    %314 = tpu.matmul %311, %0, %cst_62 {dimension_numbers = #tpu.dot_dimension_numbers<[1], [0], [0], [1], [0, 0, 1, 1], [], []>} : vector<2x256xbf16>, vector<256x1024xbf16>, vector<2x1024xf32> -> vector<2x1024xf32>
    %315 = arith.index_cast %313 : i32 to index
    %c0_63 = arith.constant 0 : index
    %316 = vector.load %arg7[%315, %c0_63] : memref<264x1024xf32, #tpu.memory_space<vmem>>, vector<2x1024xf32>
    %317 = arith.addf %314, %316 : vector<2x1024xf32>
    %318 = vector.extract_strided_slice %317 {offsets = [0, 0], sizes = [2, 768], strides = [1, 1]} : vector<2x1024xf32> to vector<2x768xf32>
    %319 = arith.negf %318 : vector<2x768xf32>
    %320 = math.exp %319 : vector<2x768xf32>
    %cst_64 = arith.constant 1.000000e+00 : f32
    %321 = vector.broadcast %cst_64 : f32 to vector<2x768xf32>
    %322 = arith.addf %321, %320 : vector<2x768xf32>
    %323 = arith.divf %321, %322 : vector<2x768xf32>
    %324 = vector.extract_strided_slice %323 {offsets = [0, 0], sizes = [2, 256], strides = [1, 1]} : vector<2x768xf32> to vector<2x256xf32>
    %325 = vector.extract_strided_slice %323 {offsets = [0, 256], sizes = [2, 256], strides = [1, 1]} : vector<2x768xf32> to vector<2x256xf32>
    %326 = vector.extract_strided_slice %323 {offsets = [0, 512], sizes = [2, 256], strides = [1, 1]} : vector<2x768xf32> to vector<2x256xf32>
    %327 = vector.extract_strided_slice %317 {offsets = [0, 768], sizes = [2, 256], strides = [1, 1]} : vector<2x1024xf32> to vector<2x256xf32>
    %328 = math.tanh %327 : vector<2x256xf32>
    %329 = arith.mulf %325, %308 : vector<2x256xf32>
    %330 = arith.mulf %324, %328 : vector<2x256xf32>
    %331 = arith.addf %329, %330 : vector<2x256xf32>
    %332 = math.tanh %331 : vector<2x256xf32>
    %333 = arith.mulf %326, %332 : vector<2x256xf32>
    %334 = arith.truncf %333 : vector<2x256xf32> to vector<2x256xbf16>
    %c14_i32 = arith.constant 14 : i32
    %c8_i32_65 = arith.constant 8 : i32
    %335 = arith.muli %c14_i32, %c8_i32_65 : i32
    %336 = tpu.assume_multiple %335, 8 : i32
    %cst_66 = arith.constant dense<0.000000e+00> : vector<2x1024xf32>
    %337 = tpu.matmul %334, %0, %cst_66 {dimension_numbers = #tpu.dot_dimension_numbers<[1], [0], [0], [1], [0, 0, 1, 1], [], []>} : vector<2x256xbf16>, vector<256x1024xbf16>, vector<2x1024xf32> -> vector<2x1024xf32>
    %338 = arith.index_cast %336 : i32 to index
    %c0_67 = arith.constant 0 : index
    %339 = vector.load %arg7[%338, %c0_67] : memref<264x1024xf32, #tpu.memory_space<vmem>>, vector<2x1024xf32>
    %340 = arith.addf %337, %339 : vector<2x1024xf32>
    %341 = vector.extract_strided_slice %340 {offsets = [0, 0], sizes = [2, 768], strides = [1, 1]} : vector<2x1024xf32> to vector<2x768xf32>
    %342 = arith.negf %341 : vector<2x768xf32>
    %343 = math.exp %342 : vector<2x768xf32>
    %cst_68 = arith.constant 1.000000e+00 : f32
    %344 = vector.broadcast %cst_68 : f32 to vector<2x768xf32>
    %345 = arith.addf %344, %343 : vector<2x768xf32>
    %346 = arith.divf %344, %345 : vector<2x768xf32>
    %347 = vector.extract_strided_slice %346 {offsets = [0, 0], sizes = [2, 256], strides = [1, 1]} : vector<2x768xf32> to vector<2x256xf32>
    %348 = vector.extract_strided_slice %346 {offsets = [0, 256], sizes = [2, 256], strides = [1, 1]} : vector<2x768xf32> to vector<2x256xf32>
    %349 = vector.extract_strided_slice %346 {offsets = [0, 512], sizes = [2, 256], strides = [1, 1]} : vector<2x768xf32> to vector<2x256xf32>
    %350 = vector.extract_strided_slice %340 {offsets = [0, 768], sizes = [2, 256], strides = [1, 1]} : vector<2x1024xf32> to vector<2x256xf32>
    %351 = math.tanh %350 : vector<2x256xf32>
    %352 = arith.mulf %348, %331 : vector<2x256xf32>
    %353 = arith.mulf %347, %351 : vector<2x256xf32>
    %354 = arith.addf %352, %353 : vector<2x256xf32>
    %355 = math.tanh %354 : vector<2x256xf32>
    %356 = arith.mulf %349, %355 : vector<2x256xf32>
    %357 = arith.truncf %356 : vector<2x256xf32> to vector<2x256xbf16>
    %c15_i32 = arith.constant 15 : i32
    %c8_i32_69 = arith.constant 8 : i32
    %358 = arith.muli %c15_i32, %c8_i32_69 : i32
    %359 = tpu.assume_multiple %358, 8 : i32
    %cst_70 = arith.constant dense<0.000000e+00> : vector<2x1024xf32>
    %360 = tpu.matmul %357, %0, %cst_70 {dimension_numbers = #tpu.dot_dimension_numbers<[1], [0], [0], [1], [0, 0, 1, 1], [], []>} : vector<2x256xbf16>, vector<256x1024xbf16>, vector<2x1024xf32> -> vector<2x1024xf32>
    %361 = arith.index_cast %359 : i32 to index
    %c0_71 = arith.constant 0 : index
    %362 = vector.load %arg7[%361, %c0_71] : memref<264x1024xf32, #tpu.memory_space<vmem>>, vector<2x1024xf32>
    %363 = arith.addf %360, %362 : vector<2x1024xf32>
    %364 = vector.extract_strided_slice %363 {offsets = [0, 0], sizes = [2, 768], strides = [1, 1]} : vector<2x1024xf32> to vector<2x768xf32>
    %365 = arith.negf %364 : vector<2x768xf32>
    %366 = math.exp %365 : vector<2x768xf32>
    %cst_72 = arith.constant 1.000000e+00 : f32
    %367 = vector.broadcast %cst_72 : f32 to vector<2x768xf32>
    %368 = arith.addf %367, %366 : vector<2x768xf32>
    %369 = arith.divf %367, %368 : vector<2x768xf32>
    %370 = vector.extract_strided_slice %369 {offsets = [0, 0], sizes = [2, 256], strides = [1, 1]} : vector<2x768xf32> to vector<2x256xf32>
    %371 = vector.extract_strided_slice %369 {offsets = [0, 256], sizes = [2, 256], strides = [1, 1]} : vector<2x768xf32> to vector<2x256xf32>
    %372 = vector.extract_strided_slice %369 {offsets = [0, 512], sizes = [2, 256], strides = [1, 1]} : vector<2x768xf32> to vector<2x256xf32>
    %373 = vector.extract_strided_slice %363 {offsets = [0, 768], sizes = [2, 256], strides = [1, 1]} : vector<2x1024xf32> to vector<2x256xf32>
    %374 = math.tanh %373 : vector<2x256xf32>
    %375 = arith.mulf %371, %354 : vector<2x256xf32>
    %376 = arith.mulf %370, %374 : vector<2x256xf32>
    %377 = arith.addf %375, %376 : vector<2x256xf32>
    %378 = math.tanh %377 : vector<2x256xf32>
    %379 = arith.mulf %372, %378 : vector<2x256xf32>
    %380 = arith.truncf %379 : vector<2x256xf32> to vector<2x256xbf16>
    %c16_i32 = arith.constant 16 : i32
    %c8_i32_73 = arith.constant 8 : i32
    %381 = arith.muli %c16_i32, %c8_i32_73 : i32
    %382 = tpu.assume_multiple %381, 8 : i32
    %cst_74 = arith.constant dense<0.000000e+00> : vector<2x1024xf32>
    %383 = tpu.matmul %380, %0, %cst_74 {dimension_numbers = #tpu.dot_dimension_numbers<[1], [0], [0], [1], [0, 0, 1, 1], [], []>} : vector<2x256xbf16>, vector<256x1024xbf16>, vector<2x1024xf32> -> vector<2x1024xf32>
    %384 = arith.index_cast %382 : i32 to index
    %c0_75 = arith.constant 0 : index
    %385 = vector.load %arg7[%384, %c0_75] : memref<264x1024xf32, #tpu.memory_space<vmem>>, vector<2x1024xf32>
    %386 = arith.addf %383, %385 : vector<2x1024xf32>
    %387 = vector.extract_strided_slice %386 {offsets = [0, 0], sizes = [2, 768], strides = [1, 1]} : vector<2x1024xf32> to vector<2x768xf32>
    %388 = arith.negf %387 : vector<2x768xf32>
    %389 = math.exp %388 : vector<2x768xf32>
    %cst_76 = arith.constant 1.000000e+00 : f32
    %390 = vector.broadcast %cst_76 : f32 to vector<2x768xf32>
    %391 = arith.addf %390, %389 : vector<2x768xf32>
    %392 = arith.divf %390, %391 : vector<2x768xf32>
    %393 = vector.extract_strided_slice %392 {offsets = [0, 0], sizes = [2, 256], strides = [1, 1]} : vector<2x768xf32> to vector<2x256xf32>
    %394 = vector.extract_strided_slice %392 {offsets = [0, 256], sizes = [2, 256], strides = [1, 1]} : vector<2x768xf32> to vector<2x256xf32>
    %395 = vector.extract_strided_slice %392 {offsets = [0, 512], sizes = [2, 256], strides = [1, 1]} : vector<2x768xf32> to vector<2x256xf32>
    %396 = vector.extract_strided_slice %386 {offsets = [0, 768], sizes = [2, 256], strides = [1, 1]} : vector<2x1024xf32> to vector<2x256xf32>
    %397 = math.tanh %396 : vector<2x256xf32>
    %398 = arith.mulf %394, %377 : vector<2x256xf32>
    %399 = arith.mulf %393, %397 : vector<2x256xf32>
    %400 = arith.addf %398, %399 : vector<2x256xf32>
    %401 = math.tanh %400 : vector<2x256xf32>
    %402 = arith.mulf %395, %401 : vector<2x256xf32>
    %403 = arith.truncf %402 : vector<2x256xf32> to vector<2x256xbf16>
    %c17_i32 = arith.constant 17 : i32
    %c8_i32_77 = arith.constant 8 : i32
    %404 = arith.muli %c17_i32, %c8_i32_77 : i32
    %405 = tpu.assume_multiple %404, 8 : i32
    %cst_78 = arith.constant dense<0.000000e+00> : vector<2x1024xf32>
    %406 = tpu.matmul %403, %0, %cst_78 {dimension_numbers = #tpu.dot_dimension_numbers<[1], [0], [0], [1], [0, 0, 1, 1], [], []>} : vector<2x256xbf16>, vector<256x1024xbf16>, vector<2x1024xf32> -> vector<2x1024xf32>
    %407 = arith.index_cast %405 : i32 to index
    %c0_79 = arith.constant 0 : index
    %408 = vector.load %arg7[%407, %c0_79] : memref<264x1024xf32, #tpu.memory_space<vmem>>, vector<2x1024xf32>
    %409 = arith.addf %406, %408 : vector<2x1024xf32>
    %410 = vector.extract_strided_slice %409 {offsets = [0, 0], sizes = [2, 768], strides = [1, 1]} : vector<2x1024xf32> to vector<2x768xf32>
    %411 = arith.negf %410 : vector<2x768xf32>
    %412 = math.exp %411 : vector<2x768xf32>
    %cst_80 = arith.constant 1.000000e+00 : f32
    %413 = vector.broadcast %cst_80 : f32 to vector<2x768xf32>
    %414 = arith.addf %413, %412 : vector<2x768xf32>
    %415 = arith.divf %413, %414 : vector<2x768xf32>
    %416 = vector.extract_strided_slice %415 {offsets = [0, 0], sizes = [2, 256], strides = [1, 1]} : vector<2x768xf32> to vector<2x256xf32>
    %417 = vector.extract_strided_slice %415 {offsets = [0, 256], sizes = [2, 256], strides = [1, 1]} : vector<2x768xf32> to vector<2x256xf32>
    %418 = vector.extract_strided_slice %415 {offsets = [0, 512], sizes = [2, 256], strides = [1, 1]} : vector<2x768xf32> to vector<2x256xf32>
    %419 = vector.extract_strided_slice %409 {offsets = [0, 768], sizes = [2, 256], strides = [1, 1]} : vector<2x1024xf32> to vector<2x256xf32>
    %420 = math.tanh %419 : vector<2x256xf32>
    %421 = arith.mulf %417, %400 : vector<2x256xf32>
    %422 = arith.mulf %416, %420 : vector<2x256xf32>
    %423 = arith.addf %421, %422 : vector<2x256xf32>
    %424 = math.tanh %423 : vector<2x256xf32>
    %425 = arith.mulf %418, %424 : vector<2x256xf32>
    %426 = arith.truncf %425 : vector<2x256xf32> to vector<2x256xbf16>
    %c18_i32 = arith.constant 18 : i32
    %c8_i32_81 = arith.constant 8 : i32
    %427 = arith.muli %c18_i32, %c8_i32_81 : i32
    %428 = tpu.assume_multiple %427, 8 : i32
    %cst_82 = arith.constant dense<0.000000e+00> : vector<2x1024xf32>
    %429 = tpu.matmul %426, %0, %cst_82 {dimension_numbers = #tpu.dot_dimension_numbers<[1], [0], [0], [1], [0, 0, 1, 1], [], []>} : vector<2x256xbf16>, vector<256x1024xbf16>, vector<2x1024xf32> -> vector<2x1024xf32>
    %430 = arith.index_cast %428 : i32 to index
    %c0_83 = arith.constant 0 : index
    %431 = vector.load %arg7[%430, %c0_83] : memref<264x1024xf32, #tpu.memory_space<vmem>>, vector<2x1024xf32>
    %432 = arith.addf %429, %431 : vector<2x1024xf32>
    %433 = vector.extract_strided_slice %432 {offsets = [0, 0], sizes = [2, 768], strides = [1, 1]} : vector<2x1024xf32> to vector<2x768xf32>
    %434 = arith.negf %433 : vector<2x768xf32>
    %435 = math.exp %434 : vector<2x768xf32>
    %cst_84 = arith.constant 1.000000e+00 : f32
    %436 = vector.broadcast %cst_84 : f32 to vector<2x768xf32>
    %437 = arith.addf %436, %435 : vector<2x768xf32>
    %438 = arith.divf %436, %437 : vector<2x768xf32>
    %439 = vector.extract_strided_slice %438 {offsets = [0, 0], sizes = [2, 256], strides = [1, 1]} : vector<2x768xf32> to vector<2x256xf32>
    %440 = vector.extract_strided_slice %438 {offsets = [0, 256], sizes = [2, 256], strides = [1, 1]} : vector<2x768xf32> to vector<2x256xf32>
    %441 = vector.extract_strided_slice %438 {offsets = [0, 512], sizes = [2, 256], strides = [1, 1]} : vector<2x768xf32> to vector<2x256xf32>
    %442 = vector.extract_strided_slice %432 {offsets = [0, 768], sizes = [2, 256], strides = [1, 1]} : vector<2x1024xf32> to vector<2x256xf32>
    %443 = math.tanh %442 : vector<2x256xf32>
    %444 = arith.mulf %440, %423 : vector<2x256xf32>
    %445 = arith.mulf %439, %443 : vector<2x256xf32>
    %446 = arith.addf %444, %445 : vector<2x256xf32>
    %447 = math.tanh %446 : vector<2x256xf32>
    %448 = arith.mulf %441, %447 : vector<2x256xf32>
    %449 = arith.truncf %448 : vector<2x256xf32> to vector<2x256xbf16>
    %c19_i32 = arith.constant 19 : i32
    %c8_i32_85 = arith.constant 8 : i32
    %450 = arith.muli %c19_i32, %c8_i32_85 : i32
    %451 = tpu.assume_multiple %450, 8 : i32
    %cst_86 = arith.constant dense<0.000000e+00> : vector<2x1024xf32>
    %452 = tpu.matmul %449, %0, %cst_86 {dimension_numbers = #tpu.dot_dimension_numbers<[1], [0], [0], [1], [0, 0, 1, 1], [], []>} : vector<2x256xbf16>, vector<256x1024xbf16>, vector<2x1024xf32> -> vector<2x1024xf32>
    %453 = arith.index_cast %451 : i32 to index
    %c0_87 = arith.constant 0 : index
    %454 = vector.load %arg7[%453, %c0_87] : memref<264x1024xf32, #tpu.memory_space<vmem>>, vector<2x1024xf32>
    %455 = arith.addf %452, %454 : vector<2x1024xf32>
    %456 = vector.extract_strided_slice %455 {offsets = [0, 0], sizes = [2, 768], strides = [1, 1]} : vector<2x1024xf32> to vector<2x768xf32>
    %457 = arith.negf %456 : vector<2x768xf32>
    %458 = math.exp %457 : vector<2x768xf32>
    %cst_88 = arith.constant 1.000000e+00 : f32
    %459 = vector.broadcast %cst_88 : f32 to vector<2x768xf32>
    %460 = arith.addf %459, %458 : vector<2x768xf32>
    %461 = arith.divf %459, %460 : vector<2x768xf32>
    %462 = vector.extract_strided_slice %461 {offsets = [0, 0], sizes = [2, 256], strides = [1, 1]} : vector<2x768xf32> to vector<2x256xf32>
    %463 = vector.extract_strided_slice %461 {offsets = [0, 256], sizes = [2, 256], strides = [1, 1]} : vector<2x768xf32> to vector<2x256xf32>
    %464 = vector.extract_strided_slice %461 {offsets = [0, 512], sizes = [2, 256], strides = [1, 1]} : vector<2x768xf32> to vector<2x256xf32>
    %465 = vector.extract_strided_slice %455 {offsets = [0, 768], sizes = [2, 256], strides = [1, 1]} : vector<2x1024xf32> to vector<2x256xf32>
    %466 = math.tanh %465 : vector<2x256xf32>
    %467 = arith.mulf %463, %446 : vector<2x256xf32>
    %468 = arith.mulf %462, %466 : vector<2x256xf32>
    %469 = arith.addf %467, %468 : vector<2x256xf32>
    %470 = math.tanh %469 : vector<2x256xf32>
    %471 = arith.mulf %464, %470 : vector<2x256xf32>
    %472 = arith.truncf %471 : vector<2x256xf32> to vector<2x256xbf16>
    %c20_i32 = arith.constant 20 : i32
    %c8_i32_89 = arith.constant 8 : i32
    %473 = arith.muli %c20_i32, %c8_i32_89 : i32
    %474 = tpu.assume_multiple %473, 8 : i32
    %cst_90 = arith.constant dense<0.000000e+00> : vector<2x1024xf32>
    %475 = tpu.matmul %472, %0, %cst_90 {dimension_numbers = #tpu.dot_dimension_numbers<[1], [0], [0], [1], [0, 0, 1, 1], [], []>} : vector<2x256xbf16>, vector<256x1024xbf16>, vector<2x1024xf32> -> vector<2x1024xf32>
    %476 = arith.index_cast %474 : i32 to index
    %c0_91 = arith.constant 0 : index
    %477 = vector.load %arg7[%476, %c0_91] : memref<264x1024xf32, #tpu.memory_space<vmem>>, vector<2x1024xf32>
    %478 = arith.addf %475, %477 : vector<2x1024xf32>
    %479 = vector.extract_strided_slice %478 {offsets = [0, 0], sizes = [2, 768], strides = [1, 1]} : vector<2x1024xf32> to vector<2x768xf32>
    %480 = arith.negf %479 : vector<2x768xf32>
    %481 = math.exp %480 : vector<2x768xf32>
    %cst_92 = arith.constant 1.000000e+00 : f32
    %482 = vector.broadcast %cst_92 : f32 to vector<2x768xf32>
    %483 = arith.addf %482, %481 : vector<2x768xf32>
    %484 = arith.divf %482, %483 : vector<2x768xf32>
    %485 = vector.extract_strided_slice %484 {offsets = [0, 0], sizes = [2, 256], strides = [1, 1]} : vector<2x768xf32> to vector<2x256xf32>
    %486 = vector.extract_strided_slice %484 {offsets = [0, 256], sizes = [2, 256], strides = [1, 1]} : vector<2x768xf32> to vector<2x256xf32>
    %487 = vector.extract_strided_slice %484 {offsets = [0, 512], sizes = [2, 256], strides = [1, 1]} : vector<2x768xf32> to vector<2x256xf32>
    %488 = vector.extract_strided_slice %478 {offsets = [0, 768], sizes = [2, 256], strides = [1, 1]} : vector<2x1024xf32> to vector<2x256xf32>
    %489 = math.tanh %488 : vector<2x256xf32>
    %490 = arith.mulf %486, %469 : vector<2x256xf32>
    %491 = arith.mulf %485, %489 : vector<2x256xf32>
    %492 = arith.addf %490, %491 : vector<2x256xf32>
    %493 = math.tanh %492 : vector<2x256xf32>
    %494 = arith.mulf %487, %493 : vector<2x256xf32>
    %495 = arith.truncf %494 : vector<2x256xf32> to vector<2x256xbf16>
    %c21_i32 = arith.constant 21 : i32
    %c8_i32_93 = arith.constant 8 : i32
    %496 = arith.muli %c21_i32, %c8_i32_93 : i32
    %497 = tpu.assume_multiple %496, 8 : i32
    %cst_94 = arith.constant dense<0.000000e+00> : vector<2x1024xf32>
    %498 = tpu.matmul %495, %0, %cst_94 {dimension_numbers = #tpu.dot_dimension_numbers<[1], [0], [0], [1], [0, 0, 1, 1], [], []>} : vector<2x256xbf16>, vector<256x1024xbf16>, vector<2x1024xf32> -> vector<2x1024xf32>
    %499 = arith.index_cast %497 : i32 to index
    %c0_95 = arith.constant 0 : index
    %500 = vector.load %arg7[%499, %c0_95] : memref<264x1024xf32, #tpu.memory_space<vmem>>, vector<2x1024xf32>
    %501 = arith.addf %498, %500 : vector<2x1024xf32>
    %502 = vector.extract_strided_slice %501 {offsets = [0, 0], sizes = [2, 768], strides = [1, 1]} : vector<2x1024xf32> to vector<2x768xf32>
    %503 = arith.negf %502 : vector<2x768xf32>
    %504 = math.exp %503 : vector<2x768xf32>
    %cst_96 = arith.constant 1.000000e+00 : f32
    %505 = vector.broadcast %cst_96 : f32 to vector<2x768xf32>
    %506 = arith.addf %505, %504 : vector<2x768xf32>
    %507 = arith.divf %505, %506 : vector<2x768xf32>
    %508 = vector.extract_strided_slice %507 {offsets = [0, 0], sizes = [2, 256], strides = [1, 1]} : vector<2x768xf32> to vector<2x256xf32>
    %509 = vector.extract_strided_slice %507 {offsets = [0, 256], sizes = [2, 256], strides = [1, 1]} : vector<2x768xf32> to vector<2x256xf32>
    %510 = vector.extract_strided_slice %507 {offsets = [0, 512], sizes = [2, 256], strides = [1, 1]} : vector<2x768xf32> to vector<2x256xf32>
    %511 = vector.extract_strided_slice %501 {offsets = [0, 768], sizes = [2, 256], strides = [1, 1]} : vector<2x1024xf32> to vector<2x256xf32>
    %512 = math.tanh %511 : vector<2x256xf32>
    %513 = arith.mulf %509, %492 : vector<2x256xf32>
    %514 = arith.mulf %508, %512 : vector<2x256xf32>
    %515 = arith.addf %513, %514 : vector<2x256xf32>
    %516 = math.tanh %515 : vector<2x256xf32>
    %517 = arith.mulf %510, %516 : vector<2x256xf32>
    %518 = arith.truncf %517 : vector<2x256xf32> to vector<2x256xbf16>
    %c22_i32 = arith.constant 22 : i32
    %c8_i32_97 = arith.constant 8 : i32
    %519 = arith.muli %c22_i32, %c8_i32_97 : i32
    %520 = tpu.assume_multiple %519, 8 : i32
    %cst_98 = arith.constant dense<0.000000e+00> : vector<2x1024xf32>
    %521 = tpu.matmul %518, %0, %cst_98 {dimension_numbers = #tpu.dot_dimension_numbers<[1], [0], [0], [1], [0, 0, 1, 1], [], []>} : vector<2x256xbf16>, vector<256x1024xbf16>, vector<2x1024xf32> -> vector<2x1024xf32>
    %522 = arith.index_cast %520 : i32 to index
    %c0_99 = arith.constant 0 : index
    %523 = vector.load %arg7[%522, %c0_99] : memref<264x1024xf32, #tpu.memory_space<vmem>>, vector<2x1024xf32>
    %524 = arith.addf %521, %523 : vector<2x1024xf32>
    %525 = vector.extract_strided_slice %524 {offsets = [0, 0], sizes = [2, 768], strides = [1, 1]} : vector<2x1024xf32> to vector<2x768xf32>
    %526 = arith.negf %525 : vector<2x768xf32>
    %527 = math.exp %526 : vector<2x768xf32>
    %cst_100 = arith.constant 1.000000e+00 : f32
    %528 = vector.broadcast %cst_100 : f32 to vector<2x768xf32>
    %529 = arith.addf %528, %527 : vector<2x768xf32>
    %530 = arith.divf %528, %529 : vector<2x768xf32>
    %531 = vector.extract_strided_slice %530 {offsets = [0, 0], sizes = [2, 256], strides = [1, 1]} : vector<2x768xf32> to vector<2x256xf32>
    %532 = vector.extract_strided_slice %530 {offsets = [0, 256], sizes = [2, 256], strides = [1, 1]} : vector<2x768xf32> to vector<2x256xf32>
    %533 = vector.extract_strided_slice %530 {offsets = [0, 512], sizes = [2, 256], strides = [1, 1]} : vector<2x768xf32> to vector<2x256xf32>
    %534 = vector.extract_strided_slice %524 {offsets = [0, 768], sizes = [2, 256], strides = [1, 1]} : vector<2x1024xf32> to vector<2x256xf32>
    %535 = math.tanh %534 : vector<2x256xf32>
    %536 = arith.mulf %532, %515 : vector<2x256xf32>
    %537 = arith.mulf %531, %535 : vector<2x256xf32>
    %538 = arith.addf %536, %537 : vector<2x256xf32>
    %539 = math.tanh %538 : vector<2x256xf32>
    %540 = arith.mulf %533, %539 : vector<2x256xf32>
    %541 = arith.truncf %540 : vector<2x256xf32> to vector<2x256xbf16>
    %c23_i32 = arith.constant 23 : i32
    %c8_i32_101 = arith.constant 8 : i32
    %542 = arith.muli %c23_i32, %c8_i32_101 : i32
    %543 = tpu.assume_multiple %542, 8 : i32
    %cst_102 = arith.constant dense<0.000000e+00> : vector<2x1024xf32>
    %544 = tpu.matmul %541, %0, %cst_102 {dimension_numbers = #tpu.dot_dimension_numbers<[1], [0], [0], [1], [0, 0, 1, 1], [], []>} : vector<2x256xbf16>, vector<256x1024xbf16>, vector<2x1024xf32> -> vector<2x1024xf32>
    %545 = arith.index_cast %543 : i32 to index
    %c0_103 = arith.constant 0 : index
    %546 = vector.load %arg7[%545, %c0_103] : memref<264x1024xf32, #tpu.memory_space<vmem>>, vector<2x1024xf32>
    %547 = arith.addf %544, %546 : vector<2x1024xf32>
    %548 = vector.extract_strided_slice %547 {offsets = [0, 0], sizes = [2, 768], strides = [1, 1]} : vector<2x1024xf32> to vector<2x768xf32>
    %549 = arith.negf %548 : vector<2x768xf32>
    %550 = math.exp %549 : vector<2x768xf32>
    %cst_104 = arith.constant 1.000000e+00 : f32
    %551 = vector.broadcast %cst_104 : f32 to vector<2x768xf32>
    %552 = arith.addf %551, %550 : vector<2x768xf32>
    %553 = arith.divf %551, %552 : vector<2x768xf32>
    %554 = vector.extract_strided_slice %553 {offsets = [0, 0], sizes = [2, 256], strides = [1, 1]} : vector<2x768xf32> to vector<2x256xf32>
    %555 = vector.extract_strided_slice %553 {offsets = [0, 256], sizes = [2, 256], strides = [1, 1]} : vector<2x768xf32> to vector<2x256xf32>
    %556 = vector.extract_strided_slice %553 {offsets = [0, 512], sizes = [2, 256], strides = [1, 1]} : vector<2x768xf32> to vector<2x256xf32>
    %557 = vector.extract_strided_slice %547 {offsets = [0, 768], sizes = [2, 256], strides = [1, 1]} : vector<2x1024xf32> to vector<2x256xf32>
    %558 = math.tanh %557 : vector<2x256xf32>
    %559 = arith.mulf %555, %538 : vector<2x256xf32>
    %560 = arith.mulf %554, %558 : vector<2x256xf32>
    %561 = arith.addf %559, %560 : vector<2x256xf32>
    %562 = math.tanh %561 : vector<2x256xf32>
    %563 = arith.mulf %556, %562 : vector<2x256xf32>
    %564 = arith.truncf %563 : vector<2x256xf32> to vector<2x256xbf16>
    %c24_i32 = arith.constant 24 : i32
    %c8_i32_105 = arith.constant 8 : i32
    %565 = arith.muli %c24_i32, %c8_i32_105 : i32
    %566 = tpu.assume_multiple %565, 8 : i32
    %cst_106 = arith.constant dense<0.000000e+00> : vector<2x1024xf32>
    %567 = tpu.matmul %564, %0, %cst_106 {dimension_numbers = #tpu.dot_dimension_numbers<[1], [0], [0], [1], [0, 0, 1, 1], [], []>} : vector<2x256xbf16>, vector<256x1024xbf16>, vector<2x1024xf32> -> vector<2x1024xf32>
    %568 = arith.index_cast %566 : i32 to index
    %c0_107 = arith.constant 0 : index
    %569 = vector.load %arg7[%568, %c0_107] : memref<264x1024xf32, #tpu.memory_space<vmem>>, vector<2x1024xf32>
    %570 = arith.addf %567, %569 : vector<2x1024xf32>
    %571 = vector.extract_strided_slice %570 {offsets = [0, 0], sizes = [2, 768], strides = [1, 1]} : vector<2x1024xf32> to vector<2x768xf32>
    %572 = arith.negf %571 : vector<2x768xf32>
    %573 = math.exp %572 : vector<2x768xf32>
    %cst_108 = arith.constant 1.000000e+00 : f32
    %574 = vector.broadcast %cst_108 : f32 to vector<2x768xf32>
    %575 = arith.addf %574, %573 : vector<2x768xf32>
    %576 = arith.divf %574, %575 : vector<2x768xf32>
    %577 = vector.extract_strided_slice %576 {offsets = [0, 0], sizes = [2, 256], strides = [1, 1]} : vector<2x768xf32> to vector<2x256xf32>
    %578 = vector.extract_strided_slice %576 {offsets = [0, 256], sizes = [2, 256], strides = [1, 1]} : vector<2x768xf32> to vector<2x256xf32>
    %579 = vector.extract_strided_slice %576 {offsets = [0, 512], sizes = [2, 256], strides = [1, 1]} : vector<2x768xf32> to vector<2x256xf32>
    %580 = vector.extract_strided_slice %570 {offsets = [0, 768], sizes = [2, 256], strides = [1, 1]} : vector<2x1024xf32> to vector<2x256xf32>
    %581 = math.tanh %580 : vector<2x256xf32>
    %582 = arith.mulf %578, %561 : vector<2x256xf32>
    %583 = arith.mulf %577, %581 : vector<2x256xf32>
    %584 = arith.addf %582, %583 : vector<2x256xf32>
    %585 = math.tanh %584 : vector<2x256xf32>
    %586 = arith.mulf %579, %585 : vector<2x256xf32>
    %587 = arith.truncf %586 : vector<2x256xf32> to vector<2x256xbf16>
    %c25_i32 = arith.constant 25 : i32
    %c8_i32_109 = arith.constant 8 : i32
    %588 = arith.muli %c25_i32, %c8_i32_109 : i32
    %589 = tpu.assume_multiple %588, 8 : i32
    %cst_110 = arith.constant dense<0.000000e+00> : vector<2x1024xf32>
    %590 = tpu.matmul %587, %0, %cst_110 {dimension_numbers = #tpu.dot_dimension_numbers<[1], [0], [0], [1], [0, 0, 1, 1], [], []>} : vector<2x256xbf16>, vector<256x1024xbf16>, vector<2x1024xf32> -> vector<2x1024xf32>
    %591 = arith.index_cast %589 : i32 to index
    %c0_111 = arith.constant 0 : index
    %592 = vector.load %arg7[%591, %c0_111] : memref<264x1024xf32, #tpu.memory_space<vmem>>, vector<2x1024xf32>
    %593 = arith.addf %590, %592 : vector<2x1024xf32>
    %594 = vector.extract_strided_slice %593 {offsets = [0, 0], sizes = [2, 768], strides = [1, 1]} : vector<2x1024xf32> to vector<2x768xf32>
    %595 = arith.negf %594 : vector<2x768xf32>
    %596 = math.exp %595 : vector<2x768xf32>
    %cst_112 = arith.constant 1.000000e+00 : f32
    %597 = vector.broadcast %cst_112 : f32 to vector<2x768xf32>
    %598 = arith.addf %597, %596 : vector<2x768xf32>
    %599 = arith.divf %597, %598 : vector<2x768xf32>
    %600 = vector.extract_strided_slice %599 {offsets = [0, 0], sizes = [2, 256], strides = [1, 1]} : vector<2x768xf32> to vector<2x256xf32>
    %601 = vector.extract_strided_slice %599 {offsets = [0, 256], sizes = [2, 256], strides = [1, 1]} : vector<2x768xf32> to vector<2x256xf32>
    %602 = vector.extract_strided_slice %599 {offsets = [0, 512], sizes = [2, 256], strides = [1, 1]} : vector<2x768xf32> to vector<2x256xf32>
    %603 = vector.extract_strided_slice %593 {offsets = [0, 768], sizes = [2, 256], strides = [1, 1]} : vector<2x1024xf32> to vector<2x256xf32>
    %604 = math.tanh %603 : vector<2x256xf32>
    %605 = arith.mulf %601, %584 : vector<2x256xf32>
    %606 = arith.mulf %600, %604 : vector<2x256xf32>
    %607 = arith.addf %605, %606 : vector<2x256xf32>
    %608 = math.tanh %607 : vector<2x256xf32>
    %609 = arith.mulf %602, %608 : vector<2x256xf32>
    %610 = arith.truncf %609 : vector<2x256xf32> to vector<2x256xbf16>
    %c26_i32 = arith.constant 26 : i32
    %c8_i32_113 = arith.constant 8 : i32
    %611 = arith.muli %c26_i32, %c8_i32_113 : i32
    %612 = tpu.assume_multiple %611, 8 : i32
    %cst_114 = arith.constant dense<0.000000e+00> : vector<2x1024xf32>
    %613 = tpu.matmul %610, %0, %cst_114 {dimension_numbers = #tpu.dot_dimension_numbers<[1], [0], [0], [1], [0, 0, 1, 1], [], []>} : vector<2x256xbf16>, vector<256x1024xbf16>, vector<2x1024xf32> -> vector<2x1024xf32>
    %614 = arith.index_cast %612 : i32 to index
    %c0_115 = arith.constant 0 : index
    %615 = vector.load %arg7[%614, %c0_115] : memref<264x1024xf32, #tpu.memory_space<vmem>>, vector<2x1024xf32>
    %616 = arith.addf %613, %615 : vector<2x1024xf32>
    %617 = vector.extract_strided_slice %616 {offsets = [0, 0], sizes = [2, 768], strides = [1, 1]} : vector<2x1024xf32> to vector<2x768xf32>
    %618 = arith.negf %617 : vector<2x768xf32>
    %619 = math.exp %618 : vector<2x768xf32>
    %cst_116 = arith.constant 1.000000e+00 : f32
    %620 = vector.broadcast %cst_116 : f32 to vector<2x768xf32>
    %621 = arith.addf %620, %619 : vector<2x768xf32>
    %622 = arith.divf %620, %621 : vector<2x768xf32>
    %623 = vector.extract_strided_slice %622 {offsets = [0, 0], sizes = [2, 256], strides = [1, 1]} : vector<2x768xf32> to vector<2x256xf32>
    %624 = vector.extract_strided_slice %622 {offsets = [0, 256], sizes = [2, 256], strides = [1, 1]} : vector<2x768xf32> to vector<2x256xf32>
    %625 = vector.extract_strided_slice %622 {offsets = [0, 512], sizes = [2, 256], strides = [1, 1]} : vector<2x768xf32> to vector<2x256xf32>
    %626 = vector.extract_strided_slice %616 {offsets = [0, 768], sizes = [2, 256], strides = [1, 1]} : vector<2x1024xf32> to vector<2x256xf32>
    %627 = math.tanh %626 : vector<2x256xf32>
    %628 = arith.mulf %624, %607 : vector<2x256xf32>
    %629 = arith.mulf %623, %627 : vector<2x256xf32>
    %630 = arith.addf %628, %629 : vector<2x256xf32>
    %631 = math.tanh %630 : vector<2x256xf32>
    %632 = arith.mulf %625, %631 : vector<2x256xf32>
    %633 = arith.truncf %632 : vector<2x256xf32> to vector<2x256xbf16>
    %c27_i32 = arith.constant 27 : i32
    %c8_i32_117 = arith.constant 8 : i32
    %634 = arith.muli %c27_i32, %c8_i32_117 : i32
    %635 = tpu.assume_multiple %634, 8 : i32
    %cst_118 = arith.constant dense<0.000000e+00> : vector<2x1024xf32>
    %636 = tpu.matmul %633, %0, %cst_118 {dimension_numbers = #tpu.dot_dimension_numbers<[1], [0], [0], [1], [0, 0, 1, 1], [], []>} : vector<2x256xbf16>, vector<256x1024xbf16>, vector<2x1024xf32> -> vector<2x1024xf32>
    %637 = arith.index_cast %635 : i32 to index
    %c0_119 = arith.constant 0 : index
    %638 = vector.load %arg7[%637, %c0_119] : memref<264x1024xf32, #tpu.memory_space<vmem>>, vector<2x1024xf32>
    %639 = arith.addf %636, %638 : vector<2x1024xf32>
    %640 = vector.extract_strided_slice %639 {offsets = [0, 0], sizes = [2, 768], strides = [1, 1]} : vector<2x1024xf32> to vector<2x768xf32>
    %641 = arith.negf %640 : vector<2x768xf32>
    %642 = math.exp %641 : vector<2x768xf32>
    %cst_120 = arith.constant 1.000000e+00 : f32
    %643 = vector.broadcast %cst_120 : f32 to vector<2x768xf32>
    %644 = arith.addf %643, %642 : vector<2x768xf32>
    %645 = arith.divf %643, %644 : vector<2x768xf32>
    %646 = vector.extract_strided_slice %645 {offsets = [0, 0], sizes = [2, 256], strides = [1, 1]} : vector<2x768xf32> to vector<2x256xf32>
    %647 = vector.extract_strided_slice %645 {offsets = [0, 256], sizes = [2, 256], strides = [1, 1]} : vector<2x768xf32> to vector<2x256xf32>
    %648 = vector.extract_strided_slice %645 {offsets = [0, 512], sizes = [2, 256], strides = [1, 1]} : vector<2x768xf32> to vector<2x256xf32>
    %649 = vector.extract_strided_slice %639 {offsets = [0, 768], sizes = [2, 256], strides = [1, 1]} : vector<2x1024xf32> to vector<2x256xf32>
    %650 = math.tanh %649 : vector<2x256xf32>
    %651 = arith.mulf %647, %630 : vector<2x256xf32>
    %652 = arith.mulf %646, %650 : vector<2x256xf32>
    %653 = arith.addf %651, %652 : vector<2x256xf32>
    %654 = math.tanh %653 : vector<2x256xf32>
    %655 = arith.mulf %648, %654 : vector<2x256xf32>
    %656 = arith.truncf %655 : vector<2x256xf32> to vector<2x256xbf16>
    %c28_i32 = arith.constant 28 : i32
    %c8_i32_121 = arith.constant 8 : i32
    %657 = arith.muli %c28_i32, %c8_i32_121 : i32
    %658 = tpu.assume_multiple %657, 8 : i32
    %cst_122 = arith.constant dense<0.000000e+00> : vector<2x1024xf32>
    %659 = tpu.matmul %656, %0, %cst_122 {dimension_numbers = #tpu.dot_dimension_numbers<[1], [0], [0], [1], [0, 0, 1, 1], [], []>} : vector<2x256xbf16>, vector<256x1024xbf16>, vector<2x1024xf32> -> vector<2x1024xf32>
    %660 = arith.index_cast %658 : i32 to index
    %c0_123 = arith.constant 0 : index
    %661 = vector.load %arg7[%660, %c0_123] : memref<264x1024xf32, #tpu.memory_space<vmem>>, vector<2x1024xf32>
    %662 = arith.addf %659, %661 : vector<2x1024xf32>
    %663 = vector.extract_strided_slice %662 {offsets = [0, 0], sizes = [2, 768], strides = [1, 1]} : vector<2x1024xf32> to vector<2x768xf32>
    %664 = arith.negf %663 : vector<2x768xf32>
    %665 = math.exp %664 : vector<2x768xf32>
    %cst_124 = arith.constant 1.000000e+00 : f32
    %666 = vector.broadcast %cst_124 : f32 to vector<2x768xf32>
    %667 = arith.addf %666, %665 : vector<2x768xf32>
    %668 = arith.divf %666, %667 : vector<2x768xf32>
    %669 = vector.extract_strided_slice %668 {offsets = [0, 0], sizes = [2, 256], strides = [1, 1]} : vector<2x768xf32> to vector<2x256xf32>
    %670 = vector.extract_strided_slice %668 {offsets = [0, 256], sizes = [2, 256], strides = [1, 1]} : vector<2x768xf32> to vector<2x256xf32>
    %671 = vector.extract_strided_slice %668 {offsets = [0, 512], sizes = [2, 256], strides = [1, 1]} : vector<2x768xf32> to vector<2x256xf32>
    %672 = vector.extract_strided_slice %662 {offsets = [0, 768], sizes = [2, 256], strides = [1, 1]} : vector<2x1024xf32> to vector<2x256xf32>
    %673 = math.tanh %672 : vector<2x256xf32>
    %674 = arith.mulf %670, %653 : vector<2x256xf32>
    %675 = arith.mulf %669, %673 : vector<2x256xf32>
    %676 = arith.addf %674, %675 : vector<2x256xf32>
    %677 = math.tanh %676 : vector<2x256xf32>
    %678 = arith.mulf %671, %677 : vector<2x256xf32>
    %679 = arith.truncf %678 : vector<2x256xf32> to vector<2x256xbf16>
    %c29_i32 = arith.constant 29 : i32
    %c8_i32_125 = arith.constant 8 : i32
    %680 = arith.muli %c29_i32, %c8_i32_125 : i32
    %681 = tpu.assume_multiple %680, 8 : i32
    %cst_126 = arith.constant dense<0.000000e+00> : vector<2x1024xf32>
    %682 = tpu.matmul %679, %0, %cst_126 {dimension_numbers = #tpu.dot_dimension_numbers<[1], [0], [0], [1], [0, 0, 1, 1], [], []>} : vector<2x256xbf16>, vector<256x1024xbf16>, vector<2x1024xf32> -> vector<2x1024xf32>
    %683 = arith.index_cast %681 : i32 to index
    %c0_127 = arith.constant 0 : index
    %684 = vector.load %arg7[%683, %c0_127] : memref<264x1024xf32, #tpu.memory_space<vmem>>, vector<2x1024xf32>
    %685 = arith.addf %682, %684 : vector<2x1024xf32>
    %686 = vector.extract_strided_slice %685 {offsets = [0, 0], sizes = [2, 768], strides = [1, 1]} : vector<2x1024xf32> to vector<2x768xf32>
    %687 = arith.negf %686 : vector<2x768xf32>
    %688 = math.exp %687 : vector<2x768xf32>
    %cst_128 = arith.constant 1.000000e+00 : f32
    %689 = vector.broadcast %cst_128 : f32 to vector<2x768xf32>
    %690 = arith.addf %689, %688 : vector<2x768xf32>
    %691 = arith.divf %689, %690 : vector<2x768xf32>
    %692 = vector.extract_strided_slice %691 {offsets = [0, 0], sizes = [2, 256], strides = [1, 1]} : vector<2x768xf32> to vector<2x256xf32>
    %693 = vector.extract_strided_slice %691 {offsets = [0, 256], sizes = [2, 256], strides = [1, 1]} : vector<2x768xf32> to vector<2x256xf32>
    %694 = vector.extract_strided_slice %691 {offsets = [0, 512], sizes = [2, 256], strides = [1, 1]} : vector<2x768xf32> to vector<2x256xf32>
    %695 = vector.extract_strided_slice %685 {offsets = [0, 768], sizes = [2, 256], strides = [1, 1]} : vector<2x1024xf32> to vector<2x256xf32>
    %696 = math.tanh %695 : vector<2x256xf32>
    %697 = arith.mulf %693, %676 : vector<2x256xf32>
    %698 = arith.mulf %692, %696 : vector<2x256xf32>
    %699 = arith.addf %697, %698 : vector<2x256xf32>
    %700 = math.tanh %699 : vector<2x256xf32>
    %701 = arith.mulf %694, %700 : vector<2x256xf32>
    %702 = arith.truncf %701 : vector<2x256xf32> to vector<2x256xbf16>
    %c30_i32 = arith.constant 30 : i32
    %c8_i32_129 = arith.constant 8 : i32
    %703 = arith.muli %c30_i32, %c8_i32_129 : i32
    %704 = tpu.assume_multiple %703, 8 : i32
    %cst_130 = arith.constant dense<0.000000e+00> : vector<2x1024xf32>
    %705 = tpu.matmul %702, %0, %cst_130 {dimension_numbers = #tpu.dot_dimension_numbers<[1], [0], [0], [1], [0, 0, 1, 1], [], []>} : vector<2x256xbf16>, vector<256x1024xbf16>, vector<2x1024xf32> -> vector<2x1024xf32>
    %706 = arith.index_cast %704 : i32 to index
    %c0_131 = arith.constant 0 : index
    %707 = vector.load %arg7[%706, %c0_131] : memref<264x1024xf32, #tpu.memory_space<vmem>>, vector<2x1024xf32>
    %708 = arith.addf %705, %707 : vector<2x1024xf32>
    %709 = vector.extract_strided_slice %708 {offsets = [0, 0], sizes = [2, 768], strides = [1, 1]} : vector<2x1024xf32> to vector<2x768xf32>
    %710 = arith.negf %709 : vector<2x768xf32>
    %711 = math.exp %710 : vector<2x768xf32>
    %cst_132 = arith.constant 1.000000e+00 : f32
    %712 = vector.broadcast %cst_132 : f32 to vector<2x768xf32>
    %713 = arith.addf %712, %711 : vector<2x768xf32>
    %714 = arith.divf %712, %713 : vector<2x768xf32>
    %715 = vector.extract_strided_slice %714 {offsets = [0, 0], sizes = [2, 256], strides = [1, 1]} : vector<2x768xf32> to vector<2x256xf32>
    %716 = vector.extract_strided_slice %714 {offsets = [0, 256], sizes = [2, 256], strides = [1, 1]} : vector<2x768xf32> to vector<2x256xf32>
    %717 = vector.extract_strided_slice %714 {offsets = [0, 512], sizes = [2, 256], strides = [1, 1]} : vector<2x768xf32> to vector<2x256xf32>
    %718 = vector.extract_strided_slice %708 {offsets = [0, 768], sizes = [2, 256], strides = [1, 1]} : vector<2x1024xf32> to vector<2x256xf32>
    %719 = math.tanh %718 : vector<2x256xf32>
    %720 = arith.mulf %716, %699 : vector<2x256xf32>
    %721 = arith.mulf %715, %719 : vector<2x256xf32>
    %722 = arith.addf %720, %721 : vector<2x256xf32>
    %723 = math.tanh %722 : vector<2x256xf32>
    %724 = arith.mulf %717, %723 : vector<2x256xf32>
    %725 = arith.truncf %724 : vector<2x256xf32> to vector<2x256xbf16>
    %c31_i32 = arith.constant 31 : i32
    %c8_i32_133 = arith.constant 8 : i32
    %726 = arith.muli %c31_i32, %c8_i32_133 : i32
    %727 = tpu.assume_multiple %726, 8 : i32
    %cst_134 = arith.constant dense<0.000000e+00> : vector<2x1024xf32>
    %728 = tpu.matmul %725, %0, %cst_134 {dimension_numbers = #tpu.dot_dimension_numbers<[1], [0], [0], [1], [0, 0, 1, 1], [], []>} : vector<2x256xbf16>, vector<256x1024xbf16>, vector<2x1024xf32> -> vector<2x1024xf32>
    %729 = arith.index_cast %727 : i32 to index
    %c0_135 = arith.constant 0 : index
    %730 = vector.load %arg7[%729, %c0_135] : memref<264x1024xf32, #tpu.memory_space<vmem>>, vector<2x1024xf32>
    %731 = arith.addf %728, %730 : vector<2x1024xf32>
    %732 = vector.extract_strided_slice %731 {offsets = [0, 0], sizes = [2, 768], strides = [1, 1]} : vector<2x1024xf32> to vector<2x768xf32>
    %733 = arith.negf %732 : vector<2x768xf32>
    %734 = math.exp %733 : vector<2x768xf32>
    %cst_136 = arith.constant 1.000000e+00 : f32
    %735 = vector.broadcast %cst_136 : f32 to vector<2x768xf32>
    %736 = arith.addf %735, %734 : vector<2x768xf32>
    %737 = arith.divf %735, %736 : vector<2x768xf32>
    %738 = vector.extract_strided_slice %737 {offsets = [0, 0], sizes = [2, 256], strides = [1, 1]} : vector<2x768xf32> to vector<2x256xf32>
    %739 = vector.extract_strided_slice %737 {offsets = [0, 256], sizes = [2, 256], strides = [1, 1]} : vector<2x768xf32> to vector<2x256xf32>
    %740 = vector.extract_strided_slice %737 {offsets = [0, 512], sizes = [2, 256], strides = [1, 1]} : vector<2x768xf32> to vector<2x256xf32>
    %741 = vector.extract_strided_slice %731 {offsets = [0, 768], sizes = [2, 256], strides = [1, 1]} : vector<2x1024xf32> to vector<2x256xf32>
    %742 = math.tanh %741 : vector<2x256xf32>
    %743 = arith.mulf %739, %722 : vector<2x256xf32>
    %744 = arith.mulf %738, %742 : vector<2x256xf32>
    %745 = arith.addf %743, %744 : vector<2x256xf32>
    %746 = math.tanh %745 : vector<2x256xf32>
    %747 = arith.mulf %740, %746 : vector<2x256xf32>
    %748 = arith.truncf %747 : vector<2x256xf32> to vector<2x256xbf16>
    %c32_i32 = arith.constant 32 : i32
    %c8_i32_137 = arith.constant 8 : i32
    %749 = arith.muli %c32_i32, %c8_i32_137 : i32
    %750 = tpu.assume_multiple %749, 8 : i32
    %cst_138 = arith.constant dense<0.000000e+00> : vector<2x1024xf32>
    %751 = tpu.matmul %748, %0, %cst_138 {dimension_numbers = #tpu.dot_dimension_numbers<[1], [0], [0], [1], [0, 0, 1, 1], [], []>} : vector<2x256xbf16>, vector<256x1024xbf16>, vector<2x1024xf32> -> vector<2x1024xf32>
    %752 = arith.index_cast %750 : i32 to index
    %c0_139 = arith.constant 0 : index
    %753 = vector.load %arg7[%752, %c0_139] : memref<264x1024xf32, #tpu.memory_space<vmem>>, vector<2x1024xf32>
    %754 = arith.addf %751, %753 : vector<2x1024xf32>
    %755 = vector.extract_strided_slice %754 {offsets = [0, 0], sizes = [2, 768], strides = [1, 1]} : vector<2x1024xf32> to vector<2x768xf32>
    %756 = arith.negf %755 : vector<2x768xf32>
    %757 = math.exp %756 : vector<2x768xf32>
    %cst_140 = arith.constant 1.000000e+00 : f32
    %758 = vector.broadcast %cst_140 : f32 to vector<2x768xf32>
    %759 = arith.addf %758, %757 : vector<2x768xf32>
    %760 = arith.divf %758, %759 : vector<2x768xf32>
    %761 = vector.extract_strided_slice %760 {offsets = [0, 0], sizes = [2, 256], strides = [1, 1]} : vector<2x768xf32> to vector<2x256xf32>
    %762 = vector.extract_strided_slice %760 {offsets = [0, 256], sizes = [2, 256], strides = [1, 1]} : vector<2x768xf32> to vector<2x256xf32>
    %763 = vector.extract_strided_slice %760 {offsets = [0, 512], sizes = [2, 256], strides = [1, 1]} : vector<2x768xf32> to vector<2x256xf32>
    %764 = vector.extract_strided_slice %754 {offsets = [0, 768], sizes = [2, 256], strides = [1, 1]} : vector<2x1024xf32> to vector<2x256xf32>
    %765 = math.tanh %764 : vector<2x256xf32>
    %766 = arith.mulf %762, %745 : vector<2x256xf32>
    %767 = arith.mulf %761, %765 : vector<2x256xf32>
    %768 = arith.addf %766, %767 : vector<2x256xf32>
    %769 = math.tanh %768 : vector<2x256xf32>
    %770 = arith.mulf %763, %769 : vector<2x256xf32>
    %771 = arith.truncf %770 : vector<2x256xf32> to vector<2x256xbf16>
    %c32_i32_141 = arith.constant 32 : i32
    %772 = vector.extract_strided_slice %771 {offsets = [0, 128], sizes = [2, 128], strides = [1, 1]} : vector<2x256xbf16> to vector<2x128xbf16>
    %c0_142 = arith.constant 0 : index
    %c0_143 = arith.constant 0 : index
    %773 = vector.load %arg4[%c0_142, %c0_143] : memref<128x10xbf16, #tpu.memory_space<vmem>>, vector<128x10xbf16>
    %cst_144 = arith.constant dense<0.000000e+00> : vector<2x10xf32>
    %774 = tpu.matmul %772, %773, %cst_144 {dimension_numbers = #tpu.dot_dimension_numbers<[1], [0], [0], [1], [0, 0, 1, 1], [], []>} : vector<2x128xbf16>, vector<128x10xbf16>, vector<2x10xf32> -> vector<2x10xf32>
    %c0_145 = arith.constant 0 : index
    %c0_146 = arith.constant 0 : index
    %775 = vector.load %arg5[%c0_145, %c0_146] : memref<1x10xf32, #tpu.memory_space<vmem>>, vector<1x10xf32>
    %776 = vector.broadcast %775 : vector<1x10xf32> to vector<2x10xf32>
    %777 = arith.addf %774, %776 : vector<2x10xf32>
    %c0_147 = arith.constant 0 : index
    %c0_148 = arith.constant 0 : index
    %778 = vector.load %arg6[%c0_147, %c0_148] : memref<2x10xf32, #tpu.memory_space<vmem>>, vector<2x10xf32>
    tpu.vector_store %arg6[%c0_147, %c0_148], %777 {strides = array<i32>} : memref<2x10xf32, #tpu.memory_space<vmem>>, vector<2x10xf32>,
    return
  }
}

</mosaic_0001>

<llo_original>
// kernel: tpu_custom_call.1
$region0: #{tpu_custom_call.1}
  #allocation0 [shape = 'u32[]', space=smem, size = 0x4, offset = 0x4, fixed_abs, tag = 'smem constant byte address 0x4 - core index']
  #allocation1 [shape = 'u32[144,128]{1,0:T(1,128)}', space=vmem, size = 0x12000, scoped, tag = 'internal scratch']
  #allocation2 [shape = 'f32[264,1024]{1,0:T(8,128)}', space=vmem, size = 0x108000, scoped, tag = 'scratch operand']
  %s0 = inlined_call_operand.vmem [shape: bf16[264,32], index: 0, kind: input, shape index: {}]
  %s1 = inlined_call_operand.vmem [shape: bf16[32,1024], index: 1, kind: input, shape index: {}]
  %s2 = inlined_call_operand.vmem [shape: f32[1,1024], index: 2, kind: input, shape index: {}]
  %s3 = inlined_call_operand.hbm [shape: bf16[256,1024], index: 3, kind: input, shape index: {}]
  %s4 = inlined_call_operand.vmem [shape: bf16[128,10], index: 4, kind: input, shape index: {}]
  %s5 = inlined_call_operand.vmem [shape: f32[1,10], index: 5, kind: input, shape index: {}]
  %s6 = inlined_call_operand.hbm [shape: f32[2,10], index: 6, kind: output, shape index: {}]
  %s7 = sld [smem:[#allocation0]]
  $region38: #{tpu_custom_call.1} parent=0
    _
  %s9 = ssub.s32 1, %s7
  %s10 = scalar_select 0, %s9, %s7
  $region1: #{tpu_custom_call.1} parent=0
    #allocation3 [shape = 'u8[524288]{0}', space=vmem, size = 0x80000, scoped, tag = 'input window, operand 3, single buffered']
    #allocation4 [shape = 's32[1]{0}', space=sflag, size = 0x4, scoped, tag = 'scoped memory for tpu_custom_call.1']
    #allocation5 [shape = 's32[1]{0}', space=sflag, size = 0x4, scoped, tag = 'scoped memory for tpu_custom_call.1']
    #allocation6 [shape = 'u8[1024]{0}', space=vmem, size = 0x400, scoped, tag = 'output window, operand 0, single buffered']
    %11 = vsyncpa [#allocation4], 0
    %12 = vsyncpa [#allocation5], 0
    // Predicated region
    $region2: #{tpu_custom_call.1} parent=1 // pred_check
      _
    $region3: #{tpu_custom_call.1} parent=1 // pred_check_branch
      %14 = sbr.rel (0) target = $region5
    $region4: #{tpu_custom_call.1} parent=1 // pred_region
      _
    $region5: #{tpu_custom_call.1} parent=1 // pred_fallthru
      _
    // Predicated region
    $region6: #{tpu_custom_call.1} parent=1 // pred_check
      _
    $region7: #{tpu_custom_call.1} parent=1 // pred_check_branch
      %16 = sbr.rel (0) target = $region9
    $region8: #{tpu_custom_call.1} parent=1 // pred_region
      _
    $region9: #{tpu_custom_call.1} parent=1 // pred_fallthru
      _
    // Predicated region
    $region10: #{tpu_custom_call.1} parent=1 // pred_check
      _
    $region11: #{tpu_custom_call.1} parent=1 // pred_check_branch
      %18 = sbr.rel (0) target = $region13
    $region12: #{tpu_custom_call.1} parent=1 // pred_region
      _
    $region13: #{tpu_custom_call.1} parent=1 // pred_fallthru
      _
    // Predicated region
    $region14: #{tpu_custom_call.1} parent=1 // pred_check
      _
    $region15: #{tpu_custom_call.1} parent=1 // pred_check_branch
      %20 = sbr.rel (0) target = $region17
    $region16: #{tpu_custom_call.1} parent=1 // pred_region
      %s22 = ssub.s32 16384, 16384
      %23 = vsyncadd [#allocation4], %s22
      %s24 = sshll.u32 [#allocation3], 4
      %s25 = int_to_ptr.vmem [resolvable:$true] %s24
      %30 = dma.hbm_to_vmem [thread:$0]  %s3, 16384, %s25, [#allocation4], 512, 512, 32
    $region17: #{tpu_custom_call.1} parent=1 // pred_fallthru
      _
    // Predicated region
    $region18: #{tpu_custom_call.1} parent=1 // pred_check
      _
    $region19: #{tpu_custom_call.1} parent=1 // pred_check_branch
      %32 = sbr.rel (0) target = $region21
    $region20: #{tpu_custom_call.1} parent=1 // pred_region
      _
    $region21: #{tpu_custom_call.1} parent=1 // pred_fallthru
      _
    // Predicated region
    $region22: #{tpu_custom_call.1} parent=1 // pred_check
      _
    $region23: #{tpu_custom_call.1} parent=1 // pred_check_branch
      %34 = sbr.rel (0) target = $region25
    $region24: #{tpu_custom_call.1} parent=1 // pred_region
      _
    $region25: #{tpu_custom_call.1} parent=1 // pred_fallthru
      _
    // Predicated region
    $region26: #{tpu_custom_call.1} parent=1 // pred_check
      _
    $region27: #{tpu_custom_call.1} parent=1 // pred_check_branch
      %36 = sbr.rel (0) target = $region29
    $region28: #{tpu_custom_call.1} parent=1 // pred_region
      %37 = dma.done [#allocation4], 16384
    $region29: #{tpu_custom_call.1} parent=1 // pred_fallthru
      _
    %v39 = vld [vmem:[#allocation3] sm:$0xff]
    %v40 = vld [vmem:[#allocation3 + $0x8] sm:$0xff]
    %v41 = vld [vmem:[#allocation3 + $0x10] sm:$0xff]
    %v42 = vld [vmem:[#allocation3 + $0x18] sm:$0xff]
    %v43 = vld [vmem:[#allocation3 + $0x20] sm:$0xff]
    %v44 = vld [vmem:[#allocation3 + $0x28] sm:$0xff]
    %v45 = vld [vmem:[#allocation3 + $0x30] sm:$0xff]
    %v46 = vld [vmem:[#allocation3 + $0x38] sm:$0xff]
    %v47 = vld [vmem:[#allocation3 + $0x40] sm:$0xff]
    %v48 = vld [vmem:[#allocation3 + $0x48] sm:$0xff]
    %v49 = vld [vmem:[#allocation3 + $0x50] sm:$0xff]
    %v50 = vld [vmem:[#allocation3 + $0x58] sm:$0xff]
    %v51 = vld [vmem:[#allocation3 + $0x60] sm:$0xff]
    %v52 = vld [vmem:[#allocation3 + $0x68] sm:$0xff]
    %v53 = vld [vmem:[#allocation3 + $0x70] sm:$0xff]
    %v54 = vld [vmem:[#allocation3 + $0x78] sm:$0xff]
    %v55 = vld [vmem:[#allocation3 + $0x80] sm:$0xff]
    %v56 = vld [vmem:[#allocation3 + $0x88] sm:$0xff]
    %v57 = vld [vmem:[#allocation3 + $0x90] sm:$0xff]
    %v58 = vld [vmem:[#allocation3 + $0x98] sm:$0xff]
    %v59 = vld [vmem:[#allocation3 + $0xa0] sm:$0xff]
    %v60 = vld [vmem:[#allocation3 + $0xa8] sm:$0xff]
    %v61 = vld [vmem:[#allocation3 + $0xb0] sm:$0xff]
    %v62 = vld [vmem:[#allocation3 + $0xb8] sm:$0xff]
    %v63 = vld [vmem:[#allocation3 + $0xc0] sm:$0xff]
    %v64 = vld [vmem:[#allocation3 + $0xc8] sm:$0xff]
    %v65 = vld [vmem:[#allocation3 + $0xd0] sm:$0xff]
    %v66 = vld [vmem:[#allocation3 + $0xd8] sm:$0xff]
    %v67 = vld [vmem:[#allocation3 + $0xe0] sm:$0xff]
    %v68 = vld [vmem:[#allocation3 + $0xe8] sm:$0xff]
    %v69 = vld [vmem:[#allocation3 + $0xf0] sm:$0xff]
    %v70 = vld [vmem:[#allocation3 + $0xf8] sm:$0xff]
    %v71 = vld [vmem:[#allocation3 + $0x100] sm:$0xff]
    %v72 = vld [vmem:[#allocation3 + $0x108] sm:$0xff]
    %v73 = vld [vmem:[#allocation3 + $0x110] sm:$0xff]
    %v74 = vld [vmem:[#allocation3 + $0x118] sm:$0xff]
    %v75 = vld [vmem:[#allocation3 + $0x120] sm:$0xff]
    %v76 = vld [vmem:[#allocation3 + $0x128] sm:$0xff]
    %v77 = vld [vmem:[#allocation3 + $0x130] sm:$0xff]
    %v78 = vld [vmem:[#allocation3 + $0x138] sm:$0xff]
    %v79 = vld [vmem:[#allocation3 + $0x140] sm:$0xff]
    %v80 = vld [vmem:[#allocation3 + $0x148] sm:$0xff]
    %v81 = vld [vmem:[#allocation3 + $0x150] sm:$0xff]
    %v82 = vld [vmem:[#allocation3 + $0x158] sm:$0xff]
    %v83 = vld [vmem:[#allocation3 + $0x160] sm:$0xff]
    %v84 = vld [vmem:[#allocation3 + $0x168] sm:$0xff]
    %v85 = vld [vmem:[#allocation3 + $0x170] sm:$0xff]
    %v86 = vld [vmem:[#allocation3 + $0x178] sm:$0xff]
    %v87 = vld [vmem:[#allocation3 + $0x180] sm:$0xff]
    %v88 = vld [vmem:[#allocation3 + $0x188] sm:$0xff]
    %v89 = vld [vmem:[#allocation3 + $0x190] sm:$0xff]
    %v90 = vld [vmem:[#allocation3 + $0x198] sm:$0xff]
    %v91 = vld [vmem:[#allocation3 + $0x1a0] sm:$0xff]
    %v92 = vld [vmem:[#allocation3 + $0x1a8] sm:$0xff]
    %v93 = vld [vmem:[#allocation3 + $0x1b0] sm:$0xff]
    %v94 = vld [vmem:[#allocation3 + $0x1b8] sm:$0xff]
    %v95 = vld [vmem:[#allocation3 + $0x1c0] sm:$0xff]
    %v96 = vld [vmem:[#allocation3 + $0x1c8] sm:$0xff]
    %v97 = vld [vmem:[#allocation3 + $0x1d0] sm:$0xff]
    %v98 = vld [vmem:[#allocation3 + $0x1d8] sm:$0xff]
    %v99 = vld [vmem:[#allocation3 + $0x1e0] sm:$0xff]
    %v100 = vld [vmem:[#allocation3 + $0x1e8] sm:$0xff]
    %v101 = vld [vmem:[#allocation3 + $0x1f0] sm:$0xff]
    %v102 = vld [vmem:[#allocation3 + $0x1f8] sm:$0xff]
    %v103 = vld [vmem:[#allocation3 + $0x200] sm:$0xff]
    %v104 = vld [vmem:[#allocation3 + $0x208] sm:$0xff]
    %v105 = vld [vmem:[#allocation3 + $0x210] sm:$0xff]
    %v106 = vld [vmem:[#allocation3 + $0x218] sm:$0xff]
    %v107 = vld [vmem:[#allocation3 + $0x220] sm:$0xff]
    %v108 = vld [vmem:[#allocation3 + $0x228] sm:$0xff]
    %v109 = vld [vmem:[#allocation3 + $0x230] sm:$0xff]
    %v110 = vld [vmem:[#allocation3 + $0x238] sm:$0xff]
    %v111 = vld [vmem:[#allocation3 + $0x240] sm:$0xff]
    %v112 = vld [vmem:[#allocation3 + $0x248] sm:$0xff]
    %v113 = vld [vmem:[#allocation3 + $0x250] sm:$0xff]
    %v114 = vld [vmem:[#allocation3 + $0x258] sm:$0xff]
    %v115 = vld [vmem:[#allocation3 + $0x260] sm:$0xff]
    %v116 = vld [vmem:[#allocation3 + $0x268] sm:$0xff]
    %v117 = vld [vmem:[#allocation3 + $0x270] sm:$0xff]
    %v118 = vld [vmem:[#allocation3 + $0x278] sm:$0xff]
    %v119 = vld [vmem:[#allocation3 + $0x280] sm:$0xff]
    %v120 = vld [vmem:[#allocation3 + $0x288] sm:$0xff]
    %v121 = vld [vmem:[#allocation3 + $0x290] sm:$0xff]
    %v122 = vld [vmem:[#allocation3 + $0x298] sm:$0xff]
    %v123 = vld [vmem:[#allocation3 + $0x2a0] sm:$0xff]
    %v124 = vld [vmem:[#allocation3 + $0x2a8] sm:$0xff]
    %v125 = vld [vmem:[#allocation3 + $0x2b0] sm:$0xff]
    %v126 = vld [vmem:[#allocation3 + $0x2b8] sm:$0xff]
    %v127 = vld [vmem:[#allocation3 + $0x2c0] sm:$0xff]
    %v128 = vld [vmem:[#allocation3 + $0x2c8] sm:$0xff]
    %v129 = vld [vmem:[#allocation3 + $0x2d0] sm:$0xff]
    %v130 = vld [vmem:[#allocation3 + $0x2d8] sm:$0xff]
    %v131 = vld [vmem:[#allocation3 + $0x2e0] sm:$0xff]
    %v132 = vld [vmem:[#allocation3 + $0x2e8] sm:$0xff]
    %v133 = vld [vmem:[#allocation3 + $0x2f0] sm:$0xff]
    %v134 = vld [vmem:[#allocation3 + $0x2f8] sm:$0xff]
    %v135 = vld [vmem:[#allocation3 + $0x300] sm:$0xff]
    %v136 = vld [vmem:[#allocation3 + $0x308] sm:$0xff]
    %v137 = vld [vmem:[#allocation3 + $0x310] sm:$0xff]
    %v138 = vld [vmem:[#allocation3 + $0x318] sm:$0xff]
    %v139 = vld [vmem:[#allocation3 + $0x320] sm:$0xff]
    %v140 = vld [vmem:[#allocation3 + $0x328] sm:$0xff]
    %v141 = vld [vmem:[#allocation3 + $0x330] sm:$0xff]
    %v142 = vld [vmem:[#allocation3 + $0x338] sm:$0xff]
    %v143 = vld [vmem:[#allocation3 + $0x340] sm:$0xff]
    %v144 = vld [vmem:[#allocation3 + $0x348] sm:$0xff]
    %v145 = vld [vmem:[#allocation3 + $0x350] sm:$0xff]
    %v146 = vld [vmem:[#allocation3 + $0x358] sm:$0xff]
    %v147 = vld [vmem:[#allocation3 + $0x360] sm:$0xff]
    %v148 = vld [vmem:[#allocation3 + $0x368] sm:$0xff]
    %v149 = vld [vmem:[#allocation3 + $0x370] sm:$0xff]
    %v150 = vld [vmem:[#allocation3 + $0x378] sm:$0xff]
    %v151 = vld [vmem:[#allocation3 + $0x380] sm:$0xff]
    %v152 = vld [vmem:[#allocation3 + $0x388] sm:$0xff]
    %v153 = vld [vmem:[#allocation3 + $0x390] sm:$0xff]
    %v154 = vld [vmem:[#allocation3 + $0x398] sm:$0xff]
    %v155 = vld [vmem:[#allocation3 + $0x3a0] sm:$0xff]
    %v156 = vld [vmem:[#allocation3 + $0x3a8] sm:$0xff]
    %v157 = vld [vmem:[#allocation3 + $0x3b0] sm:$0xff]
    %v158 = vld [vmem:[#allocation3 + $0x3b8] sm:$0xff]
    %v159 = vld [vmem:[#allocation3 + $0x3c0] sm:$0xff]
    %v160 = vld [vmem:[#allocation3 + $0x3c8] sm:$0xff]
    %v161 = vld [vmem:[#allocation3 + $0x3d0] sm:$0xff]
    %v162 = vld [vmem:[#allocation3 + $0x3d8] sm:$0xff]
    %v163 = vld [vmem:[#allocation3 + $0x3e0] sm:$0xff]
    %v164 = vld [vmem:[#allocation3 + $0x3e8] sm:$0xff]
    %v165 = vld [vmem:[#allocation3 + $0x3f0] sm:$0xff]
    %v166 = vld [vmem:[#allocation3 + $0x3f8] sm:$0xff]
    %v167 = vld [vmem:[%s0] sm:$0xf]
    %v168 = vld [vmem:[%s0 + $0x4] sm:$0xf]
    %v169 = vld [vmem:[%s0 + $0x8] sm:$0xf]
    %v170 = vld [vmem:[%s0 + $0xc] sm:$0xf]
    %v171 = vld [vmem:[%s0 + $0x10] sm:$0xf]
    %v172 = vld [vmem:[%s0 + $0x14] sm:$0xf]
    %v173 = vld [vmem:[%s0 + $0x18] sm:$0xf]
    %v174 = vld [vmem:[%s0 + $0x1c] sm:$0xf]
    %v175 = vld [vmem:[%s0 + $0x20] sm:$0xf]
    %v176 = vld [vmem:[%s0 + $0x24] sm:$0xf]
    %v177 = vld [vmem:[%s0 + $0x28] sm:$0xf]
    %v178 = vld [vmem:[%s0 + $0x2c] sm:$0xf]
    %v179 = vld [vmem:[%s0 + $0x30] sm:$0xf]
    %v180 = vld [vmem:[%s0 + $0x34] sm:$0xf]
    %v181 = vld [vmem:[%s0 + $0x38] sm:$0xf]
    %v182 = vld [vmem:[%s0 + $0x3c] sm:$0xf]
    %v183 = vld [vmem:[%s0 + $0x40] sm:$0xf]
    %v184 = vld [vmem:[%s0 + $0x44] sm:$0xf]
    %v185 = vld [vmem:[%s0 + $0x48] sm:$0xf]
    %v186 = vld [vmem:[%s0 + $0x4c] sm:$0xf]
    %v187 = vld [vmem:[%s0 + $0x50] sm:$0xf]
    %v188 = vld [vmem:[%s0 + $0x54] sm:$0xf]
    %v189 = vld [vmem:[%s0 + $0x58] sm:$0xf]
    %v190 = vld [vmem:[%s0 + $0x5c] sm:$0xf]
    %v191 = vld [vmem:[%s0 + $0x60] sm:$0xf]
    %v192 = vld [vmem:[%s0 + $0x64] sm:$0xf]
    %v193 = vld [vmem:[%s0 + $0x68] sm:$0xf]
    %v194 = vld [vmem:[%s0 + $0x6c] sm:$0xf]
    %v195 = vld [vmem:[%s0 + $0x70] sm:$0xf]
    %v196 = vld [vmem:[%s0 + $0x74] sm:$0xf]
    %v197 = vld [vmem:[%s0 + $0x78] sm:$0xf]
    %v198 = vld [vmem:[%s0 + $0x7c] sm:$0xf]
    %v199 = vld [vmem:[%s0 + $0x80] sm:$0xf]
    %v200 = vld [vmem:[%s1] sm:$0xff]
    %v201 = vld [vmem:[%s1 + $0x8] sm:$0xff]
    %v202 = vld [vmem:[%s1 + $0x10] sm:$0xff]
    %v203 = vld [vmem:[%s1 + $0x18] sm:$0xff]
    %v204 = vld [vmem:[%s1 + $0x20] sm:$0xff]
    %v205 = vld [vmem:[%s1 + $0x28] sm:$0xff]
    %v206 = vld [vmem:[%s1 + $0x30] sm:$0xff]
    %v207 = vld [vmem:[%s1 + $0x38] sm:$0xff]
    %v208 = vld [vmem:[%s1 + $0x40] sm:$0xff]
    %v209 = vld [vmem:[%s1 + $0x48] sm:$0xff]
    %v210 = vld [vmem:[%s1 + $0x50] sm:$0xff]
    %v211 = vld [vmem:[%s1 + $0x58] sm:$0xff]
    %v212 = vld [vmem:[%s1 + $0x60] sm:$0xff]
    %v213 = vld [vmem:[%s1 + $0x68] sm:$0xff]
    %v214 = vld [vmem:[%s1 + $0x70] sm:$0xff]
    %v215 = vld [vmem:[%s1 + $0x78] sm:$0xff]
    %v216 = vld [vmem:[%s2] sm:$0xff]
    %v218 = vlaneseq
    %v219 = vshrl.u32 %v218, 7
    %v220 = vsub.s32 0, %v219
    %v221 = vrot.slane %v216, %v220
    %v222 = vlaneseq
    %v223 = vshrl.u32 %v222, 7
    %v224 = vsub.s32 1, %v223
    %v225 = vrot.slane %v216, %v224
    %v226 = vlaneseq
    %v227 = vshrl.u32 %v226, 7
    %v228 = vsub.s32 2, %v227
    %v229 = vrot.slane %v216, %v228
    %v230 = vlaneseq
    %v231 = vshrl.u32 %v230, 7
    %v232 = vsub.s32 3, %v231
    %v233 = vrot.slane %v216, %v232
    %v234 = vlaneseq
    %v235 = vshrl.u32 %v234, 7
    %v236 = vsub.s32 4, %v235
    %v237 = vrot.slane %v216, %v236
    %v238 = vlaneseq
    %v239 = vshrl.u32 %v238, 7
    %v240 = vsub.s32 5, %v239
    %v241 = vrot.slane %v216, %v240
    %v242 = vlaneseq
    %v243 = vshrl.u32 %v242, 7
    %v244 = vsub.s32 6, %v243
    %v245 = vrot.slane %v216, %v244
    %v246 = vlaneseq
    %v247 = vshrl.u32 %v246, 7
    %v248 = vsub.s32 7, %v247
    %v249 = vrot.slane %v216, %v248
    %v291 = vunpack.c.l.b16 %v167
    %v292 = vunpack.c.l.b16 %v168
    %v293 = vunpack.c.l.b16 %v169
    %v294 = vunpack.c.l.b16 %v170
    %v295 = vunpack.c.l.b16 %v171
    %v296 = vunpack.c.l.b16 %v172
    %v297 = vunpack.c.l.b16 %v173
    %v298 = vunpack.c.l.b16 %v174
    %v299 = vunpack.c.l.b16 %v175
    %v300 = vunpack.c.l.b16 %v176
    %v301 = vunpack.c.l.b16 %v177
    %v302 = vunpack.c.l.b16 %v178
    %v303 = vunpack.c.l.b16 %v179
    %v304 = vunpack.c.l.b16 %v180
    %v305 = vunpack.c.l.b16 %v181
    %v306 = vunpack.c.l.b16 %v182
    %v307 = vunpack.c.l.b16 %v183
    %v308 = vunpack.c.l.b16 %v184
    %v309 = vunpack.c.l.b16 %v185
    %v310 = vunpack.c.l.b16 %v186
    %v311 = vunpack.c.l.b16 %v187
    %v312 = vunpack.c.l.b16 %v188
    %v313 = vunpack.c.l.b16 %v189
    %v314 = vunpack.c.l.b16 %v190
    %v315 = vunpack.c.l.b16 %v191
    %v316 = vunpack.c.l.b16 %v192
    %v317 = vunpack.c.l.b16 %v193
    %v318 = vunpack.c.l.b16 %v194
    %v319 = vunpack.c.l.b16 %v195
    %v320 = vunpack.c.l.b16 %v196
    %v321 = vunpack.c.l.b16 %v197
    %v322 = vunpack.c.l.b16 %v198
    %v323 = vunpack.c.l.b16 %v199
    %v324 = vpack.c.b16 %v292, %v291
    %v325 = vpack.c.b16 %v294, %v293
    %v326 = vpack.c.b16 %v296, %v295
    %v327 = vpack.c.b16 %v298, %v297
    %v328 = vpack.c.b16 %v300, %v299
    %v329 = vpack.c.b16 %v302, %v301
    %v330 = vpack.c.b16 %v304, %v303
    %v331 = vpack.c.b16 %v306, %v305
    %v332 = vpack.c.b16 %v308, %v307
    %v333 = vpack.c.b16 %v310, %v309
    %v334 = vpack.c.b16 %v312, %v311
    %v335 = vpack.c.b16 %v314, %v313
    %v336 = vpack.c.b16 %v316, %v315
    %v337 = vpack.c.b16 %v318, %v317
    %v338 = vpack.c.b16 %v320, %v319
    %v339 = vpack.c.b16 %v322, %v321
    %v340 = vpack.c.b16 %v323, %v323
    %v357 = vunpack.c.l.b16 %v200
    %v358 = vunpack.c.h.b16 %v200
    %v359 = vunpack.c.l.b16 %v201
    %v360 = vunpack.c.h.b16 %v201
    %v361 = vunpack.c.l.b16 %v202
    %v362 = vunpack.c.h.b16 %v202
    %v363 = vunpack.c.l.b16 %v203
    %v364 = vunpack.c.h.b16 %v203
    %v365 = vunpack.c.l.b16 %v204
    %v366 = vunpack.c.h.b16 %v204
    %v367 = vunpack.c.l.b16 %v205
    %v368 = vunpack.c.h.b16 %v205
    %v369 = vunpack.c.l.b16 %v206
    %v370 = vunpack.c.h.b16 %v206
    %v371 = vunpack.c.l.b16 %v207
    %v372 = vunpack.c.h.b16 %v207
    %v373 = vunpack.c.l.b16 %v208
    %v374 = vunpack.c.h.b16 %v208
    %v375 = vunpack.c.l.b16 %v209
    %v376 = vunpack.c.h.b16 %v209
    %v377 = vunpack.c.l.b16 %v210
    %v378 = vunpack.c.h.b16 %v210
    %v379 = vunpack.c.l.b16 %v211
    %v380 = vunpack.c.h.b16 %v211
    %v381 = vunpack.c.l.b16 %v212
    %v382 = vunpack.c.h.b16 %v212
    %v383 = vunpack.c.l.b16 %v213
    %v384 = vunpack.c.h.b16 %v213
    %v385 = vunpack.c.l.b16 %v214
    %v386 = vunpack.c.h.b16 %v214
    %v387 = vunpack.c.l.b16 %v215
    %v388 = vunpack.c.h.b16 %v215
    %v389 = vpack.c.b16 %v365, %v357
    %v390 = vpack.c.b16 %v366, %v358
    %v391 = vpack.c.b16 %v367, %v359
    %v392 = vpack.c.b16 %v368, %v360
    %v393 = vpack.c.b16 %v369, %v361
    %v394 = vpack.c.b16 %v370, %v362
    %v395 = vpack.c.b16 %v371, %v363
    %v396 = vpack.c.b16 %v372, %v364
    %v397 = vpack.c.b16 %v381, %v373
    %v398 = vpack.c.b16 %v382, %v374
    %v399 = vpack.c.b16 %v383, %v375
    %v400 = vpack.c.b16 %v384, %v376
    %v401 = vpack.c.b16 %v385, %v377
    %v402 = vpack.c.b16 %v386, %v378
    %v403 = vpack.c.b16 %v387, %v379
    %v404 = vpack.c.b16 %v388, %v380
    %vm421 = vcmask 261120
    %v423 = vsel %vm421, %v324, 0
    %v426 = vsel %vm421, %v325, 0
    %v429 = vsel %vm421, %v326, 0
    %v432 = vsel %vm421, %v327, 0
    %v435 = vsel %vm421, %v328, 0
    %v438 = vsel %vm421, %v329, 0
    %v441 = vsel %vm421, %v330, 0
    %v444 = vsel %vm421, %v331, 0
    %v447 = vsel %vm421, %v332, 0
    %v450 = vsel %vm421, %v333, 0
    %v453 = vsel %vm421, %v334, 0
    %v456 = vsel %vm421, %v335, 0
    %v459 = vsel %vm421, %v336, 0
    %v462 = vsel %vm421, %v337, 0
    %v465 = vsel %vm421, %v338, 0
    %v468 = vsel %vm421, %v339, 0
    %v471 = vsel %vm421, %v340, 0
    %473 = vmatprep.subr.bf16.mxu0 %v390
    %474 = vmatpush1.bf16.msra.mxu0 %v389
    %475 = vmatprep.subr.bf16.mxu0 %v398
    %476 = vmatpush1.bf16.msra.mxu0 %v397
    %477 = vmatprep.subr.bf16.mxu0 0
    %478 = vmatpush1.bf16.msra.mxu0 0
    %479 = vmatprep.subr.bf16.mxu0 0
    %480 = vmatpush1.bf16.msra.mxu0 0
    %481 = vmatprep.subr.bf16.mxu0 0
    %482 = vmatpush1.bf16.msra.mxu0 0
    %483 = vmatprep.subr.bf16.mxu0 0
    %484 = vmatpush1.bf16.msra.mxu0 0
    %485 = vmatprep.subr.bf16.mxu0 0
    %486 = vmatpush1.bf16.msra.mxu0 0
    %487 = vmatprep.subr.bf16.mxu0 0
    %488 = vmatpush1.bf16.msra.mxu0 0
    %489 = vmatprep.subr.bf16.mxu0 0
    %490 = vmatpush1.bf16.msra.mxu0 0
    %491 = vmatprep.subr.bf16.mxu0 0
    %492 = vmatpush1.bf16.msra.mxu0 0
    %493 = vmatprep.subr.bf16.mxu0 0
    %494 = vmatpush1.bf16.msra.mxu0 0
    %495 = vmatprep.subr.bf16.mxu0 0
    %496 = vmatpush1.bf16.msra.mxu0 0
    %497 = vmatprep.subr.bf16.mxu0 0
    %498 = vmatpush1.bf16.msra.mxu0 0
    %499 = vmatprep.subr.bf16.mxu0 0
    %500 = vmatpush1.bf16.msra.mxu0 0
    %501 = vmatprep.subr.bf16.mxu0 0
    %502 = vmatpush1.bf16.msra.mxu0 0
    %503 = vmatprep.subr.bf16.mxu0 0
    %504 = vmatpush1.bf16.msra.mxu0 0
    %505 = vmatprep.mubr.bf16.mxu0 0
    %506 = vmatmul.mubr.bf16.gmra.mrb[0].mxu0 %v423
    %v507 = vpop.f32.mrb[0].mxu0
    %v508 = vadd.f32 %v221, %v507
    %v509 = vpop.f32.mrb[0].mxu0
    %v510 = vadd.f32 %v225, %v509
    %v511 = vpop.f32.mrb[0].mxu0
    %v512 = vadd.f32 %v221, %v511
    %v513 = vpop.f32.mrb[0].mxu0
    %v514 = vadd.f32 %v225, %v513
    %515 = vmatprep.mubr.bf16.mxu0 0
    %516 = vmatmul.mubr.bf16.gmra.mrb[0].mxu0 %v426
    %v517 = vpop.f32.mrb[0].mxu0
    %v518 = vadd.f32 %v221, %v517
    %v519 = vpop.f32.mrb[0].mxu0
    %v520 = vadd.f32 %v225, %v519
    %v521 = vpop.f32.mrb[0].mxu0
    %v522 = vadd.f32 %v221, %v521
    %v523 = vpop.f32.mrb[0].mxu0
    %v524 = vadd.f32 %v225, %v523
    %525 = vmatprep.mubr.bf16.mxu0 0
    %526 = vmatmul.mubr.bf16.gmra.mrb[0].mxu0 %v429
    %v527 = vpop.f32.mrb[0].mxu0
    %v528 = vadd.f32 %v221, %v527
    %v529 = vpop.f32.mrb[0].mxu0
    %v530 = vadd.f32 %v225, %v529
    %v531 = vpop.f32.mrb[0].mxu0
    %v532 = vadd.f32 %v221, %v531
    %v533 = vpop.f32.mrb[0].mxu0
    %v534 = vadd.f32 %v225, %v533
    %535 = vmatprep.mubr.bf16.mxu0 0
    %536 = vmatmul.mubr.bf16.gmra.mrb[0].mxu0 %v432
    %v537 = vpop.f32.mrb[0].mxu0
    %v538 = vadd.f32 %v221, %v537
    %v539 = vpop.f32.mrb[0].mxu0
    %v540 = vadd.f32 %v225, %v539
    %v541 = vpop.f32.mrb[0].mxu0
    %v542 = vadd.f32 %v221, %v541
    %v543 = vpop.f32.mrb[0].mxu0
    %v544 = vadd.f32 %v225, %v543
    %545 = vmatprep.mubr.bf16.mxu0 0
    %546 = vmatmul.mubr.bf16.gmra.mrb[0].mxu0 %v435
    %v547 = vpop.f32.mrb[0].mxu0
    %v548 = vadd.f32 %v221, %v547
    %v549 = vpop.f32.mrb[0].mxu0
    %v550 = vadd.f32 %v225, %v549
    %v551 = vpop.f32.mrb[0].mxu0
    %v552 = vadd.f32 %v221, %v551
    %v553 = vpop.f32.mrb[0].mxu0
    %v554 = vadd.f32 %v225, %v553
    %555 = vmatprep.mubr.bf16.mxu0 0
    %556 = vmatmul.mubr.bf16.gmra.mrb[0].mxu0 %v438
    %v557 = vpop.f32.mrb[0].mxu0
    %v558 = vadd.f32 %v221, %v557
    %v559 = vpop.f32.mrb[0].mxu0
    %v560 = vadd.f32 %v225, %v559
    %v561 = vpop.f32.mrb[0].mxu0
    %v562 = vadd.f32 %v221, %v561
    %v563 = vpop.f32.mrb[0].mxu0
    %v564 = vadd.f32 %v225, %v563
    %565 = vmatprep.mubr.bf16.mxu0 0
    %566 = vmatmul.mubr.bf16.gmra.mrb[0].mxu0 %v441
    %v567 = vpop.f32.mrb[0].mxu0
    %v568 = vadd.f32 %v221, %v567
    %v569 = vpop.f32.mrb[0].mxu0
    %v570 = vadd.f32 %v225, %v569
    %v571 = vpop.f32.mrb[0].mxu0
    %v572 = vadd.f32 %v221, %v571
    %v573 = vpop.f32.mrb[0].mxu0
    %v574 = vadd.f32 %v225, %v573
    %575 = vmatprep.mubr.bf16.mxu0 0
    %576 = vmatmul.mubr.bf16.gmra.mrb[0].mxu0 %v444
    %v577 = vpop.f32.mrb[0].mxu0
    %v578 = vadd.f32 %v221, %v577
    %v579 = vpop.f32.mrb[0].mxu0
    %v580 = vadd.f32 %v225, %v579
    %v581 = vpop.f32.mrb[0].mxu0
    %v582 = vadd.f32 %v221, %v581
    %v583 = vpop.f32.mrb[0].mxu0
    %v584 = vadd.f32 %v225, %v583
    %585 = vmatprep.mubr.bf16.mxu0 0
    %586 = vmatmul.mubr.bf16.gmra.mrb[0].mxu0 %v447
    %v587 = vpop.f32.mrb[0].mxu0
    %v588 = vadd.f32 %v221, %v587
    %v589 = vpop.f32.mrb[0].mxu0
    %v590 = vadd.f32 %v225, %v589
    %v591 = vpop.f32.mrb[0].mxu0
    %v592 = vadd.f32 %v221, %v591
    %v593 = vpop.f32.mrb[0].mxu0
    %v594 = vadd.f32 %v225, %v593
    %595 = vmatprep.mubr.bf16.mxu0 0
    %596 = vmatmul.mubr.bf16.gmra.mrb[0].mxu0 %v450
    %v597 = vpop.f32.mrb[0].mxu0
    %v598 = vadd.f32 %v221, %v597
    %v599 = vpop.f32.mrb[0].mxu0
    %v600 = vadd.f32 %v225, %v599
    %v601 = vpop.f32.mrb[0].mxu0
    %v602 = vadd.f32 %v221, %v601
    %v603 = vpop.f32.mrb[0].mxu0
    %v604 = vadd.f32 %v225, %v603
    %605 = vmatprep.mubr.bf16.mxu0 0
    %606 = vmatmul.mubr.bf16.gmra.mrb[0].mxu0 %v453
    %v607 = vpop.f32.mrb[0].mxu0
    %v608 = vadd.f32 %v221, %v607
    %v609 = vpop.f32.mrb[0].mxu0
    %v610 = vadd.f32 %v225, %v609
    %v611 = vpop.f32.mrb[0].mxu0
    %v612 = vadd.f32 %v221, %v611
    %v613 = vpop.f32.mrb[0].mxu0
    %v614 = vadd.f32 %v225, %v613
    %615 = vmatprep.mubr.bf16.mxu0 0
    %616 = vmatmul.mubr.bf16.gmra.mrb[0].mxu0 %v456
    %v617 = vpop.f32.mrb[0].mxu0
    %v618 = vadd.f32 %v221, %v617
    %v619 = vpop.f32.mrb[0].mxu0
    %v620 = vadd.f32 %v225, %v619
    %v621 = vpop.f32.mrb[0].mxu0
    %v622 = vadd.f32 %v221, %v621
    %v623 = vpop.f32.mrb[0].mxu0
    %v624 = vadd.f32 %v225, %v623
    %625 = vmatprep.mubr.bf16.mxu0 0
    %626 = vmatmul.mubr.bf16.gmra.mrb[0].mxu0 %v459
    %v627 = vpop.f32.mrb[0].mxu0
    %v628 = vadd.f32 %v221, %v627
    %v629 = vpop.f32.mrb[0].mxu0
    %v630 = vadd.f32 %v225, %v629
    %v631 = vpop.f32.mrb[0].mxu0
    %v632 = vadd.f32 %v221, %v631
    %v633 = vpop.f32.mrb[0].mxu0
    %v634 = vadd.f32 %v225, %v633
    %635 = vmatprep.mubr.bf16.mxu0 0
    %636 = vmatmul.mubr.bf16.gmra.mrb[0].mxu0 %v462
    %v637 = vpop.f32.mrb[0].mxu0
    %v638 = vadd.f32 %v221, %v637
    %v639 = vpop.f32.mrb[0].mxu0
    %v640 = vadd.f32 %v225, %v639
    %v641 = vpop.f32.mrb[0].mxu0
    %v642 = vadd.f32 %v221, %v641
    %v643 = vpop.f32.mrb[0].mxu0
    %v644 = vadd.f32 %v225, %v643
    %645 = vmatprep.mubr.bf16.mxu0 0
    %646 = vmatmul.mubr.bf16.gmra.mrb[0].mxu0 %v465
    %v647 = vpop.f32.mrb[0].mxu0
    %v648 = vadd.f32 %v221, %v647
    %v649 = vpop.f32.mrb[0].mxu0
    %v650 = vadd.f32 %v225, %v649
    %v651 = vpop.f32.mrb[0].mxu0
    %v652 = vadd.f32 %v221, %v651
    %v653 = vpop.f32.mrb[0].mxu0
    %v654 = vadd.f32 %v225, %v653
    %655 = vmatprep.mubr.bf16.mxu0 0
    %656 = vmatmul.mubr.bf16.gmra.mrb[0].mxu0 %v468
    %v657 = vpop.f32.mrb[0].mxu0
    %v658 = vadd.f32 %v221, %v657
    %v659 = vpop.f32.mrb[0].mxu0
    %v660 = vadd.f32 %v225, %v659
    %v661 = vpop.f32.mrb[0].mxu0
    %v662 = vadd.f32 %v221, %v661
    %v663 = vpop.f32.mrb[0].mxu0
    %v664 = vadd.f32 %v225, %v663
    %665 = vmatprep.mubr.bf16.mxu0 0
    %666 = vmatmul.mubr.bf16.gmra.mrb[0].mxu0 %v471
    %v667 = vpop.f32.mrb[0].mxu0
    %v668 = vadd.f32 %v221, %v667
    %v669 = vpop.f32.mrb[0].mxu0
    %v670 = vadd.f32 %v225, %v669
    %v671 = vpop.f32.mrb[0].mxu0
    %v672 = vpop.f32.mrb[0].mxu0
    %673 = vdwg.mxu0
    %674 = vmatprep.subr.bf16.mxu0 %v392
    %675 = vmatpush1.bf16.msra.mxu0 %v391
    %676 = vmatprep.subr.bf16.mxu0 %v400
    %677 = vmatpush1.bf16.msra.mxu0 %v399
    %678 = vmatprep.subr.bf16.mxu0 0
    %679 = vmatpush1.bf16.msra.mxu0 0
    %680 = vmatprep.subr.bf16.mxu0 0
    %681 = vmatpush1.bf16.msra.mxu0 0
    %682 = vmatprep.subr.bf16.mxu0 0
    %683 = vmatpush1.bf16.msra.mxu0 0
    %684 = vmatprep.subr.bf16.mxu0 0
    %685 = vmatpush1.bf16.msra.mxu0 0
    %686 = vmatprep.subr.bf16.mxu0 0
    %687 = vmatpush1.bf16.msra.mxu0 0
    %688 = vmatprep.subr.bf16.mxu0 0
    %689 = vmatpush1.bf16.msra.mxu0 0
    %690 = vmatprep.subr.bf16.mxu0 0
    %691 = vmatpush1.bf16.msra.mxu0 0
    %692 = vmatprep.subr.bf16.mxu0 0
    %693 = vmatpush1.bf16.msra.mxu0 0
    %694 = vmatprep.subr.bf16.mxu0 0
    %695 = vmatpush1.bf16.msra.mxu0 0
    %696 = vmatprep.subr.bf16.mxu0 0
    %697 = vmatpush1.bf16.msra.mxu0 0
    %698 = vmatprep.subr.bf16.mxu0 0
    %699 = vmatpush1.bf16.msra.mxu0 0
    %700 = vmatprep.subr.bf16.mxu0 0
    %701 = vmatpush1.bf16.msra.mxu0 0
    %702 = vmatprep.subr.bf16.mxu0 0
    %703 = vmatpush1.bf16.msra.mxu0 0
    %704 = vmatprep.subr.bf16.mxu0 0
    %705 = vmatpush1.bf16.msra.mxu0 0
    %706 = vmatprep.mubr.bf16.mxu0 0
    %707 = vmatmul.mubr.bf16.gmra.mrb[0].mxu0 %v423
    %v708 = vpop.f32.mrb[0].mxu0
    %v709 = vadd.f32 %v229, %v708
    %v710 = vpop.f32.mrb[0].mxu0
    %v711 = vadd.f32 %v233, %v710
    %v712 = vpop.f32.mrb[0].mxu0
    %v713 = vadd.f32 %v229, %v712
    %v714 = vpop.f32.mrb[0].mxu0
    %v715 = vadd.f32 %v233, %v714
    %716 = vmatprep.mubr.bf16.mxu0 0
    %717 = vmatmul.mubr.bf16.gmra.mrb[0].mxu0 %v426
    %v718 = vpop.f32.mrb[0].mxu0
    %v719 = vadd.f32 %v229, %v718
    %v720 = vpop.f32.mrb[0].mxu0
    %v721 = vadd.f32 %v233, %v720
    %v722 = vpop.f32.mrb[0].mxu0
    %v723 = vadd.f32 %v229, %v722
    %v724 = vpop.f32.mrb[0].mxu0
    %v725 = vadd.f32 %v233, %v724
    %726 = vmatprep.mubr.bf16.mxu0 0
    %727 = vmatmul.mubr.bf16.gmra.mrb[0].mxu0 %v429
    %v728 = vpop.f32.mrb[0].mxu0
    %v729 = vadd.f32 %v229, %v728
    %v730 = vpop.f32.mrb[0].mxu0
    %v731 = vadd.f32 %v233, %v730
    %v732 = vpop.f32.mrb[0].mxu0
    %v733 = vadd.f32 %v229, %v732
    %v734 = vpop.f32.mrb[0].mxu0
    %v735 = vadd.f32 %v233, %v734
    %736 = vmatprep.mubr.bf16.mxu0 0
    %737 = vmatmul.mubr.bf16.gmra.mrb[0].mxu0 %v432
    %v738 = vpop.f32.mrb[0].mxu0
    %v739 = vadd.f32 %v229, %v738
    %v740 = vpop.f32.mrb[0].mxu0
    %v741 = vadd.f32 %v233, %v740
    %v742 = vpop.f32.mrb[0].mxu0
    %v743 = vadd.f32 %v229, %v742
    %v744 = vpop.f32.mrb[0].mxu0
    %v745 = vadd.f32 %v233, %v744
    %746 = vmatprep.mubr.bf16.mxu0 0
    %747 = vmatmul.mubr.bf16.gmra.mrb[0].mxu0 %v435
    %v748 = vpop.f32.mrb[0].mxu0
    %v749 = vadd.f32 %v229, %v748
    %v750 = vpop.f32.mrb[0].mxu0
    %v751 = vadd.f32 %v233, %v750
    %v752 = vpop.f32.mrb[0].mxu0
    %v753 = vadd.f32 %v229, %v752
    %v754 = vpop.f32.mrb[0].mxu0
    %v755 = vadd.f32 %v233, %v754
    %756 = vmatprep.mubr.bf16.mxu0 0
    %757 = vmatmul.mubr.bf16.gmra.mrb[0].mxu0 %v438
    %v758 = vpop.f32.mrb[0].mxu0
    %v759 = vadd.f32 %v229, %v758
    %v760 = vpop.f32.mrb[0].mxu0
    %v761 = vadd.f32 %v233, %v760
    %v762 = vpop.f32.mrb[0].mxu0
    %v763 = vadd.f32 %v229, %v762
    %v764 = vpop.f32.mrb[0].mxu0
    %v765 = vadd.f32 %v233, %v764
    %766 = vmatprep.mubr.bf16.mxu0 0
    %767 = vmatmul.mubr.bf16.gmra.mrb[0].mxu0 %v441
    %v768 = vpop.f32.mrb[0].mxu0
    %v769 = vadd.f32 %v229, %v768
    %v770 = vpop.f32.mrb[0].mxu0
    %v771 = vadd.f32 %v233, %v770
    %v772 = vpop.f32.mrb[0].mxu0
    %v773 = vadd.f32 %v229, %v772
    %v774 = vpop.f32.mrb[0].mxu0
    %v775 = vadd.f32 %v233, %v774
    %776 = vmatprep.mubr.bf16.mxu0 0
    %777 = vmatmul.mubr.bf16.gmra.mrb[0].mxu0 %v444
    %v778 = vpop.f32.mrb[0].mxu0
    %v779 = vadd.f32 %v229, %v778
    %v780 = vpop.f32.mrb[0].mxu0
    %v781 = vadd.f32 %v233, %v780
    %v782 = vpop.f32.mrb[0].mxu0
    %v783 = vadd.f32 %v229, %v782
    %v784 = vpop.f32.mrb[0].mxu0
    %v785 = vadd.f32 %v233, %v784
    %786 = vmatprep.mubr.bf16.mxu0 0
    %787 = vmatmul.mubr.bf16.gmra.mrb[0].mxu0 %v447
    %v788 = vpop.f32.mrb[0].mxu0
    %v789 = vadd.f32 %v229, %v788
    %v790 = vpop.f32.mrb[0].mxu0
    %v791 = vadd.f32 %v233, %v790
    %v792 = vpop.f32.mrb[0].mxu0
    %v793 = vadd.f32 %v229, %v792
    %v794 = vpop.f32.mrb[0].mxu0
    %v795 = vadd.f32 %v233, %v794
    %796 = vmatprep.mubr.bf16.mxu0 0
    %797 = vmatmul.mubr.bf16.gmra.mrb[0].mxu0 %v450
    %v798 = vpop.f32.mrb[0].mxu0
    %v799 = vadd.f32 %v229, %v798
    %v800 = vpop.f32.mrb[0].mxu0
    %v801 = vadd.f32 %v233, %v800
    %v802 = vpop.f32.mrb[0].mxu0
    %v803 = vadd.f32 %v229, %v802
    %v804 = vpop.f32.mrb[0].mxu0
    %v805 = vadd.f32 %v233, %v804
    %806 = vmatprep.mubr.bf16.mxu0 0
    %807 = vmatmul.mubr.bf16.gmra.mrb[0].mxu0 %v453
    %v808 = vpop.f32.mrb[0].mxu0
    %v809 = vadd.f32 %v229, %v808
    %v810 = vpop.f32.mrb[0].mxu0
    %v811 = vadd.f32 %v233, %v810
    %v812 = vpop.f32.mrb[0].mxu0
    %v813 = vadd.f32 %v229, %v812
    %v814 = vpop.f32.mrb[0].mxu0
    %v815 = vadd.f32 %v233, %v814
    %816 = vmatprep.mubr.bf16.mxu0 0
    %817 = vmatmul.mubr.bf16.gmra.mrb[0].mxu0 %v456
    %v818 = vpop.f32.mrb[0].mxu0
    %v819 = vadd.f32 %v229, %v818
    %v820 = vpop.f32.mrb[0].mxu0
    %v821 = vadd.f32 %v233, %v820
    %v822 = vpop.f32.mrb[0].mxu0
    %v823 = vadd.f32 %v229, %v822
    %v824 = vpop.f32.mrb[0].mxu0
    %v825 = vadd.f32 %v233, %v824
    %826 = vmatprep.mubr.bf16.mxu0 0
    %827 = vmatmul.mubr.bf16.gmra.mrb[0].mxu0 %v459
    %v828 = vpop.f32.mrb[0].mxu0
    %v829 = vadd.f32 %v229, %v828
    %v830 = vpop.f32.mrb[0].mxu0
    %v831 = vadd.f32 %v233, %v830
    %v832 = vpop.f32.mrb[0].mxu0
    %v833 = vadd.f32 %v229, %v832
    %v834 = vpop.f32.mrb[0].mxu0
    %v835 = vadd.f32 %v233, %v834
    %836 = vmatprep.mubr.bf16.mxu0 0
    %837 = vmatmul.mubr.bf16.gmra.mrb[0].mxu0 %v462
    %v838 = vpop.f32.mrb[0].mxu0
    %v839 = vadd.f32 %v229, %v838
    %v840 = vpop.f32.mrb[0].mxu0
    %v841 = vadd.f32 %v233, %v840
    %v842 = vpop.f32.mrb[0].mxu0
    %v843 = vadd.f32 %v229, %v842
    %v844 = vpop.f32.mrb[0].mxu0
    %v845 = vadd.f32 %v233, %v844
    %846 = vmatprep.mubr.bf16.mxu0 0
    %847 = vmatmul.mubr.bf16.gmra.mrb[0].mxu0 %v465
    %v848 = vpop.f32.mrb[0].mxu0
    %v849 = vadd.f32 %v229, %v848
    %v850 = vpop.f32.mrb[0].mxu0
    %v851 = vadd.f32 %v233, %v850
    %v852 = vpop.f32.mrb[0].mxu0
    %v853 = vadd.f32 %v229, %v852
    %v854 = vpop.f32.mrb[0].mxu0
    %v855 = vadd.f32 %v233, %v854
    %856 = vmatprep.mubr.bf16.mxu0 0
    %857 = vmatmul.mubr.bf16.gmra.mrb[0].mxu0 %v468
    %v858 = vpop.f32.mrb[0].mxu0
    %v859 = vadd.f32 %v229, %v858
    %v860 = vpop.f32.mrb[0].mxu0
    %v861 = vadd.f32 %v233, %v860
    %v862 = vpop.f32.mrb[0].mxu0
    %v863 = vadd.f32 %v229, %v862
    %v864 = vpop.f32.mrb[0].mxu0
    %v865 = vadd.f32 %v233, %v864
    %866 = vmatprep.mubr.bf16.mxu0 0
    %867 = vmatmul.mubr.bf16.gmra.mrb[0].mxu0 %v471
    %v868 = vpop.f32.mrb[0].mxu0
    %v869 = vadd.f32 %v229, %v868
    %v870 = vpop.f32.mrb[0].mxu0
    %v871 = vadd.f32 %v233, %v870
    %v872 = vpop.f32.mrb[0].mxu0
    %v873 = vpop.f32.mrb[0].mxu0
    %874 = vdwg.mxu0
    %875 = vmatprep.subr.bf16.mxu0 %v394
    %876 = vmatpush1.bf16.msra.mxu0 %v393
    %877 = vmatprep.subr.bf16.mxu0 %v402
    %878 = vmatpush1.bf16.msra.mxu0 %v401
    %879 = vmatprep.subr.bf16.mxu0 0
    %880 = vmatpush1.bf16.msra.mxu0 0
    %881 = vmatprep.subr.bf16.mxu0 0
    %882 = vmatpush1.bf16.msra.mxu0 0
    %883 = vmatprep.subr.bf16.mxu0 0
    %884 = vmatpush1.bf16.msra.mxu0 0
    %885 = vmatprep.subr.bf16.mxu0 0
    %886 = vmatpush1.bf16.msra.mxu0 0
    %887 = vmatprep.subr.bf16.mxu0 0
    %888 = vmatpush1.bf16.msra.mxu0 0
    %889 = vmatprep.subr.bf16.mxu0 0
    %890 = vmatpush1.bf16.msra.mxu0 0
    %891 = vmatprep.subr.bf16.mxu0 0
    %892 = vmatpush1.bf16.msra.mxu0 0
    %893 = vmatprep.subr.bf16.mxu0 0
    %894 = vmatpush1.bf16.msra.mxu0 0
    %895 = vmatprep.subr.bf16.mxu0 0
    %896 = vmatpush1.bf16.msra.mxu0 0
    %897 = vmatprep.subr.bf16.mxu0 0
    %898 = vmatpush1.bf16.msra.mxu0 0
    %899 = vmatprep.subr.bf16.mxu0 0
    %900 = vmatpush1.bf16.msra.mxu0 0
    %901 = vmatprep.subr.bf16.mxu0 0
    %902 = vmatpush1.bf16.msra.mxu0 0
    %903 = vmatprep.subr.bf16.mxu0 0
    %904 = vmatpush1.bf16.msra.mxu0 0
    %905 = vmatprep.subr.bf16.mxu0 0
    %906 = vmatpush1.bf16.msra.mxu0 0
    %907 = vmatprep.mubr.bf16.mxu0 0
    %908 = vmatmul.mubr.bf16.gmra.mrb[0].mxu0 %v423
    %v909 = vpop.f32.mrb[0].mxu0
    %v910 = vadd.f32 %v237, %v909
    %v911 = vpop.f32.mrb[0].mxu0
    %v912 = vadd.f32 %v241, %v911
    %v913 = vpop.f32.mrb[0].mxu0
    %v914 = vadd.f32 %v237, %v913
    %v915 = vpop.f32.mrb[0].mxu0
    %v916 = vadd.f32 %v241, %v915
    %917 = vmatprep.mubr.bf16.mxu0 0
    %918 = vmatmul.mubr.bf16.gmra.mrb[0].mxu0 %v426
    %v919 = vpop.f32.mrb[0].mxu0
    %v920 = vadd.f32 %v237, %v919
    %v921 = vpop.f32.mrb[0].mxu0
    %v922 = vadd.f32 %v241, %v921
    %v923 = vpop.f32.mrb[0].mxu0
    %v924 = vadd.f32 %v237, %v923
    %v925 = vpop.f32.mrb[0].mxu0
    %v926 = vadd.f32 %v241, %v925
    %927 = vmatprep.mubr.bf16.mxu0 0
    %928 = vmatmul.mubr.bf16.gmra.mrb[0].mxu0 %v429
    %v929 = vpop.f32.mrb[0].mxu0
    %v930 = vadd.f32 %v237, %v929
    %v931 = vpop.f32.mrb[0].mxu0
    %v932 = vadd.f32 %v241, %v931
    %v933 = vpop.f32.mrb[0].mxu0
    %v934 = vadd.f32 %v237, %v933
    %v935 = vpop.f32.mrb[0].mxu0
    %v936 = vadd.f32 %v241, %v935
    %937 = vmatprep.mubr.bf16.mxu0 0
    %938 = vmatmul.mubr.bf16.gmra.mrb[0].mxu0 %v432
    %v939 = vpop.f32.mrb[0].mxu0
    %v940 = vadd.f32 %v237, %v939
    %v941 = vpop.f32.mrb[0].mxu0
    %v942 = vadd.f32 %v241, %v941
    %v943 = vpop.f32.mrb[0].mxu0
    %v944 = vadd.f32 %v237, %v943
    %v945 = vpop.f32.mrb[0].mxu0
    %v946 = vadd.f32 %v241, %v945
    %947 = vmatprep.mubr.bf16.mxu0 0
    %948 = vmatmul.mubr.bf16.gmra.mrb[0].mxu0 %v435
    %v949 = vpop.f32.mrb[0].mxu0
    %v950 = vadd.f32 %v237, %v949
    %v951 = vpop.f32.mrb[0].mxu0
    %v952 = vadd.f32 %v241, %v951
    %v953 = vpop.f32.mrb[0].mxu0
    %v954 = vadd.f32 %v237, %v953
    %v955 = vpop.f32.mrb[0].mxu0
    %v956 = vadd.f32 %v241, %v955
    %957 = vmatprep.mubr.bf16.mxu0 0
    %958 = vmatmul.mubr.bf16.gmra.mrb[0].mxu0 %v438
    %v959 = vpop.f32.mrb[0].mxu0
    %v960 = vadd.f32 %v237, %v959
    %v961 = vpop.f32.mrb[0].mxu0
    %v962 = vadd.f32 %v241, %v961
    %v963 = vpop.f32.mrb[0].mxu0
    %v964 = vadd.f32 %v237, %v963
    %v965 = vpop.f32.mrb[0].mxu0
    %v966 = vadd.f32 %v241, %v965
    %967 = vmatprep.mubr.bf16.mxu0 0
    %968 = vmatmul.mubr.bf16.gmra.mrb[0].mxu0 %v441
    %v969 = vpop.f32.mrb[0].mxu0
    %v970 = vadd.f32 %v237, %v969
    %v971 = vpop.f32.mrb[0].mxu0
    %v972 = vadd.f32 %v241, %v971
    %v973 = vpop.f32.mrb[0].mxu0
    %v974 = vadd.f32 %v237, %v973
    %v975 = vpop.f32.mrb[0].mxu0
    %v976 = vadd.f32 %v241, %v975
    %977 = vmatprep.mubr.bf16.mxu0 0
    %978 = vmatmul.mubr.bf16.gmra.mrb[0].mxu0 %v444
    %v979 = vpop.f32.mrb[0].mxu0
    %v980 = vadd.f32 %v237, %v979
    %v981 = vpop.f32.mrb[0].mxu0
    %v982 = vadd.f32 %v241, %v981
    %v983 = vpop.f32.mrb[0].mxu0
    %v984 = vadd.f32 %v237, %v983
    %v985 = vpop.f32.mrb[0].mxu0
    %v986 = vadd.f32 %v241, %v985
    %987 = vmatprep.mubr.bf16.mxu0 0
    %988 = vmatmul.mubr.bf16.gmra.mrb[0].mxu0 %v447
    %v989 = vpop.f32.mrb[0].mxu0
    %v990 = vadd.f32 %v237, %v989
    %v991 = vpop.f32.mrb[0].mxu0
    %v992 = vadd.f32 %v241, %v991
    %v993 = vpop.f32.mrb[0].mxu0
    %v994 = vadd.f32 %v237, %v993
    %v995 = vpop.f32.mrb[0].mxu0
    %v996 = vadd.f32 %v241, %v995
    %997 = vmatprep.mubr.bf16.mxu0 0
    %998 = vmatmul.mubr.bf16.gmra.mrb[0].mxu0 %v450
    %v999 = vpop.f32.mrb[0].mxu0
    %v1000 = vadd.f32 %v237, %v999
    %v1001 = vpop.f32.mrb[0].mxu0
    %v1002 = vadd.f32 %v241, %v1001
    %v1003 = vpop.f32.mrb[0].mxu0
    %v1004 = vadd.f32 %v237, %v1003
    %v1005 = vpop.f32.mrb[0].mxu0
    %v1006 = vadd.f32 %v241, %v1005
    %1007 = vmatprep.mubr.bf16.mxu0 0
    %1008 = vmatmul.mubr.bf16.gmra.mrb[0].mxu0 %v453
    %v1009 = vpop.f32.mrb[0].mxu0
    %v1010 = vadd.f32 %v237, %v1009
    %v1011 = vpop.f32.mrb[0].mxu0
    %v1012 = vadd.f32 %v241, %v1011
    %v1013 = vpop.f32.mrb[0].mxu0
    %v1014 = vadd.f32 %v237, %v1013
    %v1015 = vpop.f32.mrb[0].mxu0
    %v1016 = vadd.f32 %v241, %v1015
    %1017 = vmatprep.mubr.bf16.mxu0 0
    %1018 = vmatmul.mubr.bf16.gmra.mrb[0].mxu0 %v456
    %v1019 = vpop.f32.mrb[0].mxu0
    %v1020 = vadd.f32 %v237, %v1019
    %v1021 = vpop.f32.mrb[0].mxu0
    %v1022 = vadd.f32 %v241, %v1021
    %v1023 = vpop.f32.mrb[0].mxu0
    %v1024 = vadd.f32 %v237, %v1023
    %v1025 = vpop.f32.mrb[0].mxu0
    %v1026 = vadd.f32 %v241, %v1025
    %1027 = vmatprep.mubr.bf16.mxu0 0
    %1028 = vmatmul.mubr.bf16.gmra.mrb[0].mxu0 %v459
    %v1029 = vpop.f32.mrb[0].mxu0
    %v1030 = vadd.f32 %v237, %v1029
    %v1031 = vpop.f32.mrb[0].mxu0
    %v1032 = vadd.f32 %v241, %v1031
    %v1033 = vpop.f32.mrb[0].mxu0
    %v1034 = vadd.f32 %v237, %v1033
    %v1035 = vpop.f32.mrb[0].mxu0
    %v1036 = vadd.f32 %v241, %v1035
    %1037 = vmatprep.mubr.bf16.mxu0 0
    %1038 = vmatmul.mubr.bf16.gmra.mrb[0].mxu0 %v462
    %v1039 = vpop.f32.mrb[0].mxu0
    %v1040 = vadd.f32 %v237, %v1039
    %v1041 = vpop.f32.mrb[0].mxu0
    %v1042 = vadd.f32 %v241, %v1041
    %v1043 = vpop.f32.mrb[0].mxu0
    %v1044 = vadd.f32 %v237, %v1043
    %v1045 = vpop.f32.mrb[0].mxu0
    %v1046 = vadd.f32 %v241, %v1045
    %1047 = vmatprep.mubr.bf16.mxu0 0
    %1048 = vmatmul.mubr.bf16.gmra.mrb[0].mxu0 %v465
    %v1049 = vpop.f32.mrb[0].mxu0
    %v1050 = vadd.f32 %v237, %v1049
    %v1051 = vpop.f32.mrb[0].mxu0
    %v1052 = vadd.f32 %v241, %v1051
    %v1053 = vpop.f32.mrb[0].mxu0
    %v1054 = vadd.f32 %v237, %v1053
    %v1055 = vpop.f32.mrb[0].mxu0
    %v1056 = vadd.f32 %v241, %v1055
    %1057 = vmatprep.mubr.bf16.mxu0 0
    %1058 = vmatmul.mubr.bf16.gmra.mrb[0].mxu0 %v468
    %v1059 = vpop.f32.mrb[0].mxu0
    %v1060 = vadd.f32 %v237, %v1059
    %v1061 = vpop.f32.mrb[0].mxu0
    %v1062 = vadd.f32 %v241, %v1061
    %v1063 = vpop.f32.mrb[0].mxu0
    %v1064 = vadd.f32 %v237, %v1063
    %v1065 = vpop.f32.mrb[0].mxu0
    %v1066 = vadd.f32 %v241, %v1065
    %1067 = vmatprep.mubr.bf16.mxu0 0
    %1068 = vmatmul.mubr.bf16.gmra.mrb[0].mxu0 %v471
    %v1069 = vpop.f32.mrb[0].mxu0
    %v1070 = vadd.f32 %v237, %v1069
    %v1071 = vpop.f32.mrb[0].mxu0
    %v1072 = vadd.f32 %v241, %v1071
    %v1073 = vpop.f32.mrb[0].mxu0
    %v1074 = vpop.f32.mrb[0].mxu0
    %1075 = vdwg.mxu0
    %1076 = vmatprep.subr.bf16.mxu0 %v396
    %1077 = vmatpush1.bf16.msra.mxu0 %v395
    %1078 = vmatprep.subr.bf16.mxu0 %v404
    %1079 = vmatpush1.bf16.msra.mxu0 %v403
    %1080 = vmatprep.subr.bf16.mxu0 0
    %1081 = vmatpush1.bf16.msra.mxu0 0
    %1082 = vmatprep.subr.bf16.mxu0 0
    %1083 = vmatpush1.bf16.msra.mxu0 0
    %1084 = vmatprep.subr.bf16.mxu0 0
    %1085 = vmatpush1.bf16.msra.mxu0 0
    %1086 = vmatprep.subr.bf16.mxu0 0
    %1087 = vmatpush1.bf16.msra.mxu0 0
    %1088 = vmatprep.subr.bf16.mxu0 0
    %1089 = vmatpush1.bf16.msra.mxu0 0
    %1090 = vmatprep.subr.bf16.mxu0 0
    %1091 = vmatpush1.bf16.msra.mxu0 0
    %1092 = vmatprep.subr.bf16.mxu0 0
    %1093 = vmatpush1.bf16.msra.mxu0 0
    %1094 = vmatprep.subr.bf16.mxu0 0
    %1095 = vmatpush1.bf16.msra.mxu0 0
    %1096 = vmatprep.subr.bf16.mxu0 0
    %1097 = vmatpush1.bf16.msra.mxu0 0
    %1098 = vmatprep.subr.bf16.mxu0 0
    %1099 = vmatpush1.bf16.msra.mxu0 0
    %1100 = vmatprep.subr.bf16.mxu0 0
    %1101 = vmatpush1.bf16.msra.mxu0 0
    %1102 = vmatprep.subr.bf16.mxu0 0
    %1103 = vmatpush1.bf16.msra.mxu0 0
    %1104 = vmatprep.subr.bf16.mxu0 0
    %1105 = vmatpush1.bf16.msra.mxu0 0
    %1106 = vmatprep.subr.bf16.mxu0 0
    %1107 = vmatpush1.bf16.msra.mxu0 0
    %1108 = vmatprep.mubr.bf16.mxu0 0
    %1109 = vmatmul.mubr.bf16.gmra.mrb[0].mxu0 %v423
    %v1110 = vpop.f32.mrb[0].mxu0
    %v1111 = vadd.f32 %v245, %v1110
    %v1112 = vpop.f32.mrb[0].mxu0
    %v1113 = vadd.f32 %v249, %v1112
    %v1114 = vpop.f32.mrb[0].mxu0
    %v1115 = vadd.f32 %v245, %v1114
    %v1116 = vpop.f32.mrb[0].mxu0
    %v1117 = vadd.f32 %v249, %v1116
    %1118 = vmatprep.mubr.bf16.mxu0 0
    %1119 = vmatmul.mubr.bf16.gmra.mrb[0].mxu0 %v426
    %v1120 = vpop.f32.mrb[0].mxu0
    %v1121 = vadd.f32 %v245, %v1120
    %v1122 = vpop.f32.mrb[0].mxu0
    %v1123 = vadd.f32 %v249, %v1122
    %v1124 = vpop.f32.mrb[0].mxu0
    %v1125 = vadd.f32 %v245, %v1124
    %v1126 = vpop.f32.mrb[0].mxu0
    %v1127 = vadd.f32 %v249, %v1126
    %1128 = vmatprep.mubr.bf16.mxu0 0
    %1129 = vmatmul.mubr.bf16.gmra.mrb[0].mxu0 %v429
    %v1130 = vpop.f32.mrb[0].mxu0
    %v1131 = vadd.f32 %v245, %v1130
    %v1132 = vpop.f32.mrb[0].mxu0
    %v1133 = vadd.f32 %v249, %v1132
    %v1134 = vpop.f32.mrb[0].mxu0
    %v1135 = vadd.f32 %v245, %v1134
    %v1136 = vpop.f32.mrb[0].mxu0
    %v1137 = vadd.f32 %v249, %v1136
    %1138 = vmatprep.mubr.bf16.mxu0 0
    %1139 = vmatmul.mubr.bf16.gmra.mrb[0].mxu0 %v432
    %v1140 = vpop.f32.mrb[0].mxu0
    %v1141 = vadd.f32 %v245, %v1140
    %v1142 = vpop.f32.mrb[0].mxu0
    %v1143 = vadd.f32 %v249, %v1142
    %v1144 = vpop.f32.mrb[0].mxu0
    %v1145 = vadd.f32 %v245, %v1144
    %v1146 = vpop.f32.mrb[0].mxu0
    %v1147 = vadd.f32 %v249, %v1146
    %1148 = vmatprep.mubr.bf16.mxu0 0
    %1149 = vmatmul.mubr.bf16.gmra.mrb[0].mxu0 %v435
    %v1150 = vpop.f32.mrb[0].mxu0
    %v1151 = vadd.f32 %v245, %v1150
    %v1152 = vpop.f32.mrb[0].mxu0
    %v1153 = vadd.f32 %v249, %v1152
    %v1154 = vpop.f32.mrb[0].mxu0
    %v1155 = vadd.f32 %v245, %v1154
    %v1156 = vpop.f32.mrb[0].mxu0
    %v1157 = vadd.f32 %v249, %v1156
    %1158 = vmatprep.mubr.bf16.mxu0 0
    %1159 = vmatmul.mubr.bf16.gmra.mrb[0].mxu0 %v438
    %v1160 = vpop.f32.mrb[0].mxu0
    %v1161 = vadd.f32 %v245, %v1160
    %v1162 = vpop.f32.mrb[0].mxu0
    %v1163 = vadd.f32 %v249, %v1162
    %v1164 = vpop.f32.mrb[0].mxu0
    %v1165 = vadd.f32 %v245, %v1164
    %v1166 = vpop.f32.mrb[0].mxu0
    %v1167 = vadd.f32 %v249, %v1166
    %1168 = vmatprep.mubr.bf16.mxu0 0
    %1169 = vmatmul.mubr.bf16.gmra.mrb[0].mxu0 %v441
    %v1170 = vpop.f32.mrb[0].mxu0
    %v1171 = vadd.f32 %v245, %v1170
    %v1172 = vpop.f32.mrb[0].mxu0
    %v1173 = vadd.f32 %v249, %v1172
    %v1174 = vpop.f32.mrb[0].mxu0
    %v1175 = vadd.f32 %v245, %v1174
    %v1176 = vpop.f32.mrb[0].mxu0
    %v1177 = vadd.f32 %v249, %v1176
    %1178 = vmatprep.mubr.bf16.mxu0 0
    %1179 = vmatmul.mubr.bf16.gmra.mrb[0].mxu0 %v444
    %v1180 = vpop.f32.mrb[0].mxu0
    %v1181 = vadd.f32 %v245, %v1180
    %v1182 = vpop.f32.mrb[0].mxu0
    %v1183 = vadd.f32 %v249, %v1182
    %v1184 = vpop.f32.mrb[0].mxu0
    %v1185 = vadd.f32 %v245, %v1184
    %v1186 = vpop.f32.mrb[0].mxu0
    %v1187 = vadd.f32 %v249, %v1186
    %1188 = vmatprep.mubr.bf16.mxu0 0
    %1189 = vmatmul.mubr.bf16.gmra.mrb[0].mxu0 %v447
    %v1190 = vpop.f32.mrb[0].mxu0
    %v1191 = vadd.f32 %v245, %v1190
    %v1192 = vpop.f32.mrb[0].mxu0
    %v1193 = vadd.f32 %v249, %v1192
    %v1194 = vpop.f32.mrb[0].mxu0
    %v1195 = vadd.f32 %v245, %v1194
    %v1196 = vpop.f32.mrb[0].mxu0
    %v1197 = vadd.f32 %v249, %v1196
    %1198 = vmatprep.mubr.bf16.mxu0 0
    %1199 = vmatmul.mubr.bf16.gmra.mrb[0].mxu0 %v450
    %v1200 = vpop.f32.mrb[0].mxu0
    %v1201 = vadd.f32 %v245, %v1200
    %v1202 = vpop.f32.mrb[0].mxu0
    %v1203 = vadd.f32 %v249, %v1202
    %v1204 = vpop.f32.mrb[0].mxu0
    %v1205 = vadd.f32 %v245, %v1204
    %v1206 = vpop.f32.mrb[0].mxu0
    %v1207 = vadd.f32 %v249, %v1206
    %1208 = vmatprep.mubr.bf16.mxu0 0
    %1209 = vmatmul.mubr.bf16.gmra.mrb[0].mxu0 %v453
    %v1210 = vpop.f32.mrb[0].mxu0
    %v1211 = vadd.f32 %v245, %v1210
    %v1212 = vpop.f32.mrb[0].mxu0
    %v1213 = vadd.f32 %v249, %v1212
    %v1214 = vpop.f32.mrb[0].mxu0
    %v1215 = vadd.f32 %v245, %v1214
    %v1216 = vpop.f32.mrb[0].mxu0
    %v1217 = vadd.f32 %v249, %v1216
    %1218 = vmatprep.mubr.bf16.mxu0 0
    %1219 = vmatmul.mubr.bf16.gmra.mrb[0].mxu0 %v456
    %v1220 = vpop.f32.mrb[0].mxu0
    %v1221 = vadd.f32 %v245, %v1220
    %v1222 = vpop.f32.mrb[0].mxu0
    %v1223 = vadd.f32 %v249, %v1222
    %v1224 = vpop.f32.mrb[0].mxu0
    %v1225 = vadd.f32 %v245, %v1224
    %v1226 = vpop.f32.mrb[0].mxu0
    %v1227 = vadd.f32 %v249, %v1226
    %1228 = vmatprep.mubr.bf16.mxu0 0
    %1229 = vmatmul.mubr.bf16.gmra.mrb[0].mxu0 %v459
    %v1230 = vpop.f32.mrb[0].mxu0
    %v1231 = vadd.f32 %v245, %v1230
    %v1232 = vpop.f32.mrb[0].mxu0
    %v1233 = vadd.f32 %v249, %v1232
    %v1234 = vpop.f32.mrb[0].mxu0
    %v1235 = vadd.f32 %v245, %v1234
    %v1236 = vpop.f32.mrb[0].mxu0
    %v1237 = vadd.f32 %v249, %v1236
    %1238 = vmatprep.mubr.bf16.mxu0 0
    %1239 = vmatmul.mubr.bf16.gmra.mrb[0].mxu0 %v462
    %v1240 = vpop.f32.mrb[0].mxu0
    %v1241 = vadd.f32 %v245, %v1240
    %v1242 = vpop.f32.mrb[0].mxu0
    %v1243 = vadd.f32 %v249, %v1242
    %v1244 = vpop.f32.mrb[0].mxu0
    %v1245 = vadd.f32 %v245, %v1244
    %v1246 = vpop.f32.mrb[0].mxu0
    %v1247 = vadd.f32 %v249, %v1246
    %1248 = vmatprep.mubr.bf16.mxu0 0
    %1249 = vmatmul.mubr.bf16.gmra.mrb[0].mxu0 %v465
    %v1250 = vpop.f32.mrb[0].mxu0
    %v1251 = vadd.f32 %v245, %v1250
    %v1252 = vpop.f32.mrb[0].mxu0
    %v1253 = vadd.f32 %v249, %v1252
    %v1254 = vpop.f32.mrb[0].mxu0
    %v1255 = vadd.f32 %v245, %v1254
    %v1256 = vpop.f32.mrb[0].mxu0
    %v1257 = vadd.f32 %v249, %v1256
    %1258 = vmatprep.mubr.bf16.mxu0 0
    %1259 = vmatmul.mubr.bf16.gmra.mrb[0].mxu0 %v468
    %v1260 = vpop.f32.mrb[0].mxu0
    %v1261 = vadd.f32 %v245, %v1260
    %v1262 = vpop.f32.mrb[0].mxu0
    %v1263 = vadd.f32 %v249, %v1262
    %v1264 = vpop.f32.mrb[0].mxu0
    %v1265 = vadd.f32 %v245, %v1264
    %v1266 = vpop.f32.mrb[0].mxu0
    %v1267 = vadd.f32 %v249, %v1266
    %1268 = vmatprep.mubr.bf16.mxu0 0
    %1269 = vmatmul.mubr.bf16.gmra.mrb[0].mxu0 %v471
    %v1270 = vpop.f32.mrb[0].mxu0
    %v1271 = vadd.f32 %v245, %v1270
    %v1272 = vpop.f32.mrb[0].mxu0
    %v1273 = vadd.f32 %v249, %v1272
    %v1274 = vpop.f32.mrb[0].mxu0
    %v1275 = vpop.f32.mrb[0].mxu0
    %1276 = vdwg.mxu0
    %1277 = vst [vmem:[#allocation2] sm:$0xff] %v508
    %1278 = vst [vmem:[#allocation2 + $0x8] sm:$0xff] %v510
    %1279 = vst [vmem:[#allocation2 + $0x10] sm:$0xff] %v709
    %1280 = vst [vmem:[#allocation2 + $0x18] sm:$0xff] %v711
    %1281 = vst [vmem:[#allocation2 + $0x20] sm:$0xff] %v910
    %1282 = vst [vmem:[#allocation2 + $0x28] sm:$0xff] %v912
    %1283 = vst [vmem:[#allocation2 + $0x30] sm:$0xff] %v1111
    %1284 = vst [vmem:[#allocation2 + $0x38] sm:$0xff] %v1113
    %1285 = vst [vmem:[#allocation2 + $0x40] sm:$0xff] %v512
    %1286 = vst [vmem:[#allocation2 + $0x48] sm:$0xff] %v514
    %1287 = vst [vmem:[#allocation2 + $0x50] sm:$0xff] %v713
    %1288 = vst [vmem:[#allocation2 + $0x58] sm:$0xff] %v715
    %1289 = vst [vmem:[#allocation2 + $0x60] sm:$0xff] %v914
    %1290 = vst [vmem:[#allocation2 + $0x68] sm:$0xff] %v916
    %1291 = vst [vmem:[#allocation2 + $0x70] sm:$0xff] %v1115
    %1292 = vst [vmem:[#allocation2 + $0x78] sm:$0xff] %v1117
    %1293 = vst [vmem:[#allocation2 + $0x80] sm:$0xff] %v518
    %1294 = vst [vmem:[#allocation2 + $0x88] sm:$0xff] %v520
    %1295 = vst [vmem:[#allocation2 + $0x90] sm:$0xff] %v719
    %1296 = vst [vmem:[#allocation2 + $0x98] sm:$0xff] %v721
    %1297 = vst [vmem:[#allocation2 + $0xa0] sm:$0xff] %v920
    %1298 = vst [vmem:[#allocation2 + $0xa8] sm:$0xff] %v922
    %1299 = vst [vmem:[#allocation2 + $0xb0] sm:$0xff] %v1121
    %1300 = vst [vmem:[#allocation2 + $0xb8] sm:$0xff] %v1123
    %1301 = vst [vmem:[#allocation2 + $0xc0] sm:$0xff] %v522
    %1302 = vst [vmem:[#allocation2 + $0xc8] sm:$0xff] %v524
    %1303 = vst [vmem:[#allocation2 + $0xd0] sm:$0xff] %v723
    %1304 = vst [vmem:[#allocation2 + $0xd8] sm:$0xff] %v725
    %1305 = vst [vmem:[#allocation2 + $0xe0] sm:$0xff] %v924
    %1306 = vst [vmem:[#allocation2 + $0xe8] sm:$0xff] %v926
    %1307 = vst [vmem:[#allocation2 + $0xf0] sm:$0xff] %v1125
    %1308 = vst [vmem:[#allocation2 + $0xf8] sm:$0xff] %v1127
    %1309 = vst [vmem:[#allocation2 + $0x100] sm:$0xff] %v528
    %1310 = vst [vmem:[#allocation2 + $0x108] sm:$0xff] %v530
    %1311 = vst [vmem:[#allocation2 + $0x110] sm:$0xff] %v729
    %1312 = vst [vmem:[#allocation2 + $0x118] sm:$0xff] %v731
    %1313 = vst [vmem:[#allocation2 + $0x120] sm:$0xff] %v930
    %1314 = vst [vmem:[#allocation2 + $0x128] sm:$0xff] %v932
    %1315 = vst [vmem:[#allocation2 + $0x130] sm:$0xff] %v1131
    %1316 = vst [vmem:[#allocation2 + $0x138] sm:$0xff] %v1133
    %1317 = vst [vmem:[#allocation2 + $0x140] sm:$0xff] %v532
    %1318 = vst [vmem:[#allocation2 + $0x148] sm:$0xff] %v534
    %1319 = vst [vmem:[#allocation2 + $0x150] sm:$0xff] %v733
    %1320 = vst [vmem:[#allocation2 + $0x158] sm:$0xff] %v735
    %1321 = vst [vmem:[#allocation2 + $0x160] sm:$0xff] %v934
    %1322 = vst [vmem:[#allocation2 + $0x168] sm:$0xff] %v936
    %1323 = vst [vmem:[#allocation2 + $0x170] sm:$0xff] %v1135
    %1324 = vst [vmem:[#allocation2 + $0x178] sm:$0xff] %v1137
    %1325 = vst [vmem:[#allocation2 + $0x180] sm:$0xff] %v538
    %1326 = vst [vmem:[#allocation2 + $0x188] sm:$0xff] %v540
    %1327 = vst [vmem:[#allocation2 + $0x190] sm:$0xff] %v739
    %1328 = vst [vmem:[#allocation2 + $0x198] sm:$0xff] %v741
    %1329 = vst [vmem:[#allocation2 + $0x1a0] sm:$0xff] %v940
    %1330 = vst [vmem:[#allocation2 + $0x1a8] sm:$0xff] %v942
    %1331 = vst [vmem:[#allocation2 + $0x1b0] sm:$0xff] %v1141
    %1332 = vst [vmem:[#allocation2 + $0x1b8] sm:$0xff] %v1143
    %1333 = vst [vmem:[#allocation2 + $0x1c0] sm:$0xff] %v542
    %1334 = vst [vmem:[#allocation2 + $0x1c8] sm:$0xff] %v544
    %1335 = vst [vmem:[#allocation2 + $0x1d0] sm:$0xff] %v743
    %1336 = vst [vmem:[#allocation2 + $0x1d8] sm:$0xff] %v745
    %1337 = vst [vmem:[#allocation2 + $0x1e0] sm:$0xff] %v944
    %1338 = vst [vmem:[#allocation2 + $0x1e8] sm:$0xff] %v946
    %1339 = vst [vmem:[#allocation2 + $0x1f0] sm:$0xff] %v1145
    %1340 = vst [vmem:[#allocation2 + $0x1f8] sm:$0xff] %v1147
    %1341 = vst [vmem:[#allocation2 + $0x200] sm:$0xff] %v548
    %1342 = vst [vmem:[#allocation2 + $0x208] sm:$0xff] %v550
    %1343 = vst [vmem:[#allocation2 + $0x210] sm:$0xff] %v749
    %1344 = vst [vmem:[#allocation2 + $0x218] sm:$0xff] %v751
    %1345 = vst [vmem:[#allocation2 + $0x220] sm:$0xff] %v950
    %1346 = vst [vmem:[#allocation2 + $0x228] sm:$0xff] %v952
    %1347 = vst [vmem:[#allocation2 + $0x230] sm:$0xff] %v1151
    %1348 = vst [vmem:[#allocation2 + $0x238] sm:$0xff] %v1153
    %1349 = vst [vmem:[#allocation2 + $0x240] sm:$0xff] %v552
    %1350 = vst [vmem:[#allocation2 + $0x248] sm:$0xff] %v554
    %1351 = vst [vmem:[#allocation2 + $0x250] sm:$0xff] %v753
    %1352 = vst [vmem:[#allocation2 + $0x258] sm:$0xff] %v755
    %1353 = vst [vmem:[#allocation2 + $0x260] sm:$0xff] %v954
    %1354 = vst [vmem:[#allocation2 + $0x268] sm:$0xff] %v956
    %1355 = vst [vmem:[#allocation2 + $0x270] sm:$0xff] %v1155
    %1356 = vst [vmem:[#allocation2 + $0x278] sm:$0xff] %v1157
    %1357 = vst [vmem:[#allocation2 + $0x280] sm:$0xff] %v558
    %1358 = vst [vmem:[#allocation2 + $0x288] sm:$0xff] %v560
    %1359 = vst [vmem:[#allocation2 + $0x290] sm:$0xff] %v759
    %1360 = vst [vmem:[#allocation2 + $0x298] sm:$0xff] %v761
    %1361 = vst [vmem:[#allocation2 + $0x2a0] sm:$0xff] %v960
    %1362 = vst [vmem:[#allocation2 + $0x2a8] sm:$0xff] %v962
    %1363 = vst [vmem:[#allocation2 + $0x2b0] sm:$0xff] %v1161
    %1364 = vst [vmem:[#allocation2 + $0x2b8] sm:$0xff] %v1163
    %1365 = vst [vmem:[#allocation2 + $0x2c0] sm:$0xff] %v562
    %1366 = vst [vmem:[#allocation2 + $0x2c8] sm:$0xff] %v564
    %1367 = vst [vmem:[#allocation2 + $0x2d0] sm:$0xff] %v763
    %1368 = vst [vmem:[#allocation2 + $0x2d8] sm:$0xff] %v765
    %1369 = vst [vmem:[#allocation2 + $0x2e0] sm:$0xff] %v964
    %1370 = vst [vmem:[#allocation2 + $0x2e8] sm:$0xff] %v966
    %1371 = vst [vmem:[#allocation2 + $0x2f0] sm:$0xff] %v1165
    %1372 = vst [vmem:[#allocation2 + $0x2f8] sm:$0xff] %v1167
    %1373 = vst [vmem:[#allocation2 + $0x300] sm:$0xff] %v568
    %1374 = vst [vmem:[#allocation2 + $0x308] sm:$0xff] %v570
    %1375 = vst [vmem:[#allocation2 + $0x310] sm:$0xff] %v769
    %1376 = vst [vmem:[#allocation2 + $0x318] sm:$0xff] %v771
    %1377 = vst [vmem:[#allocation2 + $0x320] sm:$0xff] %v970
    %1378 = vst [vmem:[#allocation2 + $0x328] sm:$0xff] %v972
    %1379 = vst [vmem:[#allocation2 + $0x330] sm:$0xff] %v1171
    %1380 = vst [vmem:[#allocation2 + $0x338] sm:$0xff] %v1173
    %1381 = vst [vmem:[#allocation2 + $0x340] sm:$0xff] %v572
    %1382 = vst [vmem:[#allocation2 + $0x348] sm:$0xff] %v574
    %1383 = vst [vmem:[#allocation2 + $0x350] sm:$0xff] %v773
    %1384 = vst [vmem:[#allocation2 + $0x358] sm:$0xff] %v775
    %1385 = vst [vmem:[#allocation2 + $0x360] sm:$0xff] %v974
    %1386 = vst [vmem:[#allocation2 + $0x368] sm:$0xff] %v976
    %1387 = vst [vmem:[#allocation2 + $0x370] sm:$0xff] %v1175
    %1388 = vst [vmem:[#allocation2 + $0x378] sm:$0xff] %v1177
    %1389 = vst [vmem:[#allocation2 + $0x380] sm:$0xff] %v578
    %1390 = vst [vmem:[#allocation2 + $0x388] sm:$0xff] %v580
    %1391 = vst [vmem:[#allocation2 + $0x390] sm:$0xff] %v779
    %1392 = vst [vmem:[#allocation2 + $0x398] sm:$0xff] %v781
    %1393 = vst [vmem:[#allocation2 + $0x3a0] sm:$0xff] %v980
    %1394 = vst [vmem:[#allocation2 + $0x3a8] sm:$0xff] %v982
    %1395 = vst [vmem:[#allocation2 + $0x3b0] sm:$0xff] %v1181
    %1396 = vst [vmem:[#allocation2 + $0x3b8] sm:$0xff] %v1183
    %1397 = vst [vmem:[#allocation2 + $0x3c0] sm:$0xff] %v582
    %1398 = vst [vmem:[#allocation2 + $0x3c8] sm:$0xff] %v584
    %1399 = vst [vmem:[#allocation2 + $0x3d0] sm:$0xff] %v783
    %1400 = vst [vmem:[#allocation2 + $0x3d8] sm:$0xff] %v785
    %1401 = vst [vmem:[#allocation2 + $0x3e0] sm:$0xff] %v984
    %1402 = vst [vmem:[#allocation2 + $0x3e8] sm:$0xff] %v986
    %1403 = vst [vmem:[#allocation2 + $0x3f0] sm:$0xff] %v1185
    %1404 = vst [vmem:[#allocation2 + $0x3f8] sm:$0xff] %v1187
    %1405 = vst [vmem:[#allocation2 + $0x400] sm:$0xff] %v588
    %1406 = vst [vmem:[#allocation2 + $0x408] sm:$0xff] %v590
    %1407 = vst [vmem:[#allocation2 + $0x410] sm:$0xff] %v789
    %1408 = vst [vmem:[#allocation2 + $0x418] sm:$0xff] %v791
    %1409 = vst [vmem:[#allocation2 + $0x420] sm:$0xff] %v990
    %1410 = vst [vmem:[#allocation2 + $0x428] sm:$0xff] %v992
    %1411 = vst [vmem:[#allocation2 + $0x430] sm:$0xff] %v1191
    %1412 = vst [vmem:[#allocation2 + $0x438] sm:$0xff] %v1193
    %1413 = vst [vmem:[#allocation2 + $0x440] sm:$0xff] %v592
    %1414 = vst [vmem:[#allocation2 + $0x448] sm:$0xff] %v594
    %1415 = vst [vmem:[#allocation2 + $0x450] sm:$0xff] %v793
    %1416 = vst [vmem:[#allocation2 + $0x458] sm:$0xff] %v795
    %1417 = vst [vmem:[#allocation2 + $0x460] sm:$0xff] %v994
    %1418 = vst [vmem:[#allocation2 + $0x468] sm:$0xff] %v996
    %1419 = vst [vmem:[#allocation2 + $0x470] sm:$0xff] %v1195
    %1420 = vst [vmem:[#allocation2 + $0x478] sm:$0xff] %v1197
    %1421 = vst [vmem:[#allocation2 + $0x480] sm:$0xff] %v598
    %1422 = vst [vmem:[#allocation2 + $0x488] sm:$0xff] %v600
    %1423 = vst [vmem:[#allocation2 + $0x490] sm:$0xff] %v799
    %1424 = vst [vmem:[#allocation2 + $0x498] sm:$0xff] %v801
    %1425 = vst [vmem:[#allocation2 + $0x4a0] sm:$0xff] %v1000
    %1426 = vst [vmem:[#allocation2 + $0x4a8] sm:$0xff] %v1002
    %1427 = vst [vmem:[#allocation2 + $0x4b0] sm:$0xff] %v1201
    %1428 = vst [vmem:[#allocation2 + $0x4b8] sm:$0xff] %v1203
    %1429 = vst [vmem:[#allocation2 + $0x4c0] sm:$0xff] %v602
    %1430 = vst [vmem:[#allocation2 + $0x4c8] sm:$0xff] %v604
    %1431 = vst [vmem:[#allocation2 + $0x4d0] sm:$0xff] %v803
    %1432 = vst [vmem:[#allocation2 + $0x4d8] sm:$0xff] %v805
    %1433 = vst [vmem:[#allocation2 + $0x4e0] sm:$0xff] %v1004
    %1434 = vst [vmem:[#allocation2 + $0x4e8] sm:$0xff] %v1006
    %1435 = vst [vmem:[#allocation2 + $0x4f0] sm:$0xff] %v1205
    %1436 = vst [vmem:[#allocation2 + $0x4f8] sm:$0xff] %v1207
    %1437 = vst [vmem:[#allocation2 + $0x500] sm:$0xff] %v608
    %1438 = vst [vmem:[#allocation2 + $0x508] sm:$0xff] %v610
    %1439 = vst [vmem:[#allocation2 + $0x510] sm:$0xff] %v809
    %1440 = vst [vmem:[#allocation2 + $0x518] sm:$0xff] %v811
    %1441 = vst [vmem:[#allocation2 + $0x520] sm:$0xff] %v1010
    %1442 = vst [vmem:[#allocation2 + $0x528] sm:$0xff] %v1012
    %1443 = vst [vmem:[#allocation2 + $0x530] sm:$0xff] %v1211
    %1444 = vst [vmem:[#allocation2 + $0x538] sm:$0xff] %v1213
    %1445 = vst [vmem:[#allocation2 + $0x540] sm:$0xff] %v612
    %1446 = vst [vmem:[#allocation2 + $0x548] sm:$0xff] %v614
    %1447 = vst [vmem:[#allocation2 + $0x550] sm:$0xff] %v813
    %1448 = vst [vmem:[#allocation2 + $0x558] sm:$0xff] %v815
    %1449 = vst [vmem:[#allocation2 + $0x560] sm:$0xff] %v1014
    %1450 = vst [vmem:[#allocation2 + $0x568] sm:$0xff] %v1016
    %1451 = vst [vmem:[#allocation2 + $0x570] sm:$0xff] %v1215
    %1452 = vst [vmem:[#allocation2 + $0x578] sm:$0xff] %v1217
    %1453 = vst [vmem:[#allocation2 + $0x580] sm:$0xff] %v618
    %1454 = vst [vmem:[#allocation2 + $0x588] sm:$0xff] %v620
    %1455 = vst [vmem:[#allocation2 + $0x590] sm:$0xff] %v819
    %1456 = vst [vmem:[#allocation2 + $0x598] sm:$0xff] %v821
    %1457 = vst [vmem:[#allocation2 + $0x5a0] sm:$0xff] %v1020
    %1458 = vst [vmem:[#allocation2 + $0x5a8] sm:$0xff] %v1022
    %1459 = vst [vmem:[#allocation2 + $0x5b0] sm:$0xff] %v1221
    %1460 = vst [vmem:[#allocation2 + $0x5b8] sm:$0xff] %v1223
    %1461 = vst [vmem:[#allocation2 + $0x5c0] sm:$0xff] %v622
    %1462 = vst [vmem:[#allocation2 + $0x5c8] sm:$0xff] %v624
    %1463 = vst [vmem:[#allocation2 + $0x5d0] sm:$0xff] %v823
    %1464 = vst [vmem:[#allocation2 + $0x5d8] sm:$0xff] %v825
    %1465 = vst [vmem:[#allocation2 + $0x5e0] sm:$0xff] %v1024
    %1466 = vst [vmem:[#allocation2 + $0x5e8] sm:$0xff] %v1026
    %1467 = vst [vmem:[#allocation2 + $0x5f0] sm:$0xff] %v1225
    %1468 = vst [vmem:[#allocation2 + $0x5f8] sm:$0xff] %v1227
    %1469 = vst [vmem:[#allocation2 + $0x600] sm:$0xff] %v628
    %1470 = vst [vmem:[#allocation2 + $0x608] sm:$0xff] %v630
    %1471 = vst [vmem:[#allocation2 + $0x610] sm:$0xff] %v829
    %1472 = vst [vmem:[#allocation2 + $0x618] sm:$0xff] %v831
    %1473 = vst [vmem:[#allocation2 + $0x620] sm:$0xff] %v1030
    %1474 = vst [vmem:[#allocation2 + $0x628] sm:$0xff] %v1032
    %1475 = vst [vmem:[#allocation2 + $0x630] sm:$0xff] %v1231
    %1476 = vst [vmem:[#allocation2 + $0x638] sm:$0xff] %v1233
    %1477 = vst [vmem:[#allocation2 + $0x640] sm:$0xff] %v632
    %1478 = vst [vmem:[#allocation2 + $0x648] sm:$0xff] %v634
    %1479 = vst [vmem:[#allocation2 + $0x650] sm:$0xff] %v833
    %1480 = vst [vmem:[#allocation2 + $0x658] sm:$0xff] %v835
    %1481 = vst [vmem:[#allocation2 + $0x660] sm:$0xff] %v1034
    %1482 = vst [vmem:[#allocation2 + $0x668] sm:$0xff] %v1036
    %1483 = vst [vmem:[#allocation2 + $0x670] sm:$0xff] %v1235
    %1484 = vst [vmem:[#allocation2 + $0x678] sm:$0xff] %v1237
    %1485 = vst [vmem:[#allocation2 + $0x680] sm:$0xff] %v638
    %1486 = vst [vmem:[#allocation2 + $0x688] sm:$0xff] %v640
    %1487 = vst [vmem:[#allocation2 + $0x690] sm:$0xff] %v839
    %1488 = vst [vmem:[#allocation2 + $0x698] sm:$0xff] %v841
    %1489 = vst [vmem:[#allocation2 + $0x6a0] sm:$0xff] %v1040
    %1490 = vst [vmem:[#allocation2 + $0x6a8] sm:$0xff] %v1042
    %1491 = vst [vmem:[#allocation2 + $0x6b0] sm:$0xff] %v1241
    %1492 = vst [vmem:[#allocation2 + $0x6b8] sm:$0xff] %v1243
    %1493 = vst [vmem:[#allocation2 + $0x6c0] sm:$0xff] %v642
    %1494 = vst [vmem:[#allocation2 + $0x6c8] sm:$0xff] %v644
    %1495 = vst [vmem:[#allocation2 + $0x6d0] sm:$0xff] %v843
    %1496 = vst [vmem:[#allocation2 + $0x6d8] sm:$0xff] %v845
    %1497 = vst [vmem:[#allocation2 + $0x6e0] sm:$0xff] %v1044
    %1498 = vst [vmem:[#allocation2 + $0x6e8] sm:$0xff] %v1046
    %1499 = vst [vmem:[#allocation2 + $0x6f0] sm:$0xff] %v1245
    %1500 = vst [vmem:[#allocation2 + $0x6f8] sm:$0xff] %v1247
    %1501 = vst [vmem:[#allocation2 + $0x700] sm:$0xff] %v648
    %1502 = vst [vmem:[#allocation2 + $0x708] sm:$0xff] %v650
    %1503 = vst [vmem:[#allocation2 + $0x710] sm:$0xff] %v849
    %1504 = vst [vmem:[#allocation2 + $0x718] sm:$0xff] %v851
    %1505 = vst [vmem:[#allocation2 + $0x720] sm:$0xff] %v1050
    %1506 = vst [vmem:[#allocation2 + $0x728] sm:$0xff] %v1052
    %1507 = vst [vmem:[#allocation2 + $0x730] sm:$0xff] %v1251
    %1508 = vst [vmem:[#allocation2 + $0x738] sm:$0xff] %v1253
    %1509 = vst [vmem:[#allocation2 + $0x740] sm:$0xff] %v652
    %1510 = vst [vmem:[#allocation2 + $0x748] sm:$0xff] %v654
    %1511 = vst [vmem:[#allocation2 + $0x750] sm:$0xff] %v853
    %1512 = vst [vmem:[#allocation2 + $0x758] sm:$0xff] %v855
    %1513 = vst [vmem:[#allocation2 + $0x760] sm:$0xff] %v1054
    %1514 = vst [vmem:[#allocation2 + $0x768] sm:$0xff] %v1056
    %1515 = vst [vmem:[#allocation2 + $0x770] sm:$0xff] %v1255
    %1516 = vst [vmem:[#allocation2 + $0x778] sm:$0xff] %v1257
    %1517 = vst [vmem:[#allocation2 + $0x780] sm:$0xff] %v658
    %1518 = vst [vmem:[#allocation2 + $0x788] sm:$0xff] %v660
    %1519 = vst [vmem:[#allocation2 + $0x790] sm:$0xff] %v859
    %1520 = vst [vmem:[#allocation2 + $0x798] sm:$0xff] %v861
    %1521 = vst [vmem:[#allocation2 + $0x7a0] sm:$0xff] %v1060
    %1522 = vst [vmem:[#allocation2 + $0x7a8] sm:$0xff] %v1062
    %1523 = vst [vmem:[#allocation2 + $0x7b0] sm:$0xff] %v1261
    %1524 = vst [vmem:[#allocation2 + $0x7b8] sm:$0xff] %v1263
    %1525 = vst [vmem:[#allocation2 + $0x7c0] sm:$0xff] %v662
    %1526 = vst [vmem:[#allocation2 + $0x7c8] sm:$0xff] %v664
    %1527 = vst [vmem:[#allocation2 + $0x7d0] sm:$0xff] %v863
    %1528 = vst [vmem:[#allocation2 + $0x7d8] sm:$0xff] %v865
    %1529 = vst [vmem:[#allocation2 + $0x7e0] sm:$0xff] %v1064
    %1530 = vst [vmem:[#allocation2 + $0x7e8] sm:$0xff] %v1066
    %1531 = vst [vmem:[#allocation2 + $0x7f0] sm:$0xff] %v1265
    %1532 = vst [vmem:[#allocation2 + $0x7f8] sm:$0xff] %v1267
    %1533 = vst [vmem:[#allocation2 + $0x800] sm:$0xff] %v668
    %1534 = vst [vmem:[#allocation2 + $0x808] sm:$0xff] %v670
    %1535 = vst [vmem:[#allocation2 + $0x810] sm:$0xff] %v869
    %1536 = vst [vmem:[#allocation2 + $0x818] sm:$0xff] %v871
    %1537 = vst [vmem:[#allocation2 + $0x820] sm:$0xff] %v1070
    %1538 = vst [vmem:[#allocation2 + $0x828] sm:$0xff] %v1072
    %1539 = vst [vmem:[#allocation2 + $0x830] sm:$0xff] %v1271
    %1540 = vst [vmem:[#allocation2 + $0x838] sm:$0xff] %v1273
    %v1541 = vlaneseq
    %v1542 = vand.u32 %v1541, 127
    %v1543 = vadd.s32 %v1542, 128
    %vm1544 = vcmp.lt.s32.totalorder %v1542, 128
    %vm1545 = vcmp.lt.s32.totalorder %v1543, 128
    %v1546 = vsel %vm1544, 1, 0
    %v1547 = vsel %vm1545, 1, 0
    %v1548 = vcvt.s32.f32 %v1546
    %v1549 = vcvt.s32.f32 %v1547
    %v1550 = vld [vmem:[#allocation2] sm:$0x3]
    %v1551 = vld [vmem:[#allocation2 + $0x8] sm:$0x3]
    %v1552 = vld [vmem:[#allocation2 + $0x10] sm:$0x3]
    %v1553 = vld [vmem:[#allocation2 + $0x18] sm:$0x3]
    %v1554 = vld [vmem:[#allocation2 + $0x20] sm:$0x3]
    %v1555 = vld [vmem:[#allocation2 + $0x28] sm:$0x3]
    %v1556 = vld [vmem:[#allocation2 + $0x30] sm:$0x3]
    %v1557 = vld [vmem:[#allocation2 + $0x38] sm:$0x3]
    %v1558 = vxor.u32 %v1550, 2147483648
    %v1559 = vxor.u32 %v1551, 2147483648
    %v1560 = vxor.u32 %v1552, 2147483648
    %v1561 = vxor.u32 %v1553, 2147483648
    %v1562 = vxor.u32 %v1554, 2147483648
    %v1563 = vxor.u32 %v1555, 2147483648
    %v1564 = vmul.f32 %v1558, 1.442695
    %v1565 = vpow.pop %v1564
    %v1566 = vmul.f32 %v1559, 1.442695
    %v1567 = vpow.pop %v1566
    %v1568 = vmul.f32 %v1560, 1.442695
    %v1569 = vpow.pop %v1568
    %v1570 = vmul.f32 %v1561, 1.442695
    %v1571 = vpow.pop %v1570
    %v1572 = vmul.f32 %v1562, 1.442695
    %v1573 = vpow.pop %v1572
    %v1574 = vmul.f32 %v1563, 1.442695
    %v1575 = vpow.pop %v1574
    %v1576 = vadd.f32 %v1565, 1.0
    %v1577 = vadd.f32 %v1567, 1.0
    %v1578 = vadd.f32 %v1569, 1.0
    %v1579 = vadd.f32 %v1571, 1.0
    %v1580 = vadd.f32 %v1573, 1.0
    %v1581 = vadd.f32 %v1575, 1.0
    %v1582 = vrcp.pop %v1576
    %v1583 = vmul.f32 1.0, %v1582
    %v1584 = vrcp.pop %v1577
    %v1585 = vmul.f32 1.0, %v1584
    %v1586 = vrcp.pop %v1578
    %v1587 = vmul.f32 1.0, %v1586
    %v1588 = vrcp.pop %v1579
    %v1589 = vmul.f32 1.0, %v1588
    %v1590 = vrcp.pop %v1580
    %v1591 = vmul.f32 1.0, %v1590
    %v1592 = vrcp.pop %v1581
    %v1593 = vmul.f32 1.0, %v1592
    %v1594 = vtanh.pop %v1556
    %v1595 = vtanh.pop %v1557
    %v1596 = vmul.f32 %v1587, 0.0
    %v1597 = vmul.f32 %v1589, 0.0
    %v1598 = vmul.f32 %v1583, %v1594
    %v1599 = vmul.f32 %v1585, %v1595
    %v1600 = vadd.f32 %v1596, %v1598
    %v1601 = vadd.f32 %v1597, %v1599
    %v1602 = vtanh.pop %v1600
    %v1603 = vtanh.pop %v1601
    %v1604 = vmul.f32 %v1591, %v1602
    %v1605 = vmul.f32 %v1593, %v1603
    %v1606 = vmul.f32 %v1604, %v1548
    %v1607 = vmul.f32 %v1605, %v1549
    %v1608 = vpack.c.bf16 %v1606, %v1606
    %v1609 = vpack.c.bf16 %v1607, %v1607
    %v1610 = vmul.f32 %v1600, %v1548
    %v1611 = vmul.f32 %v1601, %v1549
    %s1612 = smul.u32 1, 8
    %s1613 = smul.addr %s1612, 8
    %s1614 = scalar_lea.vmem [#allocation2], %s1613
    %v1615 = vld [vmem:[%s1614] sm:$0x3]
    %v1616 = vld [vmem:[%s1614 + $0x8] sm:$0x3]
    %v1617 = vld [vmem:[%s1614 + $0x10] sm:$0x3]
    %v1618 = vld [vmem:[%s1614 + $0x18] sm:$0x3]
    %v1619 = vld [vmem:[%s1614 + $0x20] sm:$0x3]
    %v1620 = vld [vmem:[%s1614 + $0x28] sm:$0x3]
    %v1621 = vld [vmem:[%s1614 + $0x30] sm:$0x3]
    %v1622 = vld [vmem:[%s1614 + $0x38] sm:$0x3]
    %v1751 = vunpack.c.l.b16 %v39
    %v1752 = vunpack.c.h.b16 %v39
    %v1753 = vunpack.c.l.b16 %v40
    %v1754 = vunpack.c.h.b16 %v40
    %v1755 = vunpack.c.l.b16 %v41
    %v1756 = vunpack.c.h.b16 %v41
    %v1757 = vunpack.c.l.b16 %v42
    %v1758 = vunpack.c.h.b16 %v42
    %v1759 = vunpack.c.l.b16 %v43
    %v1760 = vunpack.c.h.b16 %v43
    %v1761 = vunpack.c.l.b16 %v44
    %v1762 = vunpack.c.h.b16 %v44
    %v1763 = vunpack.c.l.b16 %v45
    %v1764 = vunpack.c.h.b16 %v45
    %v1765 = vunpack.c.l.b16 %v46
    %v1766 = vunpack.c.h.b16 %v46
    %v1767 = vunpack.c.l.b16 %v47
    %v1768 = vunpack.c.h.b16 %v47
    %v1769 = vunpack.c.l.b16 %v48
    %v1770 = vunpack.c.h.b16 %v48
    %v1771 = vunpack.c.l.b16 %v49
    %v1772 = vunpack.c.h.b16 %v49
    %v1773 = vunpack.c.l.b16 %v50
    %v1774 = vunpack.c.h.b16 %v50
    %v1775 = vunpack.c.l.b16 %v51
    %v1776 = vunpack.c.h.b16 %v51
    %v1777 = vunpack.c.l.b16 %v52
    %v1778 = vunpack.c.h.b16 %v52
    %v1779 = vunpack.c.l.b16 %v53
    %v1780 = vunpack.c.h.b16 %v53
    %v1781 = vunpack.c.l.b16 %v54
    %v1782 = vunpack.c.h.b16 %v54
    %v1783 = vunpack.c.l.b16 %v55
    %v1784 = vunpack.c.h.b16 %v55
    %v1785 = vunpack.c.l.b16 %v56
    %v1786 = vunpack.c.h.b16 %v56
    %v1787 = vunpack.c.l.b16 %v57
    %v1788 = vunpack.c.h.b16 %v57
    %v1789 = vunpack.c.l.b16 %v58
    %v1790 = vunpack.c.h.b16 %v58
    %v1791 = vunpack.c.l.b16 %v59
    %v1792 = vunpack.c.h.b16 %v59
    %v1793 = vunpack.c.l.b16 %v60
    %v1794 = vunpack.c.h.b16 %v60
    %v1795 = vunpack.c.l.b16 %v61
    %v1796 = vunpack.c.h.b16 %v61
    %v1797 = vunpack.c.l.b16 %v62
    %v1798 = vunpack.c.h.b16 %v62
    %v1799 = vunpack.c.l.b16 %v63
    %v1800 = vunpack.c.h.b16 %v63
    %v1801 = vunpack.c.l.b16 %v64
    %v1802 = vunpack.c.h.b16 %v64
    %v1803 = vunpack.c.l.b16 %v65
    %v1804 = vunpack.c.h.b16 %v65
    %v1805 = vunpack.c.l.b16 %v66
    %v1806 = vunpack.c.h.b16 %v66
    %v1807 = vunpack.c.l.b16 %v67
    %v1808 = vunpack.c.h.b16 %v67
    %v1809 = vunpack.c.l.b16 %v68
    %v1810 = vunpack.c.h.b16 %v68
    %v1811 = vunpack.c.l.b16 %v69
    %v1812 = vunpack.c.h.b16 %v69
    %v1813 = vunpack.c.l.b16 %v70
    %v1814 = vunpack.c.h.b16 %v70
    %v1815 = vunpack.c.l.b16 %v71
    %v1816 = vunpack.c.h.b16 %v71
    %v1817 = vunpack.c.l.b16 %v72
    %v1818 = vunpack.c.h.b16 %v72
    %v1819 = vunpack.c.l.b16 %v73
    %v1820 = vunpack.c.h.b16 %v73
    %v1821 = vunpack.c.l.b16 %v74
    %v1822 = vunpack.c.h.b16 %v74
    %v1823 = vunpack.c.l.b16 %v75
    %v1824 = vunpack.c.h.b16 %v75
    %v1825 = vunpack.c.l.b16 %v76
    %v1826 = vunpack.c.h.b16 %v76
    %v1827 = vunpack.c.l.b16 %v77
    %v1828 = vunpack.c.h.b16 %v77
    %v1829 = vunpack.c.l.b16 %v78
    %v1830 = vunpack.c.h.b16 %v78
    %v1831 = vunpack.c.l.b16 %v79
    %v1832 = vunpack.c.h.b16 %v79
    %v1833 = vunpack.c.l.b16 %v80
    %v1834 = vunpack.c.h.b16 %v80
    %v1835 = vunpack.c.l.b16 %v81
    %v1836 = vunpack.c.h.b16 %v81
    %v1837 = vunpack.c.l.b16 %v82
    %v1838 = vunpack.c.h.b16 %v82
    %v1839 = vunpack.c.l.b16 %v83
    %v1840 = vunpack.c.h.b16 %v83
    %v1841 = vunpack.c.l.b16 %v84
    %v1842 = vunpack.c.h.b16 %v84
    %v1843 = vunpack.c.l.b16 %v85
    %v1844 = vunpack.c.h.b16 %v85
    %v1845 = vunpack.c.l.b16 %v86
    %v1846 = vunpack.c.h.b16 %v86
    %v1847 = vunpack.c.l.b16 %v87
    %v1848 = vunpack.c.h.b16 %v87
    %v1849 = vunpack.c.l.b16 %v88
    %v1850 = vunpack.c.h.b16 %v88
    %v1851 = vunpack.c.l.b16 %v89
    %v1852 = vunpack.c.h.b16 %v89
    %v1853 = vunpack.c.l.b16 %v90
    %v1854 = vunpack.c.h.b16 %v90
    %v1855 = vunpack.c.l.b16 %v91
    %v1856 = vunpack.c.h.b16 %v91
    %v1857 = vunpack.c.l.b16 %v92
    %v1858 = vunpack.c.h.b16 %v92
    %v1859 = vunpack.c.l.b16 %v93
    %v1860 = vunpack.c.h.b16 %v93
    %v1861 = vunpack.c.l.b16 %v94
    %v1862 = vunpack.c.h.b16 %v94
    %v1863 = vunpack.c.l.b16 %v95
    %v1864 = vunpack.c.h.b16 %v95
    %v1865 = vunpack.c.l.b16 %v96
    %v1866 = vunpack.c.h.b16 %v96
    %v1867 = vunpack.c.l.b16 %v97
    %v1868 = vunpack.c.h.b16 %v97
    %v1869 = vunpack.c.l.b16 %v98
    %v1870 = vunpack.c.h.b16 %v98
    %v1871 = vunpack.c.l.b16 %v99
    %v1872 = vunpack.c.h.b16 %v99
    %v1873 = vunpack.c.l.b16 %v100
    %v1874 = vunpack.c.h.b16 %v100
    %v1875 = vunpack.c.l.b16 %v101
    %v1876 = vunpack.c.h.b16 %v101
    %v1877 = vunpack.c.l.b16 %v102
    %v1878 = vunpack.c.h.b16 %v102
    %v1879 = vunpack.c.l.b16 %v103
    %v1880 = vunpack.c.h.b16 %v103
    %v1881 = vunpack.c.l.b16 %v104
    %v1882 = vunpack.c.h.b16 %v104
    %v1883 = vunpack.c.l.b16 %v105
    %v1884 = vunpack.c.h.b16 %v105
    %v1885 = vunpack.c.l.b16 %v106
    %v1886 = vunpack.c.h.b16 %v106
    %v1887 = vunpack.c.l.b16 %v107
    %v1888 = vunpack.c.h.b16 %v107
    %v1889 = vunpack.c.l.b16 %v108
    %v1890 = vunpack.c.h.b16 %v108
    %v1891 = vunpack.c.l.b16 %v109
    %v1892 = vunpack.c.h.b16 %v109
    %v1893 = vunpack.c.l.b16 %v110
    %v1894 = vunpack.c.h.b16 %v110
    %v1895 = vunpack.c.l.b16 %v111
    %v1896 = vunpack.c.h.b16 %v111
    %v1897 = vunpack.c.l.b16 %v112
    %v1898 = vunpack.c.h.b16 %v112
    %v1899 = vunpack.c.l.b16 %v113
    %v1900 = vunpack.c.h.b16 %v113
    %v1901 = vunpack.c.l.b16 %v114
    %v1902 = vunpack.c.h.b16 %v114
    %v1903 = vunpack.c.l.b16 %v115
    %v1904 = vunpack.c.h.b16 %v115
    %v1905 = vunpack.c.l.b16 %v116
    %v1906 = vunpack.c.h.b16 %v116
    %v1907 = vunpack.c.l.b16 %v117
    %v1908 = vunpack.c.h.b16 %v117
    %v1909 = vunpack.c.l.b16 %v118
    %v1910 = vunpack.c.h.b16 %v118
    %v1911 = vunpack.c.l.b16 %v119
    %v1912 = vunpack.c.h.b16 %v119
    %v1913 = vunpack.c.l.b16 %v120
    %v1914 = vunpack.c.h.b16 %v120
    %v1915 = vunpack.c.l.b16 %v121
    %v1916 = vunpack.c.h.b16 %v121
    %v1917 = vunpack.c.l.b16 %v122
    %v1918 = vunpack.c.h.b16 %v122
    %v1919 = vunpack.c.l.b16 %v123
    %v1920 = vunpack.c.h.b16 %v123
    %v1921 = vunpack.c.l.b16 %v124
    %v1922 = vunpack.c.h.b16 %v124
    %v1923 = vunpack.c.l.b16 %v125
    %v1924 = vunpack.c.h.b16 %v125
    %v1925 = vunpack.c.l.b16 %v126
    %v1926 = vunpack.c.h.b16 %v126
    %v1927 = vunpack.c.l.b16 %v127
    %v1928 = vunpack.c.h.b16 %v127
    %v1929 = vunpack.c.l.b16 %v128
    %v1930 = vunpack.c.h.b16 %v128
    %v1931 = vunpack.c.l.b16 %v129
    %v1932 = vunpack.c.h.b16 %v129
    %v1933 = vunpack.c.l.b16 %v130
    %v1934 = vunpack.c.h.b16 %v130
    %v1935 = vunpack.c.l.b16 %v131
    %v1936 = vunpack.c.h.b16 %v131
    %v1937 = vunpack.c.l.b16 %v132
    %v1938 = vunpack.c.h.b16 %v132
    %v1939 = vunpack.c.l.b16 %v133
    %v1940 = vunpack.c.h.b16 %v133
    %v1941 = vunpack.c.l.b16 %v134
    %v1942 = vunpack.c.h.b16 %v134
    %v1943 = vunpack.c.l.b16 %v135
    %v1944 = vunpack.c.h.b16 %v135
    %v1945 = vunpack.c.l.b16 %v136
    %v1946 = vunpack.c.h.b16 %v136
    %v1947 = vunpack.c.l.b16 %v137
    %v1948 = vunpack.c.h.b16 %v137
    %v1949 = vunpack.c.l.b16 %v138
    %v1950 = vunpack.c.h.b16 %v138
    %v1951 = vunpack.c.l.b16 %v139
    %v1952 = vunpack.c.h.b16 %v139
    %v1953 = vunpack.c.l.b16 %v140
    %v1954 = vunpack.c.h.b16 %v140
    %v1955 = vunpack.c.l.b16 %v141
    %v1956 = vunpack.c.h.b16 %v141
    %v1957 = vunpack.c.l.b16 %v142
    %v1958 = vunpack.c.h.b16 %v142
    %v1959 = vunpack.c.l.b16 %v143
    %v1960 = vunpack.c.h.b16 %v143
    %v1961 = vunpack.c.l.b16 %v144
    %v1962 = vunpack.c.h.b16 %v144
    %v1963 = vunpack.c.l.b16 %v145
    %v1964 = vunpack.c.h.b16 %v145
    %v1965 = vunpack.c.l.b16 %v146
    %v1966 = vunpack.c.h.b16 %v146
    %v1967 = vunpack.c.l.b16 %v147
    %v1968 = vunpack.c.h.b16 %v147
    %v1969 = vunpack.c.l.b16 %v148
    %v1970 = vunpack.c.h.b16 %v148
    %v1971 = vunpack.c.l.b16 %v149
    %v1972 = vunpack.c.h.b16 %v149
    %v1973 = vunpack.c.l.b16 %v150
    %v1974 = vunpack.c.h.b16 %v150
    %v1975 = vunpack.c.l.b16 %v151
    %v1976 = vunpack.c.h.b16 %v151
    %v1977 = vunpack.c.l.b16 %v152
    %v1978 = vunpack.c.h.b16 %v152
    %v1979 = vunpack.c.l.b16 %v153
    %v1980 = vunpack.c.h.b16 %v153
    %v1981 = vunpack.c.l.b16 %v154
    %v1982 = vunpack.c.h.b16 %v154
    %v1983 = vunpack.c.l.b16 %v155
    %v1984 = vunpack.c.h.b16 %v155
    %v1985 = vunpack.c.l.b16 %v156
    %v1986 = vunpack.c.h.b16 %v156
    %v1987 = vunpack.c.l.b16 %v157
    %v1988 = vunpack.c.h.b16 %v157
    %v1989 = vunpack.c.l.b16 %v158
    %v1990 = vunpack.c.h.b16 %v158
    %v1991 = vunpack.c.l.b16 %v159
    %v1992 = vunpack.c.h.b16 %v159
    %v1993 = vunpack.c.l.b16 %v160
    %v1994 = vunpack.c.h.b16 %v160
    %v1995 = vunpack.c.l.b16 %v161
    %v1996 = vunpack.c.h.b16 %v161
    %v1997 = vunpack.c.l.b16 %v162
    %v1998 = vunpack.c.h.b16 %v162
    %v1999 = vunpack.c.l.b16 %v163
    %v2000 = vunpack.c.h.b16 %v163
    %v2001 = vunpack.c.l.b16 %v164
    %v2002 = vunpack.c.h.b16 %v164
    %v2003 = vunpack.c.l.b16 %v165
    %v2004 = vunpack.c.h.b16 %v165
    %v2005 = vunpack.c.l.b16 %v166
    %v2006 = vunpack.c.h.b16 %v166
    %v2007 = vpack.c.b16 %v1759, %v1751
    %v2008 = vpack.c.b16 %v1760, %v1752
    %v2009 = vpack.c.b16 %v1761, %v1753
    %v2010 = vpack.c.b16 %v1762, %v1754
    %v2011 = vpack.c.b16 %v1763, %v1755
    %v2012 = vpack.c.b16 %v1764, %v1756
    %v2013 = vpack.c.b16 %v1765, %v1757
    %v2014 = vpack.c.b16 %v1766, %v1758
    %v2015 = vpack.c.b16 %v1775, %v1767
    %v2016 = vpack.c.b16 %v1776, %v1768
    %v2017 = vpack.c.b16 %v1777, %v1769
    %v2018 = vpack.c.b16 %v1778, %v1770
    %v2019 = vpack.c.b16 %v1779, %v1771
    %v2020 = vpack.c.b16 %v1780, %v1772
    %v2021 = vpack.c.b16 %v1781, %v1773
    %v2022 = vpack.c.b16 %v1782, %v1774
    %v2023 = vpack.c.b16 %v1791, %v1783
    %v2024 = vpack.c.b16 %v1792, %v1784
    %v2025 = vpack.c.b16 %v1793, %v1785
    %v2026 = vpack.c.b16 %v1794, %v1786
    %v2027 = vpack.c.b16 %v1795, %v1787
    %v2028 = vpack.c.b16 %v1796, %v1788
    %v2029 = vpack.c.b16 %v1797, %v1789
    %v2030 = vpack.c.b16 %v1798, %v1790
    %v2031 = vpack.c.b16 %v1807, %v1799
    %v2032 = vpack.c.b16 %v1808, %v1800
    %v2033 = vpack.c.b16 %v1809, %v1801
    %v2034 = vpack.c.b16 %v1810, %v1802
    %v2035 = vpack.c.b16 %v1811, %v1803
    %v2036 = vpack.c.b16 %v1812, %v1804
    %v2037 = vpack.c.b16 %v1813, %v1805
    %v2038 = vpack.c.b16 %v1814, %v1806
    %v2039 = vpack.c.b16 %v1823, %v1815
    %v2040 = vpack.c.b16 %v1824, %v1816
    %v2041 = vpack.c.b16 %v1825, %v1817
    %v2042 = vpack.c.b16 %v1826, %v1818
    %v2043 = vpack.c.b16 %v1827, %v1819
    %v2044 = vpack.c.b16 %v1828, %v1820
    %v2045 = vpack.c.b16 %v1829, %v1821
    %v2046 = vpack.c.b16 %v1830, %v1822
    %v2047 = vpack.c.b16 %v1839, %v1831
    %v2048 = vpack.c.b16 %v1840, %v1832
    %v2049 = vpack.c.b16 %v1841, %v1833
    %v2050 = vpack.c.b16 %v1842, %v1834
    %v2051 = vpack.c.b16 %v1843, %v1835
    %v2052 = vpack.c.b16 %v1844, %v1836
    %v2053 = vpack.c.b16 %v1845, %v1837
    %v2054 = vpack.c.b16 %v1846, %v1838
    %v2055 = vpack.c.b16 %v1855, %v1847
    %v2056 = vpack.c.b16 %v1856, %v1848
    %v2057 = vpack.c.b16 %v1857, %v1849
    %v2058 = vpack.c.b16 %v1858, %v1850
    %v2059 = vpack.c.b16 %v1859, %v1851
    %v2060 = vpack.c.b16 %v1860, %v1852
    %v2061 = vpack.c.b16 %v1861, %v1853
    %v2062 = vpack.c.b16 %v1862, %v1854
    %v2063 = vpack.c.b16 %v1871, %v1863
    %v2064 = vpack.c.b16 %v1872, %v1864
    %v2065 = vpack.c.b16 %v1873, %v1865
    %v2066 = vpack.c.b16 %v1874, %v1866
    %v2067 = vpack.c.b16 %v1875, %v1867
    %v2068 = vpack.c.b16 %v1876, %v1868
    %v2069 = vpack.c.b16 %v1877, %v1869
    %v2070 = vpack.c.b16 %v1878, %v1870
    %v2071 = vpack.c.b16 %v1887, %v1879
    %v2072 = vpack.c.b16 %v1888, %v1880
    %v2073 = vpack.c.b16 %v1889, %v1881
    %v2074 = vpack.c.b16 %v1890, %v1882
    %v2075 = vpack.c.b16 %v1891, %v1883
    %v2076 = vpack.c.b16 %v1892, %v1884
    %v2077 = vpack.c.b16 %v1893, %v1885
    %v2078 = vpack.c.b16 %v1894, %v1886
    %v2079 = vpack.c.b16 %v1903, %v1895
    %v2080 = vpack.c.b16 %v1904, %v1896
    %v2081 = vpack.c.b16 %v1905, %v1897
    %v2082 = vpack.c.b16 %v1906, %v1898
    %v2083 = vpack.c.b16 %v1907, %v1899
    %v2084 = vpack.c.b16 %v1908, %v1900
    %v2085 = vpack.c.b16 %v1909, %v1901
    %v2086 = vpack.c.b16 %v1910, %v1902
    %v2087 = vpack.c.b16 %v1919, %v1911
    %v2088 = vpack.c.b16 %v1920, %v1912
    %v2089 = vpack.c.b16 %v1921, %v1913
    %v2090 = vpack.c.b16 %v1922, %v1914
    %v2091 = vpack.c.b16 %v1923, %v1915
    %v2092 = vpack.c.b16 %v1924, %v1916
    %v2093 = vpack.c.b16 %v1925, %v1917
    %v2094 = vpack.c.b16 %v1926, %v1918
    %v2095 = vpack.c.b16 %v1935, %v1927
    %v2096 = vpack.c.b16 %v1936, %v1928
    %v2097 = vpack.c.b16 %v1937, %v1929
    %v2098 = vpack.c.b16 %v1938, %v1930
    %v2099 = vpack.c.b16 %v1939, %v1931
    %v2100 = vpack.c.b16 %v1940, %v1932
    %v2101 = vpack.c.b16 %v1941, %v1933
    %v2102 = vpack.c.b16 %v1942, %v1934
    %v2103 = vpack.c.b16 %v1951, %v1943
    %v2104 = vpack.c.b16 %v1952, %v1944
    %v2105 = vpack.c.b16 %v1953, %v1945
    %v2106 = vpack.c.b16 %v1954, %v1946
    %v2107 = vpack.c.b16 %v1955, %v1947
    %v2108 = vpack.c.b16 %v1956, %v1948
    %v2109 = vpack.c.b16 %v1957, %v1949
    %v2110 = vpack.c.b16 %v1958, %v1950
    %v2111 = vpack.c.b16 %v1967, %v1959
    %v2112 = vpack.c.b16 %v1968, %v1960
    %v2113 = vpack.c.b16 %v1969, %v1961
    %v2114 = vpack.c.b16 %v1970, %v1962
    %v2115 = vpack.c.b16 %v1971, %v1963
    %v2116 = vpack.c.b16 %v1972, %v1964
    %v2117 = vpack.c.b16 %v1973, %v1965
    %v2118 = vpack.c.b16 %v1974, %v1966
    %v2119 = vpack.c.b16 %v1983, %v1975
    %v2120 = vpack.c.b16 %v1984, %v1976
    %v2121 = vpack.c.b16 %v1985, %v1977
    %v2122 = vpack.c.b16 %v1986, %v1978
    %v2123 = vpack.c.b16 %v1987, %v1979
    %v2124 = vpack.c.b16 %v1988, %v1980
    %v2125 = vpack.c.b16 %v1989, %v1981
    %v2126 = vpack.c.b16 %v1990, %v1982
    %v2127 = vpack.c.b16 %v1999, %v1991
    %v2128 = vpack.c.b16 %v2000, %v1992
    %v2129 = vpack.c.b16 %v2001, %v1993
    %v2130 = vpack.c.b16 %v2002, %v1994
    %v2131 = vpack.c.b16 %v2003, %v1995
    %v2132 = vpack.c.b16 %v2004, %v1996
    %v2133 = vpack.c.b16 %v2005, %v1997
    %v2134 = vpack.c.b16 %v2006, %v1998
    %2263 = vmatprep.subr.bf16.mxu0 %v2008
    %2264 = vmatpush1.bf16.msra.mxu0 %v2007
    %2265 = vmatprep.subr.bf16.mxu0 %v2016
    %2266 = vmatpush1.bf16.msra.mxu0 %v2015
    %2267 = vmatprep.subr.bf16.mxu0 %v2024
    %2268 = vmatpush1.bf16.msra.mxu0 %v2023
    %2269 = vmatprep.subr.bf16.mxu0 %v2032
    %2270 = vmatpush1.bf16.msra.mxu0 %v2031
    %2271 = vmatprep.subr.bf16.mxu0 %v2040
    %2272 = vmatpush1.bf16.msra.mxu0 %v2039
    %2273 = vmatprep.subr.bf16.mxu0 %v2048
    %2274 = vmatpush1.bf16.msra.mxu0 %v2047
    %2275 = vmatprep.subr.bf16.mxu0 %v2056
    %2276 = vmatpush1.bf16.msra.mxu0 %v2055
    %2277 = vmatprep.subr.bf16.mxu0 %v2064
    %2278 = vmatpush1.bf16.msra.mxu0 %v2063
    %2279 = vmatprep.subr.bf16.mxu0 %v2072
    %2280 = vmatpush1.bf16.msra.mxu0 %v2071
    %2281 = vmatprep.subr.bf16.mxu0 %v2080
    %2282 = vmatpush1.bf16.msra.mxu0 %v2079
    %2283 = vmatprep.subr.bf16.mxu0 %v2088
    %2284 = vmatpush1.bf16.msra.mxu0 %v2087
    %2285 = vmatprep.subr.bf16.mxu0 %v2096
    %2286 = vmatpush1.bf16.msra.mxu0 %v2095
    %2287 = vmatprep.subr.bf16.mxu0 %v2104
    %2288 = vmatpush1.bf16.msra.mxu0 %v2103
    %2289 = vmatprep.subr.bf16.mxu0 %v2112
    %2290 = vmatpush1.bf16.msra.mxu0 %v2111
    %2291 = vmatprep.subr.bf16.mxu0 %v2120
    %2292 = vmatpush1.bf16.msra.mxu0 %v2119
    %2293 = vmatprep.subr.bf16.mxu0 %v2128
    %2294 = vmatpush1.bf16.msra.mxu0 %v2127
    %2295 = vmatprep.mubr.bf16.mxu0 %v1609
    %2296 = vmatmul.mubr.bf16.gmra.mrb[0].mxu0 %v1608
    %v2297 = vpop.f32.mrb[0].mxu0
    %v2298 = vadd.f32 %v1615, %v2297
    %v2299 = vpop.f32.mrb[0].mxu0
    %v2300 = vadd.f32 %v1616, %v2299
    %v2301 = vpop.f32.mrb[0].mxu0
    %v2302 = vpop.f32.mrb[0].mxu0
    %2303 = vdwg.mxu0
    %2304 = vmatprep.subr.bf16.mxu0 %v2010
    %2305 = vmatpush1.bf16.msra.mxu0 %v2009
    %2306 = vmatprep.subr.bf16.mxu0 %v2018
    %2307 = vmatpush1.bf16.msra.mxu0 %v2017
    %2308 = vmatprep.subr.bf16.mxu0 %v2026
    %2309 = vmatpush1.bf16.msra.mxu0 %v2025
    %2310 = vmatprep.subr.bf16.mxu0 %v2034
    %2311 = vmatpush1.bf16.msra.mxu0 %v2033
    %2312 = vmatprep.subr.bf16.mxu0 %v2042
    %2313 = vmatpush1.bf16.msra.mxu0 %v2041
    %2314 = vmatprep.subr.bf16.mxu0 %v2050
    %2315 = vmatpush1.bf16.msra.mxu0 %v2049
    %2316 = vmatprep.subr.bf16.mxu0 %v2058
    %2317 = vmatpush1.bf16.msra.mxu0 %v2057
    %2318 = vmatprep.subr.bf16.mxu0 %v2066
    %2319 = vmatpush1.bf16.msra.mxu0 %v2065
    %2320 = vmatprep.subr.bf16.mxu0 %v2074
    %2321 = vmatpush1.bf16.msra.mxu0 %v2073
    %2322 = vmatprep.subr.bf16.mxu0 %v2082
    %2323 = vmatpush1.bf16.msra.mxu0 %v2081
    %2324 = vmatprep.subr.bf16.mxu0 %v2090
    %2325 = vmatpush1.bf16.msra.mxu0 %v2089
    %2326 = vmatprep.subr.bf16.mxu0 %v2098
    %2327 = vmatpush1.bf16.msra.mxu0 %v2097
    %2328 = vmatprep.subr.bf16.mxu0 %v2106
    %2329 = vmatpush1.bf16.msra.mxu0 %v2105
    %2330 = vmatprep.subr.bf16.mxu0 %v2114
    %2331 = vmatpush1.bf16.msra.mxu0 %v2113
    %2332 = vmatprep.subr.bf16.mxu0 %v2122
    %2333 = vmatpush1.bf16.msra.mxu0 %v2121
    %2334 = vmatprep.subr.bf16.mxu0 %v2130
    %2335 = vmatpush1.bf16.msra.mxu0 %v2129
    %2336 = vmatprep.mubr.bf16.mxu0 %v1609
    %2337 = vmatmul.mubr.bf16.gmra.mrb[0].mxu0 %v1608
    %v2338 = vpop.f32.mrb[0].mxu0
    %v2339 = vadd.f32 %v1617, %v2338
    %v2340 = vpop.f32.mrb[0].mxu0
    %v2341 = vadd.f32 %v1618, %v2340
    %v2342 = vpop.f32.mrb[0].mxu0
    %v2343 = vpop.f32.mrb[0].mxu0
    %2344 = vdwg.mxu0
    %2345 = vmatprep.subr.bf16.mxu0 %v2012
    %2346 = vmatpush1.bf16.msra.mxu0 %v2011
    %2347 = vmatprep.subr.bf16.mxu0 %v2020
    %2348 = vmatpush1.bf16.msra.mxu0 %v2019
    %2349 = vmatprep.subr.bf16.mxu0 %v2028
    %2350 = vmatpush1.bf16.msra.mxu0 %v2027
    %2351 = vmatprep.subr.bf16.mxu0 %v2036
    %2352 = vmatpush1.bf16.msra.mxu0 %v2035
    %2353 = vmatprep.subr.bf16.mxu0 %v2044
    %2354 = vmatpush1.bf16.msra.mxu0 %v2043
    %2355 = vmatprep.subr.bf16.mxu0 %v2052
    %2356 = vmatpush1.bf16.msra.mxu0 %v2051
    %2357 = vmatprep.subr.bf16.mxu0 %v2060
    %2358 = vmatpush1.bf16.msra.mxu0 %v2059
    %2359 = vmatprep.subr.bf16.mxu0 %v2068
    %2360 = vmatpush1.bf16.msra.mxu0 %v2067
    %2361 = vmatprep.subr.bf16.mxu0 %v2076
    %2362 = vmatpush1.bf16.msra.mxu0 %v2075
    %2363 = vmatprep.subr.bf16.mxu0 %v2084
    %2364 = vmatpush1.bf16.msra.mxu0 %v2083
    %2365 = vmatprep.subr.bf16.mxu0 %v2092
    %2366 = vmatpush1.bf16.msra.mxu0 %v2091
    %2367 = vmatprep.subr.bf16.mxu0 %v2100
    %2368 = vmatpush1.bf16.msra.mxu0 %v2099
    %2369 = vmatprep.subr.bf16.mxu0 %v2108
    %2370 = vmatpush1.bf16.msra.mxu0 %v2107
    %2371 = vmatprep.subr.bf16.mxu0 %v2116
    %2372 = vmatpush1.bf16.msra.mxu0 %v2115
    %2373 = vmatprep.subr.bf16.mxu0 %v2124
    %2374 = vmatpush1.bf16.msra.mxu0 %v2123
    %2375 = vmatprep.subr.bf16.mxu0 %v2132
    %2376 = vmatpush1.bf16.msra.mxu0 %v2131
    %2377 = vmatprep.mubr.bf16.mxu0 %v1609
    %2378 = vmatmul.mubr.bf16.gmra.mrb[0].mxu0 %v1608
    %v2379 = vpop.f32.mrb[0].mxu0
    %v2380 = vadd.f32 %v1619, %v2379
    %v2381 = vpop.f32.mrb[0].mxu0
    %v2382 = vadd.f32 %v1620, %v2381
    %v2383 = vpop.f32.mrb[0].mxu0
    %v2384 = vpop.f32.mrb[0].mxu0
    %2385 = vdwg.mxu0
    %2386 = vmatprep.subr.bf16.mxu0 %v2014
    %2387 = vmatpush1.bf16.msra.mxu0 %v2013
    %2388 = vmatprep.subr.bf16.mxu0 %v2022
    %2389 = vmatpush1.bf16.msra.mxu0 %v2021
    %2390 = vmatprep.subr.bf16.mxu0 %v2030
    %2391 = vmatpush1.bf16.msra.mxu0 %v2029
    %2392 = vmatprep.subr.bf16.mxu0 %v2038
    %2393 = vmatpush1.bf16.msra.mxu0 %v2037
    %2394 = vmatprep.subr.bf16.mxu0 %v2046
    %2395 = vmatpush1.bf16.msra.mxu0 %v2045
    %2396 = vmatprep.subr.bf16.mxu0 %v2054
    %2397 = vmatpush1.bf16.msra.mxu0 %v2053
    %2398 = vmatprep.subr.bf16.mxu0 %v2062
    %2399 = vmatpush1.bf16.msra.mxu0 %v2061
    %2400 = vmatprep.subr.bf16.mxu0 %v2070
    %2401 = vmatpush1.bf16.msra.mxu0 %v2069
    %2402 = vmatprep.subr.bf16.mxu0 %v2078
    %2403 = vmatpush1.bf16.msra.mxu0 %v2077
    %2404 = vmatprep.subr.bf16.mxu0 %v2086
    %2405 = vmatpush1.bf16.msra.mxu0 %v2085
    %2406 = vmatprep.subr.bf16.mxu0 %v2094
    %2407 = vmatpush1.bf16.msra.mxu0 %v2093
    %2408 = vmatprep.subr.bf16.mxu0 %v2102
    %2409 = vmatpush1.bf16.msra.mxu0 %v2101
    %2410 = vmatprep.subr.bf16.mxu0 %v2110
    %2411 = vmatpush1.bf16.msra.mxu0 %v2109
    %2412 = vmatprep.subr.bf16.mxu0 %v2118
    %2413 = vmatpush1.bf16.msra.mxu0 %v2117
    %2414 = vmatprep.subr.bf16.mxu0 %v2126
    %2415 = vmatpush1.bf16.msra.mxu0 %v2125
    %2416 = vmatprep.subr.bf16.mxu0 %v2134
    %2417 = vmatpush1.bf16.msra.mxu0 %v2133
    %2418 = vmatprep.mubr.bf16.mxu0 %v1609
    %2419 = vmatmul.mubr.bf16.gmra.mrb[0].mxu0 %v1608
    %v2420 = vpop.f32.mrb[0].mxu0
    %v2421 = vadd.f32 %v1621, %v2420
    %v2422 = vpop.f32.mrb[0].mxu0
    %v2423 = vadd.f32 %v1622, %v2422
    %v2424 = vpop.f32.mrb[0].mxu0
    %v2425 = vpop.f32.mrb[0].mxu0
    %2426 = vdwg.mxu0
    %v2427 = vxor.u32 %v2298, 2147483648
    %v2428 = vxor.u32 %v2300, 2147483648
    %v2429 = vxor.u32 %v2339, 2147483648
    %v2430 = vxor.u32 %v2341, 2147483648
    %v2431 = vxor.u32 %v2380, 2147483648
    %v2432 = vxor.u32 %v2382, 2147483648
    %v2433 = vmul.f32 %v2427, 1.442695
    %v2434 = vpow.pop %v2433
    %v2435 = vmul.f32 %v2428, 1.442695
    %v2436 = vpow.pop %v2435
    %v2437 = vmul.f32 %v2429, 1.442695
    %v2438 = vpow.pop %v2437
    %v2439 = vmul.f32 %v2430, 1.442695
    %v2440 = vpow.pop %v2439
    %v2441 = vmul.f32 %v2431, 1.442695
    %v2442 = vpow.pop %v2441
    %v2443 = vmul.f32 %v2432, 1.442695
    %v2444 = vpow.pop %v2443
    %v2445 = vadd.f32 %v2434, 1.0
    %v2446 = vadd.f32 %v2436, 1.0
    %v2447 = vadd.f32 %v2438, 1.0
    %v2448 = vadd.f32 %v2440, 1.0
    %v2449 = vadd.f32 %v2442, 1.0
    %v2450 = vadd.f32 %v2444, 1.0
    %v2451 = vrcp.pop %v2445
    %v2452 = vmul.f32 1.0, %v2451
    %v2453 = vrcp.pop %v2446
    %v2454 = vmul.f32 1.0, %v2453
    %v2455 = vrcp.pop %v2447
    %v2456 = vmul.f32 1.0, %v2455
    %v2457 = vrcp.pop %v2448
    %v2458 = vmul.f32 1.0, %v2457
    %v2459 = vrcp.pop %v2449
    %v2460 = vmul.f32 1.0, %v2459
    %v2461 = vrcp.pop %v2450
    %v2462 = vmul.f32 1.0, %v2461
    %v2463 = vtanh.pop %v2421
    %v2464 = vtanh.pop %v2423
    %v2465 = vmul.f32 %v2456, %v1610
    %v2466 = vmul.f32 %v2458, %v1611
    %v2467 = vmul.f32 %v2452, %v2463
    %v2468 = vmul.f32 %v2454, %v2464
    %v2469 = vadd.f32 %v2465, %v2467
    %v2470 = vadd.f32 %v2466, %v2468
    %v2471 = vtanh.pop %v2469
    %v2472 = vtanh.pop %v2470
    %v2473 = vmul.f32 %v2460, %v2471
    %v2474 = vmul.f32 %v2462, %v2472
    %v2475 = vpack.c.bf16 %v2473, %v2473
    %v2476 = vpack.c.bf16 %v2474, %v2474
    %s2477 = smul.u32 2, 8
    %s2478 = smul.addr %s2477, 8
    %s2479 = scalar_lea.vmem [#allocation2], %s2478
    %v2480 = vld [vmem:[%s2479] sm:$0x3]
    %v2481 = vld [vmem:[%s2479 + $0x8] sm:$0x3]
    %v2482 = vld [vmem:[%s2479 + $0x10] sm:$0x3]
    %v2483 = vld [vmem:[%s2479 + $0x18] sm:$0x3]
    %v2484 = vld [vmem:[%s2479 + $0x20] sm:$0x3]
    %v2485 = vld [vmem:[%s2479 + $0x28] sm:$0x3]
    %v2486 = vld [vmem:[%s2479 + $0x30] sm:$0x3]
    %v2487 = vld [vmem:[%s2479 + $0x38] sm:$0x3]
    %2488 = vmatprep.subr.bf16.mxu0 %v2008
    %2489 = vmatpush1.bf16.msra.mxu0 %v2007
    %2490 = vmatprep.subr.bf16.mxu0 %v2016
    %2491 = vmatpush1.bf16.msra.mxu0 %v2015
    %2492 = vmatprep.subr.bf16.mxu0 %v2024
    %2493 = vmatpush1.bf16.msra.mxu0 %v2023
    %2494 = vmatprep.subr.bf16.mxu0 %v2032
    %2495 = vmatpush1.bf16.msra.mxu0 %v2031
    %2496 = vmatprep.subr.bf16.mxu0 %v2040
    %2497 = vmatpush1.bf16.msra.mxu0 %v2039
    %2498 = vmatprep.subr.bf16.mxu0 %v2048
    %2499 = vmatpush1.bf16.msra.mxu0 %v2047
    %2500 = vmatprep.subr.bf16.mxu0 %v2056
    %2501 = vmatpush1.bf16.msra.mxu0 %v2055
    %2502 = vmatprep.subr.bf16.mxu0 %v2064
    %2503 = vmatpush1.bf16.msra.mxu0 %v2063
    %2504 = vmatprep.subr.bf16.mxu0 %v2072
    %2505 = vmatpush1.bf16.msra.mxu0 %v2071
    %2506 = vmatprep.subr.bf16.mxu0 %v2080
    %2507 = vmatpush1.bf16.msra.mxu0 %v2079
    %2508 = vmatprep.subr.bf16.mxu0 %v2088
    %2509 = vmatpush1.bf16.msra.mxu0 %v2087
    %2510 = vmatprep.subr.bf16.mxu0 %v2096
    %2511 = vmatpush1.bf16.msra.mxu0 %v2095
    %2512 = vmatprep.subr.bf16.mxu0 %v2104
    %2513 = vmatpush1.bf16.msra.mxu0 %v2103
    %2514 = vmatprep.subr.bf16.mxu0 %v2112
    %2515 = vmatpush1.bf16.msra.mxu0 %v2111
    %2516 = vmatprep.subr.bf16.mxu0 %v2120
    %2517 = vmatpush1.bf16.msra.mxu0 %v2119
    %2518 = vmatprep.subr.bf16.mxu0 %v2128
    %2519 = vmatpush1.bf16.msra.mxu0 %v2127
    %2520 = vmatprep.mubr.bf16.mxu0 %v2476
    %2521 = vmatmul.mubr.bf16.gmra.mrb[0].mxu0 %v2475
    %v2522 = vpop.f32.mrb[0].mxu0
    %v2523 = vadd.f32 %v2480, %v2522
    %v2524 = vpop.f32.mrb[0].mxu0
    %v2525 = vadd.f32 %v2481, %v2524
    %v2526 = vpop.f32.mrb[0].mxu0
    %v2527 = vpop.f32.mrb[0].mxu0
    %2528 = vdwg.mxu0
    %2529 = vmatprep.subr.bf16.mxu0 %v2010
    %2530 = vmatpush1.bf16.msra.mxu0 %v2009
    %2531 = vmatprep.subr.bf16.mxu0 %v2018
    %2532 = vmatpush1.bf16.msra.mxu0 %v2017
    %2533 = vmatprep.subr.bf16.mxu0 %v2026
    %2534 = vmatpush1.bf16.msra.mxu0 %v2025
    %2535 = vmatprep.subr.bf16.mxu0 %v2034
    %2536 = vmatpush1.bf16.msra.mxu0 %v2033
    %2537 = vmatprep.subr.bf16.mxu0 %v2042
    %2538 = vmatpush1.bf16.msra.mxu0 %v2041
    %2539 = vmatprep.subr.bf16.mxu0 %v2050
    %2540 = vmatpush1.bf16.msra.mxu0 %v2049
    %2541 = vmatprep.subr.bf16.mxu0 %v2058
    %2542 = vmatpush1.bf16.msra.mxu0 %v2057
    %2543 = vmatprep.subr.bf16.mxu0 %v2066
    %2544 = vmatpush1.bf16.msra.mxu0 %v2065
    %2545 = vmatprep.subr.bf16.mxu0 %v2074
    %2546 = vmatpush1.bf16.msra.mxu0 %v2073
    %2547 = vmatprep.subr.bf16.mxu0 %v2082
    %2548 = vmatpush1.bf16.msra.mxu0 %v2081
    %2549 = vmatprep.subr.bf16.mxu0 %v2090
    %2550 = vmatpush1.bf16.msra.mxu0 %v2089
    %2551 = vmatprep.subr.bf16.mxu0 %v2098
    %2552 = vmatpush1.bf16.msra.mxu0 %v2097
    %2553 = vmatprep.subr.bf16.mxu0 %v2106
    %2554 = vmatpush1.bf16.msra.mxu0 %v2105
    %2555 = vmatprep.subr.bf16.mxu0 %v2114
    %2556 = vmatpush1.bf16.msra.mxu0 %v2113
    %2557 = vmatprep.subr.bf16.mxu0 %v2122
    %2558 = vmatpush1.bf16.msra.mxu0 %v2121
    %2559 = vmatprep.subr.bf16.mxu0 %v2130
    %2560 = vmatpush1.bf16.msra.mxu0 %v2129
    %2561 = vmatprep.mubr.bf16.mxu0 %v2476
    %2562 = vmatmul.mubr.bf16.gmra.mrb[0].mxu0 %v2475
    %v2563 = vpop.f32.mrb[0].mxu0
    %v2564 = vadd.f32 %v2482, %v2563
    %v2565 = vpop.f32.mrb[0].mxu0
    %v2566 = vadd.f32 %v2483, %v2565
    %v2567 = vpop.f32.mrb[0].mxu0
    %v2568 = vpop.f32.mrb[0].mxu0
    %2569 = vdwg.mxu0
    %2570 = vmatprep.subr.bf16.mxu0 %v2012
    %2571 = vmatpush1.bf16.msra.mxu0 %v2011
    %2572 = vmatprep.subr.bf16.mxu0 %v2020
    %2573 = vmatpush1.bf16.msra.mxu0 %v2019
    %2574 = vmatprep.subr.bf16.mxu0 %v2028
    %2575 = vmatpush1.bf16.msra.mxu0 %v2027
    %2576 = vmatprep.subr.bf16.mxu0 %v2036
    %2577 = vmatpush1.bf16.msra.mxu0 %v2035
    %2578 = vmatprep.subr.bf16.mxu0 %v2044
    %2579 = vmatpush1.bf16.msra.mxu0 %v2043
    %2580 = vmatprep.subr.bf16.mxu0 %v2052
    %2581 = vmatpush1.bf16.msra.mxu0 %v2051
    %2582 = vmatprep.subr.bf16.mxu0 %v2060
    %2583 = vmatpush1.bf16.msra.mxu0 %v2059
    %2584 = vmatprep.subr.bf16.mxu0 %v2068
    %2585 = vmatpush1.bf16.msra.mxu0 %v2067
    %2586 = vmatprep.subr.bf16.mxu0 %v2076
    %2587 = vmatpush1.bf16.msra.mxu0 %v2075
    %2588 = vmatprep.subr.bf16.mxu0 %v2084
    %2589 = vmatpush1.bf16.msra.mxu0 %v2083
    %2590 = vmatprep.subr.bf16.mxu0 %v2092
    %2591 = vmatpush1.bf16.msra.mxu0 %v2091
    %2592 = vmatprep.subr.bf16.mxu0 %v2100
    %2593 = vmatpush1.bf16.msra.mxu0 %v2099
    %2594 = vmatprep.subr.bf16.mxu0 %v2108
    %2595 = vmatpush1.bf16.msra.mxu0 %v2107
    %2596 = vmatprep.subr.bf16.mxu0 %v2116
    %2597 = vmatpush1.bf16.msra.mxu0 %v2115
    %2598 = vmatprep.subr.bf16.mxu0 %v2124
    %2599 = vmatpush1.bf16.msra.mxu0 %v2123
    %2600 = vmatprep.subr.bf16.mxu0 %v2132
    %2601 = vmatpush1.bf16.msra.mxu0 %v2131
    %2602 = vmatprep.mubr.bf16.mxu0 %v2476
    %2603 = vmatmul.mubr.bf16.gmra.mrb[0].mxu0 %v2475
    %v2604 = vpop.f32.mrb[0].mxu0
    %v2605 = vadd.f32 %v2484, %v2604
    %v2606 = vpop.f32.mrb[0].mxu0
    %v2607 = vadd.f32 %v2485, %v2606
    %v2608 = vpop.f32.mrb[0].mxu0
    %v2609 = vpop.f32.mrb[0].mxu0
    %2610 = vdwg.mxu0
    %2611 = vmatprep.subr.bf16.mxu0 %v2014
    %2612 = vmatpush1.bf16.msra.mxu0 %v2013
    %2613 = vmatprep.subr.bf16.mxu0 %v2022
    %2614 = vmatpush1.bf16.msra.mxu0 %v2021
    %2615 = vmatprep.subr.bf16.mxu0 %v2030
    %2616 = vmatpush1.bf16.msra.mxu0 %v2029
    %2617 = vmatprep.subr.bf16.mxu0 %v2038
    %2618 = vmatpush1.bf16.msra.mxu0 %v2037
    %2619 = vmatprep.subr.bf16.mxu0 %v2046
    %2620 = vmatpush1.bf16.msra.mxu0 %v2045
    %2621 = vmatprep.subr.bf16.mxu0 %v2054
    %2622 = vmatpush1.bf16.msra.mxu0 %v2053
    %2623 = vmatprep.subr.bf16.mxu0 %v2062
    %2624 = vmatpush1.bf16.msra.mxu0 %v2061
    %2625 = vmatprep.subr.bf16.mxu0 %v2070
    %2626 = vmatpush1.bf16.msra.mxu0 %v2069
    %2627 = vmatprep.subr.bf16.mxu0 %v2078
    %2628 = vmatpush1.bf16.msra.mxu0 %v2077
    %2629 = vmatprep.subr.bf16.mxu0 %v2086
    %2630 = vmatpush1.bf16.msra.mxu0 %v2085
    %2631 = vmatprep.subr.bf16.mxu0 %v2094
    %2632 = vmatpush1.bf16.msra.mxu0 %v2093
    %2633 = vmatprep.subr.bf16.mxu0 %v2102
    %2634 = vmatpush1.bf16.msra.mxu0 %v2101
    %2635 = vmatprep.subr.bf16.mxu0 %v2110
    %2636 = vmatpush1.bf16.msra.mxu0 %v2109
    %2637 = vmatprep.subr.bf16.mxu0 %v2118
    %2638 = vmatpush1.bf16.msra.mxu0 %v2117
    %2639 = vmatprep.subr.bf16.mxu0 %v2126
    %2640 = vmatpush1.bf16.msra.mxu0 %v2125
    %2641 = vmatprep.subr.bf16.mxu0 %v2134
    %2642 = vmatpush1.bf16.msra.mxu0 %v2133
    %2643 = vmatprep.mubr.bf16.mxu0 %v2476
    %2644 = vmatmul.mubr.bf16.gmra.mrb[0].mxu0 %v2475
    %v2645 = vpop.f32.mrb[0].mxu0
    %v2646 = vadd.f32 %v2486, %v2645
    %v2647 = vpop.f32.mrb[0].mxu0
    %v2648 = vadd.f32 %v2487, %v2647
    %v2649 = vpop.f32.mrb[0].mxu0
    %v2650 = vpop.f32.mrb[0].mxu0
    %2651 = vdwg.mxu0
    %v2652 = vxor.u32 %v2523, 2147483648
    %v2653 = vxor.u32 %v2525, 2147483648
    %v2654 = vxor.u32 %v2564, 2147483648
    %v2655 = vxor.u32 %v2566, 2147483648
    %v2656 = vxor.u32 %v2605, 2147483648
    %v2657 = vxor.u32 %v2607, 2147483648
    %v2658 = vmul.f32 %v2652, 1.442695
    %v2659 = vpow.pop %v2658
    %v2660 = vmul.f32 %v2653, 1.442695
    %v2661 = vpow.pop %v2660
    %v2662 = vmul.f32 %v2654, 1.442695
    %v2663 = vpow.pop %v2662
    %v2664 = vmul.f32 %v2655, 1.442695
    %v2665 = vpow.pop %v2664
    %v2666 = vmul.f32 %v2656, 1.442695
    %v2667 = vpow.pop %v2666
    %v2668 = vmul.f32 %v2657, 1.442695
    %v2669 = vpow.pop %v2668
    %v2670 = vadd.f32 %v2659, 1.0
    %v2671 = vadd.f32 %v2661, 1.0
    %v2672 = vadd.f32 %v2663, 1.0
    %v2673 = vadd.f32 %v2665, 1.0
    %v2674 = vadd.f32 %v2667, 1.0
    %v2675 = vadd.f32 %v2669, 1.0
    %v2676 = vrcp.pop %v2670
    %v2677 = vmul.f32 1.0, %v2676
    %v2678 = vrcp.pop %v2671
    %v2679 = vmul.f32 1.0, %v2678
    %v2680 = vrcp.pop %v2672
    %v2681 = vmul.f32 1.0, %v2680
    %v2682 = vrcp.pop %v2673
    %v2683 = vmul.f32 1.0, %v2682
    %v2684 = vrcp.pop %v2674
    %v2685 = vmul.f32 1.0, %v2684
    %v2686 = vrcp.pop %v2675
    %v2687 = vmul.f32 1.0, %v2686
    %v2688 = vtanh.pop %v2646
    %v2689 = vtanh.pop %v2648
    %v2690 = vmul.f32 %v2681, %v2469
    %v2691 = vmul.f32 %v2683, %v2470
    %v2692 = vmul.f32 %v2677, %v2688
    %v2693 = vmul.f32 %v2679, %v2689
    %v2694 = vadd.f32 %v2690, %v2692
    %v2695 = vadd.f32 %v2691, %v2693
    %v2696 = vtanh.pop %v2694
    %v2697 = vtanh.pop %v2695
    %v2698 = vmul.f32 %v2685, %v2696
    %v2699 = vmul.f32 %v2687, %v2697
    %v2700 = vpack.c.bf16 %v2698, %v2698
    %v2701 = vpack.c.bf16 %v2699, %v2699
    %s2702 = smul.u32 3, 8
    %s2703 = smul.addr %s2702, 8
    %s2704 = scalar_lea.vmem [#allocation2], %s2703
    %v2705 = vld [vmem:[%s2704] sm:$0x3]
    %v2706 = vld [vmem:[%s2704 + $0x8] sm:$0x3]
    %v2707 = vld [vmem:[%s2704 + $0x10] sm:$0x3]
    %v2708 = vld [vmem:[%s2704 + $0x18] sm:$0x3]
    %v2709 = vld [vmem:[%s2704 + $0x20] sm:$0x3]
    %v2710 = vld [vmem:[%s2704 + $0x28] sm:$0x3]
    %v2711 = vld [vmem:[%s2704 + $0x30] sm:$0x3]
    %v2712 = vld [vmem:[%s2704 + $0x38] sm:$0x3]
    %2713 = vmatprep.subr.bf16.mxu0 %v2008
    %2714 = vmatpush1.bf16.msra.mxu0 %v2007
    %2715 = vmatprep.subr.bf16.mxu0 %v2016
    %2716 = vmatpush1.bf16.msra.mxu0 %v2015
    %2717 = vmatprep.subr.bf16.mxu0 %v2024
    %2718 = vmatpush1.bf16.msra.mxu0 %v2023
    %2719 = vmatprep.subr.bf16.mxu0 %v2032
    %2720 = vmatpush1.bf16.msra.mxu0 %v2031
    %2721 = vmatprep.subr.bf16.mxu0 %v2040
    %2722 = vmatpush1.bf16.msra.mxu0 %v2039
    %2723 = vmatprep.subr.bf16.mxu0 %v2048
    %2724 = vmatpush1.bf16.msra.mxu0 %v2047
    %2725 = vmatprep.subr.bf16.mxu0 %v2056
    %2726 = vmatpush1.bf16.msra.mxu0 %v2055
    %2727 = vmatprep.subr.bf16.mxu0 %v2064
    %2728 = vmatpush1.bf16.msra.mxu0 %v2063
    %2729 = vmatprep.subr.bf16.mxu0 %v2072
    %2730 = vmatpush1.bf16.msra.mxu0 %v2071
    %2731 = vmatprep.subr.bf16.mxu0 %v2080
    %2732 = vmatpush1.bf16.msra.mxu0 %v2079
    %2733 = vmatprep.subr.bf16.mxu0 %v2088
    %2734 = vmatpush1.bf16.msra.mxu0 %v2087
    %2735 = vmatprep.subr.bf16.mxu0 %v2096
    %2736 = vmatpush1.bf16.msra.mxu0 %v2095
    %2737 = vmatprep.subr.bf16.mxu0 %v2104
    %2738 = vmatpush1.bf16.msra.mxu0 %v2103
    %2739 = vmatprep.subr.bf16.mxu0 %v2112
    %2740 = vmatpush1.bf16.msra.mxu0 %v2111
    %2741 = vmatprep.subr.bf16.mxu0 %v2120
    %2742 = vmatpush1.bf16.msra.mxu0 %v2119
    %2743 = vmatprep.subr.bf16.mxu0 %v2128
    %2744 = vmatpush1.bf16.msra.mxu0 %v2127
    %2745 = vmatprep.mubr.bf16.mxu0 %v2701
    %2746 = vmatmul.mubr.bf16.gmra.mrb[0].mxu0 %v2700
    %v2747 = vpop.f32.mrb[0].mxu0
    %v2748 = vadd.f32 %v2705, %v2747
    %v2749 = vpop.f32.mrb[0].mxu0
    %v2750 = vadd.f32 %v2706, %v2749
    %v2751 = vpop.f32.mrb[0].mxu0
    %v2752 = vpop.f32.mrb[0].mxu0
    %2753 = vdwg.mxu0
    %2754 = vmatprep.subr.bf16.mxu0 %v2010
    %2755 = vmatpush1.bf16.msra.mxu0 %v2009
    %2756 = vmatprep.subr.bf16.mxu0 %v2018
    %2757 = vmatpush1.bf16.msra.mxu0 %v2017
    %2758 = vmatprep.subr.bf16.mxu0 %v2026
    %2759 = vmatpush1.bf16.msra.mxu0 %v2025
    %2760 = vmatprep.subr.bf16.mxu0 %v2034
    %2761 = vmatpush1.bf16.msra.mxu0 %v2033
    %2762 = vmatprep.subr.bf16.mxu0 %v2042
    %2763 = vmatpush1.bf16.msra.mxu0 %v2041
    %2764 = vmatprep.subr.bf16.mxu0 %v2050
    %2765 = vmatpush1.bf16.msra.mxu0 %v2049
    %2766 = vmatprep.subr.bf16.mxu0 %v2058
    %2767 = vmatpush1.bf16.msra.mxu0 %v2057
    %2768 = vmatprep.subr.bf16.mxu0 %v2066
    %2769 = vmatpush1.bf16.msra.mxu0 %v2065
    %2770 = vmatprep.subr.bf16.mxu0 %v2074
    %2771 = vmatpush1.bf16.msra.mxu0 %v2073
    %2772 = vmatprep.subr.bf16.mxu0 %v2082
    %2773 = vmatpush1.bf16.msra.mxu0 %v2081
    %2774 = vmatprep.subr.bf16.mxu0 %v2090
    %2775 = vmatpush1.bf16.msra.mxu0 %v2089
    %2776 = vmatprep.subr.bf16.mxu0 %v2098
    %2777 = vmatpush1.bf16.msra.mxu0 %v2097
    %2778 = vmatprep.subr.bf16.mxu0 %v2106
    %2779 = vmatpush1.bf16.msra.mxu0 %v2105
    %2780 = vmatprep.subr.bf16.mxu0 %v2114
    %2781 = vmatpush1.bf16.msra.mxu0 %v2113
    %2782 = vmatprep.subr.bf16.mxu0 %v2122
    %2783 = vmatpush1.bf16.msra.mxu0 %v2121
    %2784 = vmatprep.subr.bf16.mxu0 %v2130
    %2785 = vmatpush1.bf16.msra.mxu0 %v2129
    %2786 = vmatprep.mubr.bf16.mxu0 %v2701
    %2787 = vmatmul.mubr.bf16.gmra.mrb[0].mxu0 %v2700
    %v2788 = vpop.f32.mrb[0].mxu0
    %v2789 = vadd.f32 %v2707, %v2788
    %v2790 = vpop.f32.mrb[0].mxu0
    %v2791 = vadd.f32 %v2708, %v2790
    %v2792 = vpop.f32.mrb[0].mxu0
    %v2793 = vpop.f32.mrb[0].mxu0
    %2794 = vdwg.mxu0
    %2795 = vmatprep.subr.bf16.mxu0 %v2012
    %2796 = vmatpush1.bf16.msra.mxu0 %v2011
    %2797 = vmatprep.subr.bf16.mxu0 %v2020
    %2798 = vmatpush1.bf16.msra.mxu0 %v2019
    %2799 = vmatprep.subr.bf16.mxu0 %v2028
    %2800 = vmatpush1.bf16.msra.mxu0 %v2027
    %2801 = vmatprep.subr.bf16.mxu0 %v2036
    %2802 = vmatpush1.bf16.msra.mxu0 %v2035
    %2803 = vmatprep.subr.bf16.mxu0 %v2044
    %2804 = vmatpush1.bf16.msra.mxu0 %v2043
    %2805 = vmatprep.subr.bf16.mxu0 %v2052
    %2806 = vmatpush1.bf16.msra.mxu0 %v2051
    %2807 = vmatprep.subr.bf16.mxu0 %v2060
    %2808 = vmatpush1.bf16.msra.mxu0 %v2059
    %2809 = vmatprep.subr.bf16.mxu0 %v2068
    %2810 = vmatpush1.bf16.msra.mxu0 %v2067
    %2811 = vmatprep.subr.bf16.mxu0 %v2076
    %2812 = vmatpush1.bf16.msra.mxu0 %v2075
    %2813 = vmatprep.subr.bf16.mxu0 %v2084
    %2814 = vmatpush1.bf16.msra.mxu0 %v2083
    %2815 = vmatprep.subr.bf16.mxu0 %v2092
    %2816 = vmatpush1.bf16.msra.mxu0 %v2091
    %2817 = vmatprep.subr.bf16.mxu0 %v2100
    %2818 = vmatpush1.bf16.msra.mxu0 %v2099
    %2819 = vmatprep.subr.bf16.mxu0 %v2108
    %2820 = vmatpush1.bf16.msra.mxu0 %v2107
    %2821 = vmatprep.subr.bf16.mxu0 %v2116
    %2822 = vmatpush1.bf16.msra.mxu0 %v2115
    %2823 = vmatprep.subr.bf16.mxu0 %v2124
    %2824 = vmatpush1.bf16.msra.mxu0 %v2123
    %2825 = vmatprep.subr.bf16.mxu0 %v2132
    %2826 = vmatpush1.bf16.msra.mxu0 %v2131
    %2827 = vmatprep.mubr.bf16.mxu0 %v2701
    %2828 = vmatmul.mubr.bf16.gmra.mrb[0].mxu0 %v2700
    %v2829 = vpop.f32.mrb[0].mxu0
    %v2830 = vadd.f32 %v2709, %v2829
    %v2831 = vpop.f32.mrb[0].mxu0
    %v2832 = vadd.f32 %v2710, %v2831
    %v2833 = vpop.f32.mrb[0].mxu0
    %v2834 = vpop.f32.mrb[0].mxu0
    %2835 = vdwg.mxu0
    %2836 = vmatprep.subr.bf16.mxu0 %v2014
    %2837 = vmatpush1.bf16.msra.mxu0 %v2013
    %2838 = vmatprep.subr.bf16.mxu0 %v2022
    %2839 = vmatpush1.bf16.msra.mxu0 %v2021
    %2840 = vmatprep.subr.bf16.mxu0 %v2030
    %2841 = vmatpush1.bf16.msra.mxu0 %v2029
    %2842 = vmatprep.subr.bf16.mxu0 %v2038
    %2843 = vmatpush1.bf16.msra.mxu0 %v2037
    %2844 = vmatprep.subr.bf16.mxu0 %v2046
    %2845 = vmatpush1.bf16.msra.mxu0 %v2045
    %2846 = vmatprep.subr.bf16.mxu0 %v2054
    %2847 = vmatpush1.bf16.msra.mxu0 %v2053
    %2848 = vmatprep.subr.bf16.mxu0 %v2062
    %2849 = vmatpush1.bf16.msra.mxu0 %v2061
    %2850 = vmatprep.subr.bf16.mxu0 %v2070
    %2851 = vmatpush1.bf16.msra.mxu0 %v2069
    %2852 = vmatprep.subr.bf16.mxu0 %v2078
    %2853 = vmatpush1.bf16.msra.mxu0 %v2077
    %2854 = vmatprep.subr.bf16.mxu0 %v2086
    %2855 = vmatpush1.bf16.msra.mxu0 %v2085
    %2856 = vmatprep.subr.bf16.mxu0 %v2094
    %2857 = vmatpush1.bf16.msra.mxu0 %v2093
    %2858 = vmatprep.subr.bf16.mxu0 %v2102
    %2859 = vmatpush1.bf16.msra.mxu0 %v2101
    %2860 = vmatprep.subr.bf16.mxu0 %v2110
    %2861 = vmatpush1.bf16.msra.mxu0 %v2109
    %2862 = vmatprep.subr.bf16.mxu0 %v2118
    %2863 = vmatpush1.bf16.msra.mxu0 %v2117
    %2864 = vmatprep.subr.bf16.mxu0 %v2126
    %2865 = vmatpush1.bf16.msra.mxu0 %v2125
    %2866 = vmatprep.subr.bf16.mxu0 %v2134
    %2867 = vmatpush1.bf16.msra.mxu0 %v2133
    %2868 = vmatprep.mubr.bf16.mxu0 %v2701
    %2869 = vmatmul.mubr.bf16.gmra.mrb[0].mxu0 %v2700
    %v2870 = vpop.f32.mrb[0].mxu0
    %v2871 = vadd.f32 %v2711, %v2870
    %v2872 = vpop.f32.mrb[0].mxu0
    %v2873 = vadd.f32 %v2712, %v2872
    %v2874 = vpop.f32.mrb[0].mxu0
    %v2875 = vpop.f32.mrb[0].mxu0
    %2876 = vdwg.mxu0
    %v2877 = vxor.u32 %v2748, 2147483648
    %v2878 = vxor.u32 %v2750, 2147483648
    %v2879 = vxor.u32 %v2789, 2147483648
    %v2880 = vxor.u32 %v2791, 2147483648
    %v2881 = vxor.u32 %v2830, 2147483648
    %v2882 = vxor.u32 %v2832, 2147483648
    %v2883 = vmul.f32 %v2877, 1.442695
    %v2884 = vpow.pop %v2883
    %v2885 = vmul.f32 %v2878, 1.442695
    %v2886 = vpow.pop %v2885
    %v2887 = vmul.f32 %v2879, 1.442695
    %v2888 = vpow.pop %v2887
    %v2889 = vmul.f32 %v2880, 1.442695
    %v2890 = vpow.pop %v2889
    %v2891 = vmul.f32 %v2881, 1.442695
    %v2892 = vpow.pop %v2891
    %v2893 = vmul.f32 %v2882, 1.442695
    %v2894 = vpow.pop %v2893
    %v2895 = vadd.f32 %v2884, 1.0
    %v2896 = vadd.f32 %v2886, 1.0
    %v2897 = vadd.f32 %v2888, 1.0
    %v2898 = vadd.f32 %v2890, 1.0
    %v2899 = vadd.f32 %v2892, 1.0
    %v2900 = vadd.f32 %v2894, 1.0
    %v2901 = vrcp.pop %v2895
    %v2902 = vmul.f32 1.0, %v2901
    %v2903 = vrcp.pop %v2896
    %v2904 = vmul.f32 1.0, %v2903
    %v2905 = vrcp.pop %v2897
    %v2906 = vmul.f32 1.0, %v2905
    %v2907 = vrcp.pop %v2898
    %v2908 = vmul.f32 1.0, %v2907
    %v2909 = vrcp.pop %v2899
    %v2910 = vmul.f32 1.0, %v2909
    %v2911 = vrcp.pop %v2900
    %v2912 = vmul.f32 1.0, %v2911
    %v2913 = vtanh.pop %v2871
    %v2914 = vtanh.pop %v2873
    %v2915 = vmul.f32 %v2906, %v2694
    %v2916 = vmul.f32 %v2908, %v2695
    %v2917 = vmul.f32 %v2902, %v2913
    %v2918 = vmul.f32 %v2904, %v2914
    %v2919 = vadd.f32 %v2915, %v2917
    %v2920 = vadd.f32 %v2916, %v2918
    %v2921 = vtanh.pop %v2919
    %v2922 = vtanh.pop %v2920
    %v2923 = vmul.f32 %v2910, %v2921
    %v2924 = vmul.f32 %v2912, %v2922
    %v2925 = vpack.c.bf16 %v2923, %v2923
    %v2926 = vpack.c.bf16 %v2924, %v2924
    %s2927 = smul.u32 4, 8
    %s2928 = smul.addr %s2927, 8
    %s2929 = scalar_lea.vmem [#allocation2], %s2928
    %v2930 = vld [vmem:[%s2929] sm:$0x3]
    %v2931 = vld [vmem:[%s2929 + $0x8] sm:$0x3]
    %v2932 = vld [vmem:[%s2929 + $0x10] sm:$0x3]
    %v2933 = vld [vmem:[%s2929 + $0x18] sm:$0x3]
    %v2934 = vld [vmem:[%s2929 + $0x20] sm:$0x3]
    %v2935 = vld [vmem:[%s2929 + $0x28] sm:$0x3]
    %v2936 = vld [vmem:[%s2929 + $0x30] sm:$0x3]
    %v2937 = vld [vmem:[%s2929 + $0x38] sm:$0x3]
    %2938 = vmatprep.subr.bf16.mxu0 %v2008
    %2939 = vmatpush1.bf16.msra.mxu0 %v2007
    %2940 = vmatprep.subr.bf16.mxu0 %v2016
    %2941 = vmatpush1.bf16.msra.mxu0 %v2015
    %2942 = vmatprep.subr.bf16.mxu0 %v2024
    %2943 = vmatpush1.bf16.msra.mxu0 %v2023
    %2944 = vmatprep.subr.bf16.mxu0 %v2032
    %2945 = vmatpush1.bf16.msra.mxu0 %v2031
    %2946 = vmatprep.subr.bf16.mxu0 %v2040
    %2947 = vmatpush1.bf16.msra.mxu0 %v2039
    %2948 = vmatprep.subr.bf16.mxu0 %v2048
    %2949 = vmatpush1.bf16.msra.mxu0 %v2047
    %2950 = vmatprep.subr.bf16.mxu0 %v2056
    %2951 = vmatpush1.bf16.msra.mxu0 %v2055
    %2952 = vmatprep.subr.bf16.mxu0 %v2064
    %2953 = vmatpush1.bf16.msra.mxu0 %v2063
    %2954 = vmatprep.subr.bf16.mxu0 %v2072
    %2955 = vmatpush1.bf16.msra.mxu0 %v2071
    %2956 = vmatprep.subr.bf16.mxu0 %v2080
    %2957 = vmatpush1.bf16.msra.mxu0 %v2079
    %2958 = vmatprep.subr.bf16.mxu0 %v2088
    %2959 = vmatpush1.bf16.msra.mxu0 %v2087
    %2960 = vmatprep.subr.bf16.mxu0 %v2096
    %2961 = vmatpush1.bf16.msra.mxu0 %v2095
    %2962 = vmatprep.subr.bf16.mxu0 %v2104
    %2963 = vmatpush1.bf16.msra.mxu0 %v2103
    %2964 = vmatprep.subr.bf16.mxu0 %v2112
    %2965 = vmatpush1.bf16.msra.mxu0 %v2111
    %2966 = vmatprep.subr.bf16.mxu0 %v2120
    %2967 = vmatpush1.bf16.msra.mxu0 %v2119
    %2968 = vmatprep.subr.bf16.mxu0 %v2128
    %2969 = vmatpush1.bf16.msra.mxu0 %v2127
    %2970 = vmatprep.mubr.bf16.mxu0 %v2926
    %2971 = vmatmul.mubr.bf16.gmra.mrb[0].mxu0 %v2925
    %v2972 = vpop.f32.mrb[0].mxu0
    %v2973 = vadd.f32 %v2930, %v2972
    %v2974 = vpop.f32.mrb[0].mxu0
    %v2975 = vadd.f32 %v2931, %v2974
    %v2976 = vpop.f32.mrb[0].mxu0
    %v2977 = vpop.f32.mrb[0].mxu0
    %2978 = vdwg.mxu0
    %2979 = vmatprep.subr.bf16.mxu0 %v2010
    %2980 = vmatpush1.bf16.msra.mxu0 %v2009
    %2981 = vmatprep.subr.bf16.mxu0 %v2018
    %2982 = vmatpush1.bf16.msra.mxu0 %v2017
    %2983 = vmatprep.subr.bf16.mxu0 %v2026
    %2984 = vmatpush1.bf16.msra.mxu0 %v2025
    %2985 = vmatprep.subr.bf16.mxu0 %v2034
    %2986 = vmatpush1.bf16.msra.mxu0 %v2033
    %2987 = vmatprep.subr.bf16.mxu0 %v2042
    %2988 = vmatpush1.bf16.msra.mxu0 %v2041
    %2989 = vmatprep.subr.bf16.mxu0 %v2050
    %2990 = vmatpush1.bf16.msra.mxu0 %v2049
    %2991 = vmatprep.subr.bf16.mxu0 %v2058
    %2992 = vmatpush1.bf16.msra.mxu0 %v2057
    %2993 = vmatprep.subr.bf16.mxu0 %v2066
    %2994 = vmatpush1.bf16.msra.mxu0 %v2065
    %2995 = vmatprep.subr.bf16.mxu0 %v2074
    %2996 = vmatpush1.bf16.msra.mxu0 %v2073
    %2997 = vmatprep.subr.bf16.mxu0 %v2082
    %2998 = vmatpush1.bf16.msra.mxu0 %v2081
    %2999 = vmatprep.subr.bf16.mxu0 %v2090
    %3000 = vmatpush1.bf16.msra.mxu0 %v2089
    %3001 = vmatprep.subr.bf16.mxu0 %v2098
    %3002 = vmatpush1.bf16.msra.mxu0 %v2097
    %3003 = vmatprep.subr.bf16.mxu0 %v2106
    %3004 = vmatpush1.bf16.msra.mxu0 %v2105
    %3005 = vmatprep.subr.bf16.mxu0 %v2114
    %3006 = vmatpush1.bf16.msra.mxu0 %v2113
    %3007 = vmatprep.subr.bf16.mxu0 %v2122
    %3008 = vmatpush1.bf16.msra.mxu0 %v2121
    %3009 = vmatprep.subr.bf16.mxu0 %v2130
    %3010 = vmatpush1.bf16.msra.mxu0 %v2129
    %3011 = vmatprep.mubr.bf16.mxu0 %v2926
    %3012 = vmatmul.mubr.bf16.gmra.mrb[0].mxu0 %v2925
    %v3013 = vpop.f32.mrb[0].mxu0
    %v3014 = vadd.f32 %v2932, %v3013
    %v3015 = vpop.f32.mrb[0].mxu0
    %v3016 = vadd.f32 %v2933, %v3015
    %v3017 = vpop.f32.mrb[0].mxu0
    %v3018 = vpop.f32.mrb[0].mxu0
    %3019 = vdwg.mxu0
    %3020 = vmatprep.subr.bf16.mxu0 %v2012
    %3021 = vmatpush1.bf16.msra.mxu0 %v2011
    %3022 = vmatprep.subr.bf16.mxu0 %v2020
    %3023 = vmatpush1.bf16.msra.mxu0 %v2019
    %3024 = vmatprep.subr.bf16.mxu0 %v2028
    %3025 = vmatpush1.bf16.msra.mxu0 %v2027
    %3026 = vmatprep.subr.bf16.mxu0 %v2036
    %3027 = vmatpush1.bf16.msra.mxu0 %v2035
    %3028 = vmatprep.subr.bf16.mxu0 %v2044
    %3029 = vmatpush1.bf16.msra.mxu0 %v2043
    %3030 = vmatprep.subr.bf16.mxu0 %v2052
    %3031 = vmatpush1.bf16.msra.mxu0 %v2051
    %3032 = vmatprep.subr.bf16.mxu0 %v2060
    %3033 = vmatpush1.bf16.msra.mxu0 %v2059
    %3034 = vmatprep.subr.bf16.mxu0 %v2068
    %3035 = vmatpush1.bf16.msra.mxu0 %v2067
    %3036 = vmatprep.subr.bf16.mxu0 %v2076
    %3037 = vmatpush1.bf16.msra.mxu0 %v2075
    %3038 = vmatprep.subr.bf16.mxu0 %v2084
    %3039 = vmatpush1.bf16.msra.mxu0 %v2083
    %3040 = vmatprep.subr.bf16.mxu0 %v2092
    %3041 = vmatpush1.bf16.msra.mxu0 %v2091
    %3042 = vmatprep.subr.bf16.mxu0 %v2100
    %3043 = vmatpush1.bf16.msra.mxu0 %v2099
    %3044 = vmatprep.subr.bf16.mxu0 %v2108
    %3045 = vmatpush1.bf16.msra.mxu0 %v2107
    %3046 = vmatprep.subr.bf16.mxu0 %v2116
    %3047 = vmatpush1.bf16.msra.mxu0 %v2115
    %3048 = vmatprep.subr.bf16.mxu0 %v2124
    %3049 = vmatpush1.bf16.msra.mxu0 %v2123
    %3050 = vmatprep.subr.bf16.mxu0 %v2132
    %3051 = vmatpush1.bf16.msra.mxu0 %v2131
    %3052 = vmatprep.mubr.bf16.mxu0 %v2926
    %3053 = vmatmul.mubr.bf16.gmra.mrb[0].mxu0 %v2925
    %v3054 = vpop.f32.mrb[0].mxu0
    %v3055 = vadd.f32 %v2934, %v3054
    %v3056 = vpop.f32.mrb[0].mxu0
    %v3057 = vadd.f32 %v2935, %v3056
    %v3058 = vpop.f32.mrb[0].mxu0
    %v3059 = vpop.f32.mrb[0].mxu0
    %3060 = vdwg.mxu0
    %3061 = vmatprep.subr.bf16.mxu0 %v2014
    %3062 = vmatpush1.bf16.msra.mxu0 %v2013
    %3063 = vmatprep.subr.bf16.mxu0 %v2022
    %3064 = vmatpush1.bf16.msra.mxu0 %v2021
    %3065 = vmatprep.subr.bf16.mxu0 %v2030
    %3066 = vmatpush1.bf16.msra.mxu0 %v2029
    %3067 = vmatprep.subr.bf16.mxu0 %v2038
    %3068 = vmatpush1.bf16.msra.mxu0 %v2037
    %3069 = vmatprep.subr.bf16.mxu0 %v2046
    %3070 = vmatpush1.bf16.msra.mxu0 %v2045
    %3071 = vmatprep.subr.bf16.mxu0 %v2054
    %3072 = vmatpush1.bf16.msra.mxu0 %v2053
    %3073 = vmatprep.subr.bf16.mxu0 %v2062
    %3074 = vmatpush1.bf16.msra.mxu0 %v2061
    %3075 = vmatprep.subr.bf16.mxu0 %v2070
    %3076 = vmatpush1.bf16.msra.mxu0 %v2069
    %3077 = vmatprep.subr.bf16.mxu0 %v2078
    %3078 = vmatpush1.bf16.msra.mxu0 %v2077
    %3079 = vmatprep.subr.bf16.mxu0 %v2086
    %3080 = vmatpush1.bf16.msra.mxu0 %v2085
    %3081 = vmatprep.subr.bf16.mxu0 %v2094
    %3082 = vmatpush1.bf16.msra.mxu0 %v2093
    %3083 = vmatprep.subr.bf16.mxu0 %v2102
    %3084 = vmatpush1.bf16.msra.mxu0 %v2101
    %3085 = vmatprep.subr.bf16.mxu0 %v2110
    %3086 = vmatpush1.bf16.msra.mxu0 %v2109
    %3087 = vmatprep.subr.bf16.mxu0 %v2118
    %3088 = vmatpush1.bf16.msra.mxu0 %v2117
    %3089 = vmatprep.subr.bf16.mxu0 %v2126
    %3090 = vmatpush1.bf16.msra.mxu0 %v2125
    %3091 = vmatprep.subr.bf16.mxu0 %v2134
    %3092 = vmatpush1.bf16.msra.mxu0 %v2133
    %3093 = vmatprep.mubr.bf16.mxu0 %v2926
    %3094 = vmatmul.mubr.bf16.gmra.mrb[0].mxu0 %v2925
    %v3095 = vpop.f32.mrb[0].mxu0
    %v3096 = vadd.f32 %v2936, %v3095
    %v3097 = vpop.f32.mrb[0].mxu0
    %v3098 = vadd.f32 %v2937, %v3097
    %v3099 = vpop.f32.mrb[0].mxu0
    %v3100 = vpop.f32.mrb[0].mxu0
    %3101 = vdwg.mxu0
    %v3102 = vxor.u32 %v2973, 2147483648
    %v3103 = vxor.u32 %v2975, 2147483648
    %v3104 = vxor.u32 %v3014, 2147483648
    %v3105 = vxor.u32 %v3016, 2147483648
    %v3106 = vxor.u32 %v3055, 2147483648
    %v3107 = vxor.u32 %v3057, 2147483648
    %v3108 = vmul.f32 %v3102, 1.442695
    %v3109 = vpow.pop %v3108
    %v3110 = vmul.f32 %v3103, 1.442695
    %v3111 = vpow.pop %v3110
    %v3112 = vmul.f32 %v3104, 1.442695
    %v3113 = vpow.pop %v3112
    %v3114 = vmul.f32 %v3105, 1.442695
    %v3115 = vpow.pop %v3114
    %v3116 = vmul.f32 %v3106, 1.442695
    %v3117 = vpow.pop %v3116
    %v3118 = vmul.f32 %v3107, 1.442695
    %v3119 = vpow.pop %v3118
    %v3120 = vadd.f32 %v3109, 1.0
    %v3121 = vadd.f32 %v3111, 1.0
    %v3122 = vadd.f32 %v3113, 1.0
    %v3123 = vadd.f32 %v3115, 1.0
    %v3124 = vadd.f32 %v3117, 1.0
    %v3125 = vadd.f32 %v3119, 1.0
    %v3126 = vrcp.pop %v3120
    %v3127 = vmul.f32 1.0, %v3126
    %v3128 = vrcp.pop %v3121
    %v3129 = vmul.f32 1.0, %v3128
    %v3130 = vrcp.pop %v3122
    %v3131 = vmul.f32 1.0, %v3130
    %v3132 = vrcp.pop %v3123
    %v3133 = vmul.f32 1.0, %v3132
    %v3134 = vrcp.pop %v3124
    %v3135 = vmul.f32 1.0, %v3134
    %v3136 = vrcp.pop %v3125
    %v3137 = vmul.f32 1.0, %v3136
    %v3138 = vtanh.pop %v3096
    %v3139 = vtanh.pop %v3098
    %v3140 = vmul.f32 %v3131, %v2919
    %v3141 = vmul.f32 %v3133, %v2920
    %v3142 = vmul.f32 %v3127, %v3138
    %v3143 = vmul.f32 %v3129, %v3139
    %v3144 = vadd.f32 %v3140, %v3142
    %v3145 = vadd.f32 %v3141, %v3143
    %v3146 = vtanh.pop %v3144
    %v3147 = vtanh.pop %v3145
    %v3148 = vmul.f32 %v3135, %v3146
    %v3149 = vmul.f32 %v3137, %v3147
    %v3150 = vpack.c.bf16 %v3148, %v3148
    %v3151 = vpack.c.bf16 %v3149, %v3149
    %s3152 = smul.u32 5, 8
    %s3153 = smul.addr %s3152, 8
    %s3154 = scalar_lea.vmem [#allocation2], %s3153
    %v3155 = vld [vmem:[%s3154] sm:$0x3]
    %v3156 = vld [vmem:[%s3154 + $0x8] sm:$0x3]
    %v3157 = vld [vmem:[%s3154 + $0x10] sm:$0x3]
    %v3158 = vld [vmem:[%s3154 + $0x18] sm:$0x3]
    %v3159 = vld [vmem:[%s3154 + $0x20] sm:$0x3]
    %v3160 = vld [vmem:[%s3154 + $0x28] sm:$0x3]
    %v3161 = vld [vmem:[%s3154 + $0x30] sm:$0x3]
    %v3162 = vld [vmem:[%s3154 + $0x38] sm:$0x3]
    %3163 = vmatprep.subr.bf16.mxu0 %v2008
    %3164 = vmatpush1.bf16.msra.mxu0 %v2007
    %3165 = vmatprep.subr.bf16.mxu0 %v2016
    %3166 = vmatpush1.bf16.msra.mxu0 %v2015
    %3167 = vmatprep.subr.bf16.mxu0 %v2024
    %3168 = vmatpush1.bf16.msra.mxu0 %v2023
    %3169 = vmatprep.subr.bf16.mxu0 %v2032
    %3170 = vmatpush1.bf16.msra.mxu0 %v2031
    %3171 = vmatprep.subr.bf16.mxu0 %v2040
    %3172 = vmatpush1.bf16.msra.mxu0 %v2039
    %3173 = vmatprep.subr.bf16.mxu0 %v2048
    %3174 = vmatpush1.bf16.msra.mxu0 %v2047
    %3175 = vmatprep.subr.bf16.mxu0 %v2056
    %3176 = vmatpush1.bf16.msra.mxu0 %v2055
    %3177 = vmatprep.subr.bf16.mxu0 %v2064
    %3178 = vmatpush1.bf16.msra.mxu0 %v2063
    %3179 = vmatprep.subr.bf16.mxu0 %v2072
    %3180 = vmatpush1.bf16.msra.mxu0 %v2071
    %3181 = vmatprep.subr.bf16.mxu0 %v2080
    %3182 = vmatpush1.bf16.msra.mxu0 %v2079
    %3183 = vmatprep.subr.bf16.mxu0 %v2088
    %3184 = vmatpush1.bf16.msra.mxu0 %v2087
    %3185 = vmatprep.subr.bf16.mxu0 %v2096
    %3186 = vmatpush1.bf16.msra.mxu0 %v2095
    %3187 = vmatprep.subr.bf16.mxu0 %v2104
    %3188 = vmatpush1.bf16.msra.mxu0 %v2103
    %3189 = vmatprep.subr.bf16.mxu0 %v2112
    %3190 = vmatpush1.bf16.msra.mxu0 %v2111
    %3191 = vmatprep.subr.bf16.mxu0 %v2120
    %3192 = vmatpush1.bf16.msra.mxu0 %v2119
    %3193 = vmatprep.subr.bf16.mxu0 %v2128
    %3194 = vmatpush1.bf16.msra.mxu0 %v2127
    %3195 = vmatprep.mubr.bf16.mxu0 %v3151
    %3196 = vmatmul.mubr.bf16.gmra.mrb[0].mxu0 %v3150
    %v3197 = vpop.f32.mrb[0].mxu0
    %v3198 = vadd.f32 %v3155, %v3197
    %v3199 = vpop.f32.mrb[0].mxu0
    %v3200 = vadd.f32 %v3156, %v3199
    %v3201 = vpop.f32.mrb[0].mxu0
    %v3202 = vpop.f32.mrb[0].mxu0
    %3203 = vdwg.mxu0
    %3204 = vmatprep.subr.bf16.mxu0 %v2010
    %3205 = vmatpush1.bf16.msra.mxu0 %v2009
    %3206 = vmatprep.subr.bf16.mxu0 %v2018
    %3207 = vmatpush1.bf16.msra.mxu0 %v2017
    %3208 = vmatprep.subr.bf16.mxu0 %v2026
    %3209 = vmatpush1.bf16.msra.mxu0 %v2025
    %3210 = vmatprep.subr.bf16.mxu0 %v2034
    %3211 = vmatpush1.bf16.msra.mxu0 %v2033
    %3212 = vmatprep.subr.bf16.mxu0 %v2042
    %3213 = vmatpush1.bf16.msra.mxu0 %v2041
    %3214 = vmatprep.subr.bf16.mxu0 %v2050
    %3215 = vmatpush1.bf16.msra.mxu0 %v2049
    %3216 = vmatprep.subr.bf16.mxu0 %v2058
    %3217 = vmatpush1.bf16.msra.mxu0 %v2057
    %3218 = vmatprep.subr.bf16.mxu0 %v2066
    %3219 = vmatpush1.bf16.msra.mxu0 %v2065
    %3220 = vmatprep.subr.bf16.mxu0 %v2074
    %3221 = vmatpush1.bf16.msra.mxu0 %v2073
    %3222 = vmatprep.subr.bf16.mxu0 %v2082
    %3223 = vmatpush1.bf16.msra.mxu0 %v2081
    %3224 = vmatprep.subr.bf16.mxu0 %v2090
    %3225 = vmatpush1.bf16.msra.mxu0 %v2089
    %3226 = vmatprep.subr.bf16.mxu0 %v2098
    %3227 = vmatpush1.bf16.msra.mxu0 %v2097
    %3228 = vmatprep.subr.bf16.mxu0 %v2106
    %3229 = vmatpush1.bf16.msra.mxu0 %v2105
    %3230 = vmatprep.subr.bf16.mxu0 %v2114
    %3231 = vmatpush1.bf16.msra.mxu0 %v2113
    %3232 = vmatprep.subr.bf16.mxu0 %v2122
    %3233 = vmatpush1.bf16.msra.mxu0 %v2121
    %3234 = vmatprep.subr.bf16.mxu0 %v2130
    %3235 = vmatpush1.bf16.msra.mxu0 %v2129
    %3236 = vmatprep.mubr.bf16.mxu0 %v3151
    %3237 = vmatmul.mubr.bf16.gmra.mrb[0].mxu0 %v3150
    %v3238 = vpop.f32.mrb[0].mxu0
    %v3239 = vadd.f32 %v3157, %v3238
    %v3240 = vpop.f32.mrb[0].mxu0
    %v3241 = vadd.f32 %v3158, %v3240
    %v3242 = vpop.f32.mrb[0].mxu0
    %v3243 = vpop.f32.mrb[0].mxu0
    %3244 = vdwg.mxu0
    %3245 = vmatprep.subr.bf16.mxu0 %v2012
    %3246 = vmatpush1.bf16.msra.mxu0 %v2011
    %3247 = vmatprep.subr.bf16.mxu0 %v2020
    %3248 = vmatpush1.bf16.msra.mxu0 %v2019
    %3249 = vmatprep.subr.bf16.mxu0 %v2028
    %3250 = vmatpush1.bf16.msra.mxu0 %v2027
    %3251 = vmatprep.subr.bf16.mxu0 %v2036
    %3252 = vmatpush1.bf16.msra.mxu0 %v2035
    %3253 = vmatprep.subr.bf16.mxu0 %v2044
    %3254 = vmatpush1.bf16.msra.mxu0 %v2043
    %3255 = vmatprep.subr.bf16.mxu0 %v2052
    %3256 = vmatpush1.bf16.msra.mxu0 %v2051
    %3257 = vmatprep.subr.bf16.mxu0 %v2060
    %3258 = vmatpush1.bf16.msra.mxu0 %v2059
    %3259 = vmatprep.subr.bf16.mxu0 %v2068
    %3260 = vmatpush1.bf16.msra.mxu0 %v2067
    %3261 = vmatprep.subr.bf16.mxu0 %v2076
    %3262 = vmatpush1.bf16.msra.mxu0 %v2075
    %3263 = vmatprep.subr.bf16.mxu0 %v2084
    %3264 = vmatpush1.bf16.msra.mxu0 %v2083
    %3265 = vmatprep.subr.bf16.mxu0 %v2092
    %3266 = vmatpush1.bf16.msra.mxu0 %v2091
    %3267 = vmatprep.subr.bf16.mxu0 %v2100
    %3268 = vmatpush1.bf16.msra.mxu0 %v2099
    %3269 = vmatprep.subr.bf16.mxu0 %v2108
    %3270 = vmatpush1.bf16.msra.mxu0 %v2107
    %3271 = vmatprep.subr.bf16.mxu0 %v2116
    %3272 = vmatpush1.bf16.msra.mxu0 %v2115
    %3273 = vmatprep.subr.bf16.mxu0 %v2124
    %3274 = vmatpush1.bf16.msra.mxu0 %v2123
    %3275 = vmatprep.subr.bf16.mxu0 %v2132
    %3276 = vmatpush1.bf16.msra.mxu0 %v2131
    %3277 = vmatprep.mubr.bf16.mxu0 %v3151
    %3278 = vmatmul.mubr.bf16.gmra.mrb[0].mxu0 %v3150
    %v3279 = vpop.f32.mrb[0].mxu0
    %v3280 = vadd.f32 %v3159, %v3279
    %v3281 = vpop.f32.mrb[0].mxu0
    %v3282 = vadd.f32 %v3160, %v3281
    %v3283 = vpop.f32.mrb[0].mxu0
    %v3284 = vpop.f32.mrb[0].mxu0
    %3285 = vdwg.mxu0
    %3286 = vmatprep.subr.bf16.mxu0 %v2014
    %3287 = vmatpush1.bf16.msra.mxu0 %v2013
    %3288 = vmatprep.subr.bf16.mxu0 %v2022
    %3289 = vmatpush1.bf16.msra.mxu0 %v2021
    %3290 = vmatprep.subr.bf16.mxu0 %v2030
    %3291 = vmatpush1.bf16.msra.mxu0 %v2029
    %3292 = vmatprep.subr.bf16.mxu0 %v2038
    %3293 = vmatpush1.bf16.msra.mxu0 %v2037
    %3294 = vmatprep.subr.bf16.mxu0 %v2046
    %3295 = vmatpush1.bf16.msra.mxu0 %v2045
    %3296 = vmatprep.subr.bf16.mxu0 %v2054
    %3297 = vmatpush1.bf16.msra.mxu0 %v2053
    %3298 = vmatprep.subr.bf16.mxu0 %v2062
    %3299 = vmatpush1.bf16.msra.mxu0 %v2061
    %3300 = vmatprep.subr.bf16.mxu0 %v2070
    %3301 = vmatpush1.bf16.msra.mxu0 %v2069
    %3302 = vmatprep.subr.bf16.mxu0 %v2078
    %3303 = vmatpush1.bf16.msra.mxu0 %v2077
    %3304 = vmatprep.subr.bf16.mxu0 %v2086
    %3305 = vmatpush1.bf16.msra.mxu0 %v2085
    %3306 = vmatprep.subr.bf16.mxu0 %v2094
    %3307 = vmatpush1.bf16.msra.mxu0 %v2093
    %3308 = vmatprep.subr.bf16.mxu0 %v2102
    %3309 = vmatpush1.bf16.msra.mxu0 %v2101
    %3310 = vmatprep.subr.bf16.mxu0 %v2110
    %3311 = vmatpush1.bf16.msra.mxu0 %v2109
    %3312 = vmatprep.subr.bf16.mxu0 %v2118
    %3313 = vmatpush1.bf16.msra.mxu0 %v2117
    %3314 = vmatprep.subr.bf16.mxu0 %v2126
    %3315 = vmatpush1.bf16.msra.mxu0 %v2125
    %3316 = vmatprep.subr.bf16.mxu0 %v2134
    %3317 = vmatpush1.bf16.msra.mxu0 %v2133
    %3318 = vmatprep.mubr.bf16.mxu0 %v3151
    %3319 = vmatmul.mubr.bf16.gmra.mrb[0].mxu0 %v3150
    %v3320 = vpop.f32.mrb[0].mxu0
    %v3321 = vadd.f32 %v3161, %v3320
    %v3322 = vpop.f32.mrb[0].mxu0
    %v3323 = vadd.f32 %v3162, %v3322
    %v3324 = vpop.f32.mrb[0].mxu0
    %v3325 = vpop.f32.mrb[0].mxu0
    %3326 = vdwg.mxu0
    %v3327 = vxor.u32 %v3198, 2147483648
    %v3328 = vxor.u32 %v3200, 2147483648
    %v3329 = vxor.u32 %v3239, 2147483648
    %v3330 = vxor.u32 %v3241, 2147483648
    %v3331 = vxor.u32 %v3280, 2147483648
    %v3332 = vxor.u32 %v3282, 2147483648
    %v3333 = vmul.f32 %v3327, 1.442695
    %v3334 = vpow.pop %v3333
    %v3335 = vmul.f32 %v3328, 1.442695
    %v3336 = vpow.pop %v3335
    %v3337 = vmul.f32 %v3329, 1.442695
    %v3338 = vpow.pop %v3337
    %v3339 = vmul.f32 %v3330, 1.442695
    %v3340 = vpow.pop %v3339
    %v3341 = vmul.f32 %v3331, 1.442695
    %v3342 = vpow.pop %v3341
    %v3343 = vmul.f32 %v3332, 1.442695
    %v3344 = vpow.pop %v3343
    %v3345 = vadd.f32 %v3334, 1.0
    %v3346 = vadd.f32 %v3336, 1.0
    %v3347 = vadd.f32 %v3338, 1.0
    %v3348 = vadd.f32 %v3340, 1.0
    %v3349 = vadd.f32 %v3342, 1.0
    %v3350 = vadd.f32 %v3344, 1.0
    %v3351 = vrcp.pop %v3345
    %v3352 = vmul.f32 1.0, %v3351
    %v3353 = vrcp.pop %v3346
    %v3354 = vmul.f32 1.0, %v3353
    %v3355 = vrcp.pop %v3347
    %v3356 = vmul.f32 1.0, %v3355
    %v3357 = vrcp.pop %v3348
    %v3358 = vmul.f32 1.0, %v3357
    %v3359 = vrcp.pop %v3349
    %v3360 = vmul.f32 1.0, %v3359
    %v3361 = vrcp.pop %v3350
    %v3362 = vmul.f32 1.0, %v3361
    %v3363 = vtanh.pop %v3321
    %v3364 = vtanh.pop %v3323
    %v3365 = vmul.f32 %v3356, %v3144
    %v3366 = vmul.f32 %v3358, %v3145
    %v3367 = vmul.f32 %v3352, %v3363
    %v3368 = vmul.f32 %v3354, %v3364
    %v3369 = vadd.f32 %v3365, %v3367
    %v3370 = vadd.f32 %v3366, %v3368
    %v3371 = vtanh.pop %v3369
    %v3372 = vtanh.pop %v3370
    %v3373 = vmul.f32 %v3360, %v3371
    %v3374 = vmul.f32 %v3362, %v3372
    %v3375 = vpack.c.bf16 %v3373, %v3373
    %v3376 = vpack.c.bf16 %v3374, %v3374
    %s3377 = smul.u32 6, 8
    %s3378 = smul.addr %s3377, 8
    %s3379 = scalar_lea.vmem [#allocation2], %s3378
    %v3380 = vld [vmem:[%s3379] sm:$0x3]
    %v3381 = vld [vmem:[%s3379 + $0x8] sm:$0x3]
    %v3382 = vld [vmem:[%s3379 + $0x10] sm:$0x3]
    %v3383 = vld [vmem:[%s3379 + $0x18] sm:$0x3]
    %v3384 = vld [vmem:[%s3379 + $0x20] sm:$0x3]
    %v3385 = vld [vmem:[%s3379 + $0x28] sm:$0x3]
    %v3386 = vld [vmem:[%s3379 + $0x30] sm:$0x3]
    %v3387 = vld [vmem:[%s3379 + $0x38] sm:$0x3]
    %3388 = vmatprep.subr.bf16.mxu0 %v2008
    %3389 = vmatpush1.bf16.msra.mxu0 %v2007
    %3390 = vmatprep.subr.bf16.mxu0 %v2016
    %3391 = vmatpush1.bf16.msra.mxu0 %v2015
    %3392 = vmatprep.subr.bf16.mxu0 %v2024
    %3393 = vmatpush1.bf16.msra.mxu0 %v2023
    %3394 = vmatprep.subr.bf16.mxu0 %v2032
    %3395 = vmatpush1.bf16.msra.mxu0 %v2031
    %3396 = vmatprep.subr.bf16.mxu0 %v2040
    %3397 = vmatpush1.bf16.msra.mxu0 %v2039
    %3398 = vmatprep.subr.bf16.mxu0 %v2048
    %3399 = vmatpush1.bf16.msra.mxu0 %v2047
    %3400 = vmatprep.subr.bf16.mxu0 %v2056
    %3401 = vmatpush1.bf16.msra.mxu0 %v2055
    %3402 = vmatprep.subr.bf16.mxu0 %v2064
    %3403 = vmatpush1.bf16.msra.mxu0 %v2063
    %3404 = vmatprep.subr.bf16.mxu0 %v2072
    %3405 = vmatpush1.bf16.msra.mxu0 %v2071
    %3406 = vmatprep.subr.bf16.mxu0 %v2080
    %3407 = vmatpush1.bf16.msra.mxu0 %v2079
    %3408 = vmatprep.subr.bf16.mxu0 %v2088
    %3409 = vmatpush1.bf16.msra.mxu0 %v2087
    %3410 = vmatprep.subr.bf16.mxu0 %v2096
    %3411 = vmatpush1.bf16.msra.mxu0 %v2095
    %3412 = vmatprep.subr.bf16.mxu0 %v2104
    %3413 = vmatpush1.bf16.msra.mxu0 %v2103
    %3414 = vmatprep.subr.bf16.mxu0 %v2112
    %3415 = vmatpush1.bf16.msra.mxu0 %v2111
    %3416 = vmatprep.subr.bf16.mxu0 %v2120
    %3417 = vmatpush1.bf16.msra.mxu0 %v2119
    %3418 = vmatprep.subr.bf16.mxu0 %v2128
    %3419 = vmatpush1.bf16.msra.mxu0 %v2127
    %3420 = vmatprep.mubr.bf16.mxu0 %v3376
    %3421 = vmatmul.mubr.bf16.gmra.mrb[0].mxu0 %v3375
    %v3422 = vpop.f32.mrb[0].mxu0
    %v3423 = vadd.f32 %v3380, %v3422
    %v3424 = vpop.f32.mrb[0].mxu0
    %v3425 = vadd.f32 %v3381, %v3424
    %v3426 = vpop.f32.mrb[0].mxu0
    %v3427 = vpop.f32.mrb[0].mxu0
    %3428 = vdwg.mxu0
    %3429 = vmatprep.subr.bf16.mxu0 %v2010
    %3430 = vmatpush1.bf16.msra.mxu0 %v2009
    %3431 = vmatprep.subr.bf16.mxu0 %v2018
    %3432 = vmatpush1.bf16.msra.mxu0 %v2017
    %3433 = vmatprep.subr.bf16.mxu0 %v2026
    %3434 = vmatpush1.bf16.msra.mxu0 %v2025
    %3435 = vmatprep.subr.bf16.mxu0 %v2034
    %3436 = vmatpush1.bf16.msra.mxu0 %v2033
    %3437 = vmatprep.subr.bf16.mxu0 %v2042
    %3438 = vmatpush1.bf16.msra.mxu0 %v2041
    %3439 = vmatprep.subr.bf16.mxu0 %v2050
    %3440 = vmatpush1.bf16.msra.mxu0 %v2049
    %3441 = vmatprep.subr.bf16.mxu0 %v2058
    %3442 = vmatpush1.bf16.msra.mxu0 %v2057
    %3443 = vmatprep.subr.bf16.mxu0 %v2066
    %3444 = vmatpush1.bf16.msra.mxu0 %v2065
    %3445 = vmatprep.subr.bf16.mxu0 %v2074
    %3446 = vmatpush1.bf16.msra.mxu0 %v2073
    %3447 = vmatprep.subr.bf16.mxu0 %v2082
    %3448 = vmatpush1.bf16.msra.mxu0 %v2081
    %3449 = vmatprep.subr.bf16.mxu0 %v2090
    %3450 = vmatpush1.bf16.msra.mxu0 %v2089
    %3451 = vmatprep.subr.bf16.mxu0 %v2098
    %3452 = vmatpush1.bf16.msra.mxu0 %v2097
    %3453 = vmatprep.subr.bf16.mxu0 %v2106
    %3454 = vmatpush1.bf16.msra.mxu0 %v2105
    %3455 = vmatprep.subr.bf16.mxu0 %v2114
    %3456 = vmatpush1.bf16.msra.mxu0 %v2113
    %3457 = vmatprep.subr.bf16.mxu0 %v2122
    %3458 = vmatpush1.bf16.msra.mxu0 %v2121
    %3459 = vmatprep.subr.bf16.mxu0 %v2130
    %3460 = vmatpush1.bf16.msra.mxu0 %v2129
    %3461 = vmatprep.mubr.bf16.mxu0 %v3376
    %3462 = vmatmul.mubr.bf16.gmra.mrb[0].mxu0 %v3375
    %v3463 = vpop.f32.mrb[0].mxu0
    %v3464 = vadd.f32 %v3382, %v3463
    %v3465 = vpop.f32.mrb[0].mxu0
    %v3466 = vadd.f32 %v3383, %v3465
    %v3467 = vpop.f32.mrb[0].mxu0
    %v3468 = vpop.f32.mrb[0].mxu0
    %3469 = vdwg.mxu0
    %3470 = vmatprep.subr.bf16.mxu0 %v2012
    %3471 = vmatpush1.bf16.msra.mxu0 %v2011
    %3472 = vmatprep.subr.bf16.mxu0 %v2020
    %3473 = vmatpush1.bf16.msra.mxu0 %v2019
    %3474 = vmatprep.subr.bf16.mxu0 %v2028
    %3475 = vmatpush1.bf16.msra.mxu0 %v2027
    %3476 = vmatprep.subr.bf16.mxu0 %v2036
    %3477 = vmatpush1.bf16.msra.mxu0 %v2035
    %3478 = vmatprep.subr.bf16.mxu0 %v2044
    %3479 = vmatpush1.bf16.msra.mxu0 %v2043
    %3480 = vmatprep.subr.bf16.mxu0 %v2052
    %3481 = vmatpush1.bf16.msra.mxu0 %v2051
    %3482 = vmatprep.subr.bf16.mxu0 %v2060
    %3483 = vmatpush1.bf16.msra.mxu0 %v2059
    %3484 = vmatprep.subr.bf16.mxu0 %v2068
    %3485 = vmatpush1.bf16.msra.mxu0 %v2067
    %3486 = vmatprep.subr.bf16.mxu0 %v2076
    %3487 = vmatpush1.bf16.msra.mxu0 %v2075
    %3488 = vmatprep.subr.bf16.mxu0 %v2084
    %3489 = vmatpush1.bf16.msra.mxu0 %v2083
    %3490 = vmatprep.subr.bf16.mxu0 %v2092
    %3491 = vmatpush1.bf16.msra.mxu0 %v2091
    %3492 = vmatprep.subr.bf16.mxu0 %v2100
    %3493 = vmatpush1.bf16.msra.mxu0 %v2099
    %3494 = vmatprep.subr.bf16.mxu0 %v2108
    %3495 = vmatpush1.bf16.msra.mxu0 %v2107
    %3496 = vmatprep.subr.bf16.mxu0 %v2116
    %3497 = vmatpush1.bf16.msra.mxu0 %v2115
    %3498 = vmatprep.subr.bf16.mxu0 %v2124
    %3499 = vmatpush1.bf16.msra.mxu0 %v2123
    %3500 = vmatprep.subr.bf16.mxu0 %v2132
    %3501 = vmatpush1.bf16.msra.mxu0 %v2131
    %3502 = vmatprep.mubr.bf16.mxu0 %v3376
    %3503 = vmatmul.mubr.bf16.gmra.mrb[0].mxu0 %v3375
    %v3504 = vpop.f32.mrb[0].mxu0
    %v3505 = vadd.f32 %v3384, %v3504
    %v3506 = vpop.f32.mrb[0].mxu0
    %v3507 = vadd.f32 %v3385, %v3506
    %v3508 = vpop.f32.mrb[0].mxu0
    %v3509 = vpop.f32.mrb[0].mxu0
    %3510 = vdwg.mxu0
    %3511 = vmatprep.subr.bf16.mxu0 %v2014
    %3512 = vmatpush1.bf16.msra.mxu0 %v2013
    %3513 = vmatprep.subr.bf16.mxu0 %v2022
    %3514 = vmatpush1.bf16.msra.mxu0 %v2021
    %3515 = vmatprep.subr.bf16.mxu0 %v2030
    %3516 = vmatpush1.bf16.msra.mxu0 %v2029
    %3517 = vmatprep.subr.bf16.mxu0 %v2038
    %3518 = vmatpush1.bf16.msra.mxu0 %v2037
    %3519 = vmatprep.subr.bf16.mxu0 %v2046
    %3520 = vmatpush1.bf16.msra.mxu0 %v2045
    %3521 = vmatprep.subr.bf16.mxu0 %v2054
    %3522 = vmatpush1.bf16.msra.mxu0 %v2053
    %3523 = vmatprep.subr.bf16.mxu0 %v2062
    %3524 = vmatpush1.bf16.msra.mxu0 %v2061
    %3525 = vmatprep.subr.bf16.mxu0 %v2070
    %3526 = vmatpush1.bf16.msra.mxu0 %v2069
    %3527 = vmatprep.subr.bf16.mxu0 %v2078
    %3528 = vmatpush1.bf16.msra.mxu0 %v2077
    %3529 = vmatprep.subr.bf16.mxu0 %v2086
    %3530 = vmatpush1.bf16.msra.mxu0 %v2085
    %3531 = vmatprep.subr.bf16.mxu0 %v2094
    %3532 = vmatpush1.bf16.msra.mxu0 %v2093
    %3533 = vmatprep.subr.bf16.mxu0 %v2102
    %3534 = vmatpush1.bf16.msra.mxu0 %v2101
    %3535 = vmatprep.subr.bf16.mxu0 %v2110
    %3536 = vmatpush1.bf16.msra.mxu0 %v2109
    %3537 = vmatprep.subr.bf16.mxu0 %v2118
    %3538 = vmatpush1.bf16.msra.mxu0 %v2117
    %3539 = vmatprep.subr.bf16.mxu0 %v2126
    %3540 = vmatpush1.bf16.msra.mxu0 %v2125
    %3541 = vmatprep.subr.bf16.mxu0 %v2134
    %3542 = vmatpush1.bf16.msra.mxu0 %v2133
    %3543 = vmatprep.mubr.bf16.mxu0 %v3376
    %3544 = vmatmul.mubr.bf16.gmra.mrb[0].mxu0 %v3375
    %v3545 = vpop.f32.mrb[0].mxu0
    %v3546 = vadd.f32 %v3386, %v3545
    %v3547 = vpop.f32.mrb[0].mxu0
    %v3548 = vadd.f32 %v3387, %v3547
    %v3549 = vpop.f32.mrb[0].mxu0
    %v3550 = vpop.f32.mrb[0].mxu0
    %3551 = vdwg.mxu0
    %v3552 = vxor.u32 %v3423, 2147483648
    %v3553 = vxor.u32 %v3425, 2147483648
    %v3554 = vxor.u32 %v3464, 2147483648
    %v3555 = vxor.u32 %v3466, 2147483648
    %v3556 = vxor.u32 %v3505, 2147483648
    %v3557 = vxor.u32 %v3507, 2147483648
    %v3558 = vmul.f32 %v3552, 1.442695
    %v3559 = vpow.pop %v3558
    %v3560 = vmul.f32 %v3553, 1.442695
    %v3561 = vpow.pop %v3560
    %v3562 = vmul.f32 %v3554, 1.442695
    %v3563 = vpow.pop %v3562
    %v3564 = vmul.f32 %v3555, 1.442695
    %v3565 = vpow.pop %v3564
    %v3566 = vmul.f32 %v3556, 1.442695
    %v3567 = vpow.pop %v3566
    %v3568 = vmul.f32 %v3557, 1.442695
    %v3569 = vpow.pop %v3568
    %v3570 = vadd.f32 %v3559, 1.0
    %v3571 = vadd.f32 %v3561, 1.0
    %v3572 = vadd.f32 %v3563, 1.0
    %v3573 = vadd.f32 %v3565, 1.0
    %v3574 = vadd.f32 %v3567, 1.0
    %v3575 = vadd.f32 %v3569, 1.0
    %v3576 = vrcp.pop %v3570
    %v3577 = vmul.f32 1.0, %v3576
    %v3578 = vrcp.pop %v3571
    %v3579 = vmul.f32 1.0, %v3578
    %v3580 = vrcp.pop %v3572
    %v3581 = vmul.f32 1.0, %v3580
    %v3582 = vrcp.pop %v3573
    %v3583 = vmul.f32 1.0, %v3582
    %v3584 = vrcp.pop %v3574
    %v3585 = vmul.f32 1.0, %v3584
    %v3586 = vrcp.pop %v3575
    %v3587 = vmul.f32 1.0, %v3586
    %v3588 = vtanh.pop %v3546
    %v3589 = vtanh.pop %v3548
    %v3590 = vmul.f32 %v3581, %v3369
    %v3591 = vmul.f32 %v3583, %v3370
    %v3592 = vmul.f32 %v3577, %v3588
    %v3593 = vmul.f32 %v3579, %v3589
    %v3594 = vadd.f32 %v3590, %v3592
    %v3595 = vadd.f32 %v3591, %v3593
    %v3596 = vtanh.pop %v3594
    %v3597 = vtanh.pop %v3595
    %v3598 = vmul.f32 %v3585, %v3596
    %v3599 = vmul.f32 %v3587, %v3597
    %v3600 = vpack.c.bf16 %v3598, %v3598
    %v3601 = vpack.c.bf16 %v3599, %v3599
    %s3602 = smul.u32 7, 8
    %s3603 = smul.addr %s3602, 8
    %s3604 = scalar_lea.vmem [#allocation2], %s3603
    %v3605 = vld [vmem:[%s3604] sm:$0x3]
    %v3606 = vld [vmem:[%s3604 + $0x8] sm:$0x3]
    %v3607 = vld [vmem:[%s3604 + $0x10] sm:$0x3]
    %v3608 = vld [vmem:[%s3604 + $0x18] sm:$0x3]
    %v3609 = vld [vmem:[%s3604 + $0x20] sm:$0x3]
    %v3610 = vld [vmem:[%s3604 + $0x28] sm:$0x3]
    %v3611 = vld [vmem:[%s3604 + $0x30] sm:$0x3]
    %v3612 = vld [vmem:[%s3604 + $0x38] sm:$0x3]
    %3613 = vmatprep.subr.bf16.mxu0 %v2008
    %3614 = vmatpush1.bf16.msra.mxu0 %v2007
    %3615 = vmatprep.subr.bf16.mxu0 %v2016
    %3616 = vmatpush1.bf16.msra.mxu0 %v2015
    %3617 = vmatprep.subr.bf16.mxu0 %v2024
    %3618 = vmatpush1.bf16.msra.mxu0 %v2023
    %3619 = vmatprep.subr.bf16.mxu0 %v2032
    %3620 = vmatpush1.bf16.msra.mxu0 %v2031
    %3621 = vmatprep.subr.bf16.mxu0 %v2040
    %3622 = vmatpush1.bf16.msra.mxu0 %v2039
    %3623 = vmatprep.subr.bf16.mxu0 %v2048
    %3624 = vmatpush1.bf16.msra.mxu0 %v2047
    %3625 = vmatprep.subr.bf16.mxu0 %v2056
    %3626 = vmatpush1.bf16.msra.mxu0 %v2055
    %3627 = vmatprep.subr.bf16.mxu0 %v2064
    %3628 = vmatpush1.bf16.msra.mxu0 %v2063
    %3629 = vmatprep.subr.bf16.mxu0 %v2072
    %3630 = vmatpush1.bf16.msra.mxu0 %v2071
    %3631 = vmatprep.subr.bf16.mxu0 %v2080
    %3632 = vmatpush1.bf16.msra.mxu0 %v2079
    %3633 = vmatprep.subr.bf16.mxu0 %v2088
    %3634 = vmatpush1.bf16.msra.mxu0 %v2087
    %3635 = vmatprep.subr.bf16.mxu0 %v2096
    %3636 = vmatpush1.bf16.msra.mxu0 %v2095
    %3637 = vmatprep.subr.bf16.mxu0 %v2104
    %3638 = vmatpush1.bf16.msra.mxu0 %v2103
    %3639 = vmatprep.subr.bf16.mxu0 %v2112
    %3640 = vmatpush1.bf16.msra.mxu0 %v2111
    %3641 = vmatprep.subr.bf16.mxu0 %v2120
    %3642 = vmatpush1.bf16.msra.mxu0 %v2119
    %3643 = vmatprep.subr.bf16.mxu0 %v2128
    %3644 = vmatpush1.bf16.msra.mxu0 %v2127
    %3645 = vmatprep.mubr.bf16.mxu0 %v3601
    %3646 = vmatmul.mubr.bf16.gmra.mrb[0].mxu0 %v3600
    %v3647 = vpop.f32.mrb[0].mxu0
    %v3648 = vadd.f32 %v3605, %v3647
    %v3649 = vpop.f32.mrb[0].mxu0
    %v3650 = vadd.f32 %v3606, %v3649
    %v3651 = vpop.f32.mrb[0].mxu0
    %v3652 = vpop.f32.mrb[0].mxu0
    %3653 = vdwg.mxu0
    %3654 = vmatprep.subr.bf16.mxu0 %v2010
    %3655 = vmatpush1.bf16.msra.mxu0 %v2009
    %3656 = vmatprep.subr.bf16.mxu0 %v2018
    %3657 = vmatpush1.bf16.msra.mxu0 %v2017
    %3658 = vmatprep.subr.bf16.mxu0 %v2026
    %3659 = vmatpush1.bf16.msra.mxu0 %v2025
    %3660 = vmatprep.subr.bf16.mxu0 %v2034
    %3661 = vmatpush1.bf16.msra.mxu0 %v2033
    %3662 = vmatprep.subr.bf16.mxu0 %v2042
    %3663 = vmatpush1.bf16.msra.mxu0 %v2041
    %3664 = vmatprep.subr.bf16.mxu0 %v2050
    %3665 = vmatpush1.bf16.msra.mxu0 %v2049
    %3666 = vmatprep.subr.bf16.mxu0 %v2058
    %3667 = vmatpush1.bf16.msra.mxu0 %v2057
    %3668 = vmatprep.subr.bf16.mxu0 %v2066
    %3669 = vmatpush1.bf16.msra.mxu0 %v2065
    %3670 = vmatprep.subr.bf16.mxu0 %v2074
    %3671 = vmatpush1.bf16.msra.mxu0 %v2073
    %3672 = vmatprep.subr.bf16.mxu0 %v2082
    %3673 = vmatpush1.bf16.msra.mxu0 %v2081
    %3674 = vmatprep.subr.bf16.mxu0 %v2090
    %3675 = vmatpush1.bf16.msra.mxu0 %v2089
    %3676 = vmatprep.subr.bf16.mxu0 %v2098
    %3677 = vmatpush1.bf16.msra.mxu0 %v2097
    %3678 = vmatprep.subr.bf16.mxu0 %v2106
    %3679 = vmatpush1.bf16.msra.mxu0 %v2105
    %3680 = vmatprep.subr.bf16.mxu0 %v2114
    %3681 = vmatpush1.bf16.msra.mxu0 %v2113
    %3682 = vmatprep.subr.bf16.mxu0 %v2122
    %3683 = vmatpush1.bf16.msra.mxu0 %v2121
    %3684 = vmatprep.subr.bf16.mxu0 %v2130
    %3685 = vmatpush1.bf16.msra.mxu0 %v2129
    %3686 = vmatprep.mubr.bf16.mxu0 %v3601
    %3687 = vmatmul.mubr.bf16.gmra.mrb[0].mxu0 %v3600
    %v3688 = vpop.f32.mrb[0].mxu0
    %v3689 = vadd.f32 %v3607, %v3688
    %v3690 = vpop.f32.mrb[0].mxu0
    %v3691 = vadd.f32 %v3608, %v3690
    %v3692 = vpop.f32.mrb[0].mxu0
    %v3693 = vpop.f32.mrb[0].mxu0
    %3694 = vdwg.mxu0
    %3695 = vmatprep.subr.bf16.mxu0 %v2012
    %3696 = vmatpush1.bf16.msra.mxu0 %v2011
    %3697 = vmatprep.subr.bf16.mxu0 %v2020
    %3698 = vmatpush1.bf16.msra.mxu0 %v2019
    %3699 = vmatprep.subr.bf16.mxu0 %v2028
    %3700 = vmatpush1.bf16.msra.mxu0 %v2027
    %3701 = vmatprep.subr.bf16.mxu0 %v2036
    %3702 = vmatpush1.bf16.msra.mxu0 %v2035
    %3703 = vmatprep.subr.bf16.mxu0 %v2044
    %3704 = vmatpush1.bf16.msra.mxu0 %v2043
    %3705 = vmatprep.subr.bf16.mxu0 %v2052
    %3706 = vmatpush1.bf16.msra.mxu0 %v2051
    %3707 = vmatprep.subr.bf16.mxu0 %v2060
    %3708 = vmatpush1.bf16.msra.mxu0 %v2059
    %3709 = vmatprep.subr.bf16.mxu0 %v2068
    %3710 = vmatpush1.bf16.msra.mxu0 %v2067
    %3711 = vmatprep.subr.bf16.mxu0 %v2076
    %3712 = vmatpush1.bf16.msra.mxu0 %v2075
    %3713 = vmatprep.subr.bf16.mxu0 %v2084
    %3714 = vmatpush1.bf16.msra.mxu0 %v2083
    %3715 = vmatprep.subr.bf16.mxu0 %v2092
    %3716 = vmatpush1.bf16.msra.mxu0 %v2091
    %3717 = vmatprep.subr.bf16.mxu0 %v2100
    %3718 = vmatpush1.bf16.msra.mxu0 %v2099
    %3719 = vmatprep.subr.bf16.mxu0 %v2108
    %3720 = vmatpush1.bf16.msra.mxu0 %v2107
    %3721 = vmatprep.subr.bf16.mxu0 %v2116
    %3722 = vmatpush1.bf16.msra.mxu0 %v2115
    %3723 = vmatprep.subr.bf16.mxu0 %v2124
    %3724 = vmatpush1.bf16.msra.mxu0 %v2123
    %3725 = vmatprep.subr.bf16.mxu0 %v2132
    %3726 = vmatpush1.bf16.msra.mxu0 %v2131
    %3727 = vmatprep.mubr.bf16.mxu0 %v3601
    %3728 = vmatmul.mubr.bf16.gmra.mrb[0].mxu0 %v3600
    %v3729 = vpop.f32.mrb[0].mxu0
    %v3730 = vadd.f32 %v3609, %v3729
    %v3731 = vpop.f32.mrb[0].mxu0
    %v3732 = vadd.f32 %v3610, %v3731
    %v3733 = vpop.f32.mrb[0].mxu0
    %v3734 = vpop.f32.mrb[0].mxu0
    %3735 = vdwg.mxu0
    %3736 = vmatprep.subr.bf16.mxu0 %v2014
    %3737 = vmatpush1.bf16.msra.mxu0 %v2013
    %3738 = vmatprep.subr.bf16.mxu0 %v2022
    %3739 = vmatpush1.bf16.msra.mxu0 %v2021
    %3740 = vmatprep.subr.bf16.mxu0 %v2030
    %3741 = vmatpush1.bf16.msra.mxu0 %v2029
    %3742 = vmatprep.subr.bf16.mxu0 %v2038
    %3743 = vmatpush1.bf16.msra.mxu0 %v2037
    %3744 = vmatprep.subr.bf16.mxu0 %v2046
    %3745 = vmatpush1.bf16.msra.mxu0 %v2045
    %3746 = vmatprep.subr.bf16.mxu0 %v2054
    %3747 = vmatpush1.bf16.msra.mxu0 %v2053
    %3748 = vmatprep.subr.bf16.mxu0 %v2062
    %3749 = vmatpush1.bf16.msra.mxu0 %v2061
    %3750 = vmatprep.subr.bf16.mxu0 %v2070
    %3751 = vmatpush1.bf16.msra.mxu0 %v2069
    %3752 = vmatprep.subr.bf16.mxu0 %v2078
    %3753 = vmatpush1.bf16.msra.mxu0 %v2077
    %3754 = vmatprep.subr.bf16.mxu0 %v2086
    %3755 = vmatpush1.bf16.msra.mxu0 %v2085
    %3756 = vmatprep.subr.bf16.mxu0 %v2094
    %3757 = vmatpush1.bf16.msra.mxu0 %v2093
    %3758 = vmatprep.subr.bf16.mxu0 %v2102
    %3759 = vmatpush1.bf16.msra.mxu0 %v2101
    %3760 = vmatprep.subr.bf16.mxu0 %v2110
    %3761 = vmatpush1.bf16.msra.mxu0 %v2109
    %3762 = vmatprep.subr.bf16.mxu0 %v2118
    %3763 = vmatpush1.bf16.msra.mxu0 %v2117
    %3764 = vmatprep.subr.bf16.mxu0 %v2126
    %3765 = vmatpush1.bf16.msra.mxu0 %v2125
    %3766 = vmatprep.subr.bf16.mxu0 %v2134
    %3767 = vmatpush1.bf16.msra.mxu0 %v2133
    %3768 = vmatprep.mubr.bf16.mxu0 %v3601
    %3769 = vmatmul.mubr.bf16.gmra.mrb[0].mxu0 %v3600
    %v3770 = vpop.f32.mrb[0].mxu0
    %v3771 = vadd.f32 %v3611, %v3770
    %v3772 = vpop.f32.mrb[0].mxu0
    %v3773 = vadd.f32 %v3612, %v3772
    %v3774 = vpop.f32.mrb[0].mxu0
    %v3775 = vpop.f32.mrb[0].mxu0
    %3776 = vdwg.mxu0
    %v3777 = vxor.u32 %v3648, 2147483648
    %v3778 = vxor.u32 %v3650, 2147483648
    %v3779 = vxor.u32 %v3689, 2147483648
    %v3780 = vxor.u32 %v3691, 2147483648
    %v3781 = vxor.u32 %v3730, 2147483648
    %v3782 = vxor.u32 %v3732, 2147483648
    %v3783 = vmul.f32 %v3777, 1.442695
    %v3784 = vpow.pop %v3783
    %v3785 = vmul.f32 %v3778, 1.442695
    %v3786 = vpow.pop %v3785
    %v3787 = vmul.f32 %v3779, 1.442695
    %v3788 = vpow.pop %v3787
    %v3789 = vmul.f32 %v3780, 1.442695
    %v3790 = vpow.pop %v3789
    %v3791 = vmul.f32 %v3781, 1.442695
    %v3792 = vpow.pop %v3791
    %v3793 = vmul.f32 %v3782, 1.442695
    %v3794 = vpow.pop %v3793
    %v3795 = vadd.f32 %v3784, 1.0
    %v3796 = vadd.f32 %v3786, 1.0
    %v3797 = vadd.f32 %v3788, 1.0
    %v3798 = vadd.f32 %v3790, 1.0
    %v3799 = vadd.f32 %v3792, 1.0
    %v3800 = vadd.f32 %v3794, 1.0
    %v3801 = vrcp.pop %v3795
    %v3802 = vmul.f32 1.0, %v3801
    %v3803 = vrcp.pop %v3796
    %v3804 = vmul.f32 1.0, %v3803
    %v3805 = vrcp.pop %v3797
    %v3806 = vmul.f32 1.0, %v3805
    %v3807 = vrcp.pop %v3798
    %v3808 = vmul.f32 1.0, %v3807
    %v3809 = vrcp.pop %v3799
    %v3810 = vmul.f32 1.0, %v3809
    %v3811 = vrcp.pop %v3800
    %v3812 = vmul.f32 1.0, %v3811
    %v3813 = vtanh.pop %v3771
    %v3814 = vtanh.pop %v3773
    %v3815 = vmul.f32 %v3806, %v3594
    %v3816 = vmul.f32 %v3808, %v3595
    %v3817 = vmul.f32 %v3802, %v3813
    %v3818 = vmul.f32 %v3804, %v3814
    %v3819 = vadd.f32 %v3815, %v3817
    %v3820 = vadd.f32 %v3816, %v3818
    %v3821 = vtanh.pop %v3819
    %v3822 = vtanh.pop %v3820
    %v3823 = vmul.f32 %v3810, %v3821
    %v3824 = vmul.f32 %v3812, %v3822
    %v3825 = vpack.c.bf16 %v3823, %v3823
    %v3826 = vpack.c.bf16 %v3824, %v3824
    %s3827 = smul.u32 8, 8
    %s3828 = smul.addr %s3827, 8
    %s3829 = scalar_lea.vmem [#allocation2], %s3828
    %v3830 = vld [vmem:[%s3829] sm:$0x3]
    %v3831 = vld [vmem:[%s3829 + $0x8] sm:$0x3]
    %v3832 = vld [vmem:[%s3829 + $0x10] sm:$0x3]
    %v3833 = vld [vmem:[%s3829 + $0x18] sm:$0x3]
    %v3834 = vld [vmem:[%s3829 + $0x20] sm:$0x3]
    %v3835 = vld [vmem:[%s3829 + $0x28] sm:$0x3]
    %v3836 = vld [vmem:[%s3829 + $0x30] sm:$0x3]
    %v3837 = vld [vmem:[%s3829 + $0x38] sm:$0x3]
    %3838 = vmatprep.subr.bf16.mxu0 %v2008
    %3839 = vmatpush1.bf16.msra.mxu0 %v2007
    %3840 = vmatprep.subr.bf16.mxu0 %v2016
    %3841 = vmatpush1.bf16.msra.mxu0 %v2015
    %3842 = vmatprep.subr.bf16.mxu0 %v2024
    %3843 = vmatpush1.bf16.msra.mxu0 %v2023
    %3844 = vmatprep.subr.bf16.mxu0 %v2032
    %3845 = vmatpush1.bf16.msra.mxu0 %v2031
    %3846 = vmatprep.subr.bf16.mxu0 %v2040
    %3847 = vmatpush1.bf16.msra.mxu0 %v2039
    %3848 = vmatprep.subr.bf16.mxu0 %v2048
    %3849 = vmatpush1.bf16.msra.mxu0 %v2047
    %3850 = vmatprep.subr.bf16.mxu0 %v2056
    %3851 = vmatpush1.bf16.msra.mxu0 %v2055
    %3852 = vmatprep.subr.bf16.mxu0 %v2064
    %3853 = vmatpush1.bf16.msra.mxu0 %v2063
    %3854 = vmatprep.subr.bf16.mxu0 %v2072
    %3855 = vmatpush1.bf16.msra.mxu0 %v2071
    %3856 = vmatprep.subr.bf16.mxu0 %v2080
    %3857 = vmatpush1.bf16.msra.mxu0 %v2079
    %3858 = vmatprep.subr.bf16.mxu0 %v2088
    %3859 = vmatpush1.bf16.msra.mxu0 %v2087
    %3860 = vmatprep.subr.bf16.mxu0 %v2096
    %3861 = vmatpush1.bf16.msra.mxu0 %v2095
    %3862 = vmatprep.subr.bf16.mxu0 %v2104
    %3863 = vmatpush1.bf16.msra.mxu0 %v2103
    %3864 = vmatprep.subr.bf16.mxu0 %v2112
    %3865 = vmatpush1.bf16.msra.mxu0 %v2111
    %3866 = vmatprep.subr.bf16.mxu0 %v2120
    %3867 = vmatpush1.bf16.msra.mxu0 %v2119
    %3868 = vmatprep.subr.bf16.mxu0 %v2128
    %3869 = vmatpush1.bf16.msra.mxu0 %v2127
    %3870 = vmatprep.mubr.bf16.mxu0 %v3826
    %3871 = vmatmul.mubr.bf16.gmra.mrb[0].mxu0 %v3825
    %v3872 = vpop.f32.mrb[0].mxu0
    %v3873 = vadd.f32 %v3830, %v3872
    %v3874 = vpop.f32.mrb[0].mxu0
    %v3875 = vadd.f32 %v3831, %v3874
    %v3876 = vpop.f32.mrb[0].mxu0
    %v3877 = vpop.f32.mrb[0].mxu0
    %3878 = vdwg.mxu0
    %3879 = vmatprep.subr.bf16.mxu0 %v2010
    %3880 = vmatpush1.bf16.msra.mxu0 %v2009
    %3881 = vmatprep.subr.bf16.mxu0 %v2018
    %3882 = vmatpush1.bf16.msra.mxu0 %v2017
    %3883 = vmatprep.subr.bf16.mxu0 %v2026
    %3884 = vmatpush1.bf16.msra.mxu0 %v2025
    %3885 = vmatprep.subr.bf16.mxu0 %v2034
    %3886 = vmatpush1.bf16.msra.mxu0 %v2033
    %3887 = vmatprep.subr.bf16.mxu0 %v2042
    %3888 = vmatpush1.bf16.msra.mxu0 %v2041
    %3889 = vmatprep.subr.bf16.mxu0 %v2050
    %3890 = vmatpush1.bf16.msra.mxu0 %v2049
    %3891 = vmatprep.subr.bf16.mxu0 %v2058
    %3892 = vmatpush1.bf16.msra.mxu0 %v2057
    %3893 = vmatprep.subr.bf16.mxu0 %v2066
    %3894 = vmatpush1.bf16.msra.mxu0 %v2065
    %3895 = vmatprep.subr.bf16.mxu0 %v2074
    %3896 = vmatpush1.bf16.msra.mxu0 %v2073
    %3897 = vmatprep.subr.bf16.mxu0 %v2082
    %3898 = vmatpush1.bf16.msra.mxu0 %v2081
    %3899 = vmatprep.subr.bf16.mxu0 %v2090
    %3900 = vmatpush1.bf16.msra.mxu0 %v2089
    %3901 = vmatprep.subr.bf16.mxu0 %v2098
    %3902 = vmatpush1.bf16.msra.mxu0 %v2097
    %3903 = vmatprep.subr.bf16.mxu0 %v2106
    %3904 = vmatpush1.bf16.msra.mxu0 %v2105
    %3905 = vmatprep.subr.bf16.mxu0 %v2114
    %3906 = vmatpush1.bf16.msra.mxu0 %v2113
    %3907 = vmatprep.subr.bf16.mxu0 %v2122
    %3908 = vmatpush1.bf16.msra.mxu0 %v2121
    %3909 = vmatprep.subr.bf16.mxu0 %v2130
    %3910 = vmatpush1.bf16.msra.mxu0 %v2129
    %3911 = vmatprep.mubr.bf16.mxu0 %v3826
    %3912 = vmatmul.mubr.bf16.gmra.mrb[0].mxu0 %v3825
    %v3913 = vpop.f32.mrb[0].mxu0
    %v3914 = vadd.f32 %v3832, %v3913
    %v3915 = vpop.f32.mrb[0].mxu0
    %v3916 = vadd.f32 %v3833, %v3915
    %v3917 = vpop.f32.mrb[0].mxu0
    %v3918 = vpop.f32.mrb[0].mxu0
    %3919 = vdwg.mxu0
    %3920 = vmatprep.subr.bf16.mxu0 %v2012
    %3921 = vmatpush1.bf16.msra.mxu0 %v2011
    %3922 = vmatprep.subr.bf16.mxu0 %v2020
    %3923 = vmatpush1.bf16.msra.mxu0 %v2019
    %3924 = vmatprep.subr.bf16.mxu0 %v2028
    %3925 = vmatpush1.bf16.msra.mxu0 %v2027
    %3926 = vmatprep.subr.bf16.mxu0 %v2036
    %3927 = vmatpush1.bf16.msra.mxu0 %v2035
    %3928 = vmatprep.subr.bf16.mxu0 %v2044
    %3929 = vmatpush1.bf16.msra.mxu0 %v2043
    %3930 = vmatprep.subr.bf16.mxu0 %v2052
    %3931 = vmatpush1.bf16.msra.mxu0 %v2051
    %3932 = vmatprep.subr.bf16.mxu0 %v2060
    %3933 = vmatpush1.bf16.msra.mxu0 %v2059
    %3934 = vmatprep.subr.bf16.mxu0 %v2068
    %3935 = vmatpush1.bf16.msra.mxu0 %v2067
    %3936 = vmatprep.subr.bf16.mxu0 %v2076
    %3937 = vmatpush1.bf16.msra.mxu0 %v2075
    %3938 = vmatprep.subr.bf16.mxu0 %v2084
    %3939 = vmatpush1.bf16.msra.mxu0 %v2083
    %3940 = vmatprep.subr.bf16.mxu0 %v2092
    %3941 = vmatpush1.bf16.msra.mxu0 %v2091
    %3942 = vmatprep.subr.bf16.mxu0 %v2100
    %3943 = vmatpush1.bf16.msra.mxu0 %v2099
    %3944 = vmatprep.subr.bf16.mxu0 %v2108
    %3945 = vmatpush1.bf16.msra.mxu0 %v2107
    %3946 = vmatprep.subr.bf16.mxu0 %v2116
    %3947 = vmatpush1.bf16.msra.mxu0 %v2115
    %3948 = vmatprep.subr.bf16.mxu0 %v2124
    %3949 = vmatpush1.bf16.msra.mxu0 %v2123
    %3950 = vmatprep.subr.bf16.mxu0 %v2132
    %3951 = vmatpush1.bf16.msra.mxu0 %v2131
    %3952 = vmatprep.mubr.bf16.mxu0 %v3826
    %3953 = vmatmul.mubr.bf16.gmra.mrb[0].mxu0 %v3825
    %v3954 = vpop.f32.mrb[0].mxu0
    %v3955 = vadd.f32 %v3834, %v3954
    %v3956 = vpop.f32.mrb[0].mxu0
    %v3957 = vadd.f32 %v3835, %v3956
    %v3958 = vpop.f32.mrb[0].mxu0
    %v3959 = vpop.f32.mrb[0].mxu0
    %3960 = vdwg.mxu0
    %3961 = vmatprep.subr.bf16.mxu0 %v2014
    %3962 = vmatpush1.bf16.msra.mxu0 %v2013
    %3963 = vmatprep.subr.bf16.mxu0 %v2022
    %3964 = vmatpush1.bf16.msra.mxu0 %v2021
    %3965 = vmatprep.subr.bf16.mxu0 %v2030
    %3966 = vmatpush1.bf16.msra.mxu0 %v2029
    %3967 = vmatprep.subr.bf16.mxu0 %v2038
    %3968 = vmatpush1.bf16.msra.mxu0 %v2037
    %3969 = vmatprep.subr.bf16.mxu0 %v2046
    %3970 = vmatpush1.bf16.msra.mxu0 %v2045
    %3971 = vmatprep.subr.bf16.mxu0 %v2054
    %3972 = vmatpush1.bf16.msra.mxu0 %v2053
    %3973 = vmatprep.subr.bf16.mxu0 %v2062
    %3974 = vmatpush1.bf16.msra.mxu0 %v2061
    %3975 = vmatprep.subr.bf16.mxu0 %v2070
    %3976 = vmatpush1.bf16.msra.mxu0 %v2069
    %3977 = vmatprep.subr.bf16.mxu0 %v2078
    %3978 = vmatpush1.bf16.msra.mxu0 %v2077
    %3979 = vmatprep.subr.bf16.mxu0 %v2086
    %3980 = vmatpush1.bf16.msra.mxu0 %v2085
    %3981 = vmatprep.subr.bf16.mxu0 %v2094
    %3982 = vmatpush1.bf16.msra.mxu0 %v2093
    %3983 = vmatprep.subr.bf16.mxu0 %v2102
    %3984 = vmatpush1.bf16.msra.mxu0 %v2101
    %3985 = vmatprep.subr.bf16.mxu0 %v2110
    %3986 = vmatpush1.bf16.msra.mxu0 %v2109
    %3987 = vmatprep.subr.bf16.mxu0 %v2118
    %3988 = vmatpush1.bf16.msra.mxu0 %v2117
    %3989 = vmatprep.subr.bf16.mxu0 %v2126
    %3990 = vmatpush1.bf16.msra.mxu0 %v2125
    %3991 = vmatprep.subr.bf16.mxu0 %v2134
    %3992 = vmatpush1.bf16.msra.mxu0 %v2133
    %3993 = vmatprep.mubr.bf16.mxu0 %v3826
    %3994 = vmatmul.mubr.bf16.gmra.mrb[0].mxu0 %v3825
    %v3995 = vpop.f32.mrb[0].mxu0
    %v3996 = vadd.f32 %v3836, %v3995
    %v3997 = vpop.f32.mrb[0].mxu0
    %v3998 = vadd.f32 %v3837, %v3997
    %v3999 = vpop.f32.mrb[0].mxu0
    %v4000 = vpop.f32.mrb[0].mxu0
    %4001 = vdwg.mxu0
    %v4002 = vxor.u32 %v3873, 2147483648
    %v4003 = vxor.u32 %v3875, 2147483648
    %v4004 = vxor.u32 %v3914, 2147483648
    %v4005 = vxor.u32 %v3916, 2147483648
    %v4006 = vxor.u32 %v3955, 2147483648
    %v4007 = vxor.u32 %v3957, 2147483648
    %v4008 = vmul.f32 %v4002, 1.442695
    %v4009 = vpow.pop %v4008
    %v4010 = vmul.f32 %v4003, 1.442695
    %v4011 = vpow.pop %v4010
    %v4012 = vmul.f32 %v4004, 1.442695
    %v4013 = vpow.pop %v4012
    %v4014 = vmul.f32 %v4005, 1.442695
    %v4015 = vpow.pop %v4014
    %v4016 = vmul.f32 %v4006, 1.442695
    %v4017 = vpow.pop %v4016
    %v4018 = vmul.f32 %v4007, 1.442695
    %v4019 = vpow.pop %v4018
    %v4020 = vadd.f32 %v4009, 1.0
    %v4021 = vadd.f32 %v4011, 1.0
    %v4022 = vadd.f32 %v4013, 1.0
    %v4023 = vadd.f32 %v4015, 1.0
    %v4024 = vadd.f32 %v4017, 1.0
    %v4025 = vadd.f32 %v4019, 1.0
    %v4026 = vrcp.pop %v4020
    %v4027 = vmul.f32 1.0, %v4026
    %v4028 = vrcp.pop %v4021
    %v4029 = vmul.f32 1.0, %v4028
    %v4030 = vrcp.pop %v4022
    %v4031 = vmul.f32 1.0, %v4030
    %v4032 = vrcp.pop %v4023
    %v4033 = vmul.f32 1.0, %v4032
    %v4034 = vrcp.pop %v4024
    %v4035 = vmul.f32 1.0, %v4034
    %v4036 = vrcp.pop %v4025
    %v4037 = vmul.f32 1.0, %v4036
    %v4038 = vtanh.pop %v3996
    %v4039 = vtanh.pop %v3998
    %v4040 = vmul.f32 %v4031, %v3819
    %v4041 = vmul.f32 %v4033, %v3820
    %v4042 = vmul.f32 %v4027, %v4038
    %v4043 = vmul.f32 %v4029, %v4039
    %v4044 = vadd.f32 %v4040, %v4042
    %v4045 = vadd.f32 %v4041, %v4043
    %v4046 = vtanh.pop %v4044
    %v4047 = vtanh.pop %v4045
    %v4048 = vmul.f32 %v4035, %v4046
    %v4049 = vmul.f32 %v4037, %v4047
    %v4050 = vpack.c.bf16 %v4048, %v4048
    %v4051 = vpack.c.bf16 %v4049, %v4049
    %s4052 = smul.u32 9, 8
    %s4053 = smul.addr %s4052, 8
    %s4054 = scalar_lea.vmem [#allocation2], %s4053
    %v4055 = vld [vmem:[%s4054] sm:$0x3]
    %v4056 = vld [vmem:[%s4054 + $0x8] sm:$0x3]
    %v4057 = vld [vmem:[%s4054 + $0x10] sm:$0x3]
    %v4058 = vld [vmem:[%s4054 + $0x18] sm:$0x3]
    %v4059 = vld [vmem:[%s4054 + $0x20] sm:$0x3]
    %v4060 = vld [vmem:[%s4054 + $0x28] sm:$0x3]
    %v4061 = vld [vmem:[%s4054 + $0x30] sm:$0x3]
    %v4062 = vld [vmem:[%s4054 + $0x38] sm:$0x3]
    %4063 = vmatprep.subr.bf16.mxu0 %v2008
    %4064 = vmatpush1.bf16.msra.mxu0 %v2007
    %4065 = vmatprep.subr.bf16.mxu0 %v2016
    %4066 = vmatpush1.bf16.msra.mxu0 %v2015
    %4067 = vmatprep.subr.bf16.mxu0 %v2024
    %4068 = vmatpush1.bf16.msra.mxu0 %v2023
    %4069 = vmatprep.subr.bf16.mxu0 %v2032
    %4070 = vmatpush1.bf16.msra.mxu0 %v2031
    %4071 = vmatprep.subr.bf16.mxu0 %v2040
    %4072 = vmatpush1.bf16.msra.mxu0 %v2039
    %4073 = vmatprep.subr.bf16.mxu0 %v2048
    %4074 = vmatpush1.bf16.msra.mxu0 %v2047
    %4075 = vmatprep.subr.bf16.mxu0 %v2056
    %4076 = vmatpush1.bf16.msra.mxu0 %v2055
    %4077 = vmatprep.subr.bf16.mxu0 %v2064
    %4078 = vmatpush1.bf16.msra.mxu0 %v2063
    %4079 = vmatprep.subr.bf16.mxu0 %v2072
    %4080 = vmatpush1.bf16.msra.mxu0 %v2071
    %4081 = vmatprep.subr.bf16.mxu0 %v2080
    %4082 = vmatpush1.bf16.msra.mxu0 %v2079
    %4083 = vmatprep.subr.bf16.mxu0 %v2088
    %4084 = vmatpush1.bf16.msra.mxu0 %v2087
    %4085 = vmatprep.subr.bf16.mxu0 %v2096
    %4086 = vmatpush1.bf16.msra.mxu0 %v2095
    %4087 = vmatprep.subr.bf16.mxu0 %v2104
    %4088 = vmatpush1.bf16.msra.mxu0 %v2103
    %4089 = vmatprep.subr.bf16.mxu0 %v2112
    %4090 = vmatpush1.bf16.msra.mxu0 %v2111
    %4091 = vmatprep.subr.bf16.mxu0 %v2120
    %4092 = vmatpush1.bf16.msra.mxu0 %v2119
    %4093 = vmatprep.subr.bf16.mxu0 %v2128
    %4094 = vmatpush1.bf16.msra.mxu0 %v2127
    %4095 = vmatprep.mubr.bf16.mxu0 %v4051
    %4096 = vmatmul.mubr.bf16.gmra.mrb[0].mxu0 %v4050
    %v4097 = vpop.f32.mrb[0].mxu0
    %v4098 = vadd.f32 %v4055, %v4097
    %v4099 = vpop.f32.mrb[0].mxu0
    %v4100 = vadd.f32 %v4056, %v4099
    %v4101 = vpop.f32.mrb[0].mxu0
    %v4102 = vpop.f32.mrb[0].mxu0
    %4103 = vdwg.mxu0
    %4104 = vmatprep.subr.bf16.mxu0 %v2010
    %4105 = vmatpush1.bf16.msra.mxu0 %v2009
    %4106 = vmatprep.subr.bf16.mxu0 %v2018
    %4107 = vmatpush1.bf16.msra.mxu0 %v2017
    %4108 = vmatprep.subr.bf16.mxu0 %v2026
    %4109 = vmatpush1.bf16.msra.mxu0 %v2025
    %4110 = vmatprep.subr.bf16.mxu0 %v2034
    %4111 = vmatpush1.bf16.msra.mxu0 %v2033
    %4112 = vmatprep.subr.bf16.mxu0 %v2042
    %4113 = vmatpush1.bf16.msra.mxu0 %v2041
    %4114 = vmatprep.subr.bf16.mxu0 %v2050
    %4115 = vmatpush1.bf16.msra.mxu0 %v2049
    %4116 = vmatprep.subr.bf16.mxu0 %v2058
    %4117 = vmatpush1.bf16.msra.mxu0 %v2057
    %4118 = vmatprep.subr.bf16.mxu0 %v2066
    %4119 = vmatpush1.bf16.msra.mxu0 %v2065
    %4120 = vmatprep.subr.bf16.mxu0 %v2074
    %4121 = vmatpush1.bf16.msra.mxu0 %v2073
    %4122 = vmatprep.subr.bf16.mxu0 %v2082
    %4123 = vmatpush1.bf16.msra.mxu0 %v2081
    %4124 = vmatprep.subr.bf16.mxu0 %v2090
    %4125 = vmatpush1.bf16.msra.mxu0 %v2089
    %4126 = vmatprep.subr.bf16.mxu0 %v2098
    %4127 = vmatpush1.bf16.msra.mxu0 %v2097
    %4128 = vmatprep.subr.bf16.mxu0 %v2106
    %4129 = vmatpush1.bf16.msra.mxu0 %v2105
    %4130 = vmatprep.subr.bf16.mxu0 %v2114
    %4131 = vmatpush1.bf16.msra.mxu0 %v2113
    %4132 = vmatprep.subr.bf16.mxu0 %v2122
    %4133 = vmatpush1.bf16.msra.mxu0 %v2121
    %4134 = vmatprep.subr.bf16.mxu0 %v2130
    %4135 = vmatpush1.bf16.msra.mxu0 %v2129
    %4136 = vmatprep.mubr.bf16.mxu0 %v4051
    %4137 = vmatmul.mubr.bf16.gmra.mrb[0].mxu0 %v4050
    %v4138 = vpop.f32.mrb[0].mxu0
    %v4139 = vadd.f32 %v4057, %v4138
    %v4140 = vpop.f32.mrb[0].mxu0
    %v4141 = vadd.f32 %v4058, %v4140
    %v4142 = vpop.f32.mrb[0].mxu0
    %v4143 = vpop.f32.mrb[0].mxu0
    %4144 = vdwg.mxu0
    %4145 = vmatprep.subr.bf16.mxu0 %v2012
    %4146 = vmatpush1.bf16.msra.mxu0 %v2011
    %4147 = vmatprep.subr.bf16.mxu0 %v2020
    %4148 = vmatpush1.bf16.msra.mxu0 %v2019
    %4149 = vmatprep.subr.bf16.mxu0 %v2028
    %4150 = vmatpush1.bf16.msra.mxu0 %v2027
    %4151 = vmatprep.subr.bf16.mxu0 %v2036
    %4152 = vmatpush1.bf16.msra.mxu0 %v2035
    %4153 = vmatprep.subr.bf16.mxu0 %v2044
    %4154 = vmatpush1.bf16.msra.mxu0 %v2043
    %4155 = vmatprep.subr.bf16.mxu0 %v2052
    %4156 = vmatpush1.bf16.msra.mxu0 %v2051
    %4157 = vmatprep.subr.bf16.mxu0 %v2060
    %4158 = vmatpush1.bf16.msra.mxu0 %v2059
    %4159 = vmatprep.subr.bf16.mxu0 %v2068
    %4160 = vmatpush1.bf16.msra.mxu0 %v2067
    %4161 = vmatprep.subr.bf16.mxu0 %v2076
    %4162 = vmatpush1.bf16.msra.mxu0 %v2075
    %4163 = vmatprep.subr.bf16.mxu0 %v2084
    %4164 = vmatpush1.bf16.msra.mxu0 %v2083
    %4165 = vmatprep.subr.bf16.mxu0 %v2092
    %4166 = vmatpush1.bf16.msra.mxu0 %v2091
    %4167 = vmatprep.subr.bf16.mxu0 %v2100
    %4168 = vmatpush1.bf16.msra.mxu0 %v2099
    %4169 = vmatprep.subr.bf16.mxu0 %v2108
    %4170 = vmatpush1.bf16.msra.mxu0 %v2107
    %4171 = vmatprep.subr.bf16.mxu0 %v2116
    %4172 = vmatpush1.bf16.msra.mxu0 %v2115
    %4173 = vmatprep.subr.bf16.mxu0 %v2124
    %4174 = vmatpush1.bf16.msra.mxu0 %v2123
    %4175 = vmatprep.subr.bf16.mxu0 %v2132
    %4176 = vmatpush1.bf16.msra.mxu0 %v2131
    %4177 = vmatprep.mubr.bf16.mxu0 %v4051
    %4178 = vmatmul.mubr.bf16.gmra.mrb[0].mxu0 %v4050
    %v4179 = vpop.f32.mrb[0].mxu0
    %v4180 = vadd.f32 %v4059, %v4179
    %v4181 = vpop.f32.mrb[0].mxu0
    %v4182 = vadd.f32 %v4060, %v4181
    %v4183 = vpop.f32.mrb[0].mxu0
    %v4184 = vpop.f32.mrb[0].mxu0
    %4185 = vdwg.mxu0
    %4186 = vmatprep.subr.bf16.mxu0 %v2014
    %4187 = vmatpush1.bf16.msra.mxu0 %v2013
    %4188 = vmatprep.subr.bf16.mxu0 %v2022
    %4189 = vmatpush1.bf16.msra.mxu0 %v2021
    %4190 = vmatprep.subr.bf16.mxu0 %v2030
    %4191 = vmatpush1.bf16.msra.mxu0 %v2029
    %4192 = vmatprep.subr.bf16.mxu0 %v2038
    %4193 = vmatpush1.bf16.msra.mxu0 %v2037
    %4194 = vmatprep.subr.bf16.mxu0 %v2046
    %4195 = vmatpush1.bf16.msra.mxu0 %v2045
    %4196 = vmatprep.subr.bf16.mxu0 %v2054
    %4197 = vmatpush1.bf16.msra.mxu0 %v2053
    %4198 = vmatprep.subr.bf16.mxu0 %v2062
    %4199 = vmatpush1.bf16.msra.mxu0 %v2061
    %4200 = vmatprep.subr.bf16.mxu0 %v2070
    %4201 = vmatpush1.bf16.msra.mxu0 %v2069
    %4202 = vmatprep.subr.bf16.mxu0 %v2078
    %4203 = vmatpush1.bf16.msra.mxu0 %v2077
    %4204 = vmatprep.subr.bf16.mxu0 %v2086
    %4205 = vmatpush1.bf16.msra.mxu0 %v2085
    %4206 = vmatprep.subr.bf16.mxu0 %v2094
    %4207 = vmatpush1.bf16.msra.mxu0 %v2093
    %4208 = vmatprep.subr.bf16.mxu0 %v2102
    %4209 = vmatpush1.bf16.msra.mxu0 %v2101
    %4210 = vmatprep.subr.bf16.mxu0 %v2110
    %4211 = vmatpush1.bf16.msra.mxu0 %v2109
    %4212 = vmatprep.subr.bf16.mxu0 %v2118
    %4213 = vmatpush1.bf16.msra.mxu0 %v2117
    %4214 = vmatprep.subr.bf16.mxu0 %v2126
    %4215 = vmatpush1.bf16.msra.mxu0 %v2125
    %4216 = vmatprep.subr.bf16.mxu0 %v2134
    %4217 = vmatpush1.bf16.msra.mxu0 %v2133
    %4218 = vmatprep.mubr.bf16.mxu0 %v4051
    %4219 = vmatmul.mubr.bf16.gmra.mrb[0].mxu0 %v4050
    %v4220 = vpop.f32.mrb[0].mxu0
    %v4221 = vadd.f32 %v4061, %v4220
    %v4222 = vpop.f32.mrb[0].mxu0
    %v4223 = vadd.f32 %v4062, %v4222
    %v4224 = vpop.f32.mrb[0].mxu0
    %v4225 = vpop.f32.mrb[0].mxu0
    %4226 = vdwg.mxu0
    %v4227 = vxor.u32 %v4098, 2147483648
    %v4228 = vxor.u32 %v4100, 2147483648
    %v4229 = vxor.u32 %v4139, 2147483648
    %v4230 = vxor.u32 %v4141, 2147483648
    %v4231 = vxor.u32 %v4180, 2147483648
    %v4232 = vxor.u32 %v4182, 2147483648
    %v4233 = vmul.f32 %v4227, 1.442695
    %v4234 = vpow.pop %v4233
    %v4235 = vmul.f32 %v4228, 1.442695
    %v4236 = vpow.pop %v4235
    %v4237 = vmul.f32 %v4229, 1.442695
    %v4238 = vpow.pop %v4237
    %v4239 = vmul.f32 %v4230, 1.442695
    %v4240 = vpow.pop %v4239
    %v4241 = vmul.f32 %v4231, 1.442695
    %v4242 = vpow.pop %v4241
    %v4243 = vmul.f32 %v4232, 1.442695
    %v4244 = vpow.pop %v4243
    %v4245 = vadd.f32 %v4234, 1.0
    %v4246 = vadd.f32 %v4236, 1.0
    %v4247 = vadd.f32 %v4238, 1.0
    %v4248 = vadd.f32 %v4240, 1.0
    %v4249 = vadd.f32 %v4242, 1.0
    %v4250 = vadd.f32 %v4244, 1.0
    %v4251 = vrcp.pop %v4245
    %v4252 = vmul.f32 1.0, %v4251
    %v4253 = vrcp.pop %v4246
    %v4254 = vmul.f32 1.0, %v4253
    %v4255 = vrcp.pop %v4247
    %v4256 = vmul.f32 1.0, %v4255
    %v4257 = vrcp.pop %v4248
    %v4258 = vmul.f32 1.0, %v4257
    %v4259 = vrcp.pop %v4249
    %v4260 = vmul.f32 1.0, %v4259
    %v4261 = vrcp.pop %v4250
    %v4262 = vmul.f32 1.0, %v4261
    %v4263 = vtanh.pop %v4221
    %v4264 = vtanh.pop %v4223
    %v4265 = vmul.f32 %v4256, %v4044
    %v4266 = vmul.f32 %v4258, %v4045
    %v4267 = vmul.f32 %v4252, %v4263
    %v4268 = vmul.f32 %v4254, %v4264
    %v4269 = vadd.f32 %v4265, %v4267
    %v4270 = vadd.f32 %v4266, %v4268
    %v4271 = vtanh.pop %v4269
    %v4272 = vtanh.pop %v4270
    %v4273 = vmul.f32 %v4260, %v4271
    %v4274 = vmul.f32 %v4262, %v4272
    %v4275 = vpack.c.bf16 %v4273, %v4273
    %v4276 = vpack.c.bf16 %v4274, %v4274
    %s4277 = smul.u32 10, 8
    %s4278 = smul.addr %s4277, 8
    %s4279 = scalar_lea.vmem [#allocation2], %s4278
    %v4280 = vld [vmem:[%s4279] sm:$0x3]
    %v4281 = vld [vmem:[%s4279 + $0x8] sm:$0x3]
    %v4282 = vld [vmem:[%s4279 + $0x10] sm:$0x3]
    %v4283 = vld [vmem:[%s4279 + $0x18] sm:$0x3]
    %v4284 = vld [vmem:[%s4279 + $0x20] sm:$0x3]
    %v4285 = vld [vmem:[%s4279 + $0x28] sm:$0x3]
    %v4286 = vld [vmem:[%s4279 + $0x30] sm:$0x3]
    %v4287 = vld [vmem:[%s4279 + $0x38] sm:$0x3]
    %4288 = vmatprep.subr.bf16.mxu0 %v2008
    %4289 = vmatpush1.bf16.msra.mxu0 %v2007
    %4290 = vmatprep.subr.bf16.mxu0 %v2016
    %4291 = vmatpush1.bf16.msra.mxu0 %v2015
    %4292 = vmatprep.subr.bf16.mxu0 %v2024
    %4293 = vmatpush1.bf16.msra.mxu0 %v2023
    %4294 = vmatprep.subr.bf16.mxu0 %v2032
    %4295 = vmatpush1.bf16.msra.mxu0 %v2031
    %4296 = vmatprep.subr.bf16.mxu0 %v2040
    %4297 = vmatpush1.bf16.msra.mxu0 %v2039
    %4298 = vmatprep.subr.bf16.mxu0 %v2048
    %4299 = vmatpush1.bf16.msra.mxu0 %v2047
    %4300 = vmatprep.subr.bf16.mxu0 %v2056
    %4301 = vmatpush1.bf16.msra.mxu0 %v2055
    %4302 = vmatprep.subr.bf16.mxu0 %v2064
    %4303 = vmatpush1.bf16.msra.mxu0 %v2063
    %4304 = vmatprep.subr.bf16.mxu0 %v2072
    %4305 = vmatpush1.bf16.msra.mxu0 %v2071
    %4306 = vmatprep.subr.bf16.mxu0 %v2080
    %4307 = vmatpush1.bf16.msra.mxu0 %v2079
    %4308 = vmatprep.subr.bf16.mxu0 %v2088
    %4309 = vmatpush1.bf16.msra.mxu0 %v2087
    %4310 = vmatprep.subr.bf16.mxu0 %v2096
    %4311 = vmatpush1.bf16.msra.mxu0 %v2095
    %4312 = vmatprep.subr.bf16.mxu0 %v2104
    %4313 = vmatpush1.bf16.msra.mxu0 %v2103
    %4314 = vmatprep.subr.bf16.mxu0 %v2112
    %4315 = vmatpush1.bf16.msra.mxu0 %v2111
    %4316 = vmatprep.subr.bf16.mxu0 %v2120
    %4317 = vmatpush1.bf16.msra.mxu0 %v2119
    %4318 = vmatprep.subr.bf16.mxu0 %v2128
    %4319 = vmatpush1.bf16.msra.mxu0 %v2127
    %4320 = vmatprep.mubr.bf16.mxu0 %v4276
    %4321 = vmatmul.mubr.bf16.gmra.mrb[0].mxu0 %v4275
    %v4322 = vpop.f32.mrb[0].mxu0
    %v4323 = vadd.f32 %v4280, %v4322
    %v4324 = vpop.f32.mrb[0].mxu0
    %v4325 = vadd.f32 %v4281, %v4324
    %v4326 = vpop.f32.mrb[0].mxu0
    %v4327 = vpop.f32.mrb[0].mxu0
    %4328 = vdwg.mxu0
    %4329 = vmatprep.subr.bf16.mxu0 %v2010
    %4330 = vmatpush1.bf16.msra.mxu0 %v2009
    %4331 = vmatprep.subr.bf16.mxu0 %v2018
    %4332 = vmatpush1.bf16.msra.mxu0 %v2017
    %4333 = vmatprep.subr.bf16.mxu0 %v2026
    %4334 = vmatpush1.bf16.msra.mxu0 %v2025
    %4335 = vmatprep.subr.bf16.mxu0 %v2034
    %4336 = vmatpush1.bf16.msra.mxu0 %v2033
    %4337 = vmatprep.subr.bf16.mxu0 %v2042
    %4338 = vmatpush1.bf16.msra.mxu0 %v2041
    %4339 = vmatprep.subr.bf16.mxu0 %v2050
    %4340 = vmatpush1.bf16.msra.mxu0 %v2049
    %4341 = vmatprep.subr.bf16.mxu0 %v2058
    %4342 = vmatpush1.bf16.msra.mxu0 %v2057
    %4343 = vmatprep.subr.bf16.mxu0 %v2066
    %4344 = vmatpush1.bf16.msra.mxu0 %v2065
    %4345 = vmatprep.subr.bf16.mxu0 %v2074
    %4346 = vmatpush1.bf16.msra.mxu0 %v2073
    %4347 = vmatprep.subr.bf16.mxu0 %v2082
    %4348 = vmatpush1.bf16.msra.mxu0 %v2081
    %4349 = vmatprep.subr.bf16.mxu0 %v2090
    %4350 = vmatpush1.bf16.msra.mxu0 %v2089
    %4351 = vmatprep.subr.bf16.mxu0 %v2098
    %4352 = vmatpush1.bf16.msra.mxu0 %v2097
    %4353 = vmatprep.subr.bf16.mxu0 %v2106
    %4354 = vmatpush1.bf16.msra.mxu0 %v2105
    %4355 = vmatprep.subr.bf16.mxu0 %v2114
    %4356 = vmatpush1.bf16.msra.mxu0 %v2113
    %4357 = vmatprep.subr.bf16.mxu0 %v2122
    %4358 = vmatpush1.bf16.msra.mxu0 %v2121
    %4359 = vmatprep.subr.bf16.mxu0 %v2130
    %4360 = vmatpush1.bf16.msra.mxu0 %v2129
    %4361 = vmatprep.mubr.bf16.mxu0 %v4276
    %4362 = vmatmul.mubr.bf16.gmra.mrb[0].mxu0 %v4275
    %v4363 = vpop.f32.mrb[0].mxu0
    %v4364 = vadd.f32 %v4282, %v4363
    %v4365 = vpop.f32.mrb[0].mxu0
    %v4366 = vadd.f32 %v4283, %v4365
    %v4367 = vpop.f32.mrb[0].mxu0
    %v4368 = vpop.f32.mrb[0].mxu0
    %4369 = vdwg.mxu0
    %4370 = vmatprep.subr.bf16.mxu0 %v2012
    %4371 = vmatpush1.bf16.msra.mxu0 %v2011
    %4372 = vmatprep.subr.bf16.mxu0 %v2020
    %4373 = vmatpush1.bf16.msra.mxu0 %v2019
    %4374 = vmatprep.subr.bf16.mxu0 %v2028
    %4375 = vmatpush1.bf16.msra.mxu0 %v2027
    %4376 = vmatprep.subr.bf16.mxu0 %v2036
    %4377 = vmatpush1.bf16.msra.mxu0 %v2035
    %4378 = vmatprep.subr.bf16.mxu0 %v2044
    %4379 = vmatpush1.bf16.msra.mxu0 %v2043
    %4380 = vmatprep.subr.bf16.mxu0 %v2052
    %4381 = vmatpush1.bf16.msra.mxu0 %v2051
    %4382 = vmatprep.subr.bf16.mxu0 %v2060
    %4383 = vmatpush1.bf16.msra.mxu0 %v2059
    %4384 = vmatprep.subr.bf16.mxu0 %v2068
    %4385 = vmatpush1.bf16.msra.mxu0 %v2067
    %4386 = vmatprep.subr.bf16.mxu0 %v2076
    %4387 = vmatpush1.bf16.msra.mxu0 %v2075
    %4388 = vmatprep.subr.bf16.mxu0 %v2084
    %4389 = vmatpush1.bf16.msra.mxu0 %v2083
    %4390 = vmatprep.subr.bf16.mxu0 %v2092
    %4391 = vmatpush1.bf16.msra.mxu0 %v2091
    %4392 = vmatprep.subr.bf16.mxu0 %v2100
    %4393 = vmatpush1.bf16.msra.mxu0 %v2099
    %4394 = vmatprep.subr.bf16.mxu0 %v2108
    %4395 = vmatpush1.bf16.msra.mxu0 %v2107
    %4396 = vmatprep.subr.bf16.mxu0 %v2116
    %4397 = vmatpush1.bf16.msra.mxu0 %v2115
    %4398 = vmatprep.subr.bf16.mxu0 %v2124
    %4399 = vmatpush1.bf16.msra.mxu0 %v2123
    %4400 = vmatprep.subr.bf16.mxu0 %v2132
    %4401 = vmatpush1.bf16.msra.mxu0 %v2131
    %4402 = vmatprep.mubr.bf16.mxu0 %v4276
    %4403 = vmatmul.mubr.bf16.gmra.mrb[0].mxu0 %v4275
    %v4404 = vpop.f32.mrb[0].mxu0
    %v4405 = vadd.f32 %v4284, %v4404
    %v4406 = vpop.f32.mrb[0].mxu0
    %v4407 = vadd.f32 %v4285, %v4406
    %v4408 = vpop.f32.mrb[0].mxu0
    %v4409 = vpop.f32.mrb[0].mxu0
    %4410 = vdwg.mxu0
    %4411 = vmatprep.subr.bf16.mxu0 %v2014
    %4412 = vmatpush1.bf16.msra.mxu0 %v2013
    %4413 = vmatprep.subr.bf16.mxu0 %v2022
    %4414 = vmatpush1.bf16.msra.mxu0 %v2021
    %4415 = vmatprep.subr.bf16.mxu0 %v2030
    %4416 = vmatpush1.bf16.msra.mxu0 %v2029
    %4417 = vmatprep.subr.bf16.mxu0 %v2038
    %4418 = vmatpush1.bf16.msra.mxu0 %v2037
    %4419 = vmatprep.subr.bf16.mxu0 %v2046
    %4420 = vmatpush1.bf16.msra.mxu0 %v2045
    %4421 = vmatprep.subr.bf16.mxu0 %v2054
    %4422 = vmatpush1.bf16.msra.mxu0 %v2053
    %4423 = vmatprep.subr.bf16.mxu0 %v2062
    %4424 = vmatpush1.bf16.msra.mxu0 %v2061
    %4425 = vmatprep.subr.bf16.mxu0 %v2070
    %4426 = vmatpush1.bf16.msra.mxu0 %v2069
    %4427 = vmatprep.subr.bf16.mxu0 %v2078
    %4428 = vmatpush1.bf16.msra.mxu0 %v2077
    %4429 = vmatprep.subr.bf16.mxu0 %v2086
    %4430 = vmatpush1.bf16.msra.mxu0 %v2085
    %4431 = vmatprep.subr.bf16.mxu0 %v2094
    %4432 = vmatpush1.bf16.msra.mxu0 %v2093
    %4433 = vmatprep.subr.bf16.mxu0 %v2102
    %4434 = vmatpush1.bf16.msra.mxu0 %v2101
    %4435 = vmatprep.subr.bf16.mxu0 %v2110
    %4436 = vmatpush1.bf16.msra.mxu0 %v2109
    %4437 = vmatprep.subr.bf16.mxu0 %v2118
    %4438 = vmatpush1.bf16.msra.mxu0 %v2117
    %4439 = vmatprep.subr.bf16.mxu0 %v2126
    %4440 = vmatpush1.bf16.msra.mxu0 %v2125
    %4441 = vmatprep.subr.bf16.mxu0 %v2134
    %4442 = vmatpush1.bf16.msra.mxu0 %v2133
    %4443 = vmatprep.mubr.bf16.mxu0 %v4276
    %4444 = vmatmul.mubr.bf16.gmra.mrb[0].mxu0 %v4275
    %v4445 = vpop.f32.mrb[0].mxu0
    %v4446 = vadd.f32 %v4286, %v4445
    %v4447 = vpop.f32.mrb[0].mxu0
    %v4448 = vadd.f32 %v4287, %v4447
    %v4449 = vpop.f32.mrb[0].mxu0
    %v4450 = vpop.f32.mrb[0].mxu0
    %4451 = vdwg.mxu0
    %v4452 = vxor.u32 %v4323, 2147483648
    %v4453 = vxor.u32 %v4325, 2147483648
    %v4454 = vxor.u32 %v4364, 2147483648
    %v4455 = vxor.u32 %v4366, 2147483648
    %v4456 = vxor.u32 %v4405, 2147483648
    %v4457 = vxor.u32 %v4407, 2147483648
    %v4458 = vmul.f32 %v4452, 1.442695
    %v4459 = vpow.pop %v4458
    %v4460 = vmul.f32 %v4453, 1.442695
    %v4461 = vpow.pop %v4460
    %v4462 = vmul.f32 %v4454, 1.442695
    %v4463 = vpow.pop %v4462
    %v4464 = vmul.f32 %v4455, 1.442695
    %v4465 = vpow.pop %v4464
    %v4466 = vmul.f32 %v4456, 1.442695
    %v4467 = vpow.pop %v4466
    %v4468 = vmul.f32 %v4457, 1.442695
    %v4469 = vpow.pop %v4468
    %v4470 = vadd.f32 %v4459, 1.0
    %v4471 = vadd.f32 %v4461, 1.0
    %v4472 = vadd.f32 %v4463, 1.0
    %v4473 = vadd.f32 %v4465, 1.0
    %v4474 = vadd.f32 %v4467, 1.0
    %v4475 = vadd.f32 %v4469, 1.0
    %v4476 = vrcp.pop %v4470
    %v4477 = vmul.f32 1.0, %v4476
    %v4478 = vrcp.pop %v4471
    %v4479 = vmul.f32 1.0, %v4478
    %v4480 = vrcp.pop %v4472
    %v4481 = vmul.f32 1.0, %v4480
    %v4482 = vrcp.pop %v4473
    %v4483 = vmul.f32 1.0, %v4482
    %v4484 = vrcp.pop %v4474
    %v4485 = vmul.f32 1.0, %v4484
    %v4486 = vrcp.pop %v4475
    %v4487 = vmul.f32 1.0, %v4486
    %v4488 = vtanh.pop %v4446
    %v4489 = vtanh.pop %v4448
    %v4490 = vmul.f32 %v4481, %v4269
    %v4491 = vmul.f32 %v4483, %v4270
    %v4492 = vmul.f32 %v4477, %v4488
    %v4493 = vmul.f32 %v4479, %v4489
    %v4494 = vadd.f32 %v4490, %v4492
    %v4495 = vadd.f32 %v4491, %v4493
    %v4496 = vtanh.pop %v4494
    %v4497 = vtanh.pop %v4495
    %v4498 = vmul.f32 %v4485, %v4496
    %v4499 = vmul.f32 %v4487, %v4497
    %v4500 = vpack.c.bf16 %v4498, %v4498
    %v4501 = vpack.c.bf16 %v4499, %v4499
    %s4502 = smul.u32 11, 8
    %s4503 = smul.addr %s4502, 8
    %s4504 = scalar_lea.vmem [#allocation2], %s4503
    %v4505 = vld [vmem:[%s4504] sm:$0x3]
    %v4506 = vld [vmem:[%s4504 + $0x8] sm:$0x3]
    %v4507 = vld [vmem:[%s4504 + $0x10] sm:$0x3]
    %v4508 = vld [vmem:[%s4504 + $0x18] sm:$0x3]
    %v4509 = vld [vmem:[%s4504 + $0x20] sm:$0x3]
    %v4510 = vld [vmem:[%s4504 + $0x28] sm:$0x3]
    %v4511 = vld [vmem:[%s4504 + $0x30] sm:$0x3]
    %v4512 = vld [vmem:[%s4504 + $0x38] sm:$0x3]
    %4513 = vmatprep.subr.bf16.mxu0 %v2008
    %4514 = vmatpush1.bf16.msra.mxu0 %v2007
    %4515 = vmatprep.subr.bf16.mxu0 %v2016
    %4516 = vmatpush1.bf16.msra.mxu0 %v2015
    %4517 = vmatprep.subr.bf16.mxu0 %v2024
    %4518 = vmatpush1.bf16.msra.mxu0 %v2023
    %4519 = vmatprep.subr.bf16.mxu0 %v2032
    %4520 = vmatpush1.bf16.msra.mxu0 %v2031
    %4521 = vmatprep.subr.bf16.mxu0 %v2040
    %4522 = vmatpush1.bf16.msra.mxu0 %v2039
    %4523 = vmatprep.subr.bf16.mxu0 %v2048
    %4524 = vmatpush1.bf16.msra.mxu0 %v2047
    %4525 = vmatprep.subr.bf16.mxu0 %v2056
    %4526 = vmatpush1.bf16.msra.mxu0 %v2055
    %4527 = vmatprep.subr.bf16.mxu0 %v2064
    %4528 = vmatpush1.bf16.msra.mxu0 %v2063
    %4529 = vmatprep.subr.bf16.mxu0 %v2072
    %4530 = vmatpush1.bf16.msra.mxu0 %v2071
    %4531 = vmatprep.subr.bf16.mxu0 %v2080
    %4532 = vmatpush1.bf16.msra.mxu0 %v2079
    %4533 = vmatprep.subr.bf16.mxu0 %v2088
    %4534 = vmatpush1.bf16.msra.mxu0 %v2087
    %4535 = vmatprep.subr.bf16.mxu0 %v2096
    %4536 = vmatpush1.bf16.msra.mxu0 %v2095
    %4537 = vmatprep.subr.bf16.mxu0 %v2104
    %4538 = vmatpush1.bf16.msra.mxu0 %v2103
    %4539 = vmatprep.subr.bf16.mxu0 %v2112
    %4540 = vmatpush1.bf16.msra.mxu0 %v2111
    %4541 = vmatprep.subr.bf16.mxu0 %v2120
    %4542 = vmatpush1.bf16.msra.mxu0 %v2119
    %4543 = vmatprep.subr.bf16.mxu0 %v2128
    %4544 = vmatpush1.bf16.msra.mxu0 %v2127
    %4545 = vmatprep.mubr.bf16.mxu0 %v4501
    %4546 = vmatmul.mubr.bf16.gmra.mrb[0].mxu0 %v4500
    %v4547 = vpop.f32.mrb[0].mxu0
    %v4548 = vadd.f32 %v4505, %v4547
    %v4549 = vpop.f32.mrb[0].mxu0
    %v4550 = vadd.f32 %v4506, %v4549
    %v4551 = vpop.f32.mrb[0].mxu0
    %v4552 = vpop.f32.mrb[0].mxu0
    %4553 = vdwg.mxu0
    %4554 = vmatprep.subr.bf16.mxu0 %v2010
    %4555 = vmatpush1.bf16.msra.mxu0 %v2009
    %4556 = vmatprep.subr.bf16.mxu0 %v2018
    %4557 = vmatpush1.bf16.msra.mxu0 %v2017
    %4558 = vmatprep.subr.bf16.mxu0 %v2026
    %4559 = vmatpush1.bf16.msra.mxu0 %v2025
    %4560 = vmatprep.subr.bf16.mxu0 %v2034
    %4561 = vmatpush1.bf16.msra.mxu0 %v2033
    %4562 = vmatprep.subr.bf16.mxu0 %v2042
    %4563 = vmatpush1.bf16.msra.mxu0 %v2041
    %4564 = vmatprep.subr.bf16.mxu0 %v2050
    %4565 = vmatpush1.bf16.msra.mxu0 %v2049
    %4566 = vmatprep.subr.bf16.mxu0 %v2058
    %4567 = vmatpush1.bf16.msra.mxu0 %v2057
    %4568 = vmatprep.subr.bf16.mxu0 %v2066
    %4569 = vmatpush1.bf16.msra.mxu0 %v2065
    %4570 = vmatprep.subr.bf16.mxu0 %v2074
    %4571 = vmatpush1.bf16.msra.mxu0 %v2073
    %4572 = vmatprep.subr.bf16.mxu0 %v2082
    %4573 = vmatpush1.bf16.msra.mxu0 %v2081
    %4574 = vmatprep.subr.bf16.mxu0 %v2090
    %4575 = vmatpush1.bf16.msra.mxu0 %v2089
    %4576 = vmatprep.subr.bf16.mxu0 %v2098
    %4577 = vmatpush1.bf16.msra.mxu0 %v2097
    %4578 = vmatprep.subr.bf16.mxu0 %v2106
    %4579 = vmatpush1.bf16.msra.mxu0 %v2105
    %4580 = vmatprep.subr.bf16.mxu0 %v2114
    %4581 = vmatpush1.bf16.msra.mxu0 %v2113
    %4582 = vmatprep.subr.bf16.mxu0 %v2122
    %4583 = vmatpush1.bf16.msra.mxu0 %v2121
    %4584 = vmatprep.subr.bf16.mxu0 %v2130
    %4585 = vmatpush1.bf16.msra.mxu0 %v2129
    %4586 = vmatprep.mubr.bf16.mxu0 %v4501
    %4587 = vmatmul.mubr.bf16.gmra.mrb[0].mxu0 %v4500
    %v4588 = vpop.f32.mrb[0].mxu0
    %v4589 = vadd.f32 %v4507, %v4588
    %v4590 = vpop.f32.mrb[0].mxu0
    %v4591 = vadd.f32 %v4508, %v4590
    %v4592 = vpop.f32.mrb[0].mxu0
    %v4593 = vpop.f32.mrb[0].mxu0
    %4594 = vdwg.mxu0
    %4595 = vmatprep.subr.bf16.mxu0 %v2012
    %4596 = vmatpush1.bf16.msra.mxu0 %v2011
    %4597 = vmatprep.subr.bf16.mxu0 %v2020
    %4598 = vmatpush1.bf16.msra.mxu0 %v2019
    %4599 = vmatprep.subr.bf16.mxu0 %v2028
    %4600 = vmatpush1.bf16.msra.mxu0 %v2027
    %4601 = vmatprep.subr.bf16.mxu0 %v2036
    %4602 = vmatpush1.bf16.msra.mxu0 %v2035
    %4603 = vmatprep.subr.bf16.mxu0 %v2044
    %4604 = vmatpush1.bf16.msra.mxu0 %v2043
    %4605 = vmatprep.subr.bf16.mxu0 %v2052
    %4606 = vmatpush1.bf16.msra.mxu0 %v2051
    %4607 = vmatprep.subr.bf16.mxu0 %v2060
    %4608 = vmatpush1.bf16.msra.mxu0 %v2059
    %4609 = vmatprep.subr.bf16.mxu0 %v2068
    %4610 = vmatpush1.bf16.msra.mxu0 %v2067
    %4611 = vmatprep.subr.bf16.mxu0 %v2076
    %4612 = vmatpush1.bf16.msra.mxu0 %v2075
    %4613 = vmatprep.subr.bf16.mxu0 %v2084
    %4614 = vmatpush1.bf16.msra.mxu0 %v2083
    %4615 = vmatprep.subr.bf16.mxu0 %v2092
    %4616 = vmatpush1.bf16.msra.mxu0 %v2091
    %4617 = vmatprep.subr.bf16.mxu0 %v2100
    %4618 = vmatpush1.bf16.msra.mxu0 %v2099
    %4619 = vmatprep.subr.bf16.mxu0 %v2108
    %4620 = vmatpush1.bf16.msra.mxu0 %v2107
    %4621 = vmatprep.subr.bf16.mxu0 %v2116
    %4622 = vmatpush1.bf16.msra.mxu0 %v2115
    %4623 = vmatprep.subr.bf16.mxu0 %v2124
    %4624 = vmatpush1.bf16.msra.mxu0 %v2123
    %4625 = vmatprep.subr.bf16.mxu0 %v2132
    %4626 = vmatpush1.bf16.msra.mxu0 %v2131
    %4627 = vmatprep.mubr.bf16.mxu0 %v4501
    %4628 = vmatmul.mubr.bf16.gmra.mrb[0].mxu0 %v4500
    %v4629 = vpop.f32.mrb[0].mxu0
    %v4630 = vadd.f32 %v4509, %v4629
    %v4631 = vpop.f32.mrb[0].mxu0
    %v4632 = vadd.f32 %v4510, %v4631
    %v4633 = vpop.f32.mrb[0].mxu0
    %v4634 = vpop.f32.mrb[0].mxu0
    %4635 = vdwg.mxu0
    %4636 = vmatprep.subr.bf16.mxu0 %v2014
    %4637 = vmatpush1.bf16.msra.mxu0 %v2013
    %4638 = vmatprep.subr.bf16.mxu0 %v2022
    %4639 = vmatpush1.bf16.msra.mxu0 %v2021
    %4640 = vmatprep.subr.bf16.mxu0 %v2030
    %4641 = vmatpush1.bf16.msra.mxu0 %v2029
    %4642 = vmatprep.subr.bf16.mxu0 %v2038
    %4643 = vmatpush1.bf16.msra.mxu0 %v2037
    %4644 = vmatprep.subr.bf16.mxu0 %v2046
    %4645 = vmatpush1.bf16.msra.mxu0 %v2045
    %4646 = vmatprep.subr.bf16.mxu0 %v2054
    %4647 = vmatpush1.bf16.msra.mxu0 %v2053
    %4648 = vmatprep.subr.bf16.mxu0 %v2062
    %4649 = vmatpush1.bf16.msra.mxu0 %v2061
    %4650 = vmatprep.subr.bf16.mxu0 %v2070
    %4651 = vmatpush1.bf16.msra.mxu0 %v2069
    %4652 = vmatprep.subr.bf16.mxu0 %v2078
    %4653 = vmatpush1.bf16.msra.mxu0 %v2077
    %4654 = vmatprep.subr.bf16.mxu0 %v2086
    %4655 = vmatpush1.bf16.msra.mxu0 %v2085
    %4656 = vmatprep.subr.bf16.mxu0 %v2094
    %4657 = vmatpush1.bf16.msra.mxu0 %v2093
    %4658 = vmatprep.subr.bf16.mxu0 %v2102
    %4659 = vmatpush1.bf16.msra.mxu0 %v2101
    %4660 = vmatprep.subr.bf16.mxu0 %v2110
    %4661 = vmatpush1.bf16.msra.mxu0 %v2109
    %4662 = vmatprep.subr.bf16.mxu0 %v2118
    %4663 = vmatpush1.bf16.msra.mxu0 %v2117
    %4664 = vmatprep.subr.bf16.mxu0 %v2126
    %4665 = vmatpush1.bf16.msra.mxu0 %v2125
    %4666 = vmatprep.subr.bf16.mxu0 %v2134
    %4667 = vmatpush1.bf16.msra.mxu0 %v2133
    %4668 = vmatprep.mubr.bf16.mxu0 %v4501
    %4669 = vmatmul.mubr.bf16.gmra.mrb[0].mxu0 %v4500
    %v4670 = vpop.f32.mrb[0].mxu0
    %v4671 = vadd.f32 %v4511, %v4670
    %v4672 = vpop.f32.mrb[0].mxu0
    %v4673 = vadd.f32 %v4512, %v4672
    %v4674 = vpop.f32.mrb[0].mxu0
    %v4675 = vpop.f32.mrb[0].mxu0
    %4676 = vdwg.mxu0
    %v4677 = vxor.u32 %v4548, 2147483648
    %v4678 = vxor.u32 %v4550, 2147483648
    %v4679 = vxor.u32 %v4589, 2147483648
    %v4680 = vxor.u32 %v4591, 2147483648
    %v4681 = vxor.u32 %v4630, 2147483648
    %v4682 = vxor.u32 %v4632, 2147483648
    %v4683 = vmul.f32 %v4677, 1.442695
    %v4684 = vpow.pop %v4683
    %v4685 = vmul.f32 %v4678, 1.442695
    %v4686 = vpow.pop %v4685
    %v4687 = vmul.f32 %v4679, 1.442695
    %v4688 = vpow.pop %v4687
    %v4689 = vmul.f32 %v4680, 1.442695
    %v4690 = vpow.pop %v4689
    %v4691 = vmul.f32 %v4681, 1.442695
    %v4692 = vpow.pop %v4691
    %v4693 = vmul.f32 %v4682, 1.442695
    %v4694 = vpow.pop %v4693
    %v4695 = vadd.f32 %v4684, 1.0
    %v4696 = vadd.f32 %v4686, 1.0
    %v4697 = vadd.f32 %v4688, 1.0
    %v4698 = vadd.f32 %v4690, 1.0
    %v4699 = vadd.f32 %v4692, 1.0
    %v4700 = vadd.f32 %v4694, 1.0
    %v4701 = vrcp.pop %v4695
    %v4702 = vmul.f32 1.0, %v4701
    %v4703 = vrcp.pop %v4696
    %v4704 = vmul.f32 1.0, %v4703
    %v4705 = vrcp.pop %v4697
    %v4706 = vmul.f32 1.0, %v4705
    %v4707 = vrcp.pop %v4698
    %v4708 = vmul.f32 1.0, %v4707
    %v4709 = vrcp.pop %v4699
    %v4710 = vmul.f32 1.0, %v4709
    %v4711 = vrcp.pop %v4700
    %v4712 = vmul.f32 1.0, %v4711
    %v4713 = vtanh.pop %v4671
    %v4714 = vtanh.pop %v4673
    %v4715 = vmul.f32 %v4706, %v4494
    %v4716 = vmul.f32 %v4708, %v4495
    %v4717 = vmul.f32 %v4702, %v4713
    %v4718 = vmul.f32 %v4704, %v4714
    %v4719 = vadd.f32 %v4715, %v4717
    %v4720 = vadd.f32 %v4716, %v4718
    %v4721 = vtanh.pop %v4719
    %v4722 = vtanh.pop %v4720
    %v4723 = vmul.f32 %v4710, %v4721
    %v4724 = vmul.f32 %v4712, %v4722
    %v4725 = vpack.c.bf16 %v4723, %v4723
    %v4726 = vpack.c.bf16 %v4724, %v4724
    %s4727 = smul.u32 12, 8
    %s4728 = smul.addr %s4727, 8
    %s4729 = scalar_lea.vmem [#allocation2], %s4728
    %v4730 = vld [vmem:[%s4729] sm:$0x3]
    %v4731 = vld [vmem:[%s4729 + $0x8] sm:$0x3]
    %v4732 = vld [vmem:[%s4729 + $0x10] sm:$0x3]
    %v4733 = vld [vmem:[%s4729 + $0x18] sm:$0x3]
    %v4734 = vld [vmem:[%s4729 + $0x20] sm:$0x3]
    %v4735 = vld [vmem:[%s4729 + $0x28] sm:$0x3]
    %v4736 = vld [vmem:[%s4729 + $0x30] sm:$0x3]
    %v4737 = vld [vmem:[%s4729 + $0x38] sm:$0x3]
    %4738 = vmatprep.subr.bf16.mxu0 %v2008
    %4739 = vmatpush1.bf16.msra.mxu0 %v2007
    %4740 = vmatprep.subr.bf16.mxu0 %v2016
    %4741 = vmatpush1.bf16.msra.mxu0 %v2015
    %4742 = vmatprep.subr.bf16.mxu0 %v2024
    %4743 = vmatpush1.bf16.msra.mxu0 %v2023
    %4744 = vmatprep.subr.bf16.mxu0 %v2032
    %4745 = vmatpush1.bf16.msra.mxu0 %v2031
    %4746 = vmatprep.subr.bf16.mxu0 %v2040
    %4747 = vmatpush1.bf16.msra.mxu0 %v2039
    %4748 = vmatprep.subr.bf16.mxu0 %v2048
    %4749 = vmatpush1.bf16.msra.mxu0 %v2047
    %4750 = vmatprep.subr.bf16.mxu0 %v2056
    %4751 = vmatpush1.bf16.msra.mxu0 %v2055
    %4752 = vmatprep.subr.bf16.mxu0 %v2064
    %4753 = vmatpush1.bf16.msra.mxu0 %v2063
    %4754 = vmatprep.subr.bf16.mxu0 %v2072
    %4755 = vmatpush1.bf16.msra.mxu0 %v2071
    %4756 = vmatprep.subr.bf16.mxu0 %v2080
    %4757 = vmatpush1.bf16.msra.mxu0 %v2079
    %4758 = vmatprep.subr.bf16.mxu0 %v2088
    %4759 = vmatpush1.bf16.msra.mxu0 %v2087
    %4760 = vmatprep.subr.bf16.mxu0 %v2096
    %4761 = vmatpush1.bf16.msra.mxu0 %v2095
    %4762 = vmatprep.subr.bf16.mxu0 %v2104
    %4763 = vmatpush1.bf16.msra.mxu0 %v2103
    %4764 = vmatprep.subr.bf16.mxu0 %v2112
    %4765 = vmatpush1.bf16.msra.mxu0 %v2111
    %4766 = vmatprep.subr.bf16.mxu0 %v2120
    %4767 = vmatpush1.bf16.msra.mxu0 %v2119
    %4768 = vmatprep.subr.bf16.mxu0 %v2128
    %4769 = vmatpush1.bf16.msra.mxu0 %v2127
    %4770 = vmatprep.mubr.bf16.mxu0 %v4726
    %4771 = vmatmul.mubr.bf16.gmra.mrb[0].mxu0 %v4725
    %v4772 = vpop.f32.mrb[0].mxu0
    %v4773 = vadd.f32 %v4730, %v4772
    %v4774 = vpop.f32.mrb[0].mxu0
    %v4775 = vadd.f32 %v4731, %v4774
    %v4776 = vpop.f32.mrb[0].mxu0
    %v4777 = vpop.f32.mrb[0].mxu0
    %4778 = vdwg.mxu0
    %4779 = vmatprep.subr.bf16.mxu0 %v2010
    %4780 = vmatpush1.bf16.msra.mxu0 %v2009
    %4781 = vmatprep.subr.bf16.mxu0 %v2018
    %4782 = vmatpush1.bf16.msra.mxu0 %v2017
    %4783 = vmatprep.subr.bf16.mxu0 %v2026
    %4784 = vmatpush1.bf16.msra.mxu0 %v2025
    %4785 = vmatprep.subr.bf16.mxu0 %v2034
    %4786 = vmatpush1.bf16.msra.mxu0 %v2033
    %4787 = vmatprep.subr.bf16.mxu0 %v2042
    %4788 = vmatpush1.bf16.msra.mxu0 %v2041
    %4789 = vmatprep.subr.bf16.mxu0 %v2050
    %4790 = vmatpush1.bf16.msra.mxu0 %v2049
    %4791 = vmatprep.subr.bf16.mxu0 %v2058
    %4792 = vmatpush1.bf16.msra.mxu0 %v2057
    %4793 = vmatprep.subr.bf16.mxu0 %v2066
    %4794 = vmatpush1.bf16.msra.mxu0 %v2065
    %4795 = vmatprep.subr.bf16.mxu0 %v2074
    %4796 = vmatpush1.bf16.msra.mxu0 %v2073
    %4797 = vmatprep.subr.bf16.mxu0 %v2082
    %4798 = vmatpush1.bf16.msra.mxu0 %v2081
    %4799 = vmatprep.subr.bf16.mxu0 %v2090
    %4800 = vmatpush1.bf16.msra.mxu0 %v2089
    %4801 = vmatprep.subr.bf16.mxu0 %v2098
    %4802 = vmatpush1.bf16.msra.mxu0 %v2097
    %4803 = vmatprep.subr.bf16.mxu0 %v2106
    %4804 = vmatpush1.bf16.msra.mxu0 %v2105
    %4805 = vmatprep.subr.bf16.mxu0 %v2114
    %4806 = vmatpush1.bf16.msra.mxu0 %v2113
    %4807 = vmatprep.subr.bf16.mxu0 %v2122
    %4808 = vmatpush1.bf16.msra.mxu0 %v2121
    %4809 = vmatprep.subr.bf16.mxu0 %v2130
    %4810 = vmatpush1.bf16.msra.mxu0 %v2129
    %4811 = vmatprep.mubr.bf16.mxu0 %v4726
    %4812 = vmatmul.mubr.bf16.gmra.mrb[0].mxu0 %v4725
    %v4813 = vpop.f32.mrb[0].mxu0
    %v4814 = vadd.f32 %v4732, %v4813
    %v4815 = vpop.f32.mrb[0].mxu0
    %v4816 = vadd.f32 %v4733, %v4815
    %v4817 = vpop.f32.mrb[0].mxu0
    %v4818 = vpop.f32.mrb[0].mxu0
    %4819 = vdwg.mxu0
    %4820 = vmatprep.subr.bf16.mxu0 %v2012
    %4821 = vmatpush1.bf16.msra.mxu0 %v2011
    %4822 = vmatprep.subr.bf16.mxu0 %v2020
    %4823 = vmatpush1.bf16.msra.mxu0 %v2019
    %4824 = vmatprep.subr.bf16.mxu0 %v2028
    %4825 = vmatpush1.bf16.msra.mxu0 %v2027
    %4826 = vmatprep.subr.bf16.mxu0 %v2036
    %4827 = vmatpush1.bf16.msra.mxu0 %v2035
    %4828 = vmatprep.subr.bf16.mxu0 %v2044
    %4829 = vmatpush1.bf16.msra.mxu0 %v2043
    %4830 = vmatprep.subr.bf16.mxu0 %v2052
    %4831 = vmatpush1.bf16.msra.mxu0 %v2051
    %4832 = vmatprep.subr.bf16.mxu0 %v2060
    %4833 = vmatpush1.bf16.msra.mxu0 %v2059
    %4834 = vmatprep.subr.bf16.mxu0 %v2068
    %4835 = vmatpush1.bf16.msra.mxu0 %v2067
    %4836 = vmatprep.subr.bf16.mxu0 %v2076
    %4837 = vmatpush1.bf16.msra.mxu0 %v2075
    %4838 = vmatprep.subr.bf16.mxu0 %v2084
    %4839 = vmatpush1.bf16.msra.mxu0 %v2083
    %4840 = vmatprep.subr.bf16.mxu0 %v2092
    %4841 = vmatpush1.bf16.msra.mxu0 %v2091
    %4842 = vmatprep.subr.bf16.mxu0 %v2100
    %4843 = vmatpush1.bf16.msra.mxu0 %v2099
    %4844 = vmatprep.subr.bf16.mxu0 %v2108
    %4845 = vmatpush1.bf16.msra.mxu0 %v2107
    %4846 = vmatprep.subr.bf16.mxu0 %v2116
    %4847 = vmatpush1.bf16.msra.mxu0 %v2115
    %4848 = vmatprep.subr.bf16.mxu0 %v2124
    %4849 = vmatpush1.bf16.msra.mxu0 %v2123
    %4850 = vmatprep.subr.bf16.mxu0 %v2132
    %4851 = vmatpush1.bf16.msra.mxu0 %v2131
    %4852 = vmatprep.mubr.bf16.mxu0 %v4726
    %4853 = vmatmul.mubr.bf16.gmra.mrb[0].mxu0 %v4725
    %v4854 = vpop.f32.mrb[0].mxu0
    %v4855 = vadd.f32 %v4734, %v4854
    %v4856 = vpop.f32.mrb[0].mxu0
    %v4857 = vadd.f32 %v4735, %v4856
    %v4858 = vpop.f32.mrb[0].mxu0
    %v4859 = vpop.f32.mrb[0].mxu0
    %4860 = vdwg.mxu0
    %4861 = vmatprep.subr.bf16.mxu0 %v2014
    %4862 = vmatpush1.bf16.msra.mxu0 %v2013
    %4863 = vmatprep.subr.bf16.mxu0 %v2022
    %4864 = vmatpush1.bf16.msra.mxu0 %v2021
    %4865 = vmatprep.subr.bf16.mxu0 %v2030
    %4866 = vmatpush1.bf16.msra.mxu0 %v2029
    %4867 = vmatprep.subr.bf16.mxu0 %v2038
    %4868 = vmatpush1.bf16.msra.mxu0 %v2037
    %4869 = vmatprep.subr.bf16.mxu0 %v2046
    %4870 = vmatpush1.bf16.msra.mxu0 %v2045
    %4871 = vmatprep.subr.bf16.mxu0 %v2054
    %4872 = vmatpush1.bf16.msra.mxu0 %v2053
    %4873 = vmatprep.subr.bf16.mxu0 %v2062
    %4874 = vmatpush1.bf16.msra.mxu0 %v2061
    %4875 = vmatprep.subr.bf16.mxu0 %v2070
    %4876 = vmatpush1.bf16.msra.mxu0 %v2069
    %4877 = vmatprep.subr.bf16.mxu0 %v2078
    %4878 = vmatpush1.bf16.msra.mxu0 %v2077
    %4879 = vmatprep.subr.bf16.mxu0 %v2086
    %4880 = vmatpush1.bf16.msra.mxu0 %v2085
    %4881 = vmatprep.subr.bf16.mxu0 %v2094
    %4882 = vmatpush1.bf16.msra.mxu0 %v2093
    %4883 = vmatprep.subr.bf16.mxu0 %v2102
    %4884 = vmatpush1.bf16.msra.mxu0 %v2101
    %4885 = vmatprep.subr.bf16.mxu0 %v2110
    %4886 = vmatpush1.bf16.msra.mxu0 %v2109
    %4887 = vmatprep.subr.bf16.mxu0 %v2118
    %4888 = vmatpush1.bf16.msra.mxu0 %v2117
    %4889 = vmatprep.subr.bf16.mxu0 %v2126
    %4890 = vmatpush1.bf16.msra.mxu0 %v2125
    %4891 = vmatprep.subr.bf16.mxu0 %v2134
    %4892 = vmatpush1.bf16.msra.mxu0 %v2133
    %4893 = vmatprep.mubr.bf16.mxu0 %v4726
    %4894 = vmatmul.mubr.bf16.gmra.mrb[0].mxu0 %v4725
    %v4895 = vpop.f32.mrb[0].mxu0
    %v4896 = vadd.f32 %v4736, %v4895
    %v4897 = vpop.f32.mrb[0].mxu0
    %v4898 = vadd.f32 %v4737, %v4897
    %v4899 = vpop.f32.mrb[0].mxu0
    %v4900 = vpop.f32.mrb[0].mxu0
    %4901 = vdwg.mxu0
    %v4902 = vxor.u32 %v4773, 2147483648
    %v4903 = vxor.u32 %v4775, 2147483648
    %v4904 = vxor.u32 %v4814, 2147483648
    %v4905 = vxor.u32 %v4816, 2147483648
    %v4906 = vxor.u32 %v4855, 2147483648
    %v4907 = vxor.u32 %v4857, 2147483648
    %v4908 = vmul.f32 %v4902, 1.442695
    %v4909 = vpow.pop %v4908
    %v4910 = vmul.f32 %v4903, 1.442695
    %v4911 = vpow.pop %v4910
    %v4912 = vmul.f32 %v4904, 1.442695
    %v4913 = vpow.pop %v4912
    %v4914 = vmul.f32 %v4905, 1.442695
    %v4915 = vpow.pop %v4914
    %v4916 = vmul.f32 %v4906, 1.442695
    %v4917 = vpow.pop %v4916
    %v4918 = vmul.f32 %v4907, 1.442695
    %v4919 = vpow.pop %v4918
    %v4920 = vadd.f32 %v4909, 1.0
    %v4921 = vadd.f32 %v4911, 1.0
    %v4922 = vadd.f32 %v4913, 1.0
    %v4923 = vadd.f32 %v4915, 1.0
    %v4924 = vadd.f32 %v4917, 1.0
    %v4925 = vadd.f32 %v4919, 1.0
    %v4926 = vrcp.pop %v4920
    %v4927 = vmul.f32 1.0, %v4926
    %v4928 = vrcp.pop %v4921
    %v4929 = vmul.f32 1.0, %v4928
    %v4930 = vrcp.pop %v4922
    %v4931 = vmul.f32 1.0, %v4930
    %v4932 = vrcp.pop %v4923
    %v4933 = vmul.f32 1.0, %v4932
    %v4934 = vrcp.pop %v4924
    %v4935 = vmul.f32 1.0, %v4934
    %v4936 = vrcp.pop %v4925
    %v4937 = vmul.f32 1.0, %v4936
    %v4938 = vtanh.pop %v4896
    %v4939 = vtanh.pop %v4898
    %v4940 = vmul.f32 %v4931, %v4719
    %v4941 = vmul.f32 %v4933, %v4720
    %v4942 = vmul.f32 %v4927, %v4938
    %v4943 = vmul.f32 %v4929, %v4939
    %v4944 = vadd.f32 %v4940, %v4942
    %v4945 = vadd.f32 %v4941, %v4943
    %v4946 = vtanh.pop %v4944
    %v4947 = vtanh.pop %v4945
    %v4948 = vmul.f32 %v4935, %v4946
    %v4949 = vmul.f32 %v4937, %v4947
    %v4950 = vpack.c.bf16 %v4948, %v4948
    %v4951 = vpack.c.bf16 %v4949, %v4949
    %s4952 = smul.u32 13, 8
    %s4953 = smul.addr %s4952, 8
    %s4954 = scalar_lea.vmem [#allocation2], %s4953
    %v4955 = vld [vmem:[%s4954] sm:$0x3]
    %v4956 = vld [vmem:[%s4954 + $0x8] sm:$0x3]
    %v4957 = vld [vmem:[%s4954 + $0x10] sm:$0x3]
    %v4958 = vld [vmem:[%s4954 + $0x18] sm:$0x3]
    %v4959 = vld [vmem:[%s4954 + $0x20] sm:$0x3]
    %v4960 = vld [vmem:[%s4954 + $0x28] sm:$0x3]
    %v4961 = vld [vmem:[%s4954 + $0x30] sm:$0x3]
    %v4962 = vld [vmem:[%s4954 + $0x38] sm:$0x3]
    %4963 = vmatprep.subr.bf16.mxu0 %v2008
    %4964 = vmatpush1.bf16.msra.mxu0 %v2007
    %4965 = vmatprep.subr.bf16.mxu0 %v2016
    %4966 = vmatpush1.bf16.msra.mxu0 %v2015
    %4967 = vmatprep.subr.bf16.mxu0 %v2024
    %4968 = vmatpush1.bf16.msra.mxu0 %v2023
    %4969 = vmatprep.subr.bf16.mxu0 %v2032
    %4970 = vmatpush1.bf16.msra.mxu0 %v2031
    %4971 = vmatprep.subr.bf16.mxu0 %v2040
    %4972 = vmatpush1.bf16.msra.mxu0 %v2039
    %4973 = vmatprep.subr.bf16.mxu0 %v2048
    %4974 = vmatpush1.bf16.msra.mxu0 %v2047
    %4975 = vmatprep.subr.bf16.mxu0 %v2056
    %4976 = vmatpush1.bf16.msra.mxu0 %v2055
    %4977 = vmatprep.subr.bf16.mxu0 %v2064
    %4978 = vmatpush1.bf16.msra.mxu0 %v2063
    %4979 = vmatprep.subr.bf16.mxu0 %v2072
    %4980 = vmatpush1.bf16.msra.mxu0 %v2071
    %4981 = vmatprep.subr.bf16.mxu0 %v2080
    %4982 = vmatpush1.bf16.msra.mxu0 %v2079
    %4983 = vmatprep.subr.bf16.mxu0 %v2088
    %4984 = vmatpush1.bf16.msra.mxu0 %v2087
    %4985 = vmatprep.subr.bf16.mxu0 %v2096
    %4986 = vmatpush1.bf16.msra.mxu0 %v2095
    %4987 = vmatprep.subr.bf16.mxu0 %v2104
    %4988 = vmatpush1.bf16.msra.mxu0 %v2103
    %4989 = vmatprep.subr.bf16.mxu0 %v2112
    %4990 = vmatpush1.bf16.msra.mxu0 %v2111
    %4991 = vmatprep.subr.bf16.mxu0 %v2120
    %4992 = vmatpush1.bf16.msra.mxu0 %v2119
    %4993 = vmatprep.subr.bf16.mxu0 %v2128
    %4994 = vmatpush1.bf16.msra.mxu0 %v2127
    %4995 = vmatprep.mubr.bf16.mxu0 %v4951
    %4996 = vmatmul.mubr.bf16.gmra.mrb[0].mxu0 %v4950
    %v4997 = vpop.f32.mrb[0].mxu0
    %v4998 = vadd.f32 %v4955, %v4997
    %v4999 = vpop.f32.mrb[0].mxu0
    %v5000 = vadd.f32 %v4956, %v4999
    %v5001 = vpop.f32.mrb[0].mxu0
    %v5002 = vpop.f32.mrb[0].mxu0
    %5003 = vdwg.mxu0
    %5004 = vmatprep.subr.bf16.mxu0 %v2010
    %5005 = vmatpush1.bf16.msra.mxu0 %v2009
    %5006 = vmatprep.subr.bf16.mxu0 %v2018
    %5007 = vmatpush1.bf16.msra.mxu0 %v2017
    %5008 = vmatprep.subr.bf16.mxu0 %v2026
    %5009 = vmatpush1.bf16.msra.mxu0 %v2025
    %5010 = vmatprep.subr.bf16.mxu0 %v2034
    %5011 = vmatpush1.bf16.msra.mxu0 %v2033
    %5012 = vmatprep.subr.bf16.mxu0 %v2042
    %5013 = vmatpush1.bf16.msra.mxu0 %v2041
    %5014 = vmatprep.subr.bf16.mxu0 %v2050
    %5015 = vmatpush1.bf16.msra.mxu0 %v2049
    %5016 = vmatprep.subr.bf16.mxu0 %v2058
    %5017 = vmatpush1.bf16.msra.mxu0 %v2057
    %5018 = vmatprep.subr.bf16.mxu0 %v2066
    %5019 = vmatpush1.bf16.msra.mxu0 %v2065
    %5020 = vmatprep.subr.bf16.mxu0 %v2074
    %5021 = vmatpush1.bf16.msra.mxu0 %v2073
    %5022 = vmatprep.subr.bf16.mxu0 %v2082
    %5023 = vmatpush1.bf16.msra.mxu0 %v2081
    %5024 = vmatprep.subr.bf16.mxu0 %v2090
    %5025 = vmatpush1.bf16.msra.mxu0 %v2089
    %5026 = vmatprep.subr.bf16.mxu0 %v2098
    %5027 = vmatpush1.bf16.msra.mxu0 %v2097
    %5028 = vmatprep.subr.bf16.mxu0 %v2106
    %5029 = vmatpush1.bf16.msra.mxu0 %v2105
    %5030 = vmatprep.subr.bf16.mxu0 %v2114
    %5031 = vmatpush1.bf16.msra.mxu0 %v2113
    %5032 = vmatprep.subr.bf16.mxu0 %v2122
    %5033 = vmatpush1.bf16.msra.mxu0 %v2121
    %5034 = vmatprep.subr.bf16.mxu0 %v2130
    %5035 = vmatpush1.bf16.msra.mxu0 %v2129
    %5036 = vmatprep.mubr.bf16.mxu0 %v4951
    %5037 = vmatmul.mubr.bf16.gmra.mrb[0].mxu0 %v4950
    %v5038 = vpop.f32.mrb[0].mxu0
    %v5039 = vadd.f32 %v4957, %v5038
    %v5040 = vpop.f32.mrb[0].mxu0
    %v5041 = vadd.f32 %v4958, %v5040
    %v5042 = vpop.f32.mrb[0].mxu0
    %v5043 = vpop.f32.mrb[0].mxu0
    %5044 = vdwg.mxu0
    %5045 = vmatprep.subr.bf16.mxu0 %v2012
    %5046 = vmatpush1.bf16.msra.mxu0 %v2011
    %5047 = vmatprep.subr.bf16.mxu0 %v2020
    %5048 = vmatpush1.bf16.msra.mxu0 %v2019
    %5049 = vmatprep.subr.bf16.mxu0 %v2028
    %5050 = vmatpush1.bf16.msra.mxu0 %v2027
    %5051 = vmatprep.subr.bf16.mxu0 %v2036
    %5052 = vmatpush1.bf16.msra.mxu0 %v2035
    %5053 = vmatprep.subr.bf16.mxu0 %v2044
    %5054 = vmatpush1.bf16.msra.mxu0 %v2043
    %5055 = vmatprep.subr.bf16.mxu0 %v2052
    %5056 = vmatpush1.bf16.msra.mxu0 %v2051
    %5057 = vmatprep.subr.bf16.mxu0 %v2060
    %5058 = vmatpush1.bf16.msra.mxu0 %v2059
    %5059 = vmatprep.subr.bf16.mxu0 %v2068
    %5060 = vmatpush1.bf16.msra.mxu0 %v2067
    %5061 = vmatprep.subr.bf16.mxu0 %v2076
    %5062 = vmatpush1.bf16.msra.mxu0 %v2075
    %5063 = vmatprep.subr.bf16.mxu0 %v2084
    %5064 = vmatpush1.bf16.msra.mxu0 %v2083
    %5065 = vmatprep.subr.bf16.mxu0 %v2092
    %5066 = vmatpush1.bf16.msra.mxu0 %v2091
    %5067 = vmatprep.subr.bf16.mxu0 %v2100
    %5068 = vmatpush1.bf16.msra.mxu0 %v2099
    %5069 = vmatprep.subr.bf16.mxu0 %v2108
    %5070 = vmatpush1.bf16.msra.mxu0 %v2107
    %5071 = vmatprep.subr.bf16.mxu0 %v2116
    %5072 = vmatpush1.bf16.msra.mxu0 %v2115
    %5073 = vmatprep.subr.bf16.mxu0 %v2124
    %5074 = vmatpush1.bf16.msra.mxu0 %v2123
    %5075 = vmatprep.subr.bf16.mxu0 %v2132
    %5076 = vmatpush1.bf16.msra.mxu0 %v2131
    %5077 = vmatprep.mubr.bf16.mxu0 %v4951
    %5078 = vmatmul.mubr.bf16.gmra.mrb[0].mxu0 %v4950
    %v5079 = vpop.f32.mrb[0].mxu0
    %v5080 = vadd.f32 %v4959, %v5079
    %v5081 = vpop.f32.mrb[0].mxu0
    %v5082 = vadd.f32 %v4960, %v5081
    %v5083 = vpop.f32.mrb[0].mxu0
    %v5084 = vpop.f32.mrb[0].mxu0
    %5085 = vdwg.mxu0
    %5086 = vmatprep.subr.bf16.mxu0 %v2014
    %5087 = vmatpush1.bf16.msra.mxu0 %v2013
    %5088 = vmatprep.subr.bf16.mxu0 %v2022
    %5089 = vmatpush1.bf16.msra.mxu0 %v2021
    %5090 = vmatprep.subr.bf16.mxu0 %v2030
    %5091 = vmatpush1.bf16.msra.mxu0 %v2029
    %5092 = vmatprep.subr.bf16.mxu0 %v2038
    %5093 = vmatpush1.bf16.msra.mxu0 %v2037
    %5094 = vmatprep.subr.bf16.mxu0 %v2046
    %5095 = vmatpush1.bf16.msra.mxu0 %v2045
    %5096 = vmatprep.subr.bf16.mxu0 %v2054
    %5097 = vmatpush1.bf16.msra.mxu0 %v2053
    %5098 = vmatprep.subr.bf16.mxu0 %v2062
    %5099 = vmatpush1.bf16.msra.mxu0 %v2061
    %5100 = vmatprep.subr.bf16.mxu0 %v2070
    %5101 = vmatpush1.bf16.msra.mxu0 %v2069
    %5102 = vmatprep.subr.bf16.mxu0 %v2078
    %5103 = vmatpush1.bf16.msra.mxu0 %v2077
    %5104 = vmatprep.subr.bf16.mxu0 %v2086
    %5105 = vmatpush1.bf16.msra.mxu0 %v2085
    %5106 = vmatprep.subr.bf16.mxu0 %v2094
    %5107 = vmatpush1.bf16.msra.mxu0 %v2093
    %5108 = vmatprep.subr.bf16.mxu0 %v2102
    %5109 = vmatpush1.bf16.msra.mxu0 %v2101
    %5110 = vmatprep.subr.bf16.mxu0 %v2110
    %5111 = vmatpush1.bf16.msra.mxu0 %v2109
    %5112 = vmatprep.subr.bf16.mxu0 %v2118
    %5113 = vmatpush1.bf16.msra.mxu0 %v2117
    %5114 = vmatprep.subr.bf16.mxu0 %v2126
    %5115 = vmatpush1.bf16.msra.mxu0 %v2125
    %5116 = vmatprep.subr.bf16.mxu0 %v2134
    %5117 = vmatpush1.bf16.msra.mxu0 %v2133
    %5118 = vmatprep.mubr.bf16.mxu0 %v4951
    %5119 = vmatmul.mubr.bf16.gmra.mrb[0].mxu0 %v4950
    %v5120 = vpop.f32.mrb[0].mxu0
    %v5121 = vadd.f32 %v4961, %v5120
    %v5122 = vpop.f32.mrb[0].mxu0
    %v5123 = vadd.f32 %v4962, %v5122
    %v5124 = vpop.f32.mrb[0].mxu0
    %v5125 = vpop.f32.mrb[0].mxu0
    %5126 = vdwg.mxu0
    %v5127 = vxor.u32 %v4998, 2147483648
    %v5128 = vxor.u32 %v5000, 2147483648
    %v5129 = vxor.u32 %v5039, 2147483648
    %v5130 = vxor.u32 %v5041, 2147483648
    %v5131 = vxor.u32 %v5080, 2147483648
    %v5132 = vxor.u32 %v5082, 2147483648
    %v5133 = vmul.f32 %v5127, 1.442695
    %v5134 = vpow.pop %v5133
    %v5135 = vmul.f32 %v5128, 1.442695
    %v5136 = vpow.pop %v5135
    %v5137 = vmul.f32 %v5129, 1.442695
    %v5138 = vpow.pop %v5137
    %v5139 = vmul.f32 %v5130, 1.442695
    %v5140 = vpow.pop %v5139
    %v5141 = vmul.f32 %v5131, 1.442695
    %v5142 = vpow.pop %v5141
    %v5143 = vmul.f32 %v5132, 1.442695
    %v5144 = vpow.pop %v5143
    %v5145 = vadd.f32 %v5134, 1.0
    %v5146 = vadd.f32 %v5136, 1.0
    %v5147 = vadd.f32 %v5138, 1.0
    %v5148 = vadd.f32 %v5140, 1.0
    %v5149 = vadd.f32 %v5142, 1.0
    %v5150 = vadd.f32 %v5144, 1.0
    %v5151 = vrcp.pop %v5145
    %v5152 = vmul.f32 1.0, %v5151
    %v5153 = vrcp.pop %v5146
    %v5154 = vmul.f32 1.0, %v5153
    %v5155 = vrcp.pop %v5147
    %v5156 = vmul.f32 1.0, %v5155
    %v5157 = vrcp.pop %v5148
    %v5158 = vmul.f32 1.0, %v5157
    %v5159 = vrcp.pop %v5149
    %v5160 = vmul.f32 1.0, %v5159
    %v5161 = vrcp.pop %v5150
    %v5162 = vmul.f32 1.0, %v5161
    %v5163 = vtanh.pop %v5121
    %v5164 = vtanh.pop %v5123
    %v5165 = vmul.f32 %v5156, %v4944
    %v5166 = vmul.f32 %v5158, %v4945
    %v5167 = vmul.f32 %v5152, %v5163
    %v5168 = vmul.f32 %v5154, %v5164
    %v5169 = vadd.f32 %v5165, %v5167
    %v5170 = vadd.f32 %v5166, %v5168
    %v5171 = vtanh.pop %v5169
    %v5172 = vtanh.pop %v5170
    %v5173 = vmul.f32 %v5160, %v5171
    %v5174 = vmul.f32 %v5162, %v5172
    %v5175 = vpack.c.bf16 %v5173, %v5173
    %v5176 = vpack.c.bf16 %v5174, %v5174
    %s5177 = smul.u32 14, 8
    %s5178 = smul.addr %s5177, 8
    %s5179 = scalar_lea.vmem [#allocation2], %s5178
    %v5180 = vld [vmem:[%s5179] sm:$0x3]
    %v5181 = vld [vmem:[%s5179 + $0x8] sm:$0x3]
    %v5182 = vld [vmem:[%s5179 + $0x10] sm:$0x3]
    %v5183 = vld [vmem:[%s5179 + $0x18] sm:$0x3]
    %v5184 = vld [vmem:[%s5179 + $0x20] sm:$0x3]
    %v5185 = vld [vmem:[%s5179 + $0x28] sm:$0x3]
    %v5186 = vld [vmem:[%s5179 + $0x30] sm:$0x3]
    %v5187 = vld [vmem:[%s5179 + $0x38] sm:$0x3]
    %5188 = vmatprep.subr.bf16.mxu0 %v2008
    %5189 = vmatpush1.bf16.msra.mxu0 %v2007
    %5190 = vmatprep.subr.bf16.mxu0 %v2016
    %5191 = vmatpush1.bf16.msra.mxu0 %v2015
    %5192 = vmatprep.subr.bf16.mxu0 %v2024
    %5193 = vmatpush1.bf16.msra.mxu0 %v2023
    %5194 = vmatprep.subr.bf16.mxu0 %v2032
    %5195 = vmatpush1.bf16.msra.mxu0 %v2031
    %5196 = vmatprep.subr.bf16.mxu0 %v2040
    %5197 = vmatpush1.bf16.msra.mxu0 %v2039
    %5198 = vmatprep.subr.bf16.mxu0 %v2048
    %5199 = vmatpush1.bf16.msra.mxu0 %v2047
    %5200 = vmatprep.subr.bf16.mxu0 %v2056
    %5201 = vmatpush1.bf16.msra.mxu0 %v2055
    %5202 = vmatprep.subr.bf16.mxu0 %v2064
    %5203 = vmatpush1.bf16.msra.mxu0 %v2063
    %5204 = vmatprep.subr.bf16.mxu0 %v2072
    %5205 = vmatpush1.bf16.msra.mxu0 %v2071
    %5206 = vmatprep.subr.bf16.mxu0 %v2080
    %5207 = vmatpush1.bf16.msra.mxu0 %v2079
    %5208 = vmatprep.subr.bf16.mxu0 %v2088
    %5209 = vmatpush1.bf16.msra.mxu0 %v2087
    %5210 = vmatprep.subr.bf16.mxu0 %v2096
    %5211 = vmatpush1.bf16.msra.mxu0 %v2095
    %5212 = vmatprep.subr.bf16.mxu0 %v2104
    %5213 = vmatpush1.bf16.msra.mxu0 %v2103
    %5214 = vmatprep.subr.bf16.mxu0 %v2112
    %5215 = vmatpush1.bf16.msra.mxu0 %v2111
    %5216 = vmatprep.subr.bf16.mxu0 %v2120
    %5217 = vmatpush1.bf16.msra.mxu0 %v2119
    %5218 = vmatprep.subr.bf16.mxu0 %v2128
    %5219 = vmatpush1.bf16.msra.mxu0 %v2127
    %5220 = vmatprep.mubr.bf16.mxu0 %v5176
    %5221 = vmatmul.mubr.bf16.gmra.mrb[0].mxu0 %v5175
    %v5222 = vpop.f32.mrb[0].mxu0
    %v5223 = vadd.f32 %v5180, %v5222
    %v5224 = vpop.f32.mrb[0].mxu0
    %v5225 = vadd.f32 %v5181, %v5224
    %v5226 = vpop.f32.mrb[0].mxu0
    %v5227 = vpop.f32.mrb[0].mxu0
    %5228 = vdwg.mxu0
    %5229 = vmatprep.subr.bf16.mxu0 %v2010
    %5230 = vmatpush1.bf16.msra.mxu0 %v2009
    %5231 = vmatprep.subr.bf16.mxu0 %v2018
    %5232 = vmatpush1.bf16.msra.mxu0 %v2017
    %5233 = vmatprep.subr.bf16.mxu0 %v2026
    %5234 = vmatpush1.bf16.msra.mxu0 %v2025
    %5235 = vmatprep.subr.bf16.mxu0 %v2034
    %5236 = vmatpush1.bf16.msra.mxu0 %v2033
    %5237 = vmatprep.subr.bf16.mxu0 %v2042
    %5238 = vmatpush1.bf16.msra.mxu0 %v2041
    %5239 = vmatprep.subr.bf16.mxu0 %v2050
    %5240 = vmatpush1.bf16.msra.mxu0 %v2049
    %5241 = vmatprep.subr.bf16.mxu0 %v2058
    %5242 = vmatpush1.bf16.msra.mxu0 %v2057
    %5243 = vmatprep.subr.bf16.mxu0 %v2066
    %5244 = vmatpush1.bf16.msra.mxu0 %v2065
    %5245 = vmatprep.subr.bf16.mxu0 %v2074
    %5246 = vmatpush1.bf16.msra.mxu0 %v2073
    %5247 = vmatprep.subr.bf16.mxu0 %v2082
    %5248 = vmatpush1.bf16.msra.mxu0 %v2081
    %5249 = vmatprep.subr.bf16.mxu0 %v2090
    %5250 = vmatpush1.bf16.msra.mxu0 %v2089
    %5251 = vmatprep.subr.bf16.mxu0 %v2098
    %5252 = vmatpush1.bf16.msra.mxu0 %v2097
    %5253 = vmatprep.subr.bf16.mxu0 %v2106
    %5254 = vmatpush1.bf16.msra.mxu0 %v2105
    %5255 = vmatprep.subr.bf16.mxu0 %v2114
    %5256 = vmatpush1.bf16.msra.mxu0 %v2113
    %5257 = vmatprep.subr.bf16.mxu0 %v2122
    %5258 = vmatpush1.bf16.msra.mxu0 %v2121
    %5259 = vmatprep.subr.bf16.mxu0 %v2130
    %5260 = vmatpush1.bf16.msra.mxu0 %v2129
    %5261 = vmatprep.mubr.bf16.mxu0 %v5176
    %5262 = vmatmul.mubr.bf16.gmra.mrb[0].mxu0 %v5175
    %v5263 = vpop.f32.mrb[0].mxu0
    %v5264 = vadd.f32 %v5182, %v5263
    %v5265 = vpop.f32.mrb[0].mxu0
    %v5266 = vadd.f32 %v5183, %v5265
    %v5267 = vpop.f32.mrb[0].mxu0
    %v5268 = vpop.f32.mrb[0].mxu0
    %5269 = vdwg.mxu0
    %5270 = vmatprep.subr.bf16.mxu0 %v2012
    %5271 = vmatpush1.bf16.msra.mxu0 %v2011
    %5272 = vmatprep.subr.bf16.mxu0 %v2020
    %5273 = vmatpush1.bf16.msra.mxu0 %v2019
    %5274 = vmatprep.subr.bf16.mxu0 %v2028
    %5275 = vmatpush1.bf16.msra.mxu0 %v2027
    %5276 = vmatprep.subr.bf16.mxu0 %v2036
    %5277 = vmatpush1.bf16.msra.mxu0 %v2035
    %5278 = vmatprep.subr.bf16.mxu0 %v2044
    %5279 = vmatpush1.bf16.msra.mxu0 %v2043
    %5280 = vmatprep.subr.bf16.mxu0 %v2052
    %5281 = vmatpush1.bf16.msra.mxu0 %v2051
    %5282 = vmatprep.subr.bf16.mxu0 %v2060
    %5283 = vmatpush1.bf16.msra.mxu0 %v2059
    %5284 = vmatprep.subr.bf16.mxu0 %v2068
    %5285 = vmatpush1.bf16.msra.mxu0 %v2067
    %5286 = vmatprep.subr.bf16.mxu0 %v2076
    %5287 = vmatpush1.bf16.msra.mxu0 %v2075
    %5288 = vmatprep.subr.bf16.mxu0 %v2084
    %5289 = vmatpush1.bf16.msra.mxu0 %v2083
    %5290 = vmatprep.subr.bf16.mxu0 %v2092
    %5291 = vmatpush1.bf16.msra.mxu0 %v2091
    %5292 = vmatprep.subr.bf16.mxu0 %v2100
    %5293 = vmatpush1.bf16.msra.mxu0 %v2099
    %5294 = vmatprep.subr.bf16.mxu0 %v2108
    %5295 = vmatpush1.bf16.msra.mxu0 %v2107
    %5296 = vmatprep.subr.bf16.mxu0 %v2116
    %5297 = vmatpush1.bf16.msra.mxu0 %v2115
    %5298 = vmatprep.subr.bf16.mxu0 %v2124
    %5299 = vmatpush1.bf16.msra.mxu0 %v2123
    %5300 = vmatprep.subr.bf16.mxu0 %v2132
    %5301 = vmatpush1.bf16.msra.mxu0 %v2131
    %5302 = vmatprep.mubr.bf16.mxu0 %v5176
    %5303 = vmatmul.mubr.bf16.gmra.mrb[0].mxu0 %v5175
    %v5304 = vpop.f32.mrb[0].mxu0
    %v5305 = vadd.f32 %v5184, %v5304
    %v5306 = vpop.f32.mrb[0].mxu0
    %v5307 = vadd.f32 %v5185, %v5306
    %v5308 = vpop.f32.mrb[0].mxu0
    %v5309 = vpop.f32.mrb[0].mxu0
    %5310 = vdwg.mxu0
    %5311 = vmatprep.subr.bf16.mxu0 %v2014
    %5312 = vmatpush1.bf16.msra.mxu0 %v2013
    %5313 = vmatprep.subr.bf16.mxu0 %v2022
    %5314 = vmatpush1.bf16.msra.mxu0 %v2021
    %5315 = vmatprep.subr.bf16.mxu0 %v2030
    %5316 = vmatpush1.bf16.msra.mxu0 %v2029
    %5317 = vmatprep.subr.bf16.mxu0 %v2038
    %5318 = vmatpush1.bf16.msra.mxu0 %v2037
    %5319 = vmatprep.subr.bf16.mxu0 %v2046
    %5320 = vmatpush1.bf16.msra.mxu0 %v2045
    %5321 = vmatprep.subr.bf16.mxu0 %v2054
    %5322 = vmatpush1.bf16.msra.mxu0 %v2053
    %5323 = vmatprep.subr.bf16.mxu0 %v2062
    %5324 = vmatpush1.bf16.msra.mxu0 %v2061
    %5325 = vmatprep.subr.bf16.mxu0 %v2070
    %5326 = vmatpush1.bf16.msra.mxu0 %v2069
    %5327 = vmatprep.subr.bf16.mxu0 %v2078
    %5328 = vmatpush1.bf16.msra.mxu0 %v2077
    %5329 = vmatprep.subr.bf16.mxu0 %v2086
    %5330 = vmatpush1.bf16.msra.mxu0 %v2085
    %5331 = vmatprep.subr.bf16.mxu0 %v2094
    %5332 = vmatpush1.bf16.msra.mxu0 %v2093
    %5333 = vmatprep.subr.bf16.mxu0 %v2102
    %5334 = vmatpush1.bf16.msra.mxu0 %v2101
    %5335 = vmatprep.subr.bf16.mxu0 %v2110
    %5336 = vmatpush1.bf16.msra.mxu0 %v2109
    %5337 = vmatprep.subr.bf16.mxu0 %v2118
    %5338 = vmatpush1.bf16.msra.mxu0 %v2117
    %5339 = vmatprep.subr.bf16.mxu0 %v2126
    %5340 = vmatpush1.bf16.msra.mxu0 %v2125
    %5341 = vmatprep.subr.bf16.mxu0 %v2134
    %5342 = vmatpush1.bf16.msra.mxu0 %v2133
    %5343 = vmatprep.mubr.bf16.mxu0 %v5176
    %5344 = vmatmul.mubr.bf16.gmra.mrb[0].mxu0 %v5175
    %v5345 = vpop.f32.mrb[0].mxu0
    %v5346 = vadd.f32 %v5186, %v5345
    %v5347 = vpop.f32.mrb[0].mxu0
    %v5348 = vadd.f32 %v5187, %v5347
    %v5349 = vpop.f32.mrb[0].mxu0
    %v5350 = vpop.f32.mrb[0].mxu0
    %5351 = vdwg.mxu0
    %v5352 = vxor.u32 %v5223, 2147483648
    %v5353 = vxor.u32 %v5225, 2147483648
    %v5354 = vxor.u32 %v5264, 2147483648
    %v5355 = vxor.u32 %v5266, 2147483648
    %v5356 = vxor.u32 %v5305, 2147483648
    %v5357 = vxor.u32 %v5307, 2147483648
    %v5358 = vmul.f32 %v5352, 1.442695
    %v5359 = vpow.pop %v5358
    %v5360 = vmul.f32 %v5353, 1.442695
    %v5361 = vpow.pop %v5360
    %v5362 = vmul.f32 %v5354, 1.442695
    %v5363 = vpow.pop %v5362
    %v5364 = vmul.f32 %v5355, 1.442695
    %v5365 = vpow.pop %v5364
    %v5366 = vmul.f32 %v5356, 1.442695
    %v5367 = vpow.pop %v5366
    %v5368 = vmul.f32 %v5357, 1.442695
    %v5369 = vpow.pop %v5368
    %v5370 = vadd.f32 %v5359, 1.0
    %v5371 = vadd.f32 %v5361, 1.0
    %v5372 = vadd.f32 %v5363, 1.0
    %v5373 = vadd.f32 %v5365, 1.0
    %v5374 = vadd.f32 %v5367, 1.0
    %v5375 = vadd.f32 %v5369, 1.0
    %v5376 = vrcp.pop %v5370
    %v5377 = vmul.f32 1.0, %v5376
    %v5378 = vrcp.pop %v5371
    %v5379 = vmul.f32 1.0, %v5378
    %v5380 = vrcp.pop %v5372
    %v5381 = vmul.f32 1.0, %v5380
    %v5382 = vrcp.pop %v5373
    %v5383 = vmul.f32 1.0, %v5382
    %v5384 = vrcp.pop %v5374
    %v5385 = vmul.f32 1.0, %v5384
    %v5386 = vrcp.pop %v5375
    %v5387 = vmul.f32 1.0, %v5386
    %v5388 = vtanh.pop %v5346
    %v5389 = vtanh.pop %v5348
    %v5390 = vmul.f32 %v5381, %v5169
    %v5391 = vmul.f32 %v5383, %v5170
    %v5392 = vmul.f32 %v5377, %v5388
    %v5393 = vmul.f32 %v5379, %v5389
    %v5394 = vadd.f32 %v5390, %v5392
    %v5395 = vadd.f32 %v5391, %v5393
    %v5396 = vtanh.pop %v5394
    %v5397 = vtanh.pop %v5395
    %v5398 = vmul.f32 %v5385, %v5396
    %v5399 = vmul.f32 %v5387, %v5397
    %v5400 = vpack.c.bf16 %v5398, %v5398
    %v5401 = vpack.c.bf16 %v5399, %v5399
    %s5402 = smul.u32 15, 8
    %s5403 = smul.addr %s5402, 8
    %s5404 = scalar_lea.vmem [#allocation2], %s5403
    %v5405 = vld [vmem:[%s5404] sm:$0x3]
    %v5406 = vld [vmem:[%s5404 + $0x8] sm:$0x3]
    %v5407 = vld [vmem:[%s5404 + $0x10] sm:$0x3]
    %v5408 = vld [vmem:[%s5404 + $0x18] sm:$0x3]
    %v5409 = vld [vmem:[%s5404 + $0x20] sm:$0x3]
    %v5410 = vld [vmem:[%s5404 + $0x28] sm:$0x3]
    %v5411 = vld [vmem:[%s5404 + $0x30] sm:$0x3]
    %v5412 = vld [vmem:[%s5404 + $0x38] sm:$0x3]
    %5413 = vmatprep.subr.bf16.mxu0 %v2008
    %5414 = vmatpush1.bf16.msra.mxu0 %v2007
    %5415 = vmatprep.subr.bf16.mxu0 %v2016
    %5416 = vmatpush1.bf16.msra.mxu0 %v2015
    %5417 = vmatprep.subr.bf16.mxu0 %v2024
    %5418 = vmatpush1.bf16.msra.mxu0 %v2023
    %5419 = vmatprep.subr.bf16.mxu0 %v2032
    %5420 = vmatpush1.bf16.msra.mxu0 %v2031
    %5421 = vmatprep.subr.bf16.mxu0 %v2040
    %5422 = vmatpush1.bf16.msra.mxu0 %v2039
    %5423 = vmatprep.subr.bf16.mxu0 %v2048
    %5424 = vmatpush1.bf16.msra.mxu0 %v2047
    %5425 = vmatprep.subr.bf16.mxu0 %v2056
    %5426 = vmatpush1.bf16.msra.mxu0 %v2055
    %5427 = vmatprep.subr.bf16.mxu0 %v2064
    %5428 = vmatpush1.bf16.msra.mxu0 %v2063
    %5429 = vmatprep.subr.bf16.mxu0 %v2072
    %5430 = vmatpush1.bf16.msra.mxu0 %v2071
    %5431 = vmatprep.subr.bf16.mxu0 %v2080
    %5432 = vmatpush1.bf16.msra.mxu0 %v2079
    %5433 = vmatprep.subr.bf16.mxu0 %v2088
    %5434 = vmatpush1.bf16.msra.mxu0 %v2087
    %5435 = vmatprep.subr.bf16.mxu0 %v2096
    %5436 = vmatpush1.bf16.msra.mxu0 %v2095
    %5437 = vmatprep.subr.bf16.mxu0 %v2104
    %5438 = vmatpush1.bf16.msra.mxu0 %v2103
    %5439 = vmatprep.subr.bf16.mxu0 %v2112
    %5440 = vmatpush1.bf16.msra.mxu0 %v2111
    %5441 = vmatprep.subr.bf16.mxu0 %v2120
    %5442 = vmatpush1.bf16.msra.mxu0 %v2119
    %5443 = vmatprep.subr.bf16.mxu0 %v2128
    %5444 = vmatpush1.bf16.msra.mxu0 %v2127
    %5445 = vmatprep.mubr.bf16.mxu0 %v5401
    %5446 = vmatmul.mubr.bf16.gmra.mrb[0].mxu0 %v5400
    %v5447 = vpop.f32.mrb[0].mxu0
    %v5448 = vadd.f32 %v5405, %v5447
    %v5449 = vpop.f32.mrb[0].mxu0
    %v5450 = vadd.f32 %v5406, %v5449
    %v5451 = vpop.f32.mrb[0].mxu0
    %v5452 = vpop.f32.mrb[0].mxu0
    %5453 = vdwg.mxu0
    %5454 = vmatprep.subr.bf16.mxu0 %v2010
    %5455 = vmatpush1.bf16.msra.mxu0 %v2009
    %5456 = vmatprep.subr.bf16.mxu0 %v2018
    %5457 = vmatpush1.bf16.msra.mxu0 %v2017
    %5458 = vmatprep.subr.bf16.mxu0 %v2026
    %5459 = vmatpush1.bf16.msra.mxu0 %v2025
    %5460 = vmatprep.subr.bf16.mxu0 %v2034
    %5461 = vmatpush1.bf16.msra.mxu0 %v2033
    %5462 = vmatprep.subr.bf16.mxu0 %v2042
    %5463 = vmatpush1.bf16.msra.mxu0 %v2041
    %5464 = vmatprep.subr.bf16.mxu0 %v2050
    %5465 = vmatpush1.bf16.msra.mxu0 %v2049
    %5466 = vmatprep.subr.bf16.mxu0 %v2058
    %5467 = vmatpush1.bf16.msra.mxu0 %v2057
    %5468 = vmatprep.subr.bf16.mxu0 %v2066
    %5469 = vmatpush1.bf16.msra.mxu0 %v2065
    %5470 = vmatprep.subr.bf16.mxu0 %v2074
    %5471 = vmatpush1.bf16.msra.mxu0 %v2073
    %5472 = vmatprep.subr.bf16.mxu0 %v2082
    %5473 = vmatpush1.bf16.msra.mxu0 %v2081
    %5474 = vmatprep.subr.bf16.mxu0 %v2090
    %5475 = vmatpush1.bf16.msra.mxu0 %v2089
    %5476 = vmatprep.subr.bf16.mxu0 %v2098
    %5477 = vmatpush1.bf16.msra.mxu0 %v2097
    %5478 = vmatprep.subr.bf16.mxu0 %v2106
    %5479 = vmatpush1.bf16.msra.mxu0 %v2105
    %5480 = vmatprep.subr.bf16.mxu0 %v2114
    %5481 = vmatpush1.bf16.msra.mxu0 %v2113
    %5482 = vmatprep.subr.bf16.mxu0 %v2122
    %5483 = vmatpush1.bf16.msra.mxu0 %v2121
    %5484 = vmatprep.subr.bf16.mxu0 %v2130
    %5485 = vmatpush1.bf16.msra.mxu0 %v2129
    %5486 = vmatprep.mubr.bf16.mxu0 %v5401
    %5487 = vmatmul.mubr.bf16.gmra.mrb[0].mxu0 %v5400
    %v5488 = vpop.f32.mrb[0].mxu0
    %v5489 = vadd.f32 %v5407, %v5488
    %v5490 = vpop.f32.mrb[0].mxu0
    %v5491 = vadd.f32 %v5408, %v5490
    %v5492 = vpop.f32.mrb[0].mxu0
    %v5493 = vpop.f32.mrb[0].mxu0
    %5494 = vdwg.mxu0
    %5495 = vmatprep.subr.bf16.mxu0 %v2012
    %5496 = vmatpush1.bf16.msra.mxu0 %v2011
    %5497 = vmatprep.subr.bf16.mxu0 %v2020
    %5498 = vmatpush1.bf16.msra.mxu0 %v2019
    %5499 = vmatprep.subr.bf16.mxu0 %v2028
    %5500 = vmatpush1.bf16.msra.mxu0 %v2027
    %5501 = vmatprep.subr.bf16.mxu0 %v2036
    %5502 = vmatpush1.bf16.msra.mxu0 %v2035
    %5503 = vmatprep.subr.bf16.mxu0 %v2044
    %5504 = vmatpush1.bf16.msra.mxu0 %v2043
    %5505 = vmatprep.subr.bf16.mxu0 %v2052
    %5506 = vmatpush1.bf16.msra.mxu0 %v2051
    %5507 = vmatprep.subr.bf16.mxu0 %v2060
    %5508 = vmatpush1.bf16.msra.mxu0 %v2059
    %5509 = vmatprep.subr.bf16.mxu0 %v2068
    %5510 = vmatpush1.bf16.msra.mxu0 %v2067
    %5511 = vmatprep.subr.bf16.mxu0 %v2076
    %5512 = vmatpush1.bf16.msra.mxu0 %v2075
    %5513 = vmatprep.subr.bf16.mxu0 %v2084
    %5514 = vmatpush1.bf16.msra.mxu0 %v2083
    %5515 = vmatprep.subr.bf16.mxu0 %v2092
    %5516 = vmatpush1.bf16.msra.mxu0 %v2091
    %5517 = vmatprep.subr.bf16.mxu0 %v2100
    %5518 = vmatpush1.bf16.msra.mxu0 %v2099
    %5519 = vmatprep.subr.bf16.mxu0 %v2108
    %5520 = vmatpush1.bf16.msra.mxu0 %v2107
    %5521 = vmatprep.subr.bf16.mxu0 %v2116
    %5522 = vmatpush1.bf16.msra.mxu0 %v2115
    %5523 = vmatprep.subr.bf16.mxu0 %v2124
    %5524 = vmatpush1.bf16.msra.mxu0 %v2123
    %5525 = vmatprep.subr.bf16.mxu0 %v2132
    %5526 = vmatpush1.bf16.msra.mxu0 %v2131
    %5527 = vmatprep.mubr.bf16.mxu0 %v5401
    %5528 = vmatmul.mubr.bf16.gmra.mrb[0].mxu0 %v5400
    %v5529 = vpop.f32.mrb[0].mxu0
    %v5530 = vadd.f32 %v5409, %v5529
    %v5531 = vpop.f32.mrb[0].mxu0
    %v5532 = vadd.f32 %v5410, %v5531
    %v5533 = vpop.f32.mrb[0].mxu0
    %v5534 = vpop.f32.mrb[0].mxu0
    %5535 = vdwg.mxu0
    %5536 = vmatprep.subr.bf16.mxu0 %v2014
    %5537 = vmatpush1.bf16.msra.mxu0 %v2013
    %5538 = vmatprep.subr.bf16.mxu0 %v2022
    %5539 = vmatpush1.bf16.msra.mxu0 %v2021
    %5540 = vmatprep.subr.bf16.mxu0 %v2030
    %5541 = vmatpush1.bf16.msra.mxu0 %v2029
    %5542 = vmatprep.subr.bf16.mxu0 %v2038
    %5543 = vmatpush1.bf16.msra.mxu0 %v2037
    %5544 = vmatprep.subr.bf16.mxu0 %v2046
    %5545 = vmatpush1.bf16.msra.mxu0 %v2045
    %5546 = vmatprep.subr.bf16.mxu0 %v2054
    %5547 = vmatpush1.bf16.msra.mxu0 %v2053
    %5548 = vmatprep.subr.bf16.mxu0 %v2062
    %5549 = vmatpush1.bf16.msra.mxu0 %v2061
    %5550 = vmatprep.subr.bf16.mxu0 %v2070
    %5551 = vmatpush1.bf16.msra.mxu0 %v2069
    %5552 = vmatprep.subr.bf16.mxu0 %v2078
    %5553 = vmatpush1.bf16.msra.mxu0 %v2077
    %5554 = vmatprep.subr.bf16.mxu0 %v2086
    %5555 = vmatpush1.bf16.msra.mxu0 %v2085
    %5556 = vmatprep.subr.bf16.mxu0 %v2094
    %5557 = vmatpush1.bf16.msra.mxu0 %v2093
    %5558 = vmatprep.subr.bf16.mxu0 %v2102
    %5559 = vmatpush1.bf16.msra.mxu0 %v2101
    %5560 = vmatprep.subr.bf16.mxu0 %v2110
    %5561 = vmatpush1.bf16.msra.mxu0 %v2109
    %5562 = vmatprep.subr.bf16.mxu0 %v2118
    %5563 = vmatpush1.bf16.msra.mxu0 %v2117
    %5564 = vmatprep.subr.bf16.mxu0 %v2126
    %5565 = vmatpush1.bf16.msra.mxu0 %v2125
    %5566 = vmatprep.subr.bf16.mxu0 %v2134
    %5567 = vmatpush1.bf16.msra.mxu0 %v2133
    %5568 = vmatprep.mubr.bf16.mxu0 %v5401
    %5569 = vmatmul.mubr.bf16.gmra.mrb[0].mxu0 %v5400
    %v5570 = vpop.f32.mrb[0].mxu0
    %v5571 = vadd.f32 %v5411, %v5570
    %v5572 = vpop.f32.mrb[0].mxu0
    %v5573 = vadd.f32 %v5412, %v5572
    %v5574 = vpop.f32.mrb[0].mxu0
    %v5575 = vpop.f32.mrb[0].mxu0
    %5576 = vdwg.mxu0
    %v5577 = vxor.u32 %v5448, 2147483648
    %v5578 = vxor.u32 %v5450, 2147483648
    %v5579 = vxor.u32 %v5489, 2147483648
    %v5580 = vxor.u32 %v5491, 2147483648
    %v5581 = vxor.u32 %v5530, 2147483648
    %v5582 = vxor.u32 %v5532, 2147483648
    %v5583 = vmul.f32 %v5577, 1.442695
    %v5584 = vpow.pop %v5583
    %v5585 = vmul.f32 %v5578, 1.442695
    %v5586 = vpow.pop %v5585
    %v5587 = vmul.f32 %v5579, 1.442695
    %v5588 = vpow.pop %v5587
    %v5589 = vmul.f32 %v5580, 1.442695
    %v5590 = vpow.pop %v5589
    %v5591 = vmul.f32 %v5581, 1.442695
    %v5592 = vpow.pop %v5591
    %v5593 = vmul.f32 %v5582, 1.442695
    %v5594 = vpow.pop %v5593
    %v5595 = vadd.f32 %v5584, 1.0
    %v5596 = vadd.f32 %v5586, 1.0
    %v5597 = vadd.f32 %v5588, 1.0
    %v5598 = vadd.f32 %v5590, 1.0
    %v5599 = vadd.f32 %v5592, 1.0
    %v5600 = vadd.f32 %v5594, 1.0
    %v5601 = vrcp.pop %v5595
    %v5602 = vmul.f32 1.0, %v5601
    %v5603 = vrcp.pop %v5596
    %v5604 = vmul.f32 1.0, %v5603
    %v5605 = vrcp.pop %v5597
    %v5606 = vmul.f32 1.0, %v5605
    %v5607 = vrcp.pop %v5598
    %v5608 = vmul.f32 1.0, %v5607
    %v5609 = vrcp.pop %v5599
    %v5610 = vmul.f32 1.0, %v5609
    %v5611 = vrcp.pop %v5600
    %v5612 = vmul.f32 1.0, %v5611
    %v5613 = vtanh.pop %v5571
    %v5614 = vtanh.pop %v5573
    %v5615 = vmul.f32 %v5606, %v5394
    %v5616 = vmul.f32 %v5608, %v5395
    %v5617 = vmul.f32 %v5602, %v5613
    %v5618 = vmul.f32 %v5604, %v5614
    %v5619 = vadd.f32 %v5615, %v5617
    %v5620 = vadd.f32 %v5616, %v5618
    %v5621 = vtanh.pop %v5619
    %v5622 = vtanh.pop %v5620
    %v5623 = vmul.f32 %v5610, %v5621
    %v5624 = vmul.f32 %v5612, %v5622
    %v5625 = vpack.c.bf16 %v5623, %v5623
    %v5626 = vpack.c.bf16 %v5624, %v5624
    %s5627 = smul.u32 16, 8
    %s5628 = smul.addr %s5627, 8
    %s5629 = scalar_lea.vmem [#allocation2], %s5628
    %v5630 = vld [vmem:[%s5629] sm:$0x3]
    %v5631 = vld [vmem:[%s5629 + $0x8] sm:$0x3]
    %v5632 = vld [vmem:[%s5629 + $0x10] sm:$0x3]
    %v5633 = vld [vmem:[%s5629 + $0x18] sm:$0x3]
    %v5634 = vld [vmem:[%s5629 + $0x20] sm:$0x3]
    %v5635 = vld [vmem:[%s5629 + $0x28] sm:$0x3]
    %v5636 = vld [vmem:[%s5629 + $0x30] sm:$0x3]
    %v5637 = vld [vmem:[%s5629 + $0x38] sm:$0x3]
    %5638 = vmatprep.subr.bf16.mxu0 %v2008
    %5639 = vmatpush1.bf16.msra.mxu0 %v2007
    %5640 = vmatprep.subr.bf16.mxu0 %v2016
    %5641 = vmatpush1.bf16.msra.mxu0 %v2015
    %5642 = vmatprep.subr.bf16.mxu0 %v2024
    %5643 = vmatpush1.bf16.msra.mxu0 %v2023
    %5644 = vmatprep.subr.bf16.mxu0 %v2032
    %5645 = vmatpush1.bf16.msra.mxu0 %v2031
    %5646 = vmatprep.subr.bf16.mxu0 %v2040
    %5647 = vmatpush1.bf16.msra.mxu0 %v2039
    %5648 = vmatprep.subr.bf16.mxu0 %v2048
    %5649 = vmatpush1.bf16.msra.mxu0 %v2047
    %5650 = vmatprep.subr.bf16.mxu0 %v2056
    %5651 = vmatpush1.bf16.msra.mxu0 %v2055
    %5652 = vmatprep.subr.bf16.mxu0 %v2064
    %5653 = vmatpush1.bf16.msra.mxu0 %v2063
    %5654 = vmatprep.subr.bf16.mxu0 %v2072
    %5655 = vmatpush1.bf16.msra.mxu0 %v2071
    %5656 = vmatprep.subr.bf16.mxu0 %v2080
    %5657 = vmatpush1.bf16.msra.mxu0 %v2079
    %5658 = vmatprep.subr.bf16.mxu0 %v2088
    %5659 = vmatpush1.bf16.msra.mxu0 %v2087
    %5660 = vmatprep.subr.bf16.mxu0 %v2096
    %5661 = vmatpush1.bf16.msra.mxu0 %v2095
    %5662 = vmatprep.subr.bf16.mxu0 %v2104
    %5663 = vmatpush1.bf16.msra.mxu0 %v2103
    %5664 = vmatprep.subr.bf16.mxu0 %v2112
    %5665 = vmatpush1.bf16.msra.mxu0 %v2111
    %5666 = vmatprep.subr.bf16.mxu0 %v2120
    %5667 = vmatpush1.bf16.msra.mxu0 %v2119
    %5668 = vmatprep.subr.bf16.mxu0 %v2128
    %5669 = vmatpush1.bf16.msra.mxu0 %v2127
    %5670 = vmatprep.mubr.bf16.mxu0 %v5626
    %5671 = vmatmul.mubr.bf16.gmra.mrb[0].mxu0 %v5625
    %v5672 = vpop.f32.mrb[0].mxu0
    %v5673 = vadd.f32 %v5630, %v5672
    %v5674 = vpop.f32.mrb[0].mxu0
    %v5675 = vadd.f32 %v5631, %v5674
    %v5676 = vpop.f32.mrb[0].mxu0
    %v5677 = vpop.f32.mrb[0].mxu0
    %5678 = vdwg.mxu0
    %5679 = vmatprep.subr.bf16.mxu0 %v2010
    %5680 = vmatpush1.bf16.msra.mxu0 %v2009
    %5681 = vmatprep.subr.bf16.mxu0 %v2018
    %5682 = vmatpush1.bf16.msra.mxu0 %v2017
    %5683 = vmatprep.subr.bf16.mxu0 %v2026
    %5684 = vmatpush1.bf16.msra.mxu0 %v2025
    %5685 = vmatprep.subr.bf16.mxu0 %v2034
    %5686 = vmatpush1.bf16.msra.mxu0 %v2033
    %5687 = vmatprep.subr.bf16.mxu0 %v2042
    %5688 = vmatpush1.bf16.msra.mxu0 %v2041
    %5689 = vmatprep.subr.bf16.mxu0 %v2050
    %5690 = vmatpush1.bf16.msra.mxu0 %v2049
    %5691 = vmatprep.subr.bf16.mxu0 %v2058
    %5692 = vmatpush1.bf16.msra.mxu0 %v2057
    %5693 = vmatprep.subr.bf16.mxu0 %v2066
    %5694 = vmatpush1.bf16.msra.mxu0 %v2065
    %5695 = vmatprep.subr.bf16.mxu0 %v2074
    %5696 = vmatpush1.bf16.msra.mxu0 %v2073
    %5697 = vmatprep.subr.bf16.mxu0 %v2082
    %5698 = vmatpush1.bf16.msra.mxu0 %v2081
    %5699 = vmatprep.subr.bf16.mxu0 %v2090
    %5700 = vmatpush1.bf16.msra.mxu0 %v2089
    %5701 = vmatprep.subr.bf16.mxu0 %v2098
    %5702 = vmatpush1.bf16.msra.mxu0 %v2097
    %5703 = vmatprep.subr.bf16.mxu0 %v2106
    %5704 = vmatpush1.bf16.msra.mxu0 %v2105
    %5705 = vmatprep.subr.bf16.mxu0 %v2114
    %5706 = vmatpush1.bf16.msra.mxu0 %v2113
    %5707 = vmatprep.subr.bf16.mxu0 %v2122
    %5708 = vmatpush1.bf16.msra.mxu0 %v2121
    %5709 = vmatprep.subr.bf16.mxu0 %v2130
    %5710 = vmatpush1.bf16.msra.mxu0 %v2129
    %5711 = vmatprep.mubr.bf16.mxu0 %v5626
    %5712 = vmatmul.mubr.bf16.gmra.mrb[0].mxu0 %v5625
    %v5713 = vpop.f32.mrb[0].mxu0
    %v5714 = vadd.f32 %v5632, %v5713
    %v5715 = vpop.f32.mrb[0].mxu0
    %v5716 = vadd.f32 %v5633, %v5715
    %v5717 = vpop.f32.mrb[0].mxu0
    %v5718 = vpop.f32.mrb[0].mxu0
    %5719 = vdwg.mxu0
    %5720 = vmatprep.subr.bf16.mxu0 %v2012
    %5721 = vmatpush1.bf16.msra.mxu0 %v2011
    %5722 = vmatprep.subr.bf16.mxu0 %v2020
    %5723 = vmatpush1.bf16.msra.mxu0 %v2019
    %5724 = vmatprep.subr.bf16.mxu0 %v2028
    %5725 = vmatpush1.bf16.msra.mxu0 %v2027
    %5726 = vmatprep.subr.bf16.mxu0 %v2036
    %5727 = vmatpush1.bf16.msra.mxu0 %v2035
    %5728 = vmatprep.subr.bf16.mxu0 %v2044
    %5729 = vmatpush1.bf16.msra.mxu0 %v2043
    %5730 = vmatprep.subr.bf16.mxu0 %v2052
    %5731 = vmatpush1.bf16.msra.mxu0 %v2051
    %5732 = vmatprep.subr.bf16.mxu0 %v2060
    %5733 = vmatpush1.bf16.msra.mxu0 %v2059
    %5734 = vmatprep.subr.bf16.mxu0 %v2068
    %5735 = vmatpush1.bf16.msra.mxu0 %v2067
    %5736 = vmatprep.subr.bf16.mxu0 %v2076
    %5737 = vmatpush1.bf16.msra.mxu0 %v2075
    %5738 = vmatprep.subr.bf16.mxu0 %v2084
    %5739 = vmatpush1.bf16.msra.mxu0 %v2083
    %5740 = vmatprep.subr.bf16.mxu0 %v2092
    %5741 = vmatpush1.bf16.msra.mxu0 %v2091
    %5742 = vmatprep.subr.bf16.mxu0 %v2100
    %5743 = vmatpush1.bf16.msra.mxu0 %v2099
    %5744 = vmatprep.subr.bf16.mxu0 %v2108
    %5745 = vmatpush1.bf16.msra.mxu0 %v2107
    %5746 = vmatprep.subr.bf16.mxu0 %v2116
    %5747 = vmatpush1.bf16.msra.mxu0 %v2115
    %5748 = vmatprep.subr.bf16.mxu0 %v2124
    %5749 = vmatpush1.bf16.msra.mxu0 %v2123
    %5750 = vmatprep.subr.bf16.mxu0 %v2132
    %5751 = vmatpush1.bf16.msra.mxu0 %v2131
    %5752 = vmatprep.mubr.bf16.mxu0 %v5626
    %5753 = vmatmul.mubr.bf16.gmra.mrb[0].mxu0 %v5625
    %v5754 = vpop.f32.mrb[0].mxu0
    %v5755 = vadd.f32 %v5634, %v5754
    %v5756 = vpop.f32.mrb[0].mxu0
    %v5757 = vadd.f32 %v5635, %v5756
    %v5758 = vpop.f32.mrb[0].mxu0
    %v5759 = vpop.f32.mrb[0].mxu0
    %5760 = vdwg.mxu0
    %5761 = vmatprep.subr.bf16.mxu0 %v2014
    %5762 = vmatpush1.bf16.msra.mxu0 %v2013
    %5763 = vmatprep.subr.bf16.mxu0 %v2022
    %5764 = vmatpush1.bf16.msra.mxu0 %v2021
    %5765 = vmatprep.subr.bf16.mxu0 %v2030
    %5766 = vmatpush1.bf16.msra.mxu0 %v2029
    %5767 = vmatprep.subr.bf16.mxu0 %v2038
    %5768 = vmatpush1.bf16.msra.mxu0 %v2037
    %5769 = vmatprep.subr.bf16.mxu0 %v2046
    %5770 = vmatpush1.bf16.msra.mxu0 %v2045
    %5771 = vmatprep.subr.bf16.mxu0 %v2054
    %5772 = vmatpush1.bf16.msra.mxu0 %v2053
    %5773 = vmatprep.subr.bf16.mxu0 %v2062
    %5774 = vmatpush1.bf16.msra.mxu0 %v2061
    %5775 = vmatprep.subr.bf16.mxu0 %v2070
    %5776 = vmatpush1.bf16.msra.mxu0 %v2069
    %5777 = vmatprep.subr.bf16.mxu0 %v2078
    %5778 = vmatpush1.bf16.msra.mxu0 %v2077
    %5779 = vmatprep.subr.bf16.mxu0 %v2086
    %5780 = vmatpush1.bf16.msra.mxu0 %v2085
    %5781 = vmatprep.subr.bf16.mxu0 %v2094
    %5782 = vmatpush1.bf16.msra.mxu0 %v2093
    %5783 = vmatprep.subr.bf16.mxu0 %v2102
    %5784 = vmatpush1.bf16.msra.mxu0 %v2101
    %5785 = vmatprep.subr.bf16.mxu0 %v2110
    %5786 = vmatpush1.bf16.msra.mxu0 %v2109
    %5787 = vmatprep.subr.bf16.mxu0 %v2118
    %5788 = vmatpush1.bf16.msra.mxu0 %v2117
    %5789 = vmatprep.subr.bf16.mxu0 %v2126
    %5790 = vmatpush1.bf16.msra.mxu0 %v2125
    %5791 = vmatprep.subr.bf16.mxu0 %v2134
    %5792 = vmatpush1.bf16.msra.mxu0 %v2133
    %5793 = vmatprep.mubr.bf16.mxu0 %v5626
    %5794 = vmatmul.mubr.bf16.gmra.mrb[0].mxu0 %v5625
    %v5795 = vpop.f32.mrb[0].mxu0
    %v5796 = vadd.f32 %v5636, %v5795
    %v5797 = vpop.f32.mrb[0].mxu0
    %v5798 = vadd.f32 %v5637, %v5797
    %v5799 = vpop.f32.mrb[0].mxu0
    %v5800 = vpop.f32.mrb[0].mxu0
    %5801 = vdwg.mxu0
    %v5802 = vxor.u32 %v5673, 2147483648
    %v5803 = vxor.u32 %v5675, 2147483648
    %v5804 = vxor.u32 %v5714, 2147483648
    %v5805 = vxor.u32 %v5716, 2147483648
    %v5806 = vxor.u32 %v5755, 2147483648
    %v5807 = vxor.u32 %v5757, 2147483648
    %v5808 = vmul.f32 %v5802, 1.442695
    %v5809 = vpow.pop %v5808
    %v5810 = vmul.f32 %v5803, 1.442695
    %v5811 = vpow.pop %v5810
    %v5812 = vmul.f32 %v5804, 1.442695
    %v5813 = vpow.pop %v5812
    %v5814 = vmul.f32 %v5805, 1.442695
    %v5815 = vpow.pop %v5814
    %v5816 = vmul.f32 %v5806, 1.442695
    %v5817 = vpow.pop %v5816
    %v5818 = vmul.f32 %v5807, 1.442695
    %v5819 = vpow.pop %v5818
    %v5820 = vadd.f32 %v5809, 1.0
    %v5821 = vadd.f32 %v5811, 1.0
    %v5822 = vadd.f32 %v5813, 1.0
    %v5823 = vadd.f32 %v5815, 1.0
    %v5824 = vadd.f32 %v5817, 1.0
    %v5825 = vadd.f32 %v5819, 1.0
    %v5826 = vrcp.pop %v5820
    %v5827 = vmul.f32 1.0, %v5826
    %v5828 = vrcp.pop %v5821
    %v5829 = vmul.f32 1.0, %v5828
    %v5830 = vrcp.pop %v5822
    %v5831 = vmul.f32 1.0, %v5830
    %v5832 = vrcp.pop %v5823
    %v5833 = vmul.f32 1.0, %v5832
    %v5834 = vrcp.pop %v5824
    %v5835 = vmul.f32 1.0, %v5834
    %v5836 = vrcp.pop %v5825
    %v5837 = vmul.f32 1.0, %v5836
    %v5838 = vtanh.pop %v5796
    %v5839 = vtanh.pop %v5798
    %v5840 = vmul.f32 %v5831, %v5619
    %v5841 = vmul.f32 %v5833, %v5620
    %v5842 = vmul.f32 %v5827, %v5838
    %v5843 = vmul.f32 %v5829, %v5839
    %v5844 = vadd.f32 %v5840, %v5842
    %v5845 = vadd.f32 %v5841, %v5843
    %v5846 = vtanh.pop %v5844
    %v5847 = vtanh.pop %v5845
    %v5848 = vmul.f32 %v5835, %v5846
    %v5849 = vmul.f32 %v5837, %v5847
    %v5850 = vpack.c.bf16 %v5848, %v5848
    %v5851 = vpack.c.bf16 %v5849, %v5849
    %s5852 = smul.u32 17, 8
    %s5853 = smul.addr %s5852, 8
    %s5854 = scalar_lea.vmem [#allocation2], %s5853
    %v5855 = vld [vmem:[%s5854] sm:$0x3]
    %v5856 = vld [vmem:[%s5854 + $0x8] sm:$0x3]
    %v5857 = vld [vmem:[%s5854 + $0x10] sm:$0x3]
    %v5858 = vld [vmem:[%s5854 + $0x18] sm:$0x3]
    %v5859 = vld [vmem:[%s5854 + $0x20] sm:$0x3]
    %v5860 = vld [vmem:[%s5854 + $0x28] sm:$0x3]
    %v5861 = vld [vmem:[%s5854 + $0x30] sm:$0x3]
    %v5862 = vld [vmem:[%s5854 + $0x38] sm:$0x3]
    %5863 = vmatprep.subr.bf16.mxu0 %v2008
    %5864 = vmatpush1.bf16.msra.mxu0 %v2007
    %5865 = vmatprep.subr.bf16.mxu0 %v2016
    %5866 = vmatpush1.bf16.msra.mxu0 %v2015
    %5867 = vmatprep.subr.bf16.mxu0 %v2024
    %5868 = vmatpush1.bf16.msra.mxu0 %v2023
    %5869 = vmatprep.subr.bf16.mxu0 %v2032
    %5870 = vmatpush1.bf16.msra.mxu0 %v2031
    %5871 = vmatprep.subr.bf16.mxu0 %v2040
    %5872 = vmatpush1.bf16.msra.mxu0 %v2039
    %5873 = vmatprep.subr.bf16.mxu0 %v2048
    %5874 = vmatpush1.bf16.msra.mxu0 %v2047
    %5875 = vmatprep.subr.bf16.mxu0 %v2056
    %5876 = vmatpush1.bf16.msra.mxu0 %v2055
    %5877 = vmatprep.subr.bf16.mxu0 %v2064
    %5878 = vmatpush1.bf16.msra.mxu0 %v2063
    %5879 = vmatprep.subr.bf16.mxu0 %v2072
    %5880 = vmatpush1.bf16.msra.mxu0 %v2071
    %5881 = vmatprep.subr.bf16.mxu0 %v2080
    %5882 = vmatpush1.bf16.msra.mxu0 %v2079
    %5883 = vmatprep.subr.bf16.mxu0 %v2088
    %5884 = vmatpush1.bf16.msra.mxu0 %v2087
    %5885 = vmatprep.subr.bf16.mxu0 %v2096
    %5886 = vmatpush1.bf16.msra.mxu0 %v2095
    %5887 = vmatprep.subr.bf16.mxu0 %v2104
    %5888 = vmatpush1.bf16.msra.mxu0 %v2103
    %5889 = vmatprep.subr.bf16.mxu0 %v2112
    %5890 = vmatpush1.bf16.msra.mxu0 %v2111
    %5891 = vmatprep.subr.bf16.mxu0 %v2120
    %5892 = vmatpush1.bf16.msra.mxu0 %v2119
    %5893 = vmatprep.subr.bf16.mxu0 %v2128
    %5894 = vmatpush1.bf16.msra.mxu0 %v2127
    %5895 = vmatprep.mubr.bf16.mxu0 %v5851
    %5896 = vmatmul.mubr.bf16.gmra.mrb[0].mxu0 %v5850
    %v5897 = vpop.f32.mrb[0].mxu0
    %v5898 = vadd.f32 %v5855, %v5897
    %v5899 = vpop.f32.mrb[0].mxu0
    %v5900 = vadd.f32 %v5856, %v5899
    %v5901 = vpop.f32.mrb[0].mxu0
    %v5902 = vpop.f32.mrb[0].mxu0
    %5903 = vdwg.mxu0
    %5904 = vmatprep.subr.bf16.mxu0 %v2010
    %5905 = vmatpush1.bf16.msra.mxu0 %v2009
    %5906 = vmatprep.subr.bf16.mxu0 %v2018
    %5907 = vmatpush1.bf16.msra.mxu0 %v2017
    %5908 = vmatprep.subr.bf16.mxu0 %v2026
    %5909 = vmatpush1.bf16.msra.mxu0 %v2025
    %5910 = vmatprep.subr.bf16.mxu0 %v2034
    %5911 = vmatpush1.bf16.msra.mxu0 %v2033
    %5912 = vmatprep.subr.bf16.mxu0 %v2042
    %5913 = vmatpush1.bf16.msra.mxu0 %v2041
    %5914 = vmatprep.subr.bf16.mxu0 %v2050
    %5915 = vmatpush1.bf16.msra.mxu0 %v2049
    %5916 = vmatprep.subr.bf16.mxu0 %v2058
    %5917 = vmatpush1.bf16.msra.mxu0 %v2057
    %5918 = vmatprep.subr.bf16.mxu0 %v2066
    %5919 = vmatpush1.bf16.msra.mxu0 %v2065
    %5920 = vmatprep.subr.bf16.mxu0 %v2074
    %5921 = vmatpush1.bf16.msra.mxu0 %v2073
    %5922 = vmatprep.subr.bf16.mxu0 %v2082
    %5923 = vmatpush1.bf16.msra.mxu0 %v2081
    %5924 = vmatprep.subr.bf16.mxu0 %v2090
    %5925 = vmatpush1.bf16.msra.mxu0 %v2089
    %5926 = vmatprep.subr.bf16.mxu0 %v2098
    %5927 = vmatpush1.bf16.msra.mxu0 %v2097
    %5928 = vmatprep.subr.bf16.mxu0 %v2106
    %5929 = vmatpush1.bf16.msra.mxu0 %v2105
    %5930 = vmatprep.subr.bf16.mxu0 %v2114
    %5931 = vmatpush1.bf16.msra.mxu0 %v2113
    %5932 = vmatprep.subr.bf16.mxu0 %v2122
    %5933 = vmatpush1.bf16.msra.mxu0 %v2121
    %5934 = vmatprep.subr.bf16.mxu0 %v2130
    %5935 = vmatpush1.bf16.msra.mxu0 %v2129
    %5936 = vmatprep.mubr.bf16.mxu0 %v5851
    %5937 = vmatmul.mubr.bf16.gmra.mrb[0].mxu0 %v5850
    %v5938 = vpop.f32.mrb[0].mxu0
    %v5939 = vadd.f32 %v5857, %v5938
    %v5940 = vpop.f32.mrb[0].mxu0
    %v5941 = vadd.f32 %v5858, %v5940
    %v5942 = vpop.f32.mrb[0].mxu0
    %v5943 = vpop.f32.mrb[0].mxu0
    %5944 = vdwg.mxu0
    %5945 = vmatprep.subr.bf16.mxu0 %v2012
    %5946 = vmatpush1.bf16.msra.mxu0 %v2011
    %5947 = vmatprep.subr.bf16.mxu0 %v2020
    %5948 = vmatpush1.bf16.msra.mxu0 %v2019
    %5949 = vmatprep.subr.bf16.mxu0 %v2028
    %5950 = vmatpush1.bf16.msra.mxu0 %v2027
    %5951 = vmatprep.subr.bf16.mxu0 %v2036
    %5952 = vmatpush1.bf16.msra.mxu0 %v2035
    %5953 = vmatprep.subr.bf16.mxu0 %v2044
    %5954 = vmatpush1.bf16.msra.mxu0 %v2043
    %5955 = vmatprep.subr.bf16.mxu0 %v2052
    %5956 = vmatpush1.bf16.msra.mxu0 %v2051
    %5957 = vmatprep.subr.bf16.mxu0 %v2060
    %5958 = vmatpush1.bf16.msra.mxu0 %v2059
    %5959 = vmatprep.subr.bf16.mxu0 %v2068
    %5960 = vmatpush1.bf16.msra.mxu0 %v2067
    %5961 = vmatprep.subr.bf16.mxu0 %v2076
    %5962 = vmatpush1.bf16.msra.mxu0 %v2075
    %5963 = vmatprep.subr.bf16.mxu0 %v2084
    %5964 = vmatpush1.bf16.msra.mxu0 %v2083
    %5965 = vmatprep.subr.bf16.mxu0 %v2092
    %5966 = vmatpush1.bf16.msra.mxu0 %v2091
    %5967 = vmatprep.subr.bf16.mxu0 %v2100
    %5968 = vmatpush1.bf16.msra.mxu0 %v2099
    %5969 = vmatprep.subr.bf16.mxu0 %v2108
    %5970 = vmatpush1.bf16.msra.mxu0 %v2107
    %5971 = vmatprep.subr.bf16.mxu0 %v2116
    %5972 = vmatpush1.bf16.msra.mxu0 %v2115
    %5973 = vmatprep.subr.bf16.mxu0 %v2124
    %5974 = vmatpush1.bf16.msra.mxu0 %v2123
    %5975 = vmatprep.subr.bf16.mxu0 %v2132
    %5976 = vmatpush1.bf16.msra.mxu0 %v2131
    %5977 = vmatprep.mubr.bf16.mxu0 %v5851
    %5978 = vmatmul.mubr.bf16.gmra.mrb[0].mxu0 %v5850
    %v5979 = vpop.f32.mrb[0].mxu0
    %v5980 = vadd.f32 %v5859, %v5979
    %v5981 = vpop.f32.mrb[0].mxu0
    %v5982 = vadd.f32 %v5860, %v5981
    %v5983 = vpop.f32.mrb[0].mxu0
    %v5984 = vpop.f32.mrb[0].mxu0
    %5985 = vdwg.mxu0
    %5986 = vmatprep.subr.bf16.mxu0 %v2014
    %5987 = vmatpush1.bf16.msra.mxu0 %v2013
    %5988 = vmatprep.subr.bf16.mxu0 %v2022
    %5989 = vmatpush1.bf16.msra.mxu0 %v2021
    %5990 = vmatprep.subr.bf16.mxu0 %v2030
    %5991 = vmatpush1.bf16.msra.mxu0 %v2029
    %5992 = vmatprep.subr.bf16.mxu0 %v2038
    %5993 = vmatpush1.bf16.msra.mxu0 %v2037
    %5994 = vmatprep.subr.bf16.mxu0 %v2046
    %5995 = vmatpush1.bf16.msra.mxu0 %v2045
    %5996 = vmatprep.subr.bf16.mxu0 %v2054
    %5997 = vmatpush1.bf16.msra.mxu0 %v2053
    %5998 = vmatprep.subr.bf16.mxu0 %v2062
    %5999 = vmatpush1.bf16.msra.mxu0 %v2061
    %6000 = vmatprep.subr.bf16.mxu0 %v2070
    %6001 = vmatpush1.bf16.msra.mxu0 %v2069
    %6002 = vmatprep.subr.bf16.mxu0 %v2078
    %6003 = vmatpush1.bf16.msra.mxu0 %v2077
    %6004 = vmatprep.subr.bf16.mxu0 %v2086
    %6005 = vmatpush1.bf16.msra.mxu0 %v2085
    %6006 = vmatprep.subr.bf16.mxu0 %v2094
    %6007 = vmatpush1.bf16.msra.mxu0 %v2093
    %6008 = vmatprep.subr.bf16.mxu0 %v2102
    %6009 = vmatpush1.bf16.msra.mxu0 %v2101
    %6010 = vmatprep.subr.bf16.mxu0 %v2110
    %6011 = vmatpush1.bf16.msra.mxu0 %v2109
    %6012 = vmatprep.subr.bf16.mxu0 %v2118
    %6013 = vmatpush1.bf16.msra.mxu0 %v2117
    %6014 = vmatprep.subr.bf16.mxu0 %v2126
    %6015 = vmatpush1.bf16.msra.mxu0 %v2125
    %6016 = vmatprep.subr.bf16.mxu0 %v2134
    %6017 = vmatpush1.bf16.msra.mxu0 %v2133
    %6018 = vmatprep.mubr.bf16.mxu0 %v5851
    %6019 = vmatmul.mubr.bf16.gmra.mrb[0].mxu0 %v5850
    %v6020 = vpop.f32.mrb[0].mxu0
    %v6021 = vadd.f32 %v5861, %v6020
    %v6022 = vpop.f32.mrb[0].mxu0
    %v6023 = vadd.f32 %v5862, %v6022
    %v6024 = vpop.f32.mrb[0].mxu0
    %v6025 = vpop.f32.mrb[0].mxu0
    %6026 = vdwg.mxu0
    %v6027 = vxor.u32 %v5898, 2147483648
    %v6028 = vxor.u32 %v5900, 2147483648
    %v6029 = vxor.u32 %v5939, 2147483648
    %v6030 = vxor.u32 %v5941, 2147483648
    %v6031 = vxor.u32 %v5980, 2147483648
    %v6032 = vxor.u32 %v5982, 2147483648
    %v6033 = vmul.f32 %v6027, 1.442695
    %v6034 = vpow.pop %v6033
    %v6035 = vmul.f32 %v6028, 1.442695
    %v6036 = vpow.pop %v6035
    %v6037 = vmul.f32 %v6029, 1.442695
    %v6038 = vpow.pop %v6037
    %v6039 = vmul.f32 %v6030, 1.442695
    %v6040 = vpow.pop %v6039
    %v6041 = vmul.f32 %v6031, 1.442695
    %v6042 = vpow.pop %v6041
    %v6043 = vmul.f32 %v6032, 1.442695
    %v6044 = vpow.pop %v6043
    %v6045 = vadd.f32 %v6034, 1.0
    %v6046 = vadd.f32 %v6036, 1.0
    %v6047 = vadd.f32 %v6038, 1.0
    %v6048 = vadd.f32 %v6040, 1.0
    %v6049 = vadd.f32 %v6042, 1.0
    %v6050 = vadd.f32 %v6044, 1.0
    %v6051 = vrcp.pop %v6045
    %v6052 = vmul.f32 1.0, %v6051
    %v6053 = vrcp.pop %v6046
    %v6054 = vmul.f32 1.0, %v6053
    %v6055 = vrcp.pop %v6047
    %v6056 = vmul.f32 1.0, %v6055
    %v6057 = vrcp.pop %v6048
    %v6058 = vmul.f32 1.0, %v6057
    %v6059 = vrcp.pop %v6049
    %v6060 = vmul.f32 1.0, %v6059
    %v6061 = vrcp.pop %v6050
    %v6062 = vmul.f32 1.0, %v6061
    %v6063 = vtanh.pop %v6021
    %v6064 = vtanh.pop %v6023
    %v6065 = vmul.f32 %v6056, %v5844
    %v6066 = vmul.f32 %v6058, %v5845
    %v6067 = vmul.f32 %v6052, %v6063
    %v6068 = vmul.f32 %v6054, %v6064
    %v6069 = vadd.f32 %v6065, %v6067
    %v6070 = vadd.f32 %v6066, %v6068
    %v6071 = vtanh.pop %v6069
    %v6072 = vtanh.pop %v6070
    %v6073 = vmul.f32 %v6060, %v6071
    %v6074 = vmul.f32 %v6062, %v6072
    %v6075 = vpack.c.bf16 %v6073, %v6073
    %v6076 = vpack.c.bf16 %v6074, %v6074
    %s6077 = smul.u32 18, 8
    %s6078 = smul.addr %s6077, 8
    %s6079 = scalar_lea.vmem [#allocation2], %s6078
    %v6080 = vld [vmem:[%s6079] sm:$0x3]
    %v6081 = vld [vmem:[%s6079 + $0x8] sm:$0x3]
    %v6082 = vld [vmem:[%s6079 + $0x10] sm:$0x3]
    %v6083 = vld [vmem:[%s6079 + $0x18] sm:$0x3]
    %v6084 = vld [vmem:[%s6079 + $0x20] sm:$0x3]
    %v6085 = vld [vmem:[%s6079 + $0x28] sm:$0x3]
    %v6086 = vld [vmem:[%s6079 + $0x30] sm:$0x3]
    %v6087 = vld [vmem:[%s6079 + $0x38] sm:$0x3]
    %6088 = vmatprep.subr.bf16.mxu0 %v2008
    %6089 = vmatpush1.bf16.msra.mxu0 %v2007
    %6090 = vmatprep.subr.bf16.mxu0 %v2016
    %6091 = vmatpush1.bf16.msra.mxu0 %v2015
    %6092 = vmatprep.subr.bf16.mxu0 %v2024
    %6093 = vmatpush1.bf16.msra.mxu0 %v2023
    %6094 = vmatprep.subr.bf16.mxu0 %v2032
    %6095 = vmatpush1.bf16.msra.mxu0 %v2031
    %6096 = vmatprep.subr.bf16.mxu0 %v2040
    %6097 = vmatpush1.bf16.msra.mxu0 %v2039
    %6098 = vmatprep.subr.bf16.mxu0 %v2048
    %6099 = vmatpush1.bf16.msra.mxu0 %v2047
    %6100 = vmatprep.subr.bf16.mxu0 %v2056
    %6101 = vmatpush1.bf16.msra.mxu0 %v2055
    %6102 = vmatprep.subr.bf16.mxu0 %v2064
    %6103 = vmatpush1.bf16.msra.mxu0 %v2063
    %6104 = vmatprep.subr.bf16.mxu0 %v2072
    %6105 = vmatpush1.bf16.msra.mxu0 %v2071
    %6106 = vmatprep.subr.bf16.mxu0 %v2080
    %6107 = vmatpush1.bf16.msra.mxu0 %v2079
    %6108 = vmatprep.subr.bf16.mxu0 %v2088
    %6109 = vmatpush1.bf16.msra.mxu0 %v2087
    %6110 = vmatprep.subr.bf16.mxu0 %v2096
    %6111 = vmatpush1.bf16.msra.mxu0 %v2095
    %6112 = vmatprep.subr.bf16.mxu0 %v2104
    %6113 = vmatpush1.bf16.msra.mxu0 %v2103
    %6114 = vmatprep.subr.bf16.mxu0 %v2112
    %6115 = vmatpush1.bf16.msra.mxu0 %v2111
    %6116 = vmatprep.subr.bf16.mxu0 %v2120
    %6117 = vmatpush1.bf16.msra.mxu0 %v2119
    %6118 = vmatprep.subr.bf16.mxu0 %v2128
    %6119 = vmatpush1.bf16.msra.mxu0 %v2127
    %6120 = vmatprep.mubr.bf16.mxu0 %v6076
    %6121 = vmatmul.mubr.bf16.gmra.mrb[0].mxu0 %v6075
    %v6122 = vpop.f32.mrb[0].mxu0
    %v6123 = vadd.f32 %v6080, %v6122
    %v6124 = vpop.f32.mrb[0].mxu0
    %v6125 = vadd.f32 %v6081, %v6124
    %v6126 = vpop.f32.mrb[0].mxu0
    %v6127 = vpop.f32.mrb[0].mxu0
    %6128 = vdwg.mxu0
    %6129 = vmatprep.subr.bf16.mxu0 %v2010
    %6130 = vmatpush1.bf16.msra.mxu0 %v2009
    %6131 = vmatprep.subr.bf16.mxu0 %v2018
    %6132 = vmatpush1.bf16.msra.mxu0 %v2017
    %6133 = vmatprep.subr.bf16.mxu0 %v2026
    %6134 = vmatpush1.bf16.msra.mxu0 %v2025
    %6135 = vmatprep.subr.bf16.mxu0 %v2034
    %6136 = vmatpush1.bf16.msra.mxu0 %v2033
    %6137 = vmatprep.subr.bf16.mxu0 %v2042
    %6138 = vmatpush1.bf16.msra.mxu0 %v2041
    %6139 = vmatprep.subr.bf16.mxu0 %v2050
    %6140 = vmatpush1.bf16.msra.mxu0 %v2049
    %6141 = vmatprep.subr.bf16.mxu0 %v2058
    %6142 = vmatpush1.bf16.msra.mxu0 %v2057
    %6143 = vmatprep.subr.bf16.mxu0 %v2066
    %6144 = vmatpush1.bf16.msra.mxu0 %v2065
    %6145 = vmatprep.subr.bf16.mxu0 %v2074
    %6146 = vmatpush1.bf16.msra.mxu0 %v2073
    %6147 = vmatprep.subr.bf16.mxu0 %v2082
    %6148 = vmatpush1.bf16.msra.mxu0 %v2081
    %6149 = vmatprep.subr.bf16.mxu0 %v2090
    %6150 = vmatpush1.bf16.msra.mxu0 %v2089
    %6151 = vmatprep.subr.bf16.mxu0 %v2098
    %6152 = vmatpush1.bf16.msra.mxu0 %v2097
    %6153 = vmatprep.subr.bf16.mxu0 %v2106
    %6154 = vmatpush1.bf16.msra.mxu0 %v2105
    %6155 = vmatprep.subr.bf16.mxu0 %v2114
    %6156 = vmatpush1.bf16.msra.mxu0 %v2113
    %6157 = vmatprep.subr.bf16.mxu0 %v2122
    %6158 = vmatpush1.bf16.msra.mxu0 %v2121
    %6159 = vmatprep.subr.bf16.mxu0 %v2130
    %6160 = vmatpush1.bf16.msra.mxu0 %v2129
    %6161 = vmatprep.mubr.bf16.mxu0 %v6076
    %6162 = vmatmul.mubr.bf16.gmra.mrb[0].mxu0 %v6075
    %v6163 = vpop.f32.mrb[0].mxu0
    %v6164 = vadd.f32 %v6082, %v6163
    %v6165 = vpop.f32.mrb[0].mxu0
    %v6166 = vadd.f32 %v6083, %v6165
    %v6167 = vpop.f32.mrb[0].mxu0
    %v6168 = vpop.f32.mrb[0].mxu0
    %6169 = vdwg.mxu0
    %6170 = vmatprep.subr.bf16.mxu0 %v2012
    %6171 = vmatpush1.bf16.msra.mxu0 %v2011
    %6172 = vmatprep.subr.bf16.mxu0 %v2020
    %6173 = vmatpush1.bf16.msra.mxu0 %v2019
    %6174 = vmatprep.subr.bf16.mxu0 %v2028
    %6175 = vmatpush1.bf16.msra.mxu0 %v2027
    %6176 = vmatprep.subr.bf16.mxu0 %v2036
    %6177 = vmatpush1.bf16.msra.mxu0 %v2035
    %6178 = vmatprep.subr.bf16.mxu0 %v2044
    %6179 = vmatpush1.bf16.msra.mxu0 %v2043
    %6180 = vmatprep.subr.bf16.mxu0 %v2052
    %6181 = vmatpush1.bf16.msra.mxu0 %v2051
    %6182 = vmatprep.subr.bf16.mxu0 %v2060
    %6183 = vmatpush1.bf16.msra.mxu0 %v2059
    %6184 = vmatprep.subr.bf16.mxu0 %v2068
    %6185 = vmatpush1.bf16.msra.mxu0 %v2067
    %6186 = vmatprep.subr.bf16.mxu0 %v2076
    %6187 = vmatpush1.bf16.msra.mxu0 %v2075
    %6188 = vmatprep.subr.bf16.mxu0 %v2084
    %6189 = vmatpush1.bf16.msra.mxu0 %v2083
    %6190 = vmatprep.subr.bf16.mxu0 %v2092
    %6191 = vmatpush1.bf16.msra.mxu0 %v2091
    %6192 = vmatprep.subr.bf16.mxu0 %v2100
    %6193 = vmatpush1.bf16.msra.mxu0 %v2099
    %6194 = vmatprep.subr.bf16.mxu0 %v2108
    %6195 = vmatpush1.bf16.msra.mxu0 %v2107
    %6196 = vmatprep.subr.bf16.mxu0 %v2116
    %6197 = vmatpush1.bf16.msra.mxu0 %v2115
    %6198 = vmatprep.subr.bf16.mxu0 %v2124
    %6199 = vmatpush1.bf16.msra.mxu0 %v2123
    %6200 = vmatprep.subr.bf16.mxu0 %v2132
    %6201 = vmatpush1.bf16.msra.mxu0 %v2131
    %6202 = vmatprep.mubr.bf16.mxu0 %v6076
    %6203 = vmatmul.mubr.bf16.gmra.mrb[0].mxu0 %v6075
    %v6204 = vpop.f32.mrb[0].mxu0
    %v6205 = vadd.f32 %v6084, %v6204
    %v6206 = vpop.f32.mrb[0].mxu0
    %v6207 = vadd.f32 %v6085, %v6206
    %v6208 = vpop.f32.mrb[0].mxu0
    %v6209 = vpop.f32.mrb[0].mxu0
    %6210 = vdwg.mxu0
    %6211 = vmatprep.subr.bf16.mxu0 %v2014
    %6212 = vmatpush1.bf16.msra.mxu0 %v2013
    %6213 = vmatprep.subr.bf16.mxu0 %v2022
    %6214 = vmatpush1.bf16.msra.mxu0 %v2021
    %6215 = vmatprep.subr.bf16.mxu0 %v2030
    %6216 = vmatpush1.bf16.msra.mxu0 %v2029
    %6217 = vmatprep.subr.bf16.mxu0 %v2038
    %6218 = vmatpush1.bf16.msra.mxu0 %v2037
    %6219 = vmatprep.subr.bf16.mxu0 %v2046
    %6220 = vmatpush1.bf16.msra.mxu0 %v2045
    %6221 = vmatprep.subr.bf16.mxu0 %v2054
    %6222 = vmatpush1.bf16.msra.mxu0 %v2053
    %6223 = vmatprep.subr.bf16.mxu0 %v2062
    %6224 = vmatpush1.bf16.msra.mxu0 %v2061
    %6225 = vmatprep.subr.bf16.mxu0 %v2070
    %6226 = vmatpush1.bf16.msra.mxu0 %v2069
    %6227 = vmatprep.subr.bf16.mxu0 %v2078
    %6228 = vmatpush1.bf16.msra.mxu0 %v2077
    %6229 = vmatprep.subr.bf16.mxu0 %v2086
    %6230 = vmatpush1.bf16.msra.mxu0 %v2085
    %6231 = vmatprep.subr.bf16.mxu0 %v2094
    %6232 = vmatpush1.bf16.msra.mxu0 %v2093
    %6233 = vmatprep.subr.bf16.mxu0 %v2102
    %6234 = vmatpush1.bf16.msra.mxu0 %v2101
    %6235 = vmatprep.subr.bf16.mxu0 %v2110
    %6236 = vmatpush1.bf16.msra.mxu0 %v2109
    %6237 = vmatprep.subr.bf16.mxu0 %v2118
    %6238 = vmatpush1.bf16.msra.mxu0 %v2117
    %6239 = vmatprep.subr.bf16.mxu0 %v2126
    %6240 = vmatpush1.bf16.msra.mxu0 %v2125
    %6241 = vmatprep.subr.bf16.mxu0 %v2134
    %6242 = vmatpush1.bf16.msra.mxu0 %v2133
    %6243 = vmatprep.mubr.bf16.mxu0 %v6076
    %6244 = vmatmul.mubr.bf16.gmra.mrb[0].mxu0 %v6075
    %v6245 = vpop.f32.mrb[0].mxu0
    %v6246 = vadd.f32 %v6086, %v6245
    %v6247 = vpop.f32.mrb[0].mxu0
    %v6248 = vadd.f32 %v6087, %v6247
    %v6249 = vpop.f32.mrb[0].mxu0
    %v6250 = vpop.f32.mrb[0].mxu0
    %6251 = vdwg.mxu0
    %v6252 = vxor.u32 %v6123, 2147483648
    %v6253 = vxor.u32 %v6125, 2147483648
    %v6254 = vxor.u32 %v6164, 2147483648
    %v6255 = vxor.u32 %v6166, 2147483648
    %v6256 = vxor.u32 %v6205, 2147483648
    %v6257 = vxor.u32 %v6207, 2147483648
    %v6258 = vmul.f32 %v6252, 1.442695
    %v6259 = vpow.pop %v6258
    %v6260 = vmul.f32 %v6253, 1.442695
    %v6261 = vpow.pop %v6260
    %v6262 = vmul.f32 %v6254, 1.442695
    %v6263 = vpow.pop %v6262
    %v6264 = vmul.f32 %v6255, 1.442695
    %v6265 = vpow.pop %v6264
    %v6266 = vmul.f32 %v6256, 1.442695
    %v6267 = vpow.pop %v6266
    %v6268 = vmul.f32 %v6257, 1.442695
    %v6269 = vpow.pop %v6268
    %v6270 = vadd.f32 %v6259, 1.0
    %v6271 = vadd.f32 %v6261, 1.0
    %v6272 = vadd.f32 %v6263, 1.0
    %v6273 = vadd.f32 %v6265, 1.0
    %v6274 = vadd.f32 %v6267, 1.0
    %v6275 = vadd.f32 %v6269, 1.0
    %v6276 = vrcp.pop %v6270
    %v6277 = vmul.f32 1.0, %v6276
    %v6278 = vrcp.pop %v6271
    %v6279 = vmul.f32 1.0, %v6278
    %v6280 = vrcp.pop %v6272
    %v6281 = vmul.f32 1.0, %v6280
    %v6282 = vrcp.pop %v6273
    %v6283 = vmul.f32 1.0, %v6282
    %v6284 = vrcp.pop %v6274
    %v6285 = vmul.f32 1.0, %v6284
    %v6286 = vrcp.pop %v6275
    %v6287 = vmul.f32 1.0, %v6286
    %v6288 = vtanh.pop %v6246
    %v6289 = vtanh.pop %v6248
    %v6290 = vmul.f32 %v6281, %v6069
    %v6291 = vmul.f32 %v6283, %v6070
    %v6292 = vmul.f32 %v6277, %v6288
    %v6293 = vmul.f32 %v6279, %v6289
    %v6294 = vadd.f32 %v6290, %v6292
    %v6295 = vadd.f32 %v6291, %v6293
    %v6296 = vtanh.pop %v6294
    %v6297 = vtanh.pop %v6295
    %v6298 = vmul.f32 %v6285, %v6296
    %v6299 = vmul.f32 %v6287, %v6297
    %v6300 = vpack.c.bf16 %v6298, %v6298
    %v6301 = vpack.c.bf16 %v6299, %v6299
    %s6302 = smul.u32 19, 8
    %s6303 = smul.addr %s6302, 8
    %s6304 = scalar_lea.vmem [#allocation2], %s6303
    %v6305 = vld [vmem:[%s6304] sm:$0x3]
    %v6306 = vld [vmem:[%s6304 + $0x8] sm:$0x3]
    %v6307 = vld [vmem:[%s6304 + $0x10] sm:$0x3]
    %v6308 = vld [vmem:[%s6304 + $0x18] sm:$0x3]
    %v6309 = vld [vmem:[%s6304 + $0x20] sm:$0x3]
    %v6310 = vld [vmem:[%s6304 + $0x28] sm:$0x3]
    %v6311 = vld [vmem:[%s6304 + $0x30] sm:$0x3]
    %v6312 = vld [vmem:[%s6304 + $0x38] sm:$0x3]
    %6313 = vmatprep.subr.bf16.mxu0 %v2008
    %6314 = vmatpush1.bf16.msra.mxu0 %v2007
    %6315 = vmatprep.subr.bf16.mxu0 %v2016
    %6316 = vmatpush1.bf16.msra.mxu0 %v2015
    %6317 = vmatprep.subr.bf16.mxu0 %v2024
    %6318 = vmatpush1.bf16.msra.mxu0 %v2023
    %6319 = vmatprep.subr.bf16.mxu0 %v2032
    %6320 = vmatpush1.bf16.msra.mxu0 %v2031
    %6321 = vmatprep.subr.bf16.mxu0 %v2040
    %6322 = vmatpush1.bf16.msra.mxu0 %v2039
    %6323 = vmatprep.subr.bf16.mxu0 %v2048
    %6324 = vmatpush1.bf16.msra.mxu0 %v2047
    %6325 = vmatprep.subr.bf16.mxu0 %v2056
    %6326 = vmatpush1.bf16.msra.mxu0 %v2055
    %6327 = vmatprep.subr.bf16.mxu0 %v2064
    %6328 = vmatpush1.bf16.msra.mxu0 %v2063
    %6329 = vmatprep.subr.bf16.mxu0 %v2072
    %6330 = vmatpush1.bf16.msra.mxu0 %v2071
    %6331 = vmatprep.subr.bf16.mxu0 %v2080
    %6332 = vmatpush1.bf16.msra.mxu0 %v2079
    %6333 = vmatprep.subr.bf16.mxu0 %v2088
    %6334 = vmatpush1.bf16.msra.mxu0 %v2087
    %6335 = vmatprep.subr.bf16.mxu0 %v2096
    %6336 = vmatpush1.bf16.msra.mxu0 %v2095
    %6337 = vmatprep.subr.bf16.mxu0 %v2104
    %6338 = vmatpush1.bf16.msra.mxu0 %v2103
    %6339 = vmatprep.subr.bf16.mxu0 %v2112
    %6340 = vmatpush1.bf16.msra.mxu0 %v2111
    %6341 = vmatprep.subr.bf16.mxu0 %v2120
    %6342 = vmatpush1.bf16.msra.mxu0 %v2119
    %6343 = vmatprep.subr.bf16.mxu0 %v2128
    %6344 = vmatpush1.bf16.msra.mxu0 %v2127
    %6345 = vmatprep.mubr.bf16.mxu0 %v6301
    %6346 = vmatmul.mubr.bf16.gmra.mrb[0].mxu0 %v6300
    %v6347 = vpop.f32.mrb[0].mxu0
    %v6348 = vadd.f32 %v6305, %v6347
    %v6349 = vpop.f32.mrb[0].mxu0
    %v6350 = vadd.f32 %v6306, %v6349
    %v6351 = vpop.f32.mrb[0].mxu0
    %v6352 = vpop.f32.mrb[0].mxu0
    %6353 = vdwg.mxu0
    %6354 = vmatprep.subr.bf16.mxu0 %v2010
    %6355 = vmatpush1.bf16.msra.mxu0 %v2009
    %6356 = vmatprep.subr.bf16.mxu0 %v2018
    %6357 = vmatpush1.bf16.msra.mxu0 %v2017
    %6358 = vmatprep.subr.bf16.mxu0 %v2026
    %6359 = vmatpush1.bf16.msra.mxu0 %v2025
    %6360 = vmatprep.subr.bf16.mxu0 %v2034
    %6361 = vmatpush1.bf16.msra.mxu0 %v2033
    %6362 = vmatprep.subr.bf16.mxu0 %v2042
    %6363 = vmatpush1.bf16.msra.mxu0 %v2041
    %6364 = vmatprep.subr.bf16.mxu0 %v2050
    %6365 = vmatpush1.bf16.msra.mxu0 %v2049
    %6366 = vmatprep.subr.bf16.mxu0 %v2058
    %6367 = vmatpush1.bf16.msra.mxu0 %v2057
    %6368 = vmatprep.subr.bf16.mxu0 %v2066
    %6369 = vmatpush1.bf16.msra.mxu0 %v2065
    %6370 = vmatprep.subr.bf16.mxu0 %v2074
    %6371 = vmatpush1.bf16.msra.mxu0 %v2073
    %6372 = vmatprep.subr.bf16.mxu0 %v2082
    %6373 = vmatpush1.bf16.msra.mxu0 %v2081
    %6374 = vmatprep.subr.bf16.mxu0 %v2090
    %6375 = vmatpush1.bf16.msra.mxu0 %v2089
    %6376 = vmatprep.subr.bf16.mxu0 %v2098
    %6377 = vmatpush1.bf16.msra.mxu0 %v2097
    %6378 = vmatprep.subr.bf16.mxu0 %v2106
    %6379 = vmatpush1.bf16.msra.mxu0 %v2105
    %6380 = vmatprep.subr.bf16.mxu0 %v2114
    %6381 = vmatpush1.bf16.msra.mxu0 %v2113
    %6382 = vmatprep.subr.bf16.mxu0 %v2122
    %6383 = vmatpush1.bf16.msra.mxu0 %v2121
    %6384 = vmatprep.subr.bf16.mxu0 %v2130
    %6385 = vmatpush1.bf16.msra.mxu0 %v2129
    %6386 = vmatprep.mubr.bf16.mxu0 %v6301
    %6387 = vmatmul.mubr.bf16.gmra.mrb[0].mxu0 %v6300
    %v6388 = vpop.f32.mrb[0].mxu0
    %v6389 = vadd.f32 %v6307, %v6388
    %v6390 = vpop.f32.mrb[0].mxu0
    %v6391 = vadd.f32 %v6308, %v6390
    %v6392 = vpop.f32.mrb[0].mxu0
    %v6393 = vpop.f32.mrb[0].mxu0
    %6394 = vdwg.mxu0
    %6395 = vmatprep.subr.bf16.mxu0 %v2012
    %6396 = vmatpush1.bf16.msra.mxu0 %v2011
    %6397 = vmatprep.subr.bf16.mxu0 %v2020
    %6398 = vmatpush1.bf16.msra.mxu0 %v2019
    %6399 = vmatprep.subr.bf16.mxu0 %v2028
    %6400 = vmatpush1.bf16.msra.mxu0 %v2027
    %6401 = vmatprep.subr.bf16.mxu0 %v2036
    %6402 = vmatpush1.bf16.msra.mxu0 %v2035
    %6403 = vmatprep.subr.bf16.mxu0 %v2044
    %6404 = vmatpush1.bf16.msra.mxu0 %v2043
    %6405 = vmatprep.subr.bf16.mxu0 %v2052
    %6406 = vmatpush1.bf16.msra.mxu0 %v2051
    %6407 = vmatprep.subr.bf16.mxu0 %v2060
    %6408 = vmatpush1.bf16.msra.mxu0 %v2059
    %6409 = vmatprep.subr.bf16.mxu0 %v2068
    %6410 = vmatpush1.bf16.msra.mxu0 %v2067
    %6411 = vmatprep.subr.bf16.mxu0 %v2076
    %6412 = vmatpush1.bf16.msra.mxu0 %v2075
    %6413 = vmatprep.subr.bf16.mxu0 %v2084
    %6414 = vmatpush1.bf16.msra.mxu0 %v2083
    %6415 = vmatprep.subr.bf16.mxu0 %v2092
    %6416 = vmatpush1.bf16.msra.mxu0 %v2091
    %6417 = vmatprep.subr.bf16.mxu0 %v2100
    %6418 = vmatpush1.bf16.msra.mxu0 %v2099
    %6419 = vmatprep.subr.bf16.mxu0 %v2108
    %6420 = vmatpush1.bf16.msra.mxu0 %v2107
    %6421 = vmatprep.subr.bf16.mxu0 %v2116
    %6422 = vmatpush1.bf16.msra.mxu0 %v2115
    %6423 = vmatprep.subr.bf16.mxu0 %v2124
    %6424 = vmatpush1.bf16.msra.mxu0 %v2123
    %6425 = vmatprep.subr.bf16.mxu0 %v2132
    %6426 = vmatpush1.bf16.msra.mxu0 %v2131
    %6427 = vmatprep.mubr.bf16.mxu0 %v6301
    %6428 = vmatmul.mubr.bf16.gmra.mrb[0].mxu0 %v6300
    %v6429 = vpop.f32.mrb[0].mxu0
    %v6430 = vadd.f32 %v6309, %v6429
    %v6431 = vpop.f32.mrb[0].mxu0
    %v6432 = vadd.f32 %v6310, %v6431
    %v6433 = vpop.f32.mrb[0].mxu0
    %v6434 = vpop.f32.mrb[0].mxu0
    %6435 = vdwg.mxu0
    %6436 = vmatprep.subr.bf16.mxu0 %v2014
    %6437 = vmatpush1.bf16.msra.mxu0 %v2013
    %6438 = vmatprep.subr.bf16.mxu0 %v2022
    %6439 = vmatpush1.bf16.msra.mxu0 %v2021
    %6440 = vmatprep.subr.bf16.mxu0 %v2030
    %6441 = vmatpush1.bf16.msra.mxu0 %v2029
    %6442 = vmatprep.subr.bf16.mxu0 %v2038
    %6443 = vmatpush1.bf16.msra.mxu0 %v2037
    %6444 = vmatprep.subr.bf16.mxu0 %v2046
    %6445 = vmatpush1.bf16.msra.mxu0 %v2045
    %6446 = vmatprep.subr.bf16.mxu0 %v2054
    %6447 = vmatpush1.bf16.msra.mxu0 %v2053
    %6448 = vmatprep.subr.bf16.mxu0 %v2062
    %6449 = vmatpush1.bf16.msra.mxu0 %v2061
    %6450 = vmatprep.subr.bf16.mxu0 %v2070
    %6451 = vmatpush1.bf16.msra.mxu0 %v2069
    %6452 = vmatprep.subr.bf16.mxu0 %v2078
    %6453 = vmatpush1.bf16.msra.mxu0 %v2077
    %6454 = vmatprep.subr.bf16.mxu0 %v2086
    %6455 = vmatpush1.bf16.msra.mxu0 %v2085
    %6456 = vmatprep.subr.bf16.mxu0 %v2094
    %6457 = vmatpush1.bf16.msra.mxu0 %v2093
    %6458 = vmatprep.subr.bf16.mxu0 %v2102
    %6459 = vmatpush1.bf16.msra.mxu0 %v2101
    %6460 = vmatprep.subr.bf16.mxu0 %v2110
    %6461 = vmatpush1.bf16.msra.mxu0 %v2109
    %6462 = vmatprep.subr.bf16.mxu0 %v2118
    %6463 = vmatpush1.bf16.msra.mxu0 %v2117
    %6464 = vmatprep.subr.bf16.mxu0 %v2126
    %6465 = vmatpush1.bf16.msra.mxu0 %v2125
    %6466 = vmatprep.subr.bf16.mxu0 %v2134
    %6467 = vmatpush1.bf16.msra.mxu0 %v2133
    %6468 = vmatprep.mubr.bf16.mxu0 %v6301
    %6469 = vmatmul.mubr.bf16.gmra.mrb[0].mxu0 %v6300
    %v6470 = vpop.f32.mrb[0].mxu0
    %v6471 = vadd.f32 %v6311, %v6470
    %v6472 = vpop.f32.mrb[0].mxu0
    %v6473 = vadd.f32 %v6312, %v6472
    %v6474 = vpop.f32.mrb[0].mxu0
    %v6475 = vpop.f32.mrb[0].mxu0
    %6476 = vdwg.mxu0
    %v6477 = vxor.u32 %v6348, 2147483648
    %v6478 = vxor.u32 %v6350, 2147483648
    %v6479 = vxor.u32 %v6389, 2147483648
    %v6480 = vxor.u32 %v6391, 2147483648
    %v6481 = vxor.u32 %v6430, 2147483648
    %v6482 = vxor.u32 %v6432, 2147483648
    %v6483 = vmul.f32 %v6477, 1.442695
    %v6484 = vpow.pop %v6483
    %v6485 = vmul.f32 %v6478, 1.442695
    %v6486 = vpow.pop %v6485
    %v6487 = vmul.f32 %v6479, 1.442695
    %v6488 = vpow.pop %v6487
    %v6489 = vmul.f32 %v6480, 1.442695
    %v6490 = vpow.pop %v6489
    %v6491 = vmul.f32 %v6481, 1.442695
    %v6492 = vpow.pop %v6491
    %v6493 = vmul.f32 %v6482, 1.442695
    %v6494 = vpow.pop %v6493
    %v6495 = vadd.f32 %v6484, 1.0
    %v6496 = vadd.f32 %v6486, 1.0
    %v6497 = vadd.f32 %v6488, 1.0
    %v6498 = vadd.f32 %v6490, 1.0
    %v6499 = vadd.f32 %v6492, 1.0
    %v6500 = vadd.f32 %v6494, 1.0
    %v6501 = vrcp.pop %v6495
    %v6502 = vmul.f32 1.0, %v6501
    %v6503 = vrcp.pop %v6496
    %v6504 = vmul.f32 1.0, %v6503
    %v6505 = vrcp.pop %v6497
    %v6506 = vmul.f32 1.0, %v6505
    %v6507 = vrcp.pop %v6498
    %v6508 = vmul.f32 1.0, %v6507
    %v6509 = vrcp.pop %v6499
    %v6510 = vmul.f32 1.0, %v6509
    %v6511 = vrcp.pop %v6500
    %v6512 = vmul.f32 1.0, %v6511
    %v6513 = vtanh.pop %v6471
    %v6514 = vtanh.pop %v6473
    %v6515 = vmul.f32 %v6506, %v6294
    %v6516 = vmul.f32 %v6508, %v6295
    %v6517 = vmul.f32 %v6502, %v6513
    %v6518 = vmul.f32 %v6504, %v6514
    %v6519 = vadd.f32 %v6515, %v6517
    %v6520 = vadd.f32 %v6516, %v6518
    %v6521 = vtanh.pop %v6519
    %v6522 = vtanh.pop %v6520
    %v6523 = vmul.f32 %v6510, %v6521
    %v6524 = vmul.f32 %v6512, %v6522
    %v6525 = vpack.c.bf16 %v6523, %v6523
    %v6526 = vpack.c.bf16 %v6524, %v6524
    %s6527 = smul.u32 20, 8
    %s6528 = smul.addr %s6527, 8
    %s6529 = scalar_lea.vmem [#allocation2], %s6528
    %v6530 = vld [vmem:[%s6529] sm:$0x3]
    %v6531 = vld [vmem:[%s6529 + $0x8] sm:$0x3]
    %v6532 = vld [vmem:[%s6529 + $0x10] sm:$0x3]
    %v6533 = vld [vmem:[%s6529 + $0x18] sm:$0x3]
    %v6534 = vld [vmem:[%s6529 + $0x20] sm:$0x3]
    %v6535 = vld [vmem:[%s6529 + $0x28] sm:$0x3]
    %v6536 = vld [vmem:[%s6529 + $0x30] sm:$0x3]
    %v6537 = vld [vmem:[%s6529 + $0x38] sm:$0x3]
    %6538 = vmatprep.subr.bf16.mxu0 %v2008
    %6539 = vmatpush1.bf16.msra.mxu0 %v2007
    %6540 = vmatprep.subr.bf16.mxu0 %v2016
    %6541 = vmatpush1.bf16.msra.mxu0 %v2015
    %6542 = vmatprep.subr.bf16.mxu0 %v2024
    %6543 = vmatpush1.bf16.msra.mxu0 %v2023
    %6544 = vmatprep.subr.bf16.mxu0 %v2032
    %6545 = vmatpush1.bf16.msra.mxu0 %v2031
    %6546 = vmatprep.subr.bf16.mxu0 %v2040
    %6547 = vmatpush1.bf16.msra.mxu0 %v2039
    %6548 = vmatprep.subr.bf16.mxu0 %v2048
    %6549 = vmatpush1.bf16.msra.mxu0 %v2047
    %6550 = vmatprep.subr.bf16.mxu0 %v2056
    %6551 = vmatpush1.bf16.msra.mxu0 %v2055
    %6552 = vmatprep.subr.bf16.mxu0 %v2064
    %6553 = vmatpush1.bf16.msra.mxu0 %v2063
    %6554 = vmatprep.subr.bf16.mxu0 %v2072
    %6555 = vmatpush1.bf16.msra.mxu0 %v2071
    %6556 = vmatprep.subr.bf16.mxu0 %v2080
    %6557 = vmatpush1.bf16.msra.mxu0 %v2079
    %6558 = vmatprep.subr.bf16.mxu0 %v2088
    %6559 = vmatpush1.bf16.msra.mxu0 %v2087
    %6560 = vmatprep.subr.bf16.mxu0 %v2096
    %6561 = vmatpush1.bf16.msra.mxu0 %v2095
    %6562 = vmatprep.subr.bf16.mxu0 %v2104
    %6563 = vmatpush1.bf16.msra.mxu0 %v2103
    %6564 = vmatprep.subr.bf16.mxu0 %v2112
    %6565 = vmatpush1.bf16.msra.mxu0 %v2111
    %6566 = vmatprep.subr.bf16.mxu0 %v2120
    %6567 = vmatpush1.bf16.msra.mxu0 %v2119
    %6568 = vmatprep.subr.bf16.mxu0 %v2128
    %6569 = vmatpush1.bf16.msra.mxu0 %v2127
    %6570 = vmatprep.mubr.bf16.mxu0 %v6526
    %6571 = vmatmul.mubr.bf16.gmra.mrb[0].mxu0 %v6525
    %v6572 = vpop.f32.mrb[0].mxu0
    %v6573 = vadd.f32 %v6530, %v6572
    %v6574 = vpop.f32.mrb[0].mxu0
    %v6575 = vadd.f32 %v6531, %v6574
    %v6576 = vpop.f32.mrb[0].mxu0
    %v6577 = vpop.f32.mrb[0].mxu0
    %6578 = vdwg.mxu0
    %6579 = vmatprep.subr.bf16.mxu0 %v2010
    %6580 = vmatpush1.bf16.msra.mxu0 %v2009
    %6581 = vmatprep.subr.bf16.mxu0 %v2018
    %6582 = vmatpush1.bf16.msra.mxu0 %v2017
    %6583 = vmatprep.subr.bf16.mxu0 %v2026
    %6584 = vmatpush1.bf16.msra.mxu0 %v2025
    %6585 = vmatprep.subr.bf16.mxu0 %v2034
    %6586 = vmatpush1.bf16.msra.mxu0 %v2033
    %6587 = vmatprep.subr.bf16.mxu0 %v2042
    %6588 = vmatpush1.bf16.msra.mxu0 %v2041
    %6589 = vmatprep.subr.bf16.mxu0 %v2050
    %6590 = vmatpush1.bf16.msra.mxu0 %v2049
    %6591 = vmatprep.subr.bf16.mxu0 %v2058
    %6592 = vmatpush1.bf16.msra.mxu0 %v2057
    %6593 = vmatprep.subr.bf16.mxu0 %v2066
    %6594 = vmatpush1.bf16.msra.mxu0 %v2065
    %6595 = vmatprep.subr.bf16.mxu0 %v2074
    %6596 = vmatpush1.bf16.msra.mxu0 %v2073
    %6597 = vmatprep.subr.bf16.mxu0 %v2082
    %6598 = vmatpush1.bf16.msra.mxu0 %v2081
    %6599 = vmatprep.subr.bf16.mxu0 %v2090
    %6600 = vmatpush1.bf16.msra.mxu0 %v2089
    %6601 = vmatprep.subr.bf16.mxu0 %v2098
    %6602 = vmatpush1.bf16.msra.mxu0 %v2097
    %6603 = vmatprep.subr.bf16.mxu0 %v2106
    %6604 = vmatpush1.bf16.msra.mxu0 %v2105
    %6605 = vmatprep.subr.bf16.mxu0 %v2114
    %6606 = vmatpush1.bf16.msra.mxu0 %v2113
    %6607 = vmatprep.subr.bf16.mxu0 %v2122
    %6608 = vmatpush1.bf16.msra.mxu0 %v2121
    %6609 = vmatprep.subr.bf16.mxu0 %v2130
    %6610 = vmatpush1.bf16.msra.mxu0 %v2129
    %6611 = vmatprep.mubr.bf16.mxu0 %v6526
    %6612 = vmatmul.mubr.bf16.gmra.mrb[0].mxu0 %v6525
    %v6613 = vpop.f32.mrb[0].mxu0
    %v6614 = vadd.f32 %v6532, %v6613
    %v6615 = vpop.f32.mrb[0].mxu0
    %v6616 = vadd.f32 %v6533, %v6615
    %v6617 = vpop.f32.mrb[0].mxu0
    %v6618 = vpop.f32.mrb[0].mxu0
    %6619 = vdwg.mxu0
    %6620 = vmatprep.subr.bf16.mxu0 %v2012
    %6621 = vmatpush1.bf16.msra.mxu0 %v2011
    %6622 = vmatprep.subr.bf16.mxu0 %v2020
    %6623 = vmatpush1.bf16.msra.mxu0 %v2019
    %6624 = vmatprep.subr.bf16.mxu0 %v2028
    %6625 = vmatpush1.bf16.msra.mxu0 %v2027
    %6626 = vmatprep.subr.bf16.mxu0 %v2036
    %6627 = vmatpush1.bf16.msra.mxu0 %v2035
    %6628 = vmatprep.subr.bf16.mxu0 %v2044
    %6629 = vmatpush1.bf16.msra.mxu0 %v2043
    %6630 = vmatprep.subr.bf16.mxu0 %v2052
    %6631 = vmatpush1.bf16.msra.mxu0 %v2051
    %6632 = vmatprep.subr.bf16.mxu0 %v2060
    %6633 = vmatpush1.bf16.msra.mxu0 %v2059
    %6634 = vmatprep.subr.bf16.mxu0 %v2068
    %6635 = vmatpush1.bf16.msra.mxu0 %v2067
    %6636 = vmatprep.subr.bf16.mxu0 %v2076
    %6637 = vmatpush1.bf16.msra.mxu0 %v2075
    %6638 = vmatprep.subr.bf16.mxu0 %v2084
    %6639 = vmatpush1.bf16.msra.mxu0 %v2083
    %6640 = vmatprep.subr.bf16.mxu0 %v2092
    %6641 = vmatpush1.bf16.msra.mxu0 %v2091
    %6642 = vmatprep.subr.bf16.mxu0 %v2100
    %6643 = vmatpush1.bf16.msra.mxu0 %v2099
    %6644 = vmatprep.subr.bf16.mxu0 %v2108
    %6645 = vmatpush1.bf16.msra.mxu0 %v2107
    %6646 = vmatprep.subr.bf16.mxu0 %v2116
    %6647 = vmatpush1.bf16.msra.mxu0 %v2115
    %6648 = vmatprep.subr.bf16.mxu0 %v2124
    %6649 = vmatpush1.bf16.msra.mxu0 %v2123
    %6650 = vmatprep.subr.bf16.mxu0 %v2132
    %6651 = vmatpush1.bf16.msra.mxu0 %v2131
    %6652 = vmatprep.mubr.bf16.mxu0 %v6526
    %6653 = vmatmul.mubr.bf16.gmra.mrb[0].mxu0 %v6525
    %v6654 = vpop.f32.mrb[0].mxu0
    %v6655 = vadd.f32 %v6534, %v6654
    %v6656 = vpop.f32.mrb[0].mxu0
    %v6657 = vadd.f32 %v6535, %v6656
    %v6658 = vpop.f32.mrb[0].mxu0
    %v6659 = vpop.f32.mrb[0].mxu0
    %6660 = vdwg.mxu0
    %6661 = vmatprep.subr.bf16.mxu0 %v2014
    %6662 = vmatpush1.bf16.msra.mxu0 %v2013
    %6663 = vmatprep.subr.bf16.mxu0 %v2022
    %6664 = vmatpush1.bf16.msra.mxu0 %v2021
    %6665 = vmatprep.subr.bf16.mxu0 %v2030
    %6666 = vmatpush1.bf16.msra.mxu0 %v2029
    %6667 = vmatprep.subr.bf16.mxu0 %v2038
    %6668 = vmatpush1.bf16.msra.mxu0 %v2037
    %6669 = vmatprep.subr.bf16.mxu0 %v2046
    %6670 = vmatpush1.bf16.msra.mxu0 %v2045
    %6671 = vmatprep.subr.bf16.mxu0 %v2054
    %6672 = vmatpush1.bf16.msra.mxu0 %v2053
    %6673 = vmatprep.subr.bf16.mxu0 %v2062
    %6674 = vmatpush1.bf16.msra.mxu0 %v2061
    %6675 = vmatprep.subr.bf16.mxu0 %v2070
    %6676 = vmatpush1.bf16.msra.mxu0 %v2069
    %6677 = vmatprep.subr.bf16.mxu0 %v2078
    %6678 = vmatpush1.bf16.msra.mxu0 %v2077
    %6679 = vmatprep.subr.bf16.mxu0 %v2086
    %6680 = vmatpush1.bf16.msra.mxu0 %v2085
    %6681 = vmatprep.subr.bf16.mxu0 %v2094
    %6682 = vmatpush1.bf16.msra.mxu0 %v2093
    %6683 = vmatprep.subr.bf16.mxu0 %v2102
    %6684 = vmatpush1.bf16.msra.mxu0 %v2101
    %6685 = vmatprep.subr.bf16.mxu0 %v2110
    %6686 = vmatpush1.bf16.msra.mxu0 %v2109
    %6687 = vmatprep.subr.bf16.mxu0 %v2118
    %6688 = vmatpush1.bf16.msra.mxu0 %v2117
    %6689 = vmatprep.subr.bf16.mxu0 %v2126
    %6690 = vmatpush1.bf16.msra.mxu0 %v2125
    %6691 = vmatprep.subr.bf16.mxu0 %v2134
    %6692 = vmatpush1.bf16.msra.mxu0 %v2133
    %6693 = vmatprep.mubr.bf16.mxu0 %v6526
    %6694 = vmatmul.mubr.bf16.gmra.mrb[0].mxu0 %v6525
    %v6695 = vpop.f32.mrb[0].mxu0
    %v6696 = vadd.f32 %v6536, %v6695
    %v6697 = vpop.f32.mrb[0].mxu0
    %v6698 = vadd.f32 %v6537, %v6697
    %v6699 = vpop.f32.mrb[0].mxu0
    %v6700 = vpop.f32.mrb[0].mxu0
    %6701 = vdwg.mxu0
    %v6702 = vxor.u32 %v6573, 2147483648
    %v6703 = vxor.u32 %v6575, 2147483648
    %v6704 = vxor.u32 %v6614, 2147483648
    %v6705 = vxor.u32 %v6616, 2147483648
    %v6706 = vxor.u32 %v6655, 2147483648
    %v6707 = vxor.u32 %v6657, 2147483648
    %v6708 = vmul.f32 %v6702, 1.442695
    %v6709 = vpow.pop %v6708
    %v6710 = vmul.f32 %v6703, 1.442695
    %v6711 = vpow.pop %v6710
    %v6712 = vmul.f32 %v6704, 1.442695
    %v6713 = vpow.pop %v6712
    %v6714 = vmul.f32 %v6705, 1.442695
    %v6715 = vpow.pop %v6714
    %v6716 = vmul.f32 %v6706, 1.442695
    %v6717 = vpow.pop %v6716
    %v6718 = vmul.f32 %v6707, 1.442695
    %v6719 = vpow.pop %v6718
    %v6720 = vadd.f32 %v6709, 1.0
    %v6721 = vadd.f32 %v6711, 1.0
    %v6722 = vadd.f32 %v6713, 1.0
    %v6723 = vadd.f32 %v6715, 1.0
    %v6724 = vadd.f32 %v6717, 1.0
    %v6725 = vadd.f32 %v6719, 1.0
    %v6726 = vrcp.pop %v6720
    %v6727 = vmul.f32 1.0, %v6726
    %v6728 = vrcp.pop %v6721
    %v6729 = vmul.f32 1.0, %v6728
    %v6730 = vrcp.pop %v6722
    %v6731 = vmul.f32 1.0, %v6730
    %v6732 = vrcp.pop %v6723
    %v6733 = vmul.f32 1.0, %v6732
    %v6734 = vrcp.pop %v6724
    %v6735 = vmul.f32 1.0, %v6734
    %v6736 = vrcp.pop %v6725
    %v6737 = vmul.f32 1.0, %v6736
    %v6738 = vtanh.pop %v6696
    %v6739 = vtanh.pop %v6698
    %v6740 = vmul.f32 %v6731, %v6519
    %v6741 = vmul.f32 %v6733, %v6520
    %v6742 = vmul.f32 %v6727, %v6738
    %v6743 = vmul.f32 %v6729, %v6739
    %v6744 = vadd.f32 %v6740, %v6742
    %v6745 = vadd.f32 %v6741, %v6743
    %v6746 = vtanh.pop %v6744
    %v6747 = vtanh.pop %v6745
    %v6748 = vmul.f32 %v6735, %v6746
    %v6749 = vmul.f32 %v6737, %v6747
    %v6750 = vpack.c.bf16 %v6748, %v6748
    %v6751 = vpack.c.bf16 %v6749, %v6749
    %s6752 = smul.u32 21, 8
    %s6753 = smul.addr %s6752, 8
    %s6754 = scalar_lea.vmem [#allocation2], %s6753
    %v6755 = vld [vmem:[%s6754] sm:$0x3]
    %v6756 = vld [vmem:[%s6754 + $0x8] sm:$0x3]
    %v6757 = vld [vmem:[%s6754 + $0x10] sm:$0x3]
    %v6758 = vld [vmem:[%s6754 + $0x18] sm:$0x3]
    %v6759 = vld [vmem:[%s6754 + $0x20] sm:$0x3]
    %v6760 = vld [vmem:[%s6754 + $0x28] sm:$0x3]
    %v6761 = vld [vmem:[%s6754 + $0x30] sm:$0x3]
    %v6762 = vld [vmem:[%s6754 + $0x38] sm:$0x3]
    %6763 = vmatprep.subr.bf16.mxu0 %v2008
    %6764 = vmatpush1.bf16.msra.mxu0 %v2007
    %6765 = vmatprep.subr.bf16.mxu0 %v2016
    %6766 = vmatpush1.bf16.msra.mxu0 %v2015
    %6767 = vmatprep.subr.bf16.mxu0 %v2024
    %6768 = vmatpush1.bf16.msra.mxu0 %v2023
    %6769 = vmatprep.subr.bf16.mxu0 %v2032
    %6770 = vmatpush1.bf16.msra.mxu0 %v2031
    %6771 = vmatprep.subr.bf16.mxu0 %v2040
    %6772 = vmatpush1.bf16.msra.mxu0 %v2039
    %6773 = vmatprep.subr.bf16.mxu0 %v2048
    %6774 = vmatpush1.bf16.msra.mxu0 %v2047
    %6775 = vmatprep.subr.bf16.mxu0 %v2056
    %6776 = vmatpush1.bf16.msra.mxu0 %v2055
    %6777 = vmatprep.subr.bf16.mxu0 %v2064
    %6778 = vmatpush1.bf16.msra.mxu0 %v2063
    %6779 = vmatprep.subr.bf16.mxu0 %v2072
    %6780 = vmatpush1.bf16.msra.mxu0 %v2071
    %6781 = vmatprep.subr.bf16.mxu0 %v2080
    %6782 = vmatpush1.bf16.msra.mxu0 %v2079
    %6783 = vmatprep.subr.bf16.mxu0 %v2088
    %6784 = vmatpush1.bf16.msra.mxu0 %v2087
    %6785 = vmatprep.subr.bf16.mxu0 %v2096
    %6786 = vmatpush1.bf16.msra.mxu0 %v2095
    %6787 = vmatprep.subr.bf16.mxu0 %v2104
    %6788 = vmatpush1.bf16.msra.mxu0 %v2103
    %6789 = vmatprep.subr.bf16.mxu0 %v2112
    %6790 = vmatpush1.bf16.msra.mxu0 %v2111
    %6791 = vmatprep.subr.bf16.mxu0 %v2120
    %6792 = vmatpush1.bf16.msra.mxu0 %v2119
    %6793 = vmatprep.subr.bf16.mxu0 %v2128
    %6794 = vmatpush1.bf16.msra.mxu0 %v2127
    %6795 = vmatprep.mubr.bf16.mxu0 %v6751
    %6796 = vmatmul.mubr.bf16.gmra.mrb[0].mxu0 %v6750
    %v6797 = vpop.f32.mrb[0].mxu0
    %v6798 = vadd.f32 %v6755, %v6797
    %v6799 = vpop.f32.mrb[0].mxu0
    %v6800 = vadd.f32 %v6756, %v6799
    %v6801 = vpop.f32.mrb[0].mxu0
    %v6802 = vpop.f32.mrb[0].mxu0
    %6803 = vdwg.mxu0
    %6804 = vmatprep.subr.bf16.mxu0 %v2010
    %6805 = vmatpush1.bf16.msra.mxu0 %v2009
    %6806 = vmatprep.subr.bf16.mxu0 %v2018
    %6807 = vmatpush1.bf16.msra.mxu0 %v2017
    %6808 = vmatprep.subr.bf16.mxu0 %v2026
    %6809 = vmatpush1.bf16.msra.mxu0 %v2025
    %6810 = vmatprep.subr.bf16.mxu0 %v2034
    %6811 = vmatpush1.bf16.msra.mxu0 %v2033
    %6812 = vmatprep.subr.bf16.mxu0 %v2042
    %6813 = vmatpush1.bf16.msra.mxu0 %v2041
    %6814 = vmatprep.subr.bf16.mxu0 %v2050
    %6815 = vmatpush1.bf16.msra.mxu0 %v2049
    %6816 = vmatprep.subr.bf16.mxu0 %v2058
    %6817 = vmatpush1.bf16.msra.mxu0 %v2057
    %6818 = vmatprep.subr.bf16.mxu0 %v2066
    %6819 = vmatpush1.bf16.msra.mxu0 %v2065
    %6820 = vmatprep.subr.bf16.mxu0 %v2074
    %6821 = vmatpush1.bf16.msra.mxu0 %v2073
    %6822 = vmatprep.subr.bf16.mxu0 %v2082
    %6823 = vmatpush1.bf16.msra.mxu0 %v2081
    %6824 = vmatprep.subr.bf16.mxu0 %v2090
    %6825 = vmatpush1.bf16.msra.mxu0 %v2089
    %6826 = vmatprep.subr.bf16.mxu0 %v2098
    %6827 = vmatpush1.bf16.msra.mxu0 %v2097
    %6828 = vmatprep.subr.bf16.mxu0 %v2106
    %6829 = vmatpush1.bf16.msra.mxu0 %v2105
    %6830 = vmatprep.subr.bf16.mxu0 %v2114
    %6831 = vmatpush1.bf16.msra.mxu0 %v2113
    %6832 = vmatprep.subr.bf16.mxu0 %v2122
    %6833 = vmatpush1.bf16.msra.mxu0 %v2121
    %6834 = vmatprep.subr.bf16.mxu0 %v2130
    %6835 = vmatpush1.bf16.msra.mxu0 %v2129
    %6836 = vmatprep.mubr.bf16.mxu0 %v6751
    %6837 = vmatmul.mubr.bf16.gmra.mrb[0].mxu0 %v6750
    %v6838 = vpop.f32.mrb[0].mxu0
    %v6839 = vadd.f32 %v6757, %v6838
    %v6840 = vpop.f32.mrb[0].mxu0
    %v6841 = vadd.f32 %v6758, %v6840
    %v6842 = vpop.f32.mrb[0].mxu0
    %v6843 = vpop.f32.mrb[0].mxu0
    %6844 = vdwg.mxu0
    %6845 = vmatprep.subr.bf16.mxu0 %v2012
    %6846 = vmatpush1.bf16.msra.mxu0 %v2011
    %6847 = vmatprep.subr.bf16.mxu0 %v2020
    %6848 = vmatpush1.bf16.msra.mxu0 %v2019
    %6849 = vmatprep.subr.bf16.mxu0 %v2028
    %6850 = vmatpush1.bf16.msra.mxu0 %v2027
    %6851 = vmatprep.subr.bf16.mxu0 %v2036
    %6852 = vmatpush1.bf16.msra.mxu0 %v2035
    %6853 = vmatprep.subr.bf16.mxu0 %v2044
    %6854 = vmatpush1.bf16.msra.mxu0 %v2043
    %6855 = vmatprep.subr.bf16.mxu0 %v2052
    %6856 = vmatpush1.bf16.msra.mxu0 %v2051
    %6857 = vmatprep.subr.bf16.mxu0 %v2060
    %6858 = vmatpush1.bf16.msra.mxu0 %v2059
    %6859 = vmatprep.subr.bf16.mxu0 %v2068
    %6860 = vmatpush1.bf16.msra.mxu0 %v2067
    %6861 = vmatprep.subr.bf16.mxu0 %v2076
    %6862 = vmatpush1.bf16.msra.mxu0 %v2075
    %6863 = vmatprep.subr.bf16.mxu0 %v2084
    %6864 = vmatpush1.bf16.msra.mxu0 %v2083
    %6865 = vmatprep.subr.bf16.mxu0 %v2092
    %6866 = vmatpush1.bf16.msra.mxu0 %v2091
    %6867 = vmatprep.subr.bf16.mxu0 %v2100
    %6868 = vmatpush1.bf16.msra.mxu0 %v2099
    %6869 = vmatprep.subr.bf16.mxu0 %v2108
    %6870 = vmatpush1.bf16.msra.mxu0 %v2107
    %6871 = vmatprep.subr.bf16.mxu0 %v2116
    %6872 = vmatpush1.bf16.msra.mxu0 %v2115
    %6873 = vmatprep.subr.bf16.mxu0 %v2124
    %6874 = vmatpush1.bf16.msra.mxu0 %v2123
    %6875 = vmatprep.subr.bf16.mxu0 %v2132
    %6876 = vmatpush1.bf16.msra.mxu0 %v2131
    %6877 = vmatprep.mubr.bf16.mxu0 %v6751
    %6878 = vmatmul.mubr.bf16.gmra.mrb[0].mxu0 %v6750
    %v6879 = vpop.f32.mrb[0].mxu0
    %v6880 = vadd.f32 %v6759, %v6879
    %v6881 = vpop.f32.mrb[0].mxu0
    %v6882 = vadd.f32 %v6760, %v6881
    %v6883 = vpop.f32.mrb[0].mxu0
    %v6884 = vpop.f32.mrb[0].mxu0
    %6885 = vdwg.mxu0
    %6886 = vmatprep.subr.bf16.mxu0 %v2014
    %6887 = vmatpush1.bf16.msra.mxu0 %v2013
    %6888 = vmatprep.subr.bf16.mxu0 %v2022
    %6889 = vmatpush1.bf16.msra.mxu0 %v2021
    %6890 = vmatprep.subr.bf16.mxu0 %v2030
    %6891 = vmatpush1.bf16.msra.mxu0 %v2029
    %6892 = vmatprep.subr.bf16.mxu0 %v2038
    %6893 = vmatpush1.bf16.msra.mxu0 %v2037
    %6894 = vmatprep.subr.bf16.mxu0 %v2046
    %6895 = vmatpush1.bf16.msra.mxu0 %v2045
    %6896 = vmatprep.subr.bf16.mxu0 %v2054
    %6897 = vmatpush1.bf16.msra.mxu0 %v2053
    %6898 = vmatprep.subr.bf16.mxu0 %v2062
    %6899 = vmatpush1.bf16.msra.mxu0 %v2061
    %6900 = vmatprep.subr.bf16.mxu0 %v2070
    %6901 = vmatpush1.bf16.msra.mxu0 %v2069
    %6902 = vmatprep.subr.bf16.mxu0 %v2078
    %6903 = vmatpush1.bf16.msra.mxu0 %v2077
    %6904 = vmatprep.subr.bf16.mxu0 %v2086
    %6905 = vmatpush1.bf16.msra.mxu0 %v2085
    %6906 = vmatprep.subr.bf16.mxu0 %v2094
    %6907 = vmatpush1.bf16.msra.mxu0 %v2093
    %6908 = vmatprep.subr.bf16.mxu0 %v2102
    %6909 = vmatpush1.bf16.msra.mxu0 %v2101
    %6910 = vmatprep.subr.bf16.mxu0 %v2110
    %6911 = vmatpush1.bf16.msra.mxu0 %v2109
    %6912 = vmatprep.subr.bf16.mxu0 %v2118
    %6913 = vmatpush1.bf16.msra.mxu0 %v2117
    %6914 = vmatprep.subr.bf16.mxu0 %v2126
    %6915 = vmatpush1.bf16.msra.mxu0 %v2125
    %6916 = vmatprep.subr.bf16.mxu0 %v2134
    %6917 = vmatpush1.bf16.msra.mxu0 %v2133
    %6918 = vmatprep.mubr.bf16.mxu0 %v6751
    %6919 = vmatmul.mubr.bf16.gmra.mrb[0].mxu0 %v6750
    %v6920 = vpop.f32.mrb[0].mxu0
    %v6921 = vadd.f32 %v6761, %v6920
    %v6922 = vpop.f32.mrb[0].mxu0
    %v6923 = vadd.f32 %v6762, %v6922
    %v6924 = vpop.f32.mrb[0].mxu0
    %v6925 = vpop.f32.mrb[0].mxu0
    %6926 = vdwg.mxu0
    %v6927 = vxor.u32 %v6798, 2147483648
    %v6928 = vxor.u32 %v6800, 2147483648
    %v6929 = vxor.u32 %v6839, 2147483648
    %v6930 = vxor.u32 %v6841, 2147483648
    %v6931 = vxor.u32 %v6880, 2147483648
    %v6932 = vxor.u32 %v6882, 2147483648
    %v6933 = vmul.f32 %v6927, 1.442695
    %v6934 = vpow.pop %v6933
    %v6935 = vmul.f32 %v6928, 1.442695
    %v6936 = vpow.pop %v6935
    %v6937 = vmul.f32 %v6929, 1.442695
    %v6938 = vpow.pop %v6937
    %v6939 = vmul.f32 %v6930, 1.442695
    %v6940 = vpow.pop %v6939
    %v6941 = vmul.f32 %v6931, 1.442695
    %v6942 = vpow.pop %v6941
    %v6943 = vmul.f32 %v6932, 1.442695
    %v6944 = vpow.pop %v6943
    %v6945 = vadd.f32 %v6934, 1.0
    %v6946 = vadd.f32 %v6936, 1.0
    %v6947 = vadd.f32 %v6938, 1.0
    %v6948 = vadd.f32 %v6940, 1.0
    %v6949 = vadd.f32 %v6942, 1.0
    %v6950 = vadd.f32 %v6944, 1.0
    %v6951 = vrcp.pop %v6945
    %v6952 = vmul.f32 1.0, %v6951
    %v6953 = vrcp.pop %v6946
    %v6954 = vmul.f32 1.0, %v6953
    %v6955 = vrcp.pop %v6947
    %v6956 = vmul.f32 1.0, %v6955
    %v6957 = vrcp.pop %v6948
    %v6958 = vmul.f32 1.0, %v6957
    %v6959 = vrcp.pop %v6949
    %v6960 = vmul.f32 1.0, %v6959
    %v6961 = vrcp.pop %v6950
    %v6962 = vmul.f32 1.0, %v6961
    %v6963 = vtanh.pop %v6921
    %v6964 = vtanh.pop %v6923
    %v6965 = vmul.f32 %v6956, %v6744
    %v6966 = vmul.f32 %v6958, %v6745
    %v6967 = vmul.f32 %v6952, %v6963
    %v6968 = vmul.f32 %v6954, %v6964
    %v6969 = vadd.f32 %v6965, %v6967
    %v6970 = vadd.f32 %v6966, %v6968
    %v6971 = vtanh.pop %v6969
    %v6972 = vtanh.pop %v6970
    %v6973 = vmul.f32 %v6960, %v6971
    %v6974 = vmul.f32 %v6962, %v6972
    %v6975 = vpack.c.bf16 %v6973, %v6973
    %v6976 = vpack.c.bf16 %v6974, %v6974
    %s6977 = smul.u32 22, 8
    %s6978 = smul.addr %s6977, 8
    %s6979 = scalar_lea.vmem [#allocation2], %s6978
    %v6980 = vld [vmem:[%s6979] sm:$0x3]
    %v6981 = vld [vmem:[%s6979 + $0x8] sm:$0x3]
    %v6982 = vld [vmem:[%s6979 + $0x10] sm:$0x3]
    %v6983 = vld [vmem:[%s6979 + $0x18] sm:$0x3]
    %v6984 = vld [vmem:[%s6979 + $0x20] sm:$0x3]
    %v6985 = vld [vmem:[%s6979 + $0x28] sm:$0x3]
    %v6986 = vld [vmem:[%s6979 + $0x30] sm:$0x3]
    %v6987 = vld [vmem:[%s6979 + $0x38] sm:$0x3]
    %6988 = vmatprep.subr.bf16.mxu0 %v2008
    %6989 = vmatpush1.bf16.msra.mxu0 %v2007
    %6990 = vmatprep.subr.bf16.mxu0 %v2016
    %6991 = vmatpush1.bf16.msra.mxu0 %v2015
    %6992 = vmatprep.subr.bf16.mxu0 %v2024
    %6993 = vmatpush1.bf16.msra.mxu0 %v2023
    %6994 = vmatprep.subr.bf16.mxu0 %v2032
    %6995 = vmatpush1.bf16.msra.mxu0 %v2031
    %6996 = vmatprep.subr.bf16.mxu0 %v2040
    %6997 = vmatpush1.bf16.msra.mxu0 %v2039
    %6998 = vmatprep.subr.bf16.mxu0 %v2048
    %6999 = vmatpush1.bf16.msra.mxu0 %v2047
    %7000 = vmatprep.subr.bf16.mxu0 %v2056
    %7001 = vmatpush1.bf16.msra.mxu0 %v2055
    %7002 = vmatprep.subr.bf16.mxu0 %v2064
    %7003 = vmatpush1.bf16.msra.mxu0 %v2063
    %7004 = vmatprep.subr.bf16.mxu0 %v2072
    %7005 = vmatpush1.bf16.msra.mxu0 %v2071
    %7006 = vmatprep.subr.bf16.mxu0 %v2080
    %7007 = vmatpush1.bf16.msra.mxu0 %v2079
    %7008 = vmatprep.subr.bf16.mxu0 %v2088
    %7009 = vmatpush1.bf16.msra.mxu0 %v2087
    %7010 = vmatprep.subr.bf16.mxu0 %v2096
    %7011 = vmatpush1.bf16.msra.mxu0 %v2095
    %7012 = vmatprep.subr.bf16.mxu0 %v2104
    %7013 = vmatpush1.bf16.msra.mxu0 %v2103
    %7014 = vmatprep.subr.bf16.mxu0 %v2112
    %7015 = vmatpush1.bf16.msra.mxu0 %v2111
    %7016 = vmatprep.subr.bf16.mxu0 %v2120
    %7017 = vmatpush1.bf16.msra.mxu0 %v2119
    %7018 = vmatprep.subr.bf16.mxu0 %v2128
    %7019 = vmatpush1.bf16.msra.mxu0 %v2127
    %7020 = vmatprep.mubr.bf16.mxu0 %v6976
    %7021 = vmatmul.mubr.bf16.gmra.mrb[0].mxu0 %v6975
    %v7022 = vpop.f32.mrb[0].mxu0
    %v7023 = vadd.f32 %v6980, %v7022
    %v7024 = vpop.f32.mrb[0].mxu0
    %v7025 = vadd.f32 %v6981, %v7024
    %v7026 = vpop.f32.mrb[0].mxu0
    %v7027 = vpop.f32.mrb[0].mxu0
    %7028 = vdwg.mxu0
    %7029 = vmatprep.subr.bf16.mxu0 %v2010
    %7030 = vmatpush1.bf16.msra.mxu0 %v2009
    %7031 = vmatprep.subr.bf16.mxu0 %v2018
    %7032 = vmatpush1.bf16.msra.mxu0 %v2017
    %7033 = vmatprep.subr.bf16.mxu0 %v2026
    %7034 = vmatpush1.bf16.msra.mxu0 %v2025
    %7035 = vmatprep.subr.bf16.mxu0 %v2034
    %7036 = vmatpush1.bf16.msra.mxu0 %v2033
    %7037 = vmatprep.subr.bf16.mxu0 %v2042
    %7038 = vmatpush1.bf16.msra.mxu0 %v2041
    %7039 = vmatprep.subr.bf16.mxu0 %v2050
    %7040 = vmatpush1.bf16.msra.mxu0 %v2049
    %7041 = vmatprep.subr.bf16.mxu0 %v2058
    %7042 = vmatpush1.bf16.msra.mxu0 %v2057
    %7043 = vmatprep.subr.bf16.mxu0 %v2066
    %7044 = vmatpush1.bf16.msra.mxu0 %v2065
    %7045 = vmatprep.subr.bf16.mxu0 %v2074
    %7046 = vmatpush1.bf16.msra.mxu0 %v2073
    %7047 = vmatprep.subr.bf16.mxu0 %v2082
    %7048 = vmatpush1.bf16.msra.mxu0 %v2081
    %7049 = vmatprep.subr.bf16.mxu0 %v2090
    %7050 = vmatpush1.bf16.msra.mxu0 %v2089
    %7051 = vmatprep.subr.bf16.mxu0 %v2098
    %7052 = vmatpush1.bf16.msra.mxu0 %v2097
    %7053 = vmatprep.subr.bf16.mxu0 %v2106
    %7054 = vmatpush1.bf16.msra.mxu0 %v2105
    %7055 = vmatprep.subr.bf16.mxu0 %v2114
    %7056 = vmatpush1.bf16.msra.mxu0 %v2113
    %7057 = vmatprep.subr.bf16.mxu0 %v2122
    %7058 = vmatpush1.bf16.msra.mxu0 %v2121
    %7059 = vmatprep.subr.bf16.mxu0 %v2130
    %7060 = vmatpush1.bf16.msra.mxu0 %v2129
    %7061 = vmatprep.mubr.bf16.mxu0 %v6976
    %7062 = vmatmul.mubr.bf16.gmra.mrb[0].mxu0 %v6975
    %v7063 = vpop.f32.mrb[0].mxu0
    %v7064 = vadd.f32 %v6982, %v7063
    %v7065 = vpop.f32.mrb[0].mxu0
    %v7066 = vadd.f32 %v6983, %v7065
    %v7067 = vpop.f32.mrb[0].mxu0
    %v7068 = vpop.f32.mrb[0].mxu0
    %7069 = vdwg.mxu0
    %7070 = vmatprep.subr.bf16.mxu0 %v2012
    %7071 = vmatpush1.bf16.msra.mxu0 %v2011
    %7072 = vmatprep.subr.bf16.mxu0 %v2020
    %7073 = vmatpush1.bf16.msra.mxu0 %v2019
    %7074 = vmatprep.subr.bf16.mxu0 %v2028
    %7075 = vmatpush1.bf16.msra.mxu0 %v2027
    %7076 = vmatprep.subr.bf16.mxu0 %v2036
    %7077 = vmatpush1.bf16.msra.mxu0 %v2035
    %7078 = vmatprep.subr.bf16.mxu0 %v2044
    %7079 = vmatpush1.bf16.msra.mxu0 %v2043
    %7080 = vmatprep.subr.bf16.mxu0 %v2052
    %7081 = vmatpush1.bf16.msra.mxu0 %v2051
    %7082 = vmatprep.subr.bf16.mxu0 %v2060
    %7083 = vmatpush1.bf16.msra.mxu0 %v2059
    %7084 = vmatprep.subr.bf16.mxu0 %v2068
    %7085 = vmatpush1.bf16.msra.mxu0 %v2067
    %7086 = vmatprep.subr.bf16.mxu0 %v2076
    %7087 = vmatpush1.bf16.msra.mxu0 %v2075
    %7088 = vmatprep.subr.bf16.mxu0 %v2084
    %7089 = vmatpush1.bf16.msra.mxu0 %v2083
    %7090 = vmatprep.subr.bf16.mxu0 %v2092
    %7091 = vmatpush1.bf16.msra.mxu0 %v2091
    %7092 = vmatprep.subr.bf16.mxu0 %v2100
    %7093 = vmatpush1.bf16.msra.mxu0 %v2099
    %7094 = vmatprep.subr.bf16.mxu0 %v2108
    %7095 = vmatpush1.bf16.msra.mxu0 %v2107
    %7096 = vmatprep.subr.bf16.mxu0 %v2116
    %7097 = vmatpush1.bf16.msra.mxu0 %v2115
    %7098 = vmatprep.subr.bf16.mxu0 %v2124
    %7099 = vmatpush1.bf16.msra.mxu0 %v2123
    %7100 = vmatprep.subr.bf16.mxu0 %v2132
    %7101 = vmatpush1.bf16.msra.mxu0 %v2131
    %7102 = vmatprep.mubr.bf16.mxu0 %v6976
    %7103 = vmatmul.mubr.bf16.gmra.mrb[0].mxu0 %v6975
    %v7104 = vpop.f32.mrb[0].mxu0
    %v7105 = vadd.f32 %v6984, %v7104
    %v7106 = vpop.f32.mrb[0].mxu0
    %v7107 = vadd.f32 %v6985, %v7106
    %v7108 = vpop.f32.mrb[0].mxu0
    %v7109 = vpop.f32.mrb[0].mxu0
    %7110 = vdwg.mxu0
    %7111 = vmatprep.subr.bf16.mxu0 %v2014
    %7112 = vmatpush1.bf16.msra.mxu0 %v2013
    %7113 = vmatprep.subr.bf16.mxu0 %v2022
    %7114 = vmatpush1.bf16.msra.mxu0 %v2021
    %7115 = vmatprep.subr.bf16.mxu0 %v2030
    %7116 = vmatpush1.bf16.msra.mxu0 %v2029
    %7117 = vmatprep.subr.bf16.mxu0 %v2038
    %7118 = vmatpush1.bf16.msra.mxu0 %v2037
    %7119 = vmatprep.subr.bf16.mxu0 %v2046
    %7120 = vmatpush1.bf16.msra.mxu0 %v2045
    %7121 = vmatprep.subr.bf16.mxu0 %v2054
    %7122 = vmatpush1.bf16.msra.mxu0 %v2053
    %7123 = vmatprep.subr.bf16.mxu0 %v2062
    %7124 = vmatpush1.bf16.msra.mxu0 %v2061
    %7125 = vmatprep.subr.bf16.mxu0 %v2070
    %7126 = vmatpush1.bf16.msra.mxu0 %v2069
    %7127 = vmatprep.subr.bf16.mxu0 %v2078
    %7128 = vmatpush1.bf16.msra.mxu0 %v2077
    %7129 = vmatprep.subr.bf16.mxu0 %v2086
    %7130 = vmatpush1.bf16.msra.mxu0 %v2085
    %7131 = vmatprep.subr.bf16.mxu0 %v2094
    %7132 = vmatpush1.bf16.msra.mxu0 %v2093
    %7133 = vmatprep.subr.bf16.mxu0 %v2102
    %7134 = vmatpush1.bf16.msra.mxu0 %v2101
    %7135 = vmatprep.subr.bf16.mxu0 %v2110
    %7136 = vmatpush1.bf16.msra.mxu0 %v2109
    %7137 = vmatprep.subr.bf16.mxu0 %v2118
    %7138 = vmatpush1.bf16.msra.mxu0 %v2117
    %7139 = vmatprep.subr.bf16.mxu0 %v2126
    %7140 = vmatpush1.bf16.msra.mxu0 %v2125
    %7141 = vmatprep.subr.bf16.mxu0 %v2134
    %7142 = vmatpush1.bf16.msra.mxu0 %v2133
    %7143 = vmatprep.mubr.bf16.mxu0 %v6976
    %7144 = vmatmul.mubr.bf16.gmra.mrb[0].mxu0 %v6975
    %v7145 = vpop.f32.mrb[0].mxu0
    %v7146 = vadd.f32 %v6986, %v7145
    %v7147 = vpop.f32.mrb[0].mxu0
    %v7148 = vadd.f32 %v6987, %v7147
    %v7149 = vpop.f32.mrb[0].mxu0
    %v7150 = vpop.f32.mrb[0].mxu0
    %7151 = vdwg.mxu0
    %v7152 = vxor.u32 %v7023, 2147483648
    %v7153 = vxor.u32 %v7025, 2147483648
    %v7154 = vxor.u32 %v7064, 2147483648
    %v7155 = vxor.u32 %v7066, 2147483648
    %v7156 = vxor.u32 %v7105, 2147483648
    %v7157 = vxor.u32 %v7107, 2147483648
    %v7158 = vmul.f32 %v7152, 1.442695
    %v7159 = vpow.pop %v7158
    %v7160 = vmul.f32 %v7153, 1.442695
    %v7161 = vpow.pop %v7160
    %v7162 = vmul.f32 %v7154, 1.442695
    %v7163 = vpow.pop %v7162
    %v7164 = vmul.f32 %v7155, 1.442695
    %v7165 = vpow.pop %v7164
    %v7166 = vmul.f32 %v7156, 1.442695
    %v7167 = vpow.pop %v7166
    %v7168 = vmul.f32 %v7157, 1.442695
    %v7169 = vpow.pop %v7168
    %v7170 = vadd.f32 %v7159, 1.0
    %v7171 = vadd.f32 %v7161, 1.0
    %v7172 = vadd.f32 %v7163, 1.0
    %v7173 = vadd.f32 %v7165, 1.0
    %v7174 = vadd.f32 %v7167, 1.0
    %v7175 = vadd.f32 %v7169, 1.0
    %v7176 = vrcp.pop %v7170
    %v7177 = vmul.f32 1.0, %v7176
    %v7178 = vrcp.pop %v7171
    %v7179 = vmul.f32 1.0, %v7178
    %v7180 = vrcp.pop %v7172
    %v7181 = vmul.f32 1.0, %v7180
    %v7182 = vrcp.pop %v7173
    %v7183 = vmul.f32 1.0, %v7182
    %v7184 = vrcp.pop %v7174
    %v7185 = vmul.f32 1.0, %v7184
    %v7186 = vrcp.pop %v7175
    %v7187 = vmul.f32 1.0, %v7186
    %v7188 = vtanh.pop %v7146
    %v7189 = vtanh.pop %v7148
    %v7190 = vmul.f32 %v7181, %v6969
    %v7191 = vmul.f32 %v7183, %v6970
    %v7192 = vmul.f32 %v7177, %v7188
    %v7193 = vmul.f32 %v7179, %v7189
    %v7194 = vadd.f32 %v7190, %v7192
    %v7195 = vadd.f32 %v7191, %v7193
    %v7196 = vtanh.pop %v7194
    %v7197 = vtanh.pop %v7195
    %v7198 = vmul.f32 %v7185, %v7196
    %v7199 = vmul.f32 %v7187, %v7197
    %v7200 = vpack.c.bf16 %v7198, %v7198
    %v7201 = vpack.c.bf16 %v7199, %v7199
    %s7202 = smul.u32 23, 8
    %s7203 = smul.addr %s7202, 8
    %s7204 = scalar_lea.vmem [#allocation2], %s7203
    %v7205 = vld [vmem:[%s7204] sm:$0x3]
    %v7206 = vld [vmem:[%s7204 + $0x8] sm:$0x3]
    %v7207 = vld [vmem:[%s7204 + $0x10] sm:$0x3]
    %v7208 = vld [vmem:[%s7204 + $0x18] sm:$0x3]
    %v7209 = vld [vmem:[%s7204 + $0x20] sm:$0x3]
    %v7210 = vld [vmem:[%s7204 + $0x28] sm:$0x3]
    %v7211 = vld [vmem:[%s7204 + $0x30] sm:$0x3]
    %v7212 = vld [vmem:[%s7204 + $0x38] sm:$0x3]
    %7213 = vmatprep.subr.bf16.mxu0 %v2008
    %7214 = vmatpush1.bf16.msra.mxu0 %v2007
    %7215 = vmatprep.subr.bf16.mxu0 %v2016
    %7216 = vmatpush1.bf16.msra.mxu0 %v2015
    %7217 = vmatprep.subr.bf16.mxu0 %v2024
    %7218 = vmatpush1.bf16.msra.mxu0 %v2023
    %7219 = vmatprep.subr.bf16.mxu0 %v2032
    %7220 = vmatpush1.bf16.msra.mxu0 %v2031
    %7221 = vmatprep.subr.bf16.mxu0 %v2040
    %7222 = vmatpush1.bf16.msra.mxu0 %v2039
    %7223 = vmatprep.subr.bf16.mxu0 %v2048
    %7224 = vmatpush1.bf16.msra.mxu0 %v2047
    %7225 = vmatprep.subr.bf16.mxu0 %v2056
    %7226 = vmatpush1.bf16.msra.mxu0 %v2055
    %7227 = vmatprep.subr.bf16.mxu0 %v2064
    %7228 = vmatpush1.bf16.msra.mxu0 %v2063
    %7229 = vmatprep.subr.bf16.mxu0 %v2072
    %7230 = vmatpush1.bf16.msra.mxu0 %v2071
    %7231 = vmatprep.subr.bf16.mxu0 %v2080
    %7232 = vmatpush1.bf16.msra.mxu0 %v2079
    %7233 = vmatprep.subr.bf16.mxu0 %v2088
    %7234 = vmatpush1.bf16.msra.mxu0 %v2087
    %7235 = vmatprep.subr.bf16.mxu0 %v2096
    %7236 = vmatpush1.bf16.msra.mxu0 %v2095
    %7237 = vmatprep.subr.bf16.mxu0 %v2104
    %7238 = vmatpush1.bf16.msra.mxu0 %v2103
    %7239 = vmatprep.subr.bf16.mxu0 %v2112
    %7240 = vmatpush1.bf16.msra.mxu0 %v2111
    %7241 = vmatprep.subr.bf16.mxu0 %v2120
    %7242 = vmatpush1.bf16.msra.mxu0 %v2119
    %7243 = vmatprep.subr.bf16.mxu0 %v2128
    %7244 = vmatpush1.bf16.msra.mxu0 %v2127
    %7245 = vmatprep.mubr.bf16.mxu0 %v7201
    %7246 = vmatmul.mubr.bf16.gmra.mrb[0].mxu0 %v7200
    %v7247 = vpop.f32.mrb[0].mxu0
    %v7248 = vadd.f32 %v7205, %v7247
    %v7249 = vpop.f32.mrb[0].mxu0
    %v7250 = vadd.f32 %v7206, %v7249
    %v7251 = vpop.f32.mrb[0].mxu0
    %v7252 = vpop.f32.mrb[0].mxu0
    %7253 = vdwg.mxu0
    %7254 = vmatprep.subr.bf16.mxu0 %v2010
    %7255 = vmatpush1.bf16.msra.mxu0 %v2009
    %7256 = vmatprep.subr.bf16.mxu0 %v2018
    %7257 = vmatpush1.bf16.msra.mxu0 %v2017
    %7258 = vmatprep.subr.bf16.mxu0 %v2026
    %7259 = vmatpush1.bf16.msra.mxu0 %v2025
    %7260 = vmatprep.subr.bf16.mxu0 %v2034
    %7261 = vmatpush1.bf16.msra.mxu0 %v2033
    %7262 = vmatprep.subr.bf16.mxu0 %v2042
    %7263 = vmatpush1.bf16.msra.mxu0 %v2041
    %7264 = vmatprep.subr.bf16.mxu0 %v2050
    %7265 = vmatpush1.bf16.msra.mxu0 %v2049
    %7266 = vmatprep.subr.bf16.mxu0 %v2058
    %7267 = vmatpush1.bf16.msra.mxu0 %v2057
    %7268 = vmatprep.subr.bf16.mxu0 %v2066
    %7269 = vmatpush1.bf16.msra.mxu0 %v2065
    %7270 = vmatprep.subr.bf16.mxu0 %v2074
    %7271 = vmatpush1.bf16.msra.mxu0 %v2073
    %7272 = vmatprep.subr.bf16.mxu0 %v2082
    %7273 = vmatpush1.bf16.msra.mxu0 %v2081
    %7274 = vmatprep.subr.bf16.mxu0 %v2090
    %7275 = vmatpush1.bf16.msra.mxu0 %v2089
    %7276 = vmatprep.subr.bf16.mxu0 %v2098
    %7277 = vmatpush1.bf16.msra.mxu0 %v2097
    %7278 = vmatprep.subr.bf16.mxu0 %v2106
    %7279 = vmatpush1.bf16.msra.mxu0 %v2105
    %7280 = vmatprep.subr.bf16.mxu0 %v2114
    %7281 = vmatpush1.bf16.msra.mxu0 %v2113
    %7282 = vmatprep.subr.bf16.mxu0 %v2122
    %7283 = vmatpush1.bf16.msra.mxu0 %v2121
    %7284 = vmatprep.subr.bf16.mxu0 %v2130
    %7285 = vmatpush1.bf16.msra.mxu0 %v2129
    %7286 = vmatprep.mubr.bf16.mxu0 %v7201
    %7287 = vmatmul.mubr.bf16.gmra.mrb[0].mxu0 %v7200
    %v7288 = vpop.f32.mrb[0].mxu0
    %v7289 = vadd.f32 %v7207, %v7288
    %v7290 = vpop.f32.mrb[0].mxu0
    %v7291 = vadd.f32 %v7208, %v7290
    %v7292 = vpop.f32.mrb[0].mxu0
    %v7293 = vpop.f32.mrb[0].mxu0
    %7294 = vdwg.mxu0
    %7295 = vmatprep.subr.bf16.mxu0 %v2012
    %7296 = vmatpush1.bf16.msra.mxu0 %v2011
    %7297 = vmatprep.subr.bf16.mxu0 %v2020
    %7298 = vmatpush1.bf16.msra.mxu0 %v2019
    %7299 = vmatprep.subr.bf16.mxu0 %v2028
    %7300 = vmatpush1.bf16.msra.mxu0 %v2027
    %7301 = vmatprep.subr.bf16.mxu0 %v2036
    %7302 = vmatpush1.bf16.msra.mxu0 %v2035
    %7303 = vmatprep.subr.bf16.mxu0 %v2044
    %7304 = vmatpush1.bf16.msra.mxu0 %v2043
    %7305 = vmatprep.subr.bf16.mxu0 %v2052
    %7306 = vmatpush1.bf16.msra.mxu0 %v2051
    %7307 = vmatprep.subr.bf16.mxu0 %v2060
    %7308 = vmatpush1.bf16.msra.mxu0 %v2059
    %7309 = vmatprep.subr.bf16.mxu0 %v2068
    %7310 = vmatpush1.bf16.msra.mxu0 %v2067
    %7311 = vmatprep.subr.bf16.mxu0 %v2076
    %7312 = vmatpush1.bf16.msra.mxu0 %v2075
    %7313 = vmatprep.subr.bf16.mxu0 %v2084
    %7314 = vmatpush1.bf16.msra.mxu0 %v2083
    %7315 = vmatprep.subr.bf16.mxu0 %v2092
    %7316 = vmatpush1.bf16.msra.mxu0 %v2091
    %7317 = vmatprep.subr.bf16.mxu0 %v2100
    %7318 = vmatpush1.bf16.msra.mxu0 %v2099
    %7319 = vmatprep.subr.bf16.mxu0 %v2108
    %7320 = vmatpush1.bf16.msra.mxu0 %v2107
    %7321 = vmatprep.subr.bf16.mxu0 %v2116
    %7322 = vmatpush1.bf16.msra.mxu0 %v2115
    %7323 = vmatprep.subr.bf16.mxu0 %v2124
    %7324 = vmatpush1.bf16.msra.mxu0 %v2123
    %7325 = vmatprep.subr.bf16.mxu0 %v2132
    %7326 = vmatpush1.bf16.msra.mxu0 %v2131
    %7327 = vmatprep.mubr.bf16.mxu0 %v7201
    %7328 = vmatmul.mubr.bf16.gmra.mrb[0].mxu0 %v7200
    %v7329 = vpop.f32.mrb[0].mxu0
    %v7330 = vadd.f32 %v7209, %v7329
    %v7331 = vpop.f32.mrb[0].mxu0
    %v7332 = vadd.f32 %v7210, %v7331
    %v7333 = vpop.f32.mrb[0].mxu0
    %v7334 = vpop.f32.mrb[0].mxu0
    %7335 = vdwg.mxu0
    %7336 = vmatprep.subr.bf16.mxu0 %v2014
    %7337 = vmatpush1.bf16.msra.mxu0 %v2013
    %7338 = vmatprep.subr.bf16.mxu0 %v2022
    %7339 = vmatpush1.bf16.msra.mxu0 %v2021
    %7340 = vmatprep.subr.bf16.mxu0 %v2030
    %7341 = vmatpush1.bf16.msra.mxu0 %v2029
    %7342 = vmatprep.subr.bf16.mxu0 %v2038
    %7343 = vmatpush1.bf16.msra.mxu0 %v2037
    %7344 = vmatprep.subr.bf16.mxu0 %v2046
    %7345 = vmatpush1.bf16.msra.mxu0 %v2045
    %7346 = vmatprep.subr.bf16.mxu0 %v2054
    %7347 = vmatpush1.bf16.msra.mxu0 %v2053
    %7348 = vmatprep.subr.bf16.mxu0 %v2062
    %7349 = vmatpush1.bf16.msra.mxu0 %v2061
    %7350 = vmatprep.subr.bf16.mxu0 %v2070
    %7351 = vmatpush1.bf16.msra.mxu0 %v2069
    %7352 = vmatprep.subr.bf16.mxu0 %v2078
    %7353 = vmatpush1.bf16.msra.mxu0 %v2077
    %7354 = vmatprep.subr.bf16.mxu0 %v2086
    %7355 = vmatpush1.bf16.msra.mxu0 %v2085
    %7356 = vmatprep.subr.bf16.mxu0 %v2094
    %7357 = vmatpush1.bf16.msra.mxu0 %v2093
    %7358 = vmatprep.subr.bf16.mxu0 %v2102
    %7359 = vmatpush1.bf16.msra.mxu0 %v2101
    %7360 = vmatprep.subr.bf16.mxu0 %v2110
    %7361 = vmatpush1.bf16.msra.mxu0 %v2109
    %7362 = vmatprep.subr.bf16.mxu0 %v2118
    %7363 = vmatpush1.bf16.msra.mxu0 %v2117
    %7364 = vmatprep.subr.bf16.mxu0 %v2126
    %7365 = vmatpush1.bf16.msra.mxu0 %v2125
    %7366 = vmatprep.subr.bf16.mxu0 %v2134
    %7367 = vmatpush1.bf16.msra.mxu0 %v2133
    %7368 = vmatprep.mubr.bf16.mxu0 %v7201
    %7369 = vmatmul.mubr.bf16.gmra.mrb[0].mxu0 %v7200
    %v7370 = vpop.f32.mrb[0].mxu0
    %v7371 = vadd.f32 %v7211, %v7370
    %v7372 = vpop.f32.mrb[0].mxu0
    %v7373 = vadd.f32 %v7212, %v7372
    %v7374 = vpop.f32.mrb[0].mxu0
    %v7375 = vpop.f32.mrb[0].mxu0
    %7376 = vdwg.mxu0
    %v7377 = vxor.u32 %v7248, 2147483648
    %v7378 = vxor.u32 %v7250, 2147483648
    %v7379 = vxor.u32 %v7289, 2147483648
    %v7380 = vxor.u32 %v7291, 2147483648
    %v7381 = vxor.u32 %v7330, 2147483648
    %v7382 = vxor.u32 %v7332, 2147483648
    %v7383 = vmul.f32 %v7377, 1.442695
    %v7384 = vpow.pop %v7383
    %v7385 = vmul.f32 %v7378, 1.442695
    %v7386 = vpow.pop %v7385
    %v7387 = vmul.f32 %v7379, 1.442695
    %v7388 = vpow.pop %v7387
    %v7389 = vmul.f32 %v7380, 1.442695
    %v7390 = vpow.pop %v7389
    %v7391 = vmul.f32 %v7381, 1.442695
    %v7392 = vpow.pop %v7391
    %v7393 = vmul.f32 %v7382, 1.442695
    %v7394 = vpow.pop %v7393
    %v7395 = vadd.f32 %v7384, 1.0
    %v7396 = vadd.f32 %v7386, 1.0
    %v7397 = vadd.f32 %v7388, 1.0
    %v7398 = vadd.f32 %v7390, 1.0
    %v7399 = vadd.f32 %v7392, 1.0
    %v7400 = vadd.f32 %v7394, 1.0
    %v7401 = vrcp.pop %v7395
    %v7402 = vmul.f32 1.0, %v7401
    %v7403 = vrcp.pop %v7396
    %v7404 = vmul.f32 1.0, %v7403
    %v7405 = vrcp.pop %v7397
    %v7406 = vmul.f32 1.0, %v7405
    %v7407 = vrcp.pop %v7398
    %v7408 = vmul.f32 1.0, %v7407
    %v7409 = vrcp.pop %v7399
    %v7410 = vmul.f32 1.0, %v7409
    %v7411 = vrcp.pop %v7400
    %v7412 = vmul.f32 1.0, %v7411
    %v7413 = vtanh.pop %v7371
    %v7414 = vtanh.pop %v7373
    %v7415 = vmul.f32 %v7406, %v7194
    %v7416 = vmul.f32 %v7408, %v7195
    %v7417 = vmul.f32 %v7402, %v7413
    %v7418 = vmul.f32 %v7404, %v7414
    %v7419 = vadd.f32 %v7415, %v7417
    %v7420 = vadd.f32 %v7416, %v7418
    %v7421 = vtanh.pop %v7419
    %v7422 = vtanh.pop %v7420
    %v7423 = vmul.f32 %v7410, %v7421
    %v7424 = vmul.f32 %v7412, %v7422
    %v7425 = vpack.c.bf16 %v7423, %v7423
    %v7426 = vpack.c.bf16 %v7424, %v7424
    %s7427 = smul.u32 24, 8
    %s7428 = smul.addr %s7427, 8
    %s7429 = scalar_lea.vmem [#allocation2], %s7428
    %v7430 = vld [vmem:[%s7429] sm:$0x3]
    %v7431 = vld [vmem:[%s7429 + $0x8] sm:$0x3]
    %v7432 = vld [vmem:[%s7429 + $0x10] sm:$0x3]
    %v7433 = vld [vmem:[%s7429 + $0x18] sm:$0x3]
    %v7434 = vld [vmem:[%s7429 + $0x20] sm:$0x3]
    %v7435 = vld [vmem:[%s7429 + $0x28] sm:$0x3]
    %v7436 = vld [vmem:[%s7429 + $0x30] sm:$0x3]
    %v7437 = vld [vmem:[%s7429 + $0x38] sm:$0x3]
    %7438 = vmatprep.subr.bf16.mxu0 %v2008
    %7439 = vmatpush1.bf16.msra.mxu0 %v2007
    %7440 = vmatprep.subr.bf16.mxu0 %v2016
    %7441 = vmatpush1.bf16.msra.mxu0 %v2015
    %7442 = vmatprep.subr.bf16.mxu0 %v2024
    %7443 = vmatpush1.bf16.msra.mxu0 %v2023
    %7444 = vmatprep.subr.bf16.mxu0 %v2032
    %7445 = vmatpush1.bf16.msra.mxu0 %v2031
    %7446 = vmatprep.subr.bf16.mxu0 %v2040
    %7447 = vmatpush1.bf16.msra.mxu0 %v2039
    %7448 = vmatprep.subr.bf16.mxu0 %v2048
    %7449 = vmatpush1.bf16.msra.mxu0 %v2047
    %7450 = vmatprep.subr.bf16.mxu0 %v2056
    %7451 = vmatpush1.bf16.msra.mxu0 %v2055
    %7452 = vmatprep.subr.bf16.mxu0 %v2064
    %7453 = vmatpush1.bf16.msra.mxu0 %v2063
    %7454 = vmatprep.subr.bf16.mxu0 %v2072
    %7455 = vmatpush1.bf16.msra.mxu0 %v2071
    %7456 = vmatprep.subr.bf16.mxu0 %v2080
    %7457 = vmatpush1.bf16.msra.mxu0 %v2079
    %7458 = vmatprep.subr.bf16.mxu0 %v2088
    %7459 = vmatpush1.bf16.msra.mxu0 %v2087
    %7460 = vmatprep.subr.bf16.mxu0 %v2096
    %7461 = vmatpush1.bf16.msra.mxu0 %v2095
    %7462 = vmatprep.subr.bf16.mxu0 %v2104
    %7463 = vmatpush1.bf16.msra.mxu0 %v2103
    %7464 = vmatprep.subr.bf16.mxu0 %v2112
    %7465 = vmatpush1.bf16.msra.mxu0 %v2111
    %7466 = vmatprep.subr.bf16.mxu0 %v2120
    %7467 = vmatpush1.bf16.msra.mxu0 %v2119
    %7468 = vmatprep.subr.bf16.mxu0 %v2128
    %7469 = vmatpush1.bf16.msra.mxu0 %v2127
    %7470 = vmatprep.mubr.bf16.mxu0 %v7426
    %7471 = vmatmul.mubr.bf16.gmra.mrb[0].mxu0 %v7425
    %v7472 = vpop.f32.mrb[0].mxu0
    %v7473 = vadd.f32 %v7430, %v7472
    %v7474 = vpop.f32.mrb[0].mxu0
    %v7475 = vadd.f32 %v7431, %v7474
    %v7476 = vpop.f32.mrb[0].mxu0
    %v7477 = vpop.f32.mrb[0].mxu0
    %7478 = vdwg.mxu0
    %7479 = vmatprep.subr.bf16.mxu0 %v2010
    %7480 = vmatpush1.bf16.msra.mxu0 %v2009
    %7481 = vmatprep.subr.bf16.mxu0 %v2018
    %7482 = vmatpush1.bf16.msra.mxu0 %v2017
    %7483 = vmatprep.subr.bf16.mxu0 %v2026
    %7484 = vmatpush1.bf16.msra.mxu0 %v2025
    %7485 = vmatprep.subr.bf16.mxu0 %v2034
    %7486 = vmatpush1.bf16.msra.mxu0 %v2033
    %7487 = vmatprep.subr.bf16.mxu0 %v2042
    %7488 = vmatpush1.bf16.msra.mxu0 %v2041
    %7489 = vmatprep.subr.bf16.mxu0 %v2050
    %7490 = vmatpush1.bf16.msra.mxu0 %v2049
    %7491 = vmatprep.subr.bf16.mxu0 %v2058
    %7492 = vmatpush1.bf16.msra.mxu0 %v2057
    %7493 = vmatprep.subr.bf16.mxu0 %v2066
    %7494 = vmatpush1.bf16.msra.mxu0 %v2065
    %7495 = vmatprep.subr.bf16.mxu0 %v2074
    %7496 = vmatpush1.bf16.msra.mxu0 %v2073
    %7497 = vmatprep.subr.bf16.mxu0 %v2082
    %7498 = vmatpush1.bf16.msra.mxu0 %v2081
    %7499 = vmatprep.subr.bf16.mxu0 %v2090
    %7500 = vmatpush1.bf16.msra.mxu0 %v2089
    %7501 = vmatprep.subr.bf16.mxu0 %v2098
    %7502 = vmatpush1.bf16.msra.mxu0 %v2097
    %7503 = vmatprep.subr.bf16.mxu0 %v2106
    %7504 = vmatpush1.bf16.msra.mxu0 %v2105
    %7505 = vmatprep.subr.bf16.mxu0 %v2114
    %7506 = vmatpush1.bf16.msra.mxu0 %v2113
    %7507 = vmatprep.subr.bf16.mxu0 %v2122
    %7508 = vmatpush1.bf16.msra.mxu0 %v2121
    %7509 = vmatprep.subr.bf16.mxu0 %v2130
    %7510 = vmatpush1.bf16.msra.mxu0 %v2129
    %7511 = vmatprep.mubr.bf16.mxu0 %v7426
    %7512 = vmatmul.mubr.bf16.gmra.mrb[0].mxu0 %v7425
    %v7513 = vpop.f32.mrb[0].mxu0
    %v7514 = vadd.f32 %v7432, %v7513
    %v7515 = vpop.f32.mrb[0].mxu0
    %v7516 = vadd.f32 %v7433, %v7515
    %v7517 = vpop.f32.mrb[0].mxu0
    %v7518 = vpop.f32.mrb[0].mxu0
    %7519 = vdwg.mxu0
    %7520 = vmatprep.subr.bf16.mxu0 %v2012
    %7521 = vmatpush1.bf16.msra.mxu0 %v2011
    %7522 = vmatprep.subr.bf16.mxu0 %v2020
    %7523 = vmatpush1.bf16.msra.mxu0 %v2019
    %7524 = vmatprep.subr.bf16.mxu0 %v2028
    %7525 = vmatpush1.bf16.msra.mxu0 %v2027
    %7526 = vmatprep.subr.bf16.mxu0 %v2036
    %7527 = vmatpush1.bf16.msra.mxu0 %v2035
    %7528 = vmatprep.subr.bf16.mxu0 %v2044
    %7529 = vmatpush1.bf16.msra.mxu0 %v2043
    %7530 = vmatprep.subr.bf16.mxu0 %v2052
    %7531 = vmatpush1.bf16.msra.mxu0 %v2051
    %7532 = vmatprep.subr.bf16.mxu0 %v2060
    %7533 = vmatpush1.bf16.msra.mxu0 %v2059
    %7534 = vmatprep.subr.bf16.mxu0 %v2068
    %7535 = vmatpush1.bf16.msra.mxu0 %v2067
    %7536 = vmatprep.subr.bf16.mxu0 %v2076
    %7537 = vmatpush1.bf16.msra.mxu0 %v2075
    %7538 = vmatprep.subr.bf16.mxu0 %v2084
    %7539 = vmatpush1.bf16.msra.mxu0 %v2083
    %7540 = vmatprep.subr.bf16.mxu0 %v2092
    %7541 = vmatpush1.bf16.msra.mxu0 %v2091
    %7542 = vmatprep.subr.bf16.mxu0 %v2100
    %7543 = vmatpush1.bf16.msra.mxu0 %v2099
    %7544 = vmatprep.subr.bf16.mxu0 %v2108
    %7545 = vmatpush1.bf16.msra.mxu0 %v2107
    %7546 = vmatprep.subr.bf16.mxu0 %v2116
    %7547 = vmatpush1.bf16.msra.mxu0 %v2115
    %7548 = vmatprep.subr.bf16.mxu0 %v2124
    %7549 = vmatpush1.bf16.msra.mxu0 %v2123
    %7550 = vmatprep.subr.bf16.mxu0 %v2132
    %7551 = vmatpush1.bf16.msra.mxu0 %v2131
    %7552 = vmatprep.mubr.bf16.mxu0 %v7426
    %7553 = vmatmul.mubr.bf16.gmra.mrb[0].mxu0 %v7425
    %v7554 = vpop.f32.mrb[0].mxu0
    %v7555 = vadd.f32 %v7434, %v7554
    %v7556 = vpop.f32.mrb[0].mxu0
    %v7557 = vadd.f32 %v7435, %v7556
    %v7558 = vpop.f32.mrb[0].mxu0
    %v7559 = vpop.f32.mrb[0].mxu0
    %7560 = vdwg.mxu0
    %7561 = vmatprep.subr.bf16.mxu0 %v2014
    %7562 = vmatpush1.bf16.msra.mxu0 %v2013
    %7563 = vmatprep.subr.bf16.mxu0 %v2022
    %7564 = vmatpush1.bf16.msra.mxu0 %v2021
    %7565 = vmatprep.subr.bf16.mxu0 %v2030
    %7566 = vmatpush1.bf16.msra.mxu0 %v2029
    %7567 = vmatprep.subr.bf16.mxu0 %v2038
    %7568 = vmatpush1.bf16.msra.mxu0 %v2037
    %7569 = vmatprep.subr.bf16.mxu0 %v2046
    %7570 = vmatpush1.bf16.msra.mxu0 %v2045
    %7571 = vmatprep.subr.bf16.mxu0 %v2054
    %7572 = vmatpush1.bf16.msra.mxu0 %v2053
    %7573 = vmatprep.subr.bf16.mxu0 %v2062
    %7574 = vmatpush1.bf16.msra.mxu0 %v2061
    %7575 = vmatprep.subr.bf16.mxu0 %v2070
    %7576 = vmatpush1.bf16.msra.mxu0 %v2069
    %7577 = vmatprep.subr.bf16.mxu0 %v2078
    %7578 = vmatpush1.bf16.msra.mxu0 %v2077
    %7579 = vmatprep.subr.bf16.mxu0 %v2086
    %7580 = vmatpush1.bf16.msra.mxu0 %v2085
    %7581 = vmatprep.subr.bf16.mxu0 %v2094
    %7582 = vmatpush1.bf16.msra.mxu0 %v2093
    %7583 = vmatprep.subr.bf16.mxu0 %v2102
    %7584 = vmatpush1.bf16.msra.mxu0 %v2101
    %7585 = vmatprep.subr.bf16.mxu0 %v2110
    %7586 = vmatpush1.bf16.msra.mxu0 %v2109
    %7587 = vmatprep.subr.bf16.mxu0 %v2118
    %7588 = vmatpush1.bf16.msra.mxu0 %v2117
    %7589 = vmatprep.subr.bf16.mxu0 %v2126
    %7590 = vmatpush1.bf16.msra.mxu0 %v2125
    %7591 = vmatprep.subr.bf16.mxu0 %v2134
    %7592 = vmatpush1.bf16.msra.mxu0 %v2133
    %7593 = vmatprep.mubr.bf16.mxu0 %v7426
    %7594 = vmatmul.mubr.bf16.gmra.mrb[0].mxu0 %v7425
    %v7595 = vpop.f32.mrb[0].mxu0
    %v7596 = vadd.f32 %v7436, %v7595
    %v7597 = vpop.f32.mrb[0].mxu0
    %v7598 = vadd.f32 %v7437, %v7597
    %v7599 = vpop.f32.mrb[0].mxu0
    %v7600 = vpop.f32.mrb[0].mxu0
    %7601 = vdwg.mxu0
    %v7602 = vxor.u32 %v7473, 2147483648
    %v7603 = vxor.u32 %v7475, 2147483648
    %v7604 = vxor.u32 %v7514, 2147483648
    %v7605 = vxor.u32 %v7516, 2147483648
    %v7606 = vxor.u32 %v7555, 2147483648
    %v7607 = vxor.u32 %v7557, 2147483648
    %v7608 = vmul.f32 %v7602, 1.442695
    %v7609 = vpow.pop %v7608
    %v7610 = vmul.f32 %v7603, 1.442695
    %v7611 = vpow.pop %v7610
    %v7612 = vmul.f32 %v7604, 1.442695
    %v7613 = vpow.pop %v7612
    %v7614 = vmul.f32 %v7605, 1.442695
    %v7615 = vpow.pop %v7614
    %v7616 = vmul.f32 %v7606, 1.442695
    %v7617 = vpow.pop %v7616
    %v7618 = vmul.f32 %v7607, 1.442695
    %v7619 = vpow.pop %v7618
    %v7620 = vadd.f32 %v7609, 1.0
    %v7621 = vadd.f32 %v7611, 1.0
    %v7622 = vadd.f32 %v7613, 1.0
    %v7623 = vadd.f32 %v7615, 1.0
    %v7624 = vadd.f32 %v7617, 1.0
    %v7625 = vadd.f32 %v7619, 1.0
    %v7626 = vrcp.pop %v7620
    %v7627 = vmul.f32 1.0, %v7626
    %v7628 = vrcp.pop %v7621
    %v7629 = vmul.f32 1.0, %v7628
    %v7630 = vrcp.pop %v7622
    %v7631 = vmul.f32 1.0, %v7630
    %v7632 = vrcp.pop %v7623
    %v7633 = vmul.f32 1.0, %v7632
    %v7634 = vrcp.pop %v7624
    %v7635 = vmul.f32 1.0, %v7634
    %v7636 = vrcp.pop %v7625
    %v7637 = vmul.f32 1.0, %v7636
    %v7638 = vtanh.pop %v7596
    %v7639 = vtanh.pop %v7598
    %v7640 = vmul.f32 %v7631, %v7419
    %v7641 = vmul.f32 %v7633, %v7420
    %v7642 = vmul.f32 %v7627, %v7638
    %v7643 = vmul.f32 %v7629, %v7639
    %v7644 = vadd.f32 %v7640, %v7642
    %v7645 = vadd.f32 %v7641, %v7643
    %v7646 = vtanh.pop %v7644
    %v7647 = vtanh.pop %v7645
    %v7648 = vmul.f32 %v7635, %v7646
    %v7649 = vmul.f32 %v7637, %v7647
    %v7650 = vpack.c.bf16 %v7648, %v7648
    %v7651 = vpack.c.bf16 %v7649, %v7649
    %s7652 = smul.u32 25, 8
    %s7653 = smul.addr %s7652, 8
    %s7654 = scalar_lea.vmem [#allocation2], %s7653
    %v7655 = vld [vmem:[%s7654] sm:$0x3]
    %v7656 = vld [vmem:[%s7654 + $0x8] sm:$0x3]
    %v7657 = vld [vmem:[%s7654 + $0x10] sm:$0x3]
    %v7658 = vld [vmem:[%s7654 + $0x18] sm:$0x3]
    %v7659 = vld [vmem:[%s7654 + $0x20] sm:$0x3]
    %v7660 = vld [vmem:[%s7654 + $0x28] sm:$0x3]
    %v7661 = vld [vmem:[%s7654 + $0x30] sm:$0x3]
    %v7662 = vld [vmem:[%s7654 + $0x38] sm:$0x3]
    %7663 = vmatprep.subr.bf16.mxu0 %v2008
    %7664 = vmatpush1.bf16.msra.mxu0 %v2007
    %7665 = vmatprep.subr.bf16.mxu0 %v2016
    %7666 = vmatpush1.bf16.msra.mxu0 %v2015
    %7667 = vmatprep.subr.bf16.mxu0 %v2024
    %7668 = vmatpush1.bf16.msra.mxu0 %v2023
    %7669 = vmatprep.subr.bf16.mxu0 %v2032
    %7670 = vmatpush1.bf16.msra.mxu0 %v2031
    %7671 = vmatprep.subr.bf16.mxu0 %v2040
    %7672 = vmatpush1.bf16.msra.mxu0 %v2039
    %7673 = vmatprep.subr.bf16.mxu0 %v2048
    %7674 = vmatpush1.bf16.msra.mxu0 %v2047
    %7675 = vmatprep.subr.bf16.mxu0 %v2056
    %7676 = vmatpush1.bf16.msra.mxu0 %v2055
    %7677 = vmatprep.subr.bf16.mxu0 %v2064
    %7678 = vmatpush1.bf16.msra.mxu0 %v2063
    %7679 = vmatprep.subr.bf16.mxu0 %v2072
    %7680 = vmatpush1.bf16.msra.mxu0 %v2071
    %7681 = vmatprep.subr.bf16.mxu0 %v2080
    %7682 = vmatpush1.bf16.msra.mxu0 %v2079
    %7683 = vmatprep.subr.bf16.mxu0 %v2088
    %7684 = vmatpush1.bf16.msra.mxu0 %v2087
    %7685 = vmatprep.subr.bf16.mxu0 %v2096
    %7686 = vmatpush1.bf16.msra.mxu0 %v2095
    %7687 = vmatprep.subr.bf16.mxu0 %v2104
    %7688 = vmatpush1.bf16.msra.mxu0 %v2103
    %7689 = vmatprep.subr.bf16.mxu0 %v2112
    %7690 = vmatpush1.bf16.msra.mxu0 %v2111
    %7691 = vmatprep.subr.bf16.mxu0 %v2120
    %7692 = vmatpush1.bf16.msra.mxu0 %v2119
    %7693 = vmatprep.subr.bf16.mxu0 %v2128
    %7694 = vmatpush1.bf16.msra.mxu0 %v2127
    %7695 = vmatprep.mubr.bf16.mxu0 %v7651
    %7696 = vmatmul.mubr.bf16.gmra.mrb[0].mxu0 %v7650
    %v7697 = vpop.f32.mrb[0].mxu0
    %v7698 = vadd.f32 %v7655, %v7697
    %v7699 = vpop.f32.mrb[0].mxu0
    %v7700 = vadd.f32 %v7656, %v7699
    %v7701 = vpop.f32.mrb[0].mxu0
    %v7702 = vpop.f32.mrb[0].mxu0
    %7703 = vdwg.mxu0
    %7704 = vmatprep.subr.bf16.mxu0 %v2010
    %7705 = vmatpush1.bf16.msra.mxu0 %v2009
    %7706 = vmatprep.subr.bf16.mxu0 %v2018
    %7707 = vmatpush1.bf16.msra.mxu0 %v2017
    %7708 = vmatprep.subr.bf16.mxu0 %v2026
    %7709 = vmatpush1.bf16.msra.mxu0 %v2025
    %7710 = vmatprep.subr.bf16.mxu0 %v2034
    %7711 = vmatpush1.bf16.msra.mxu0 %v2033
    %7712 = vmatprep.subr.bf16.mxu0 %v2042
    %7713 = vmatpush1.bf16.msra.mxu0 %v2041
    %7714 = vmatprep.subr.bf16.mxu0 %v2050
    %7715 = vmatpush1.bf16.msra.mxu0 %v2049
    %7716 = vmatprep.subr.bf16.mxu0 %v2058
    %7717 = vmatpush1.bf16.msra.mxu0 %v2057
    %7718 = vmatprep.subr.bf16.mxu0 %v2066
    %7719 = vmatpush1.bf16.msra.mxu0 %v2065
    %7720 = vmatprep.subr.bf16.mxu0 %v2074
    %7721 = vmatpush1.bf16.msra.mxu0 %v2073
    %7722 = vmatprep.subr.bf16.mxu0 %v2082
    %7723 = vmatpush1.bf16.msra.mxu0 %v2081
    %7724 = vmatprep.subr.bf16.mxu0 %v2090
    %7725 = vmatpush1.bf16.msra.mxu0 %v2089
    %7726 = vmatprep.subr.bf16.mxu0 %v2098
    %7727 = vmatpush1.bf16.msra.mxu0 %v2097
    %7728 = vmatprep.subr.bf16.mxu0 %v2106
    %7729 = vmatpush1.bf16.msra.mxu0 %v2105
    %7730 = vmatprep.subr.bf16.mxu0 %v2114
    %7731 = vmatpush1.bf16.msra.mxu0 %v2113
    %7732 = vmatprep.subr.bf16.mxu0 %v2122
    %7733 = vmatpush1.bf16.msra.mxu0 %v2121
    %7734 = vmatprep.subr.bf16.mxu0 %v2130
    %7735 = vmatpush1.bf16.msra.mxu0 %v2129
    %7736 = vmatprep.mubr.bf16.mxu0 %v7651
    %7737 = vmatmul.mubr.bf16.gmra.mrb[0].mxu0 %v7650
    %v7738 = vpop.f32.mrb[0].mxu0
    %v7739 = vadd.f32 %v7657, %v7738
    %v7740 = vpop.f32.mrb[0].mxu0
    %v7741 = vadd.f32 %v7658, %v7740
    %v7742 = vpop.f32.mrb[0].mxu0
    %v7743 = vpop.f32.mrb[0].mxu0
    %7744 = vdwg.mxu0
    %7745 = vmatprep.subr.bf16.mxu0 %v2012
    %7746 = vmatpush1.bf16.msra.mxu0 %v2011
    %7747 = vmatprep.subr.bf16.mxu0 %v2020
    %7748 = vmatpush1.bf16.msra.mxu0 %v2019
    %7749 = vmatprep.subr.bf16.mxu0 %v2028
    %7750 = vmatpush1.bf16.msra.mxu0 %v2027
    %7751 = vmatprep.subr.bf16.mxu0 %v2036
    %7752 = vmatpush1.bf16.msra.mxu0 %v2035
    %7753 = vmatprep.subr.bf16.mxu0 %v2044
    %7754 = vmatpush1.bf16.msra.mxu0 %v2043
    %7755 = vmatprep.subr.bf16.mxu0 %v2052
    %7756 = vmatpush1.bf16.msra.mxu0 %v2051
    %7757 = vmatprep.subr.bf16.mxu0 %v2060
    %7758 = vmatpush1.bf16.msra.mxu0 %v2059
    %7759 = vmatprep.subr.bf16.mxu0 %v2068
    %7760 = vmatpush1.bf16.msra.mxu0 %v2067
    %7761 = vmatprep.subr.bf16.mxu0 %v2076
    %7762 = vmatpush1.bf16.msra.mxu0 %v2075
    %7763 = vmatprep.subr.bf16.mxu0 %v2084
    %7764 = vmatpush1.bf16.msra.mxu0 %v2083
    %7765 = vmatprep.subr.bf16.mxu0 %v2092
    %7766 = vmatpush1.bf16.msra.mxu0 %v2091
    %7767 = vmatprep.subr.bf16.mxu0 %v2100
    %7768 = vmatpush1.bf16.msra.mxu0 %v2099
    %7769 = vmatprep.subr.bf16.mxu0 %v2108
    %7770 = vmatpush1.bf16.msra.mxu0 %v2107
    %7771 = vmatprep.subr.bf16.mxu0 %v2116
    %7772 = vmatpush1.bf16.msra.mxu0 %v2115
    %7773 = vmatprep.subr.bf16.mxu0 %v2124
    %7774 = vmatpush1.bf16.msra.mxu0 %v2123
    %7775 = vmatprep.subr.bf16.mxu0 %v2132
    %7776 = vmatpush1.bf16.msra.mxu0 %v2131
    %7777 = vmatprep.mubr.bf16.mxu0 %v7651
    %7778 = vmatmul.mubr.bf16.gmra.mrb[0].mxu0 %v7650
    %v7779 = vpop.f32.mrb[0].mxu0
    %v7780 = vadd.f32 %v7659, %v7779
    %v7781 = vpop.f32.mrb[0].mxu0
    %v7782 = vadd.f32 %v7660, %v7781
    %v7783 = vpop.f32.mrb[0].mxu0
    %v7784 = vpop.f32.mrb[0].mxu0
    %7785 = vdwg.mxu0
    %7786 = vmatprep.subr.bf16.mxu0 %v2014
    %7787 = vmatpush1.bf16.msra.mxu0 %v2013
    %7788 = vmatprep.subr.bf16.mxu0 %v2022
    %7789 = vmatpush1.bf16.msra.mxu0 %v2021
    %7790 = vmatprep.subr.bf16.mxu0 %v2030
    %7791 = vmatpush1.bf16.msra.mxu0 %v2029
    %7792 = vmatprep.subr.bf16.mxu0 %v2038
    %7793 = vmatpush1.bf16.msra.mxu0 %v2037
    %7794 = vmatprep.subr.bf16.mxu0 %v2046
    %7795 = vmatpush1.bf16.msra.mxu0 %v2045
    %7796 = vmatprep.subr.bf16.mxu0 %v2054
    %7797 = vmatpush1.bf16.msra.mxu0 %v2053
    %7798 = vmatprep.subr.bf16.mxu0 %v2062
    %7799 = vmatpush1.bf16.msra.mxu0 %v2061
    %7800 = vmatprep.subr.bf16.mxu0 %v2070
    %7801 = vmatpush1.bf16.msra.mxu0 %v2069
    %7802 = vmatprep.subr.bf16.mxu0 %v2078
    %7803 = vmatpush1.bf16.msra.mxu0 %v2077
    %7804 = vmatprep.subr.bf16.mxu0 %v2086
    %7805 = vmatpush1.bf16.msra.mxu0 %v2085
    %7806 = vmatprep.subr.bf16.mxu0 %v2094
    %7807 = vmatpush1.bf16.msra.mxu0 %v2093
    %7808 = vmatprep.subr.bf16.mxu0 %v2102
    %7809 = vmatpush1.bf16.msra.mxu0 %v2101
    %7810 = vmatprep.subr.bf16.mxu0 %v2110
    %7811 = vmatpush1.bf16.msra.mxu0 %v2109
    %7812 = vmatprep.subr.bf16.mxu0 %v2118
    %7813 = vmatpush1.bf16.msra.mxu0 %v2117
    %7814 = vmatprep.subr.bf16.mxu0 %v2126
    %7815 = vmatpush1.bf16.msra.mxu0 %v2125
    %7816 = vmatprep.subr.bf16.mxu0 %v2134
    %7817 = vmatpush1.bf16.msra.mxu0 %v2133
    %7818 = vmatprep.mubr.bf16.mxu0 %v7651
    %7819 = vmatmul.mubr.bf16.gmra.mrb[0].mxu0 %v7650
    %v7820 = vpop.f32.mrb[0].mxu0
    %v7821 = vadd.f32 %v7661, %v7820
    %v7822 = vpop.f32.mrb[0].mxu0
    %v7823 = vadd.f32 %v7662, %v7822
    %v7824 = vpop.f32.mrb[0].mxu0
    %v7825 = vpop.f32.mrb[0].mxu0
    %7826 = vdwg.mxu0
    %v7827 = vxor.u32 %v7698, 2147483648
    %v7828 = vxor.u32 %v7700, 2147483648
    %v7829 = vxor.u32 %v7739, 2147483648
    %v7830 = vxor.u32 %v7741, 2147483648
    %v7831 = vxor.u32 %v7780, 2147483648
    %v7832 = vxor.u32 %v7782, 2147483648
    %v7833 = vmul.f32 %v7827, 1.442695
    %v7834 = vpow.pop %v7833
    %v7835 = vmul.f32 %v7828, 1.442695
    %v7836 = vpow.pop %v7835
    %v7837 = vmul.f32 %v7829, 1.442695
    %v7838 = vpow.pop %v7837
    %v7839 = vmul.f32 %v7830, 1.442695
    %v7840 = vpow.pop %v7839
    %v7841 = vmul.f32 %v7831, 1.442695
    %v7842 = vpow.pop %v7841
    %v7843 = vmul.f32 %v7832, 1.442695
    %v7844 = vpow.pop %v7843
    %v7845 = vadd.f32 %v7834, 1.0
    %v7846 = vadd.f32 %v7836, 1.0
    %v7847 = vadd.f32 %v7838, 1.0
    %v7848 = vadd.f32 %v7840, 1.0
    %v7849 = vadd.f32 %v7842, 1.0
    %v7850 = vadd.f32 %v7844, 1.0
    %v7851 = vrcp.pop %v7845
    %v7852 = vmul.f32 1.0, %v7851
    %v7853 = vrcp.pop %v7846
    %v7854 = vmul.f32 1.0, %v7853
    %v7855 = vrcp.pop %v7847
    %v7856 = vmul.f32 1.0, %v7855
    %v7857 = vrcp.pop %v7848
    %v7858 = vmul.f32 1.0, %v7857
    %v7859 = vrcp.pop %v7849
    %v7860 = vmul.f32 1.0, %v7859
    %v7861 = vrcp.pop %v7850
    %v7862 = vmul.f32 1.0, %v7861
    %v7863 = vtanh.pop %v7821
    %v7864 = vtanh.pop %v7823
    %v7865 = vmul.f32 %v7856, %v7644
    %v7866 = vmul.f32 %v7858, %v7645
    %v7867 = vmul.f32 %v7852, %v7863
    %v7868 = vmul.f32 %v7854, %v7864
    %v7869 = vadd.f32 %v7865, %v7867
    %v7870 = vadd.f32 %v7866, %v7868
    %v7871 = vtanh.pop %v7869
    %v7872 = vtanh.pop %v7870
    %v7873 = vmul.f32 %v7860, %v7871
    %v7874 = vmul.f32 %v7862, %v7872
    %v7875 = vpack.c.bf16 %v7873, %v7873
    %v7876 = vpack.c.bf16 %v7874, %v7874
    %s7877 = smul.u32 26, 8
    %s7878 = smul.addr %s7877, 8
    %s7879 = scalar_lea.vmem [#allocation2], %s7878
    %v7880 = vld [vmem:[%s7879] sm:$0x3]
    %v7881 = vld [vmem:[%s7879 + $0x8] sm:$0x3]
    %v7882 = vld [vmem:[%s7879 + $0x10] sm:$0x3]
    %v7883 = vld [vmem:[%s7879 + $0x18] sm:$0x3]
    %v7884 = vld [vmem:[%s7879 + $0x20] sm:$0x3]
    %v7885 = vld [vmem:[%s7879 + $0x28] sm:$0x3]
    %v7886 = vld [vmem:[%s7879 + $0x30] sm:$0x3]
    %v7887 = vld [vmem:[%s7879 + $0x38] sm:$0x3]
    %7888 = vmatprep.subr.bf16.mxu0 %v2008
    %7889 = vmatpush1.bf16.msra.mxu0 %v2007
    %7890 = vmatprep.subr.bf16.mxu0 %v2016
    %7891 = vmatpush1.bf16.msra.mxu0 %v2015
    %7892 = vmatprep.subr.bf16.mxu0 %v2024
    %7893 = vmatpush1.bf16.msra.mxu0 %v2023
    %7894 = vmatprep.subr.bf16.mxu0 %v2032
    %7895 = vmatpush1.bf16.msra.mxu0 %v2031
    %7896 = vmatprep.subr.bf16.mxu0 %v2040
    %7897 = vmatpush1.bf16.msra.mxu0 %v2039
    %7898 = vmatprep.subr.bf16.mxu0 %v2048
    %7899 = vmatpush1.bf16.msra.mxu0 %v2047
    %7900 = vmatprep.subr.bf16.mxu0 %v2056
    %7901 = vmatpush1.bf16.msra.mxu0 %v2055
    %7902 = vmatprep.subr.bf16.mxu0 %v2064
    %7903 = vmatpush1.bf16.msra.mxu0 %v2063
    %7904 = vmatprep.subr.bf16.mxu0 %v2072
    %7905 = vmatpush1.bf16.msra.mxu0 %v2071
    %7906 = vmatprep.subr.bf16.mxu0 %v2080
    %7907 = vmatpush1.bf16.msra.mxu0 %v2079
    %7908 = vmatprep.subr.bf16.mxu0 %v2088
    %7909 = vmatpush1.bf16.msra.mxu0 %v2087
    %7910 = vmatprep.subr.bf16.mxu0 %v2096
    %7911 = vmatpush1.bf16.msra.mxu0 %v2095
    %7912 = vmatprep.subr.bf16.mxu0 %v2104
    %7913 = vmatpush1.bf16.msra.mxu0 %v2103
    %7914 = vmatprep.subr.bf16.mxu0 %v2112
    %7915 = vmatpush1.bf16.msra.mxu0 %v2111
    %7916 = vmatprep.subr.bf16.mxu0 %v2120
    %7917 = vmatpush1.bf16.msra.mxu0 %v2119
    %7918 = vmatprep.subr.bf16.mxu0 %v2128
    %7919 = vmatpush1.bf16.msra.mxu0 %v2127
    %7920 = vmatprep.mubr.bf16.mxu0 %v7876
    %7921 = vmatmul.mubr.bf16.gmra.mrb[0].mxu0 %v7875
    %v7922 = vpop.f32.mrb[0].mxu0
    %v7923 = vadd.f32 %v7880, %v7922
    %v7924 = vpop.f32.mrb[0].mxu0
    %v7925 = vadd.f32 %v7881, %v7924
    %v7926 = vpop.f32.mrb[0].mxu0
    %v7927 = vpop.f32.mrb[0].mxu0
    %7928 = vdwg.mxu0
    %7929 = vmatprep.subr.bf16.mxu0 %v2010
    %7930 = vmatpush1.bf16.msra.mxu0 %v2009
    %7931 = vmatprep.subr.bf16.mxu0 %v2018
    %7932 = vmatpush1.bf16.msra.mxu0 %v2017
    %7933 = vmatprep.subr.bf16.mxu0 %v2026
    %7934 = vmatpush1.bf16.msra.mxu0 %v2025
    %7935 = vmatprep.subr.bf16.mxu0 %v2034
    %7936 = vmatpush1.bf16.msra.mxu0 %v2033
    %7937 = vmatprep.subr.bf16.mxu0 %v2042
    %7938 = vmatpush1.bf16.msra.mxu0 %v2041
    %7939 = vmatprep.subr.bf16.mxu0 %v2050
    %7940 = vmatpush1.bf16.msra.mxu0 %v2049
    %7941 = vmatprep.subr.bf16.mxu0 %v2058
    %7942 = vmatpush1.bf16.msra.mxu0 %v2057
    %7943 = vmatprep.subr.bf16.mxu0 %v2066
    %7944 = vmatpush1.bf16.msra.mxu0 %v2065
    %7945 = vmatprep.subr.bf16.mxu0 %v2074
    %7946 = vmatpush1.bf16.msra.mxu0 %v2073
    %7947 = vmatprep.subr.bf16.mxu0 %v2082
    %7948 = vmatpush1.bf16.msra.mxu0 %v2081
    %7949 = vmatprep.subr.bf16.mxu0 %v2090
    %7950 = vmatpush1.bf16.msra.mxu0 %v2089
    %7951 = vmatprep.subr.bf16.mxu0 %v2098
    %7952 = vmatpush1.bf16.msra.mxu0 %v2097
    %7953 = vmatprep.subr.bf16.mxu0 %v2106
    %7954 = vmatpush1.bf16.msra.mxu0 %v2105
    %7955 = vmatprep.subr.bf16.mxu0 %v2114
    %7956 = vmatpush1.bf16.msra.mxu0 %v2113
    %7957 = vmatprep.subr.bf16.mxu0 %v2122
    %7958 = vmatpush1.bf16.msra.mxu0 %v2121
    %7959 = vmatprep.subr.bf16.mxu0 %v2130
    %7960 = vmatpush1.bf16.msra.mxu0 %v2129
    %7961 = vmatprep.mubr.bf16.mxu0 %v7876
    %7962 = vmatmul.mubr.bf16.gmra.mrb[0].mxu0 %v7875
    %v7963 = vpop.f32.mrb[0].mxu0
    %v7964 = vadd.f32 %v7882, %v7963
    %v7965 = vpop.f32.mrb[0].mxu0
    %v7966 = vadd.f32 %v7883, %v7965
    %v7967 = vpop.f32.mrb[0].mxu0
    %v7968 = vpop.f32.mrb[0].mxu0
    %7969 = vdwg.mxu0
    %7970 = vmatprep.subr.bf16.mxu0 %v2012
    %7971 = vmatpush1.bf16.msra.mxu0 %v2011
    %7972 = vmatprep.subr.bf16.mxu0 %v2020
    %7973 = vmatpush1.bf16.msra.mxu0 %v2019
    %7974 = vmatprep.subr.bf16.mxu0 %v2028
    %7975 = vmatpush1.bf16.msra.mxu0 %v2027
    %7976 = vmatprep.subr.bf16.mxu0 %v2036
    %7977 = vmatpush1.bf16.msra.mxu0 %v2035
    %7978 = vmatprep.subr.bf16.mxu0 %v2044
    %7979 = vmatpush1.bf16.msra.mxu0 %v2043
    %7980 = vmatprep.subr.bf16.mxu0 %v2052
    %7981 = vmatpush1.bf16.msra.mxu0 %v2051
    %7982 = vmatprep.subr.bf16.mxu0 %v2060
    %7983 = vmatpush1.bf16.msra.mxu0 %v2059
    %7984 = vmatprep.subr.bf16.mxu0 %v2068
    %7985 = vmatpush1.bf16.msra.mxu0 %v2067
    %7986 = vmatprep.subr.bf16.mxu0 %v2076
    %7987 = vmatpush1.bf16.msra.mxu0 %v2075
    %7988 = vmatprep.subr.bf16.mxu0 %v2084
    %7989 = vmatpush1.bf16.msra.mxu0 %v2083
    %7990 = vmatprep.subr.bf16.mxu0 %v2092
    %7991 = vmatpush1.bf16.msra.mxu0 %v2091
    %7992 = vmatprep.subr.bf16.mxu0 %v2100
    %7993 = vmatpush1.bf16.msra.mxu0 %v2099
    %7994 = vmatprep.subr.bf16.mxu0 %v2108
    %7995 = vmatpush1.bf16.msra.mxu0 %v2107
    %7996 = vmatprep.subr.bf16.mxu0 %v2116
    %7997 = vmatpush1.bf16.msra.mxu0 %v2115
    %7998 = vmatprep.subr.bf16.mxu0 %v2124
    %7999 = vmatpush1.bf16.msra.mxu0 %v2123
    %8000 = vmatprep.subr.bf16.mxu0 %v2132
    %8001 = vmatpush1.bf16.msra.mxu0 %v2131
    %8002 = vmatprep.mubr.bf16.mxu0 %v7876
    %8003 = vmatmul.mubr.bf16.gmra.mrb[0].mxu0 %v7875
    %v8004 = vpop.f32.mrb[0].mxu0
    %v8005 = vadd.f32 %v7884, %v8004
    %v8006 = vpop.f32.mrb[0].mxu0
    %v8007 = vadd.f32 %v7885, %v8006
    %v8008 = vpop.f32.mrb[0].mxu0
    %v8009 = vpop.f32.mrb[0].mxu0
    %8010 = vdwg.mxu0
    %8011 = vmatprep.subr.bf16.mxu0 %v2014
    %8012 = vmatpush1.bf16.msra.mxu0 %v2013
    %8013 = vmatprep.subr.bf16.mxu0 %v2022
    %8014 = vmatpush1.bf16.msra.mxu0 %v2021
    %8015 = vmatprep.subr.bf16.mxu0 %v2030
    %8016 = vmatpush1.bf16.msra.mxu0 %v2029
    %8017 = vmatprep.subr.bf16.mxu0 %v2038
    %8018 = vmatpush1.bf16.msra.mxu0 %v2037
    %8019 = vmatprep.subr.bf16.mxu0 %v2046
    %8020 = vmatpush1.bf16.msra.mxu0 %v2045
    %8021 = vmatprep.subr.bf16.mxu0 %v2054
    %8022 = vmatpush1.bf16.msra.mxu0 %v2053
    %8023 = vmatprep.subr.bf16.mxu0 %v2062
    %8024 = vmatpush1.bf16.msra.mxu0 %v2061
    %8025 = vmatprep.subr.bf16.mxu0 %v2070
    %8026 = vmatpush1.bf16.msra.mxu0 %v2069
    %8027 = vmatprep.subr.bf16.mxu0 %v2078
    %8028 = vmatpush1.bf16.msra.mxu0 %v2077
    %8029 = vmatprep.subr.bf16.mxu0 %v2086
    %8030 = vmatpush1.bf16.msra.mxu0 %v2085
    %8031 = vmatprep.subr.bf16.mxu0 %v2094
    %8032 = vmatpush1.bf16.msra.mxu0 %v2093
    %8033 = vmatprep.subr.bf16.mxu0 %v2102
    %8034 = vmatpush1.bf16.msra.mxu0 %v2101
    %8035 = vmatprep.subr.bf16.mxu0 %v2110
    %8036 = vmatpush1.bf16.msra.mxu0 %v2109
    %8037 = vmatprep.subr.bf16.mxu0 %v2118
    %8038 = vmatpush1.bf16.msra.mxu0 %v2117
    %8039 = vmatprep.subr.bf16.mxu0 %v2126
    %8040 = vmatpush1.bf16.msra.mxu0 %v2125
    %8041 = vmatprep.subr.bf16.mxu0 %v2134
    %8042 = vmatpush1.bf16.msra.mxu0 %v2133
    %8043 = vmatprep.mubr.bf16.mxu0 %v7876
    %8044 = vmatmul.mubr.bf16.gmra.mrb[0].mxu0 %v7875
    %v8045 = vpop.f32.mrb[0].mxu0
    %v8046 = vadd.f32 %v7886, %v8045
    %v8047 = vpop.f32.mrb[0].mxu0
    %v8048 = vadd.f32 %v7887, %v8047
    %v8049 = vpop.f32.mrb[0].mxu0
    %v8050 = vpop.f32.mrb[0].mxu0
    %8051 = vdwg.mxu0
    %v8052 = vxor.u32 %v7923, 2147483648
    %v8053 = vxor.u32 %v7925, 2147483648
    %v8054 = vxor.u32 %v7964, 2147483648
    %v8055 = vxor.u32 %v7966, 2147483648
    %v8056 = vxor.u32 %v8005, 2147483648
    %v8057 = vxor.u32 %v8007, 2147483648
    %v8058 = vmul.f32 %v8052, 1.442695
    %v8059 = vpow.pop %v8058
    %v8060 = vmul.f32 %v8053, 1.442695
    %v8061 = vpow.pop %v8060
    %v8062 = vmul.f32 %v8054, 1.442695
    %v8063 = vpow.pop %v8062
    %v8064 = vmul.f32 %v8055, 1.442695
    %v8065 = vpow.pop %v8064
    %v8066 = vmul.f32 %v8056, 1.442695
    %v8067 = vpow.pop %v8066
    %v8068 = vmul.f32 %v8057, 1.442695
    %v8069 = vpow.pop %v8068
    %v8070 = vadd.f32 %v8059, 1.0
    %v8071 = vadd.f32 %v8061, 1.0
    %v8072 = vadd.f32 %v8063, 1.0
    %v8073 = vadd.f32 %v8065, 1.0
    %v8074 = vadd.f32 %v8067, 1.0
    %v8075 = vadd.f32 %v8069, 1.0
    %v8076 = vrcp.pop %v8070
    %v8077 = vmul.f32 1.0, %v8076
    %v8078 = vrcp.pop %v8071
    %v8079 = vmul.f32 1.0, %v8078
    %v8080 = vrcp.pop %v8072
    %v8081 = vmul.f32 1.0, %v8080
    %v8082 = vrcp.pop %v8073
    %v8083 = vmul.f32 1.0, %v8082
    %v8084 = vrcp.pop %v8074
    %v8085 = vmul.f32 1.0, %v8084
    %v8086 = vrcp.pop %v8075
    %v8087 = vmul.f32 1.0, %v8086
    %v8088 = vtanh.pop %v8046
    %v8089 = vtanh.pop %v8048
    %v8090 = vmul.f32 %v8081, %v7869
    %v8091 = vmul.f32 %v8083, %v7870
    %v8092 = vmul.f32 %v8077, %v8088
    %v8093 = vmul.f32 %v8079, %v8089
    %v8094 = vadd.f32 %v8090, %v8092
    %v8095 = vadd.f32 %v8091, %v8093
    %v8096 = vtanh.pop %v8094
    %v8097 = vtanh.pop %v8095
    %v8098 = vmul.f32 %v8085, %v8096
    %v8099 = vmul.f32 %v8087, %v8097
    %v8100 = vpack.c.bf16 %v8098, %v8098
    %v8101 = vpack.c.bf16 %v8099, %v8099
    %s8102 = smul.u32 27, 8
    %s8103 = smul.addr %s8102, 8
    %s8104 = scalar_lea.vmem [#allocation2], %s8103
    %v8105 = vld [vmem:[%s8104] sm:$0x3]
    %v8106 = vld [vmem:[%s8104 + $0x8] sm:$0x3]
    %v8107 = vld [vmem:[%s8104 + $0x10] sm:$0x3]
    %v8108 = vld [vmem:[%s8104 + $0x18] sm:$0x3]
    %v8109 = vld [vmem:[%s8104 + $0x20] sm:$0x3]
    %v8110 = vld [vmem:[%s8104 + $0x28] sm:$0x3]
    %v8111 = vld [vmem:[%s8104 + $0x30] sm:$0x3]
    %v8112 = vld [vmem:[%s8104 + $0x38] sm:$0x3]
    %8113 = vmatprep.subr.bf16.mxu0 %v2008
    %8114 = vmatpush1.bf16.msra.mxu0 %v2007
    %8115 = vmatprep.subr.bf16.mxu0 %v2016
    %8116 = vmatpush1.bf16.msra.mxu0 %v2015
    %8117 = vmatprep.subr.bf16.mxu0 %v2024
    %8118 = vmatpush1.bf16.msra.mxu0 %v2023
    %8119 = vmatprep.subr.bf16.mxu0 %v2032
    %8120 = vmatpush1.bf16.msra.mxu0 %v2031
    %8121 = vmatprep.subr.bf16.mxu0 %v2040
    %8122 = vmatpush1.bf16.msra.mxu0 %v2039
    %8123 = vmatprep.subr.bf16.mxu0 %v2048
    %8124 = vmatpush1.bf16.msra.mxu0 %v2047
    %8125 = vmatprep.subr.bf16.mxu0 %v2056
    %8126 = vmatpush1.bf16.msra.mxu0 %v2055
    %8127 = vmatprep.subr.bf16.mxu0 %v2064
    %8128 = vmatpush1.bf16.msra.mxu0 %v2063
    %8129 = vmatprep.subr.bf16.mxu0 %v2072
    %8130 = vmatpush1.bf16.msra.mxu0 %v2071
    %8131 = vmatprep.subr.bf16.mxu0 %v2080
    %8132 = vmatpush1.bf16.msra.mxu0 %v2079
    %8133 = vmatprep.subr.bf16.mxu0 %v2088
    %8134 = vmatpush1.bf16.msra.mxu0 %v2087
    %8135 = vmatprep.subr.bf16.mxu0 %v2096
    %8136 = vmatpush1.bf16.msra.mxu0 %v2095
    %8137 = vmatprep.subr.bf16.mxu0 %v2104
    %8138 = vmatpush1.bf16.msra.mxu0 %v2103
    %8139 = vmatprep.subr.bf16.mxu0 %v2112
    %8140 = vmatpush1.bf16.msra.mxu0 %v2111
    %8141 = vmatprep.subr.bf16.mxu0 %v2120
    %8142 = vmatpush1.bf16.msra.mxu0 %v2119
    %8143 = vmatprep.subr.bf16.mxu0 %v2128
    %8144 = vmatpush1.bf16.msra.mxu0 %v2127
    %8145 = vmatprep.mubr.bf16.mxu0 %v8101
    %8146 = vmatmul.mubr.bf16.gmra.mrb[0].mxu0 %v8100
    %v8147 = vpop.f32.mrb[0].mxu0
    %v8148 = vadd.f32 %v8105, %v8147
    %v8149 = vpop.f32.mrb[0].mxu0
    %v8150 = vadd.f32 %v8106, %v8149
    %v8151 = vpop.f32.mrb[0].mxu0
    %v8152 = vpop.f32.mrb[0].mxu0
    %8153 = vdwg.mxu0
    %8154 = vmatprep.subr.bf16.mxu0 %v2010
    %8155 = vmatpush1.bf16.msra.mxu0 %v2009
    %8156 = vmatprep.subr.bf16.mxu0 %v2018
    %8157 = vmatpush1.bf16.msra.mxu0 %v2017
    %8158 = vmatprep.subr.bf16.mxu0 %v2026
    %8159 = vmatpush1.bf16.msra.mxu0 %v2025
    %8160 = vmatprep.subr.bf16.mxu0 %v2034
    %8161 = vmatpush1.bf16.msra.mxu0 %v2033
    %8162 = vmatprep.subr.bf16.mxu0 %v2042
    %8163 = vmatpush1.bf16.msra.mxu0 %v2041
    %8164 = vmatprep.subr.bf16.mxu0 %v2050
    %8165 = vmatpush1.bf16.msra.mxu0 %v2049
    %8166 = vmatprep.subr.bf16.mxu0 %v2058
    %8167 = vmatpush1.bf16.msra.mxu0 %v2057
    %8168 = vmatprep.subr.bf16.mxu0 %v2066
    %8169 = vmatpush1.bf16.msra.mxu0 %v2065
    %8170 = vmatprep.subr.bf16.mxu0 %v2074
    %8171 = vmatpush1.bf16.msra.mxu0 %v2073
    %8172 = vmatprep.subr.bf16.mxu0 %v2082
    %8173 = vmatpush1.bf16.msra.mxu0 %v2081
    %8174 = vmatprep.subr.bf16.mxu0 %v2090
    %8175 = vmatpush1.bf16.msra.mxu0 %v2089
    %8176 = vmatprep.subr.bf16.mxu0 %v2098
    %8177 = vmatpush1.bf16.msra.mxu0 %v2097
    %8178 = vmatprep.subr.bf16.mxu0 %v2106
    %8179 = vmatpush1.bf16.msra.mxu0 %v2105
    %8180 = vmatprep.subr.bf16.mxu0 %v2114
    %8181 = vmatpush1.bf16.msra.mxu0 %v2113
    %8182 = vmatprep.subr.bf16.mxu0 %v2122
    %8183 = vmatpush1.bf16.msra.mxu0 %v2121
    %8184 = vmatprep.subr.bf16.mxu0 %v2130
    %8185 = vmatpush1.bf16.msra.mxu0 %v2129
    %8186 = vmatprep.mubr.bf16.mxu0 %v8101
    %8187 = vmatmul.mubr.bf16.gmra.mrb[0].mxu0 %v8100
    %v8188 = vpop.f32.mrb[0].mxu0
    %v8189 = vadd.f32 %v8107, %v8188
    %v8190 = vpop.f32.mrb[0].mxu0
    %v8191 = vadd.f32 %v8108, %v8190
    %v8192 = vpop.f32.mrb[0].mxu0
    %v8193 = vpop.f32.mrb[0].mxu0
    %8194 = vdwg.mxu0
    %8195 = vmatprep.subr.bf16.mxu0 %v2012
    %8196 = vmatpush1.bf16.msra.mxu0 %v2011
    %8197 = vmatprep.subr.bf16.mxu0 %v2020
    %8198 = vmatpush1.bf16.msra.mxu0 %v2019
    %8199 = vmatprep.subr.bf16.mxu0 %v2028
    %8200 = vmatpush1.bf16.msra.mxu0 %v2027
    %8201 = vmatprep.subr.bf16.mxu0 %v2036
    %8202 = vmatpush1.bf16.msra.mxu0 %v2035
    %8203 = vmatprep.subr.bf16.mxu0 %v2044
    %8204 = vmatpush1.bf16.msra.mxu0 %v2043
    %8205 = vmatprep.subr.bf16.mxu0 %v2052
    %8206 = vmatpush1.bf16.msra.mxu0 %v2051
    %8207 = vmatprep.subr.bf16.mxu0 %v2060
    %8208 = vmatpush1.bf16.msra.mxu0 %v2059
    %8209 = vmatprep.subr.bf16.mxu0 %v2068
    %8210 = vmatpush1.bf16.msra.mxu0 %v2067
    %8211 = vmatprep.subr.bf16.mxu0 %v2076
    %8212 = vmatpush1.bf16.msra.mxu0 %v2075
    %8213 = vmatprep.subr.bf16.mxu0 %v2084
    %8214 = vmatpush1.bf16.msra.mxu0 %v2083
    %8215 = vmatprep.subr.bf16.mxu0 %v2092
    %8216 = vmatpush1.bf16.msra.mxu0 %v2091
    %8217 = vmatprep.subr.bf16.mxu0 %v2100
    %8218 = vmatpush1.bf16.msra.mxu0 %v2099
    %8219 = vmatprep.subr.bf16.mxu0 %v2108
    %8220 = vmatpush1.bf16.msra.mxu0 %v2107
    %8221 = vmatprep.subr.bf16.mxu0 %v2116
    %8222 = vmatpush1.bf16.msra.mxu0 %v2115
    %8223 = vmatprep.subr.bf16.mxu0 %v2124
    %8224 = vmatpush1.bf16.msra.mxu0 %v2123
    %8225 = vmatprep.subr.bf16.mxu0 %v2132
    %8226 = vmatpush1.bf16.msra.mxu0 %v2131
    %8227 = vmatprep.mubr.bf16.mxu0 %v8101
    %8228 = vmatmul.mubr.bf16.gmra.mrb[0].mxu0 %v8100
    %v8229 = vpop.f32.mrb[0].mxu0
    %v8230 = vadd.f32 %v8109, %v8229
    %v8231 = vpop.f32.mrb[0].mxu0
    %v8232 = vadd.f32 %v8110, %v8231
    %v8233 = vpop.f32.mrb[0].mxu0
    %v8234 = vpop.f32.mrb[0].mxu0
    %8235 = vdwg.mxu0
    %8236 = vmatprep.subr.bf16.mxu0 %v2014
    %8237 = vmatpush1.bf16.msra.mxu0 %v2013
    %8238 = vmatprep.subr.bf16.mxu0 %v2022
    %8239 = vmatpush1.bf16.msra.mxu0 %v2021
    %8240 = vmatprep.subr.bf16.mxu0 %v2030
    %8241 = vmatpush1.bf16.msra.mxu0 %v2029
    %8242 = vmatprep.subr.bf16.mxu0 %v2038
    %8243 = vmatpush1.bf16.msra.mxu0 %v2037
    %8244 = vmatprep.subr.bf16.mxu0 %v2046
    %8245 = vmatpush1.bf16.msra.mxu0 %v2045
    %8246 = vmatprep.subr.bf16.mxu0 %v2054
    %8247 = vmatpush1.bf16.msra.mxu0 %v2053
    %8248 = vmatprep.subr.bf16.mxu0 %v2062
    %8249 = vmatpush1.bf16.msra.mxu0 %v2061
    %8250 = vmatprep.subr.bf16.mxu0 %v2070
    %8251 = vmatpush1.bf16.msra.mxu0 %v2069
    %8252 = vmatprep.subr.bf16.mxu0 %v2078
    %8253 = vmatpush1.bf16.msra.mxu0 %v2077
    %8254 = vmatprep.subr.bf16.mxu0 %v2086
    %8255 = vmatpush1.bf16.msra.mxu0 %v2085
    %8256 = vmatprep.subr.bf16.mxu0 %v2094
    %8257 = vmatpush1.bf16.msra.mxu0 %v2093
    %8258 = vmatprep.subr.bf16.mxu0 %v2102
    %8259 = vmatpush1.bf16.msra.mxu0 %v2101
    %8260 = vmatprep.subr.bf16.mxu0 %v2110
    %8261 = vmatpush1.bf16.msra.mxu0 %v2109
    %8262 = vmatprep.subr.bf16.mxu0 %v2118
    %8263 = vmatpush1.bf16.msra.mxu0 %v2117
    %8264 = vmatprep.subr.bf16.mxu0 %v2126
    %8265 = vmatpush1.bf16.msra.mxu0 %v2125
    %8266 = vmatprep.subr.bf16.mxu0 %v2134
    %8267 = vmatpush1.bf16.msra.mxu0 %v2133
    %8268 = vmatprep.mubr.bf16.mxu0 %v8101
    %8269 = vmatmul.mubr.bf16.gmra.mrb[0].mxu0 %v8100
    %v8270 = vpop.f32.mrb[0].mxu0
    %v8271 = vadd.f32 %v8111, %v8270
    %v8272 = vpop.f32.mrb[0].mxu0
    %v8273 = vadd.f32 %v8112, %v8272
    %v8274 = vpop.f32.mrb[0].mxu0
    %v8275 = vpop.f32.mrb[0].mxu0
    %8276 = vdwg.mxu0
    %v8277 = vxor.u32 %v8148, 2147483648
    %v8278 = vxor.u32 %v8150, 2147483648
    %v8279 = vxor.u32 %v8189, 2147483648
    %v8280 = vxor.u32 %v8191, 2147483648
    %v8281 = vxor.u32 %v8230, 2147483648
    %v8282 = vxor.u32 %v8232, 2147483648
    %v8283 = vmul.f32 %v8277, 1.442695
    %v8284 = vpow.pop %v8283
    %v8285 = vmul.f32 %v8278, 1.442695
    %v8286 = vpow.pop %v8285
    %v8287 = vmul.f32 %v8279, 1.442695
    %v8288 = vpow.pop %v8287
    %v8289 = vmul.f32 %v8280, 1.442695
    %v8290 = vpow.pop %v8289
    %v8291 = vmul.f32 %v8281, 1.442695
    %v8292 = vpow.pop %v8291
    %v8293 = vmul.f32 %v8282, 1.442695
    %v8294 = vpow.pop %v8293
    %v8295 = vadd.f32 %v8284, 1.0
    %v8296 = vadd.f32 %v8286, 1.0
    %v8297 = vadd.f32 %v8288, 1.0
    %v8298 = vadd.f32 %v8290, 1.0
    %v8299 = vadd.f32 %v8292, 1.0
    %v8300 = vadd.f32 %v8294, 1.0
    %v8301 = vrcp.pop %v8295
    %v8302 = vmul.f32 1.0, %v8301
    %v8303 = vrcp.pop %v8296
    %v8304 = vmul.f32 1.0, %v8303
    %v8305 = vrcp.pop %v8297
    %v8306 = vmul.f32 1.0, %v8305
    %v8307 = vrcp.pop %v8298
    %v8308 = vmul.f32 1.0, %v8307
    %v8309 = vrcp.pop %v8299
    %v8310 = vmul.f32 1.0, %v8309
    %v8311 = vrcp.pop %v8300
    %v8312 = vmul.f32 1.0, %v8311
    %v8313 = vtanh.pop %v8271
    %v8314 = vtanh.pop %v8273
    %v8315 = vmul.f32 %v8306, %v8094
    %v8316 = vmul.f32 %v8308, %v8095
    %v8317 = vmul.f32 %v8302, %v8313
    %v8318 = vmul.f32 %v8304, %v8314
    %v8319 = vadd.f32 %v8315, %v8317
    %v8320 = vadd.f32 %v8316, %v8318
    %v8321 = vtanh.pop %v8319
    %v8322 = vtanh.pop %v8320
    %v8323 = vmul.f32 %v8310, %v8321
    %v8324 = vmul.f32 %v8312, %v8322
    %v8325 = vpack.c.bf16 %v8323, %v8323
    %v8326 = vpack.c.bf16 %v8324, %v8324
    %s8327 = smul.u32 28, 8
    %s8328 = smul.addr %s8327, 8
    %s8329 = scalar_lea.vmem [#allocation2], %s8328
    %v8330 = vld [vmem:[%s8329] sm:$0x3]
    %v8331 = vld [vmem:[%s8329 + $0x8] sm:$0x3]
    %v8332 = vld [vmem:[%s8329 + $0x10] sm:$0x3]
    %v8333 = vld [vmem:[%s8329 + $0x18] sm:$0x3]
    %v8334 = vld [vmem:[%s8329 + $0x20] sm:$0x3]
    %v8335 = vld [vmem:[%s8329 + $0x28] sm:$0x3]
    %v8336 = vld [vmem:[%s8329 + $0x30] sm:$0x3]
    %v8337 = vld [vmem:[%s8329 + $0x38] sm:$0x3]
    %8338 = vmatprep.subr.bf16.mxu0 %v2008
    %8339 = vmatpush1.bf16.msra.mxu0 %v2007
    %8340 = vmatprep.subr.bf16.mxu0 %v2016
    %8341 = vmatpush1.bf16.msra.mxu0 %v2015
    %8342 = vmatprep.subr.bf16.mxu0 %v2024
    %8343 = vmatpush1.bf16.msra.mxu0 %v2023
    %8344 = vmatprep.subr.bf16.mxu0 %v2032
    %8345 = vmatpush1.bf16.msra.mxu0 %v2031
    %8346 = vmatprep.subr.bf16.mxu0 %v2040
    %8347 = vmatpush1.bf16.msra.mxu0 %v2039
    %8348 = vmatprep.subr.bf16.mxu0 %v2048
    %8349 = vmatpush1.bf16.msra.mxu0 %v2047
    %8350 = vmatprep.subr.bf16.mxu0 %v2056
    %8351 = vmatpush1.bf16.msra.mxu0 %v2055
    %8352 = vmatprep.subr.bf16.mxu0 %v2064
    %8353 = vmatpush1.bf16.msra.mxu0 %v2063
    %8354 = vmatprep.subr.bf16.mxu0 %v2072
    %8355 = vmatpush1.bf16.msra.mxu0 %v2071
    %8356 = vmatprep.subr.bf16.mxu0 %v2080
    %8357 = vmatpush1.bf16.msra.mxu0 %v2079
    %8358 = vmatprep.subr.bf16.mxu0 %v2088
    %8359 = vmatpush1.bf16.msra.mxu0 %v2087
    %8360 = vmatprep.subr.bf16.mxu0 %v2096
    %8361 = vmatpush1.bf16.msra.mxu0 %v2095
    %8362 = vmatprep.subr.bf16.mxu0 %v2104
    %8363 = vmatpush1.bf16.msra.mxu0 %v2103
    %8364 = vmatprep.subr.bf16.mxu0 %v2112
    %8365 = vmatpush1.bf16.msra.mxu0 %v2111
    %8366 = vmatprep.subr.bf16.mxu0 %v2120
    %8367 = vmatpush1.bf16.msra.mxu0 %v2119
    %8368 = vmatprep.subr.bf16.mxu0 %v2128
    %8369 = vmatpush1.bf16.msra.mxu0 %v2127
    %8370 = vmatprep.mubr.bf16.mxu0 %v8326
    %8371 = vmatmul.mubr.bf16.gmra.mrb[0].mxu0 %v8325
    %v8372 = vpop.f32.mrb[0].mxu0
    %v8373 = vadd.f32 %v8330, %v8372
    %v8374 = vpop.f32.mrb[0].mxu0
    %v8375 = vadd.f32 %v8331, %v8374
    %v8376 = vpop.f32.mrb[0].mxu0
    %v8377 = vpop.f32.mrb[0].mxu0
    %8378 = vdwg.mxu0
    %8379 = vmatprep.subr.bf16.mxu0 %v2010
    %8380 = vmatpush1.bf16.msra.mxu0 %v2009
    %8381 = vmatprep.subr.bf16.mxu0 %v2018
    %8382 = vmatpush1.bf16.msra.mxu0 %v2017
    %8383 = vmatprep.subr.bf16.mxu0 %v2026
    %8384 = vmatpush1.bf16.msra.mxu0 %v2025
    %8385 = vmatprep.subr.bf16.mxu0 %v2034
    %8386 = vmatpush1.bf16.msra.mxu0 %v2033
    %8387 = vmatprep.subr.bf16.mxu0 %v2042
    %8388 = vmatpush1.bf16.msra.mxu0 %v2041
    %8389 = vmatprep.subr.bf16.mxu0 %v2050
    %8390 = vmatpush1.bf16.msra.mxu0 %v2049
    %8391 = vmatprep.subr.bf16.mxu0 %v2058
    %8392 = vmatpush1.bf16.msra.mxu0 %v2057
    %8393 = vmatprep.subr.bf16.mxu0 %v2066
    %8394 = vmatpush1.bf16.msra.mxu0 %v2065
    %8395 = vmatprep.subr.bf16.mxu0 %v2074
    %8396 = vmatpush1.bf16.msra.mxu0 %v2073
    %8397 = vmatprep.subr.bf16.mxu0 %v2082
    %8398 = vmatpush1.bf16.msra.mxu0 %v2081
    %8399 = vmatprep.subr.bf16.mxu0 %v2090
    %8400 = vmatpush1.bf16.msra.mxu0 %v2089
    %8401 = vmatprep.subr.bf16.mxu0 %v2098
    %8402 = vmatpush1.bf16.msra.mxu0 %v2097
    %8403 = vmatprep.subr.bf16.mxu0 %v2106
    %8404 = vmatpush1.bf16.msra.mxu0 %v2105
    %8405 = vmatprep.subr.bf16.mxu0 %v2114
    %8406 = vmatpush1.bf16.msra.mxu0 %v2113
    %8407 = vmatprep.subr.bf16.mxu0 %v2122
    %8408 = vmatpush1.bf16.msra.mxu0 %v2121
    %8409 = vmatprep.subr.bf16.mxu0 %v2130
    %8410 = vmatpush1.bf16.msra.mxu0 %v2129
    %8411 = vmatprep.mubr.bf16.mxu0 %v8326
    %8412 = vmatmul.mubr.bf16.gmra.mrb[0].mxu0 %v8325
    %v8413 = vpop.f32.mrb[0].mxu0
    %v8414 = vadd.f32 %v8332, %v8413
    %v8415 = vpop.f32.mrb[0].mxu0
    %v8416 = vadd.f32 %v8333, %v8415
    %v8417 = vpop.f32.mrb[0].mxu0
    %v8418 = vpop.f32.mrb[0].mxu0
    %8419 = vdwg.mxu0
    %8420 = vmatprep.subr.bf16.mxu0 %v2012
    %8421 = vmatpush1.bf16.msra.mxu0 %v2011
    %8422 = vmatprep.subr.bf16.mxu0 %v2020
    %8423 = vmatpush1.bf16.msra.mxu0 %v2019
    %8424 = vmatprep.subr.bf16.mxu0 %v2028
    %8425 = vmatpush1.bf16.msra.mxu0 %v2027
    %8426 = vmatprep.subr.bf16.mxu0 %v2036
    %8427 = vmatpush1.bf16.msra.mxu0 %v2035
    %8428 = vmatprep.subr.bf16.mxu0 %v2044
    %8429 = vmatpush1.bf16.msra.mxu0 %v2043
    %8430 = vmatprep.subr.bf16.mxu0 %v2052
    %8431 = vmatpush1.bf16.msra.mxu0 %v2051
    %8432 = vmatprep.subr.bf16.mxu0 %v2060
    %8433 = vmatpush1.bf16.msra.mxu0 %v2059
    %8434 = vmatprep.subr.bf16.mxu0 %v2068
    %8435 = vmatpush1.bf16.msra.mxu0 %v2067
    %8436 = vmatprep.subr.bf16.mxu0 %v2076
    %8437 = vmatpush1.bf16.msra.mxu0 %v2075
    %8438 = vmatprep.subr.bf16.mxu0 %v2084
    %8439 = vmatpush1.bf16.msra.mxu0 %v2083
    %8440 = vmatprep.subr.bf16.mxu0 %v2092
    %8441 = vmatpush1.bf16.msra.mxu0 %v2091
    %8442 = vmatprep.subr.bf16.mxu0 %v2100
    %8443 = vmatpush1.bf16.msra.mxu0 %v2099
    %8444 = vmatprep.subr.bf16.mxu0 %v2108
    %8445 = vmatpush1.bf16.msra.mxu0 %v2107
    %8446 = vmatprep.subr.bf16.mxu0 %v2116
    %8447 = vmatpush1.bf16.msra.mxu0 %v2115
    %8448 = vmatprep.subr.bf16.mxu0 %v2124
    %8449 = vmatpush1.bf16.msra.mxu0 %v2123
    %8450 = vmatprep.subr.bf16.mxu0 %v2132
    %8451 = vmatpush1.bf16.msra.mxu0 %v2131
    %8452 = vmatprep.mubr.bf16.mxu0 %v8326
    %8453 = vmatmul.mubr.bf16.gmra.mrb[0].mxu0 %v8325
    %v8454 = vpop.f32.mrb[0].mxu0
    %v8455 = vadd.f32 %v8334, %v8454
    %v8456 = vpop.f32.mrb[0].mxu0
    %v8457 = vadd.f32 %v8335, %v8456
    %v8458 = vpop.f32.mrb[0].mxu0
    %v8459 = vpop.f32.mrb[0].mxu0
    %8460 = vdwg.mxu0
    %8461 = vmatprep.subr.bf16.mxu0 %v2014
    %8462 = vmatpush1.bf16.msra.mxu0 %v2013
    %8463 = vmatprep.subr.bf16.mxu0 %v2022
    %8464 = vmatpush1.bf16.msra.mxu0 %v2021
    %8465 = vmatprep.subr.bf16.mxu0 %v2030
    %8466 = vmatpush1.bf16.msra.mxu0 %v2029
    %8467 = vmatprep.subr.bf16.mxu0 %v2038
    %8468 = vmatpush1.bf16.msra.mxu0 %v2037
    %8469 = vmatprep.subr.bf16.mxu0 %v2046
    %8470 = vmatpush1.bf16.msra.mxu0 %v2045
    %8471 = vmatprep.subr.bf16.mxu0 %v2054
    %8472 = vmatpush1.bf16.msra.mxu0 %v2053
    %8473 = vmatprep.subr.bf16.mxu0 %v2062
    %8474 = vmatpush1.bf16.msra.mxu0 %v2061
    %8475 = vmatprep.subr.bf16.mxu0 %v2070
    %8476 = vmatpush1.bf16.msra.mxu0 %v2069
    %8477 = vmatprep.subr.bf16.mxu0 %v2078
    %8478 = vmatpush1.bf16.msra.mxu0 %v2077
    %8479 = vmatprep.subr.bf16.mxu0 %v2086
    %8480 = vmatpush1.bf16.msra.mxu0 %v2085
    %8481 = vmatprep.subr.bf16.mxu0 %v2094
    %8482 = vmatpush1.bf16.msra.mxu0 %v2093
    %8483 = vmatprep.subr.bf16.mxu0 %v2102
    %8484 = vmatpush1.bf16.msra.mxu0 %v2101
    %8485 = vmatprep.subr.bf16.mxu0 %v2110
    %8486 = vmatpush1.bf16.msra.mxu0 %v2109
    %8487 = vmatprep.subr.bf16.mxu0 %v2118
    %8488 = vmatpush1.bf16.msra.mxu0 %v2117
    %8489 = vmatprep.subr.bf16.mxu0 %v2126
    %8490 = vmatpush1.bf16.msra.mxu0 %v2125
    %8491 = vmatprep.subr.bf16.mxu0 %v2134
    %8492 = vmatpush1.bf16.msra.mxu0 %v2133
    %8493 = vmatprep.mubr.bf16.mxu0 %v8326
    %8494 = vmatmul.mubr.bf16.gmra.mrb[0].mxu0 %v8325
    %v8495 = vpop.f32.mrb[0].mxu0
    %v8496 = vadd.f32 %v8336, %v8495
    %v8497 = vpop.f32.mrb[0].mxu0
    %v8498 = vadd.f32 %v8337, %v8497
    %v8499 = vpop.f32.mrb[0].mxu0
    %v8500 = vpop.f32.mrb[0].mxu0
    %8501 = vdwg.mxu0
    %v8502 = vxor.u32 %v8373, 2147483648
    %v8503 = vxor.u32 %v8375, 2147483648
    %v8504 = vxor.u32 %v8414, 2147483648
    %v8505 = vxor.u32 %v8416, 2147483648
    %v8506 = vxor.u32 %v8455, 2147483648
    %v8507 = vxor.u32 %v8457, 2147483648
    %v8508 = vmul.f32 %v8502, 1.442695
    %v8509 = vpow.pop %v8508
    %v8510 = vmul.f32 %v8503, 1.442695
    %v8511 = vpow.pop %v8510
    %v8512 = vmul.f32 %v8504, 1.442695
    %v8513 = vpow.pop %v8512
    %v8514 = vmul.f32 %v8505, 1.442695
    %v8515 = vpow.pop %v8514
    %v8516 = vmul.f32 %v8506, 1.442695
    %v8517 = vpow.pop %v8516
    %v8518 = vmul.f32 %v8507, 1.442695
    %v8519 = vpow.pop %v8518
    %v8520 = vadd.f32 %v8509, 1.0
    %v8521 = vadd.f32 %v8511, 1.0
    %v8522 = vadd.f32 %v8513, 1.0
    %v8523 = vadd.f32 %v8515, 1.0
    %v8524 = vadd.f32 %v8517, 1.0
    %v8525 = vadd.f32 %v8519, 1.0
    %v8526 = vrcp.pop %v8520
    %v8527 = vmul.f32 1.0, %v8526
    %v8528 = vrcp.pop %v8521
    %v8529 = vmul.f32 1.0, %v8528
    %v8530 = vrcp.pop %v8522
    %v8531 = vmul.f32 1.0, %v8530
    %v8532 = vrcp.pop %v8523
    %v8533 = vmul.f32 1.0, %v8532
    %v8534 = vrcp.pop %v8524
    %v8535 = vmul.f32 1.0, %v8534
    %v8536 = vrcp.pop %v8525
    %v8537 = vmul.f32 1.0, %v8536
    %v8538 = vtanh.pop %v8496
    %v8539 = vtanh.pop %v8498
    %v8540 = vmul.f32 %v8531, %v8319
    %v8541 = vmul.f32 %v8533, %v8320
    %v8542 = vmul.f32 %v8527, %v8538
    %v8543 = vmul.f32 %v8529, %v8539
    %v8544 = vadd.f32 %v8540, %v8542
    %v8545 = vadd.f32 %v8541, %v8543
    %v8546 = vtanh.pop %v8544
    %v8547 = vtanh.pop %v8545
    %v8548 = vmul.f32 %v8535, %v8546
    %v8549 = vmul.f32 %v8537, %v8547
    %v8550 = vpack.c.bf16 %v8548, %v8548
    %v8551 = vpack.c.bf16 %v8549, %v8549
    %s8552 = smul.u32 29, 8
    %s8553 = smul.addr %s8552, 8
    %s8554 = scalar_lea.vmem [#allocation2], %s8553
    %v8555 = vld [vmem:[%s8554] sm:$0x3]
    %v8556 = vld [vmem:[%s8554 + $0x8] sm:$0x3]
    %v8557 = vld [vmem:[%s8554 + $0x10] sm:$0x3]
    %v8558 = vld [vmem:[%s8554 + $0x18] sm:$0x3]
    %v8559 = vld [vmem:[%s8554 + $0x20] sm:$0x3]
    %v8560 = vld [vmem:[%s8554 + $0x28] sm:$0x3]
    %v8561 = vld [vmem:[%s8554 + $0x30] sm:$0x3]
    %v8562 = vld [vmem:[%s8554 + $0x38] sm:$0x3]
    %8563 = vmatprep.subr.bf16.mxu0 %v2008
    %8564 = vmatpush1.bf16.msra.mxu0 %v2007
    %8565 = vmatprep.subr.bf16.mxu0 %v2016
    %8566 = vmatpush1.bf16.msra.mxu0 %v2015
    %8567 = vmatprep.subr.bf16.mxu0 %v2024
    %8568 = vmatpush1.bf16.msra.mxu0 %v2023
    %8569 = vmatprep.subr.bf16.mxu0 %v2032
    %8570 = vmatpush1.bf16.msra.mxu0 %v2031
    %8571 = vmatprep.subr.bf16.mxu0 %v2040
    %8572 = vmatpush1.bf16.msra.mxu0 %v2039
    %8573 = vmatprep.subr.bf16.mxu0 %v2048
    %8574 = vmatpush1.bf16.msra.mxu0 %v2047
    %8575 = vmatprep.subr.bf16.mxu0 %v2056
    %8576 = vmatpush1.bf16.msra.mxu0 %v2055
    %8577 = vmatprep.subr.bf16.mxu0 %v2064
    %8578 = vmatpush1.bf16.msra.mxu0 %v2063
    %8579 = vmatprep.subr.bf16.mxu0 %v2072
    %8580 = vmatpush1.bf16.msra.mxu0 %v2071
    %8581 = vmatprep.subr.bf16.mxu0 %v2080
    %8582 = vmatpush1.bf16.msra.mxu0 %v2079
    %8583 = vmatprep.subr.bf16.mxu0 %v2088
    %8584 = vmatpush1.bf16.msra.mxu0 %v2087
    %8585 = vmatprep.subr.bf16.mxu0 %v2096
    %8586 = vmatpush1.bf16.msra.mxu0 %v2095
    %8587 = vmatprep.subr.bf16.mxu0 %v2104
    %8588 = vmatpush1.bf16.msra.mxu0 %v2103
    %8589 = vmatprep.subr.bf16.mxu0 %v2112
    %8590 = vmatpush1.bf16.msra.mxu0 %v2111
    %8591 = vmatprep.subr.bf16.mxu0 %v2120
    %8592 = vmatpush1.bf16.msra.mxu0 %v2119
    %8593 = vmatprep.subr.bf16.mxu0 %v2128
    %8594 = vmatpush1.bf16.msra.mxu0 %v2127
    %8595 = vmatprep.mubr.bf16.mxu0 %v8551
    %8596 = vmatmul.mubr.bf16.gmra.mrb[0].mxu0 %v8550
    %v8597 = vpop.f32.mrb[0].mxu0
    %v8598 = vadd.f32 %v8555, %v8597
    %v8599 = vpop.f32.mrb[0].mxu0
    %v8600 = vadd.f32 %v8556, %v8599
    %v8601 = vpop.f32.mrb[0].mxu0
    %v8602 = vpop.f32.mrb[0].mxu0
    %8603 = vdwg.mxu0
    %8604 = vmatprep.subr.bf16.mxu0 %v2010
    %8605 = vmatpush1.bf16.msra.mxu0 %v2009
    %8606 = vmatprep.subr.bf16.mxu0 %v2018
    %8607 = vmatpush1.bf16.msra.mxu0 %v2017
    %8608 = vmatprep.subr.bf16.mxu0 %v2026
    %8609 = vmatpush1.bf16.msra.mxu0 %v2025
    %8610 = vmatprep.subr.bf16.mxu0 %v2034
    %8611 = vmatpush1.bf16.msra.mxu0 %v2033
    %8612 = vmatprep.subr.bf16.mxu0 %v2042
    %8613 = vmatpush1.bf16.msra.mxu0 %v2041
    %8614 = vmatprep.subr.bf16.mxu0 %v2050
    %8615 = vmatpush1.bf16.msra.mxu0 %v2049
    %8616 = vmatprep.subr.bf16.mxu0 %v2058
    %8617 = vmatpush1.bf16.msra.mxu0 %v2057
    %8618 = vmatprep.subr.bf16.mxu0 %v2066
    %8619 = vmatpush1.bf16.msra.mxu0 %v2065
    %8620 = vmatprep.subr.bf16.mxu0 %v2074
    %8621 = vmatpush1.bf16.msra.mxu0 %v2073
    %8622 = vmatprep.subr.bf16.mxu0 %v2082
    %8623 = vmatpush1.bf16.msra.mxu0 %v2081
    %8624 = vmatprep.subr.bf16.mxu0 %v2090
    %8625 = vmatpush1.bf16.msra.mxu0 %v2089
    %8626 = vmatprep.subr.bf16.mxu0 %v2098
    %8627 = vmatpush1.bf16.msra.mxu0 %v2097
    %8628 = vmatprep.subr.bf16.mxu0 %v2106
    %8629 = vmatpush1.bf16.msra.mxu0 %v2105
    %8630 = vmatprep.subr.bf16.mxu0 %v2114
    %8631 = vmatpush1.bf16.msra.mxu0 %v2113
    %8632 = vmatprep.subr.bf16.mxu0 %v2122
    %8633 = vmatpush1.bf16.msra.mxu0 %v2121
    %8634 = vmatprep.subr.bf16.mxu0 %v2130
    %8635 = vmatpush1.bf16.msra.mxu0 %v2129
    %8636 = vmatprep.mubr.bf16.mxu0 %v8551
    %8637 = vmatmul.mubr.bf16.gmra.mrb[0].mxu0 %v8550
    %v8638 = vpop.f32.mrb[0].mxu0
    %v8639 = vadd.f32 %v8557, %v8638
    %v8640 = vpop.f32.mrb[0].mxu0
    %v8641 = vadd.f32 %v8558, %v8640
    %v8642 = vpop.f32.mrb[0].mxu0
    %v8643 = vpop.f32.mrb[0].mxu0
    %8644 = vdwg.mxu0
    %8645 = vmatprep.subr.bf16.mxu0 %v2012
    %8646 = vmatpush1.bf16.msra.mxu0 %v2011
    %8647 = vmatprep.subr.bf16.mxu0 %v2020
    %8648 = vmatpush1.bf16.msra.mxu0 %v2019
    %8649 = vmatprep.subr.bf16.mxu0 %v2028
    %8650 = vmatpush1.bf16.msra.mxu0 %v2027
    %8651 = vmatprep.subr.bf16.mxu0 %v2036
    %8652 = vmatpush1.bf16.msra.mxu0 %v2035
    %8653 = vmatprep.subr.bf16.mxu0 %v2044
    %8654 = vmatpush1.bf16.msra.mxu0 %v2043
    %8655 = vmatprep.subr.bf16.mxu0 %v2052
    %8656 = vmatpush1.bf16.msra.mxu0 %v2051
    %8657 = vmatprep.subr.bf16.mxu0 %v2060
    %8658 = vmatpush1.bf16.msra.mxu0 %v2059
    %8659 = vmatprep.subr.bf16.mxu0 %v2068
    %8660 = vmatpush1.bf16.msra.mxu0 %v2067
    %8661 = vmatprep.subr.bf16.mxu0 %v2076
    %8662 = vmatpush1.bf16.msra.mxu0 %v2075
    %8663 = vmatprep.subr.bf16.mxu0 %v2084
    %8664 = vmatpush1.bf16.msra.mxu0 %v2083
    %8665 = vmatprep.subr.bf16.mxu0 %v2092
    %8666 = vmatpush1.bf16.msra.mxu0 %v2091
    %8667 = vmatprep.subr.bf16.mxu0 %v2100
    %8668 = vmatpush1.bf16.msra.mxu0 %v2099
    %8669 = vmatprep.subr.bf16.mxu0 %v2108
    %8670 = vmatpush1.bf16.msra.mxu0 %v2107
    %8671 = vmatprep.subr.bf16.mxu0 %v2116
    %8672 = vmatpush1.bf16.msra.mxu0 %v2115
    %8673 = vmatprep.subr.bf16.mxu0 %v2124
    %8674 = vmatpush1.bf16.msra.mxu0 %v2123
    %8675 = vmatprep.subr.bf16.mxu0 %v2132
    %8676 = vmatpush1.bf16.msra.mxu0 %v2131
    %8677 = vmatprep.mubr.bf16.mxu0 %v8551
    %8678 = vmatmul.mubr.bf16.gmra.mrb[0].mxu0 %v8550
    %v8679 = vpop.f32.mrb[0].mxu0
    %v8680 = vadd.f32 %v8559, %v8679
    %v8681 = vpop.f32.mrb[0].mxu0
    %v8682 = vadd.f32 %v8560, %v8681
    %v8683 = vpop.f32.mrb[0].mxu0
    %v8684 = vpop.f32.mrb[0].mxu0
    %8685 = vdwg.mxu0
    %8686 = vmatprep.subr.bf16.mxu0 %v2014
    %8687 = vmatpush1.bf16.msra.mxu0 %v2013
    %8688 = vmatprep.subr.bf16.mxu0 %v2022
    %8689 = vmatpush1.bf16.msra.mxu0 %v2021
    %8690 = vmatprep.subr.bf16.mxu0 %v2030
    %8691 = vmatpush1.bf16.msra.mxu0 %v2029
    %8692 = vmatprep.subr.bf16.mxu0 %v2038
    %8693 = vmatpush1.bf16.msra.mxu0 %v2037
    %8694 = vmatprep.subr.bf16.mxu0 %v2046
    %8695 = vmatpush1.bf16.msra.mxu0 %v2045
    %8696 = vmatprep.subr.bf16.mxu0 %v2054
    %8697 = vmatpush1.bf16.msra.mxu0 %v2053
    %8698 = vmatprep.subr.bf16.mxu0 %v2062
    %8699 = vmatpush1.bf16.msra.mxu0 %v2061
    %8700 = vmatprep.subr.bf16.mxu0 %v2070
    %8701 = vmatpush1.bf16.msra.mxu0 %v2069
    %8702 = vmatprep.subr.bf16.mxu0 %v2078
    %8703 = vmatpush1.bf16.msra.mxu0 %v2077
    %8704 = vmatprep.subr.bf16.mxu0 %v2086
    %8705 = vmatpush1.bf16.msra.mxu0 %v2085
    %8706 = vmatprep.subr.bf16.mxu0 %v2094
    %8707 = vmatpush1.bf16.msra.mxu0 %v2093
    %8708 = vmatprep.subr.bf16.mxu0 %v2102
    %8709 = vmatpush1.bf16.msra.mxu0 %v2101
    %8710 = vmatprep.subr.bf16.mxu0 %v2110
    %8711 = vmatpush1.bf16.msra.mxu0 %v2109
    %8712 = vmatprep.subr.bf16.mxu0 %v2118
    %8713 = vmatpush1.bf16.msra.mxu0 %v2117
    %8714 = vmatprep.subr.bf16.mxu0 %v2126
    %8715 = vmatpush1.bf16.msra.mxu0 %v2125
    %8716 = vmatprep.subr.bf16.mxu0 %v2134
    %8717 = vmatpush1.bf16.msra.mxu0 %v2133
    %8718 = vmatprep.mubr.bf16.mxu0 %v8551
    %8719 = vmatmul.mubr.bf16.gmra.mrb[0].mxu0 %v8550
    %v8720 = vpop.f32.mrb[0].mxu0
    %v8721 = vadd.f32 %v8561, %v8720
    %v8722 = vpop.f32.mrb[0].mxu0
    %v8723 = vadd.f32 %v8562, %v8722
    %v8724 = vpop.f32.mrb[0].mxu0
    %v8725 = vpop.f32.mrb[0].mxu0
    %8726 = vdwg.mxu0
    %v8727 = vxor.u32 %v8598, 2147483648
    %v8728 = vxor.u32 %v8600, 2147483648
    %v8729 = vxor.u32 %v8639, 2147483648
    %v8730 = vxor.u32 %v8641, 2147483648
    %v8731 = vxor.u32 %v8680, 2147483648
    %v8732 = vxor.u32 %v8682, 2147483648
    %v8733 = vmul.f32 %v8727, 1.442695
    %v8734 = vpow.pop %v8733
    %v8735 = vmul.f32 %v8728, 1.442695
    %v8736 = vpow.pop %v8735
    %v8737 = vmul.f32 %v8729, 1.442695
    %v8738 = vpow.pop %v8737
    %v8739 = vmul.f32 %v8730, 1.442695
    %v8740 = vpow.pop %v8739
    %v8741 = vmul.f32 %v8731, 1.442695
    %v8742 = vpow.pop %v8741
    %v8743 = vmul.f32 %v8732, 1.442695
    %v8744 = vpow.pop %v8743
    %v8745 = vadd.f32 %v8734, 1.0
    %v8746 = vadd.f32 %v8736, 1.0
    %v8747 = vadd.f32 %v8738, 1.0
    %v8748 = vadd.f32 %v8740, 1.0
    %v8749 = vadd.f32 %v8742, 1.0
    %v8750 = vadd.f32 %v8744, 1.0
    %v8751 = vrcp.pop %v8745
    %v8752 = vmul.f32 1.0, %v8751
    %v8753 = vrcp.pop %v8746
    %v8754 = vmul.f32 1.0, %v8753
    %v8755 = vrcp.pop %v8747
    %v8756 = vmul.f32 1.0, %v8755
    %v8757 = vrcp.pop %v8748
    %v8758 = vmul.f32 1.0, %v8757
    %v8759 = vrcp.pop %v8749
    %v8760 = vmul.f32 1.0, %v8759
    %v8761 = vrcp.pop %v8750
    %v8762 = vmul.f32 1.0, %v8761
    %v8763 = vtanh.pop %v8721
    %v8764 = vtanh.pop %v8723
    %v8765 = vmul.f32 %v8756, %v8544
    %v8766 = vmul.f32 %v8758, %v8545
    %v8767 = vmul.f32 %v8752, %v8763
    %v8768 = vmul.f32 %v8754, %v8764
    %v8769 = vadd.f32 %v8765, %v8767
    %v8770 = vadd.f32 %v8766, %v8768
    %v8771 = vtanh.pop %v8769
    %v8772 = vtanh.pop %v8770
    %v8773 = vmul.f32 %v8760, %v8771
    %v8774 = vmul.f32 %v8762, %v8772
    %v8775 = vpack.c.bf16 %v8773, %v8773
    %v8776 = vpack.c.bf16 %v8774, %v8774
    %s8777 = smul.u32 30, 8
    %s8778 = smul.addr %s8777, 8
    %s8779 = scalar_lea.vmem [#allocation2], %s8778
    %v8780 = vld [vmem:[%s8779] sm:$0x3]
    %v8781 = vld [vmem:[%s8779 + $0x8] sm:$0x3]
    %v8782 = vld [vmem:[%s8779 + $0x10] sm:$0x3]
    %v8783 = vld [vmem:[%s8779 + $0x18] sm:$0x3]
    %v8784 = vld [vmem:[%s8779 + $0x20] sm:$0x3]
    %v8785 = vld [vmem:[%s8779 + $0x28] sm:$0x3]
    %v8786 = vld [vmem:[%s8779 + $0x30] sm:$0x3]
    %v8787 = vld [vmem:[%s8779 + $0x38] sm:$0x3]
    %8788 = vmatprep.subr.bf16.mxu0 %v2008
    %8789 = vmatpush1.bf16.msra.mxu0 %v2007
    %8790 = vmatprep.subr.bf16.mxu0 %v2016
    %8791 = vmatpush1.bf16.msra.mxu0 %v2015
    %8792 = vmatprep.subr.bf16.mxu0 %v2024
    %8793 = vmatpush1.bf16.msra.mxu0 %v2023
    %8794 = vmatprep.subr.bf16.mxu0 %v2032
    %8795 = vmatpush1.bf16.msra.mxu0 %v2031
    %8796 = vmatprep.subr.bf16.mxu0 %v2040
    %8797 = vmatpush1.bf16.msra.mxu0 %v2039
    %8798 = vmatprep.subr.bf16.mxu0 %v2048
    %8799 = vmatpush1.bf16.msra.mxu0 %v2047
    %8800 = vmatprep.subr.bf16.mxu0 %v2056
    %8801 = vmatpush1.bf16.msra.mxu0 %v2055
    %8802 = vmatprep.subr.bf16.mxu0 %v2064
    %8803 = vmatpush1.bf16.msra.mxu0 %v2063
    %8804 = vmatprep.subr.bf16.mxu0 %v2072
    %8805 = vmatpush1.bf16.msra.mxu0 %v2071
    %8806 = vmatprep.subr.bf16.mxu0 %v2080
    %8807 = vmatpush1.bf16.msra.mxu0 %v2079
    %8808 = vmatprep.subr.bf16.mxu0 %v2088
    %8809 = vmatpush1.bf16.msra.mxu0 %v2087
    %8810 = vmatprep.subr.bf16.mxu0 %v2096
    %8811 = vmatpush1.bf16.msra.mxu0 %v2095
    %8812 = vmatprep.subr.bf16.mxu0 %v2104
    %8813 = vmatpush1.bf16.msra.mxu0 %v2103
    %8814 = vmatprep.subr.bf16.mxu0 %v2112
    %8815 = vmatpush1.bf16.msra.mxu0 %v2111
    %8816 = vmatprep.subr.bf16.mxu0 %v2120
    %8817 = vmatpush1.bf16.msra.mxu0 %v2119
    %8818 = vmatprep.subr.bf16.mxu0 %v2128
    %8819 = vmatpush1.bf16.msra.mxu0 %v2127
    %8820 = vmatprep.mubr.bf16.mxu0 %v8776
    %8821 = vmatmul.mubr.bf16.gmra.mrb[0].mxu0 %v8775
    %v8822 = vpop.f32.mrb[0].mxu0
    %v8823 = vadd.f32 %v8780, %v8822
    %v8824 = vpop.f32.mrb[0].mxu0
    %v8825 = vadd.f32 %v8781, %v8824
    %v8826 = vpop.f32.mrb[0].mxu0
    %v8827 = vpop.f32.mrb[0].mxu0
    %8828 = vdwg.mxu0
    %8829 = vmatprep.subr.bf16.mxu0 %v2010
    %8830 = vmatpush1.bf16.msra.mxu0 %v2009
    %8831 = vmatprep.subr.bf16.mxu0 %v2018
    %8832 = vmatpush1.bf16.msra.mxu0 %v2017
    %8833 = vmatprep.subr.bf16.mxu0 %v2026
    %8834 = vmatpush1.bf16.msra.mxu0 %v2025
    %8835 = vmatprep.subr.bf16.mxu0 %v2034
    %8836 = vmatpush1.bf16.msra.mxu0 %v2033
    %8837 = vmatprep.subr.bf16.mxu0 %v2042
    %8838 = vmatpush1.bf16.msra.mxu0 %v2041
    %8839 = vmatprep.subr.bf16.mxu0 %v2050
    %8840 = vmatpush1.bf16.msra.mxu0 %v2049
    %8841 = vmatprep.subr.bf16.mxu0 %v2058
    %8842 = vmatpush1.bf16.msra.mxu0 %v2057
    %8843 = vmatprep.subr.bf16.mxu0 %v2066
    %8844 = vmatpush1.bf16.msra.mxu0 %v2065
    %8845 = vmatprep.subr.bf16.mxu0 %v2074
    %8846 = vmatpush1.bf16.msra.mxu0 %v2073
    %8847 = vmatprep.subr.bf16.mxu0 %v2082
    %8848 = vmatpush1.bf16.msra.mxu0 %v2081
    %8849 = vmatprep.subr.bf16.mxu0 %v2090
    %8850 = vmatpush1.bf16.msra.mxu0 %v2089
    %8851 = vmatprep.subr.bf16.mxu0 %v2098
    %8852 = vmatpush1.bf16.msra.mxu0 %v2097
    %8853 = vmatprep.subr.bf16.mxu0 %v2106
    %8854 = vmatpush1.bf16.msra.mxu0 %v2105
    %8855 = vmatprep.subr.bf16.mxu0 %v2114
    %8856 = vmatpush1.bf16.msra.mxu0 %v2113
    %8857 = vmatprep.subr.bf16.mxu0 %v2122
    %8858 = vmatpush1.bf16.msra.mxu0 %v2121
    %8859 = vmatprep.subr.bf16.mxu0 %v2130
    %8860 = vmatpush1.bf16.msra.mxu0 %v2129
    %8861 = vmatprep.mubr.bf16.mxu0 %v8776
    %8862 = vmatmul.mubr.bf16.gmra.mrb[0].mxu0 %v8775
    %v8863 = vpop.f32.mrb[0].mxu0
    %v8864 = vadd.f32 %v8782, %v8863
    %v8865 = vpop.f32.mrb[0].mxu0
    %v8866 = vadd.f32 %v8783, %v8865
    %v8867 = vpop.f32.mrb[0].mxu0
    %v8868 = vpop.f32.mrb[0].mxu0
    %8869 = vdwg.mxu0
    %8870 = vmatprep.subr.bf16.mxu0 %v2012
    %8871 = vmatpush1.bf16.msra.mxu0 %v2011
    %8872 = vmatprep.subr.bf16.mxu0 %v2020
    %8873 = vmatpush1.bf16.msra.mxu0 %v2019
    %8874 = vmatprep.subr.bf16.mxu0 %v2028
    %8875 = vmatpush1.bf16.msra.mxu0 %v2027
    %8876 = vmatprep.subr.bf16.mxu0 %v2036
    %8877 = vmatpush1.bf16.msra.mxu0 %v2035
    %8878 = vmatprep.subr.bf16.mxu0 %v2044
    %8879 = vmatpush1.bf16.msra.mxu0 %v2043
    %8880 = vmatprep.subr.bf16.mxu0 %v2052
    %8881 = vmatpush1.bf16.msra.mxu0 %v2051
    %8882 = vmatprep.subr.bf16.mxu0 %v2060
    %8883 = vmatpush1.bf16.msra.mxu0 %v2059
    %8884 = vmatprep.subr.bf16.mxu0 %v2068
    %8885 = vmatpush1.bf16.msra.mxu0 %v2067
    %8886 = vmatprep.subr.bf16.mxu0 %v2076
    %8887 = vmatpush1.bf16.msra.mxu0 %v2075
    %8888 = vmatprep.subr.bf16.mxu0 %v2084
    %8889 = vmatpush1.bf16.msra.mxu0 %v2083
    %8890 = vmatprep.subr.bf16.mxu0 %v2092
    %8891 = vmatpush1.bf16.msra.mxu0 %v2091
    %8892 = vmatprep.subr.bf16.mxu0 %v2100
    %8893 = vmatpush1.bf16.msra.mxu0 %v2099
    %8894 = vmatprep.subr.bf16.mxu0 %v2108
    %8895 = vmatpush1.bf16.msra.mxu0 %v2107
    %8896 = vmatprep.subr.bf16.mxu0 %v2116
    %8897 = vmatpush1.bf16.msra.mxu0 %v2115
    %8898 = vmatprep.subr.bf16.mxu0 %v2124
    %8899 = vmatpush1.bf16.msra.mxu0 %v2123
    %8900 = vmatprep.subr.bf16.mxu0 %v2132
    %8901 = vmatpush1.bf16.msra.mxu0 %v2131
    %8902 = vmatprep.mubr.bf16.mxu0 %v8776
    %8903 = vmatmul.mubr.bf16.gmra.mrb[0].mxu0 %v8775
    %v8904 = vpop.f32.mrb[0].mxu0
    %v8905 = vadd.f32 %v8784, %v8904
    %v8906 = vpop.f32.mrb[0].mxu0
    %v8907 = vadd.f32 %v8785, %v8906
    %v8908 = vpop.f32.mrb[0].mxu0
    %v8909 = vpop.f32.mrb[0].mxu0
    %8910 = vdwg.mxu0
    %8911 = vmatprep.subr.bf16.mxu0 %v2014
    %8912 = vmatpush1.bf16.msra.mxu0 %v2013
    %8913 = vmatprep.subr.bf16.mxu0 %v2022
    %8914 = vmatpush1.bf16.msra.mxu0 %v2021
    %8915 = vmatprep.subr.bf16.mxu0 %v2030
    %8916 = vmatpush1.bf16.msra.mxu0 %v2029
    %8917 = vmatprep.subr.bf16.mxu0 %v2038
    %8918 = vmatpush1.bf16.msra.mxu0 %v2037
    %8919 = vmatprep.subr.bf16.mxu0 %v2046
    %8920 = vmatpush1.bf16.msra.mxu0 %v2045
    %8921 = vmatprep.subr.bf16.mxu0 %v2054
    %8922 = vmatpush1.bf16.msra.mxu0 %v2053
    %8923 = vmatprep.subr.bf16.mxu0 %v2062
    %8924 = vmatpush1.bf16.msra.mxu0 %v2061
    %8925 = vmatprep.subr.bf16.mxu0 %v2070
    %8926 = vmatpush1.bf16.msra.mxu0 %v2069
    %8927 = vmatprep.subr.bf16.mxu0 %v2078
    %8928 = vmatpush1.bf16.msra.mxu0 %v2077
    %8929 = vmatprep.subr.bf16.mxu0 %v2086
    %8930 = vmatpush1.bf16.msra.mxu0 %v2085
    %8931 = vmatprep.subr.bf16.mxu0 %v2094
    %8932 = vmatpush1.bf16.msra.mxu0 %v2093
    %8933 = vmatprep.subr.bf16.mxu0 %v2102
    %8934 = vmatpush1.bf16.msra.mxu0 %v2101
    %8935 = vmatprep.subr.bf16.mxu0 %v2110
    %8936 = vmatpush1.bf16.msra.mxu0 %v2109
    %8937 = vmatprep.subr.bf16.mxu0 %v2118
    %8938 = vmatpush1.bf16.msra.mxu0 %v2117
    %8939 = vmatprep.subr.bf16.mxu0 %v2126
    %8940 = vmatpush1.bf16.msra.mxu0 %v2125
    %8941 = vmatprep.subr.bf16.mxu0 %v2134
    %8942 = vmatpush1.bf16.msra.mxu0 %v2133
    %8943 = vmatprep.mubr.bf16.mxu0 %v8776
    %8944 = vmatmul.mubr.bf16.gmra.mrb[0].mxu0 %v8775
    %v8945 = vpop.f32.mrb[0].mxu0
    %v8946 = vadd.f32 %v8786, %v8945
    %v8947 = vpop.f32.mrb[0].mxu0
    %v8948 = vadd.f32 %v8787, %v8947
    %v8949 = vpop.f32.mrb[0].mxu0
    %v8950 = vpop.f32.mrb[0].mxu0
    %8951 = vdwg.mxu0
    %v8952 = vxor.u32 %v8823, 2147483648
    %v8953 = vxor.u32 %v8825, 2147483648
    %v8954 = vxor.u32 %v8864, 2147483648
    %v8955 = vxor.u32 %v8866, 2147483648
    %v8956 = vxor.u32 %v8905, 2147483648
    %v8957 = vxor.u32 %v8907, 2147483648
    %v8958 = vmul.f32 %v8952, 1.442695
    %v8959 = vpow.pop %v8958
    %v8960 = vmul.f32 %v8953, 1.442695
    %v8961 = vpow.pop %v8960
    %v8962 = vmul.f32 %v8954, 1.442695
    %v8963 = vpow.pop %v8962
    %v8964 = vmul.f32 %v8955, 1.442695
    %v8965 = vpow.pop %v8964
    %v8966 = vmul.f32 %v8956, 1.442695
    %v8967 = vpow.pop %v8966
    %v8968 = vmul.f32 %v8957, 1.442695
    %v8969 = vpow.pop %v8968
    %v8970 = vadd.f32 %v8959, 1.0
    %v8971 = vadd.f32 %v8961, 1.0
    %v8972 = vadd.f32 %v8963, 1.0
    %v8973 = vadd.f32 %v8965, 1.0
    %v8974 = vadd.f32 %v8967, 1.0
    %v8975 = vadd.f32 %v8969, 1.0
    %v8976 = vrcp.pop %v8970
    %v8977 = vmul.f32 1.0, %v8976
    %v8978 = vrcp.pop %v8971
    %v8979 = vmul.f32 1.0, %v8978
    %v8980 = vrcp.pop %v8972
    %v8981 = vmul.f32 1.0, %v8980
    %v8982 = vrcp.pop %v8973
    %v8983 = vmul.f32 1.0, %v8982
    %v8984 = vrcp.pop %v8974
    %v8985 = vmul.f32 1.0, %v8984
    %v8986 = vrcp.pop %v8975
    %v8987 = vmul.f32 1.0, %v8986
    %v8988 = vtanh.pop %v8946
    %v8989 = vtanh.pop %v8948
    %v8990 = vmul.f32 %v8981, %v8769
    %v8991 = vmul.f32 %v8983, %v8770
    %v8992 = vmul.f32 %v8977, %v8988
    %v8993 = vmul.f32 %v8979, %v8989
    %v8994 = vadd.f32 %v8990, %v8992
    %v8995 = vadd.f32 %v8991, %v8993
    %v8996 = vtanh.pop %v8994
    %v8997 = vtanh.pop %v8995
    %v8998 = vmul.f32 %v8985, %v8996
    %v8999 = vmul.f32 %v8987, %v8997
    %v9000 = vpack.c.bf16 %v8998, %v8998
    %v9001 = vpack.c.bf16 %v8999, %v8999
    %s9002 = smul.u32 31, 8
    %s9003 = smul.addr %s9002, 8
    %s9004 = scalar_lea.vmem [#allocation2], %s9003
    %v9005 = vld [vmem:[%s9004] sm:$0x3]
    %v9006 = vld [vmem:[%s9004 + $0x8] sm:$0x3]
    %v9007 = vld [vmem:[%s9004 + $0x10] sm:$0x3]
    %v9008 = vld [vmem:[%s9004 + $0x18] sm:$0x3]
    %v9009 = vld [vmem:[%s9004 + $0x20] sm:$0x3]
    %v9010 = vld [vmem:[%s9004 + $0x28] sm:$0x3]
    %v9011 = vld [vmem:[%s9004 + $0x30] sm:$0x3]
    %v9012 = vld [vmem:[%s9004 + $0x38] sm:$0x3]
    %9013 = vmatprep.subr.bf16.mxu0 %v2008
    %9014 = vmatpush1.bf16.msra.mxu0 %v2007
    %9015 = vmatprep.subr.bf16.mxu0 %v2016
    %9016 = vmatpush1.bf16.msra.mxu0 %v2015
    %9017 = vmatprep.subr.bf16.mxu0 %v2024
    %9018 = vmatpush1.bf16.msra.mxu0 %v2023
    %9019 = vmatprep.subr.bf16.mxu0 %v2032
    %9020 = vmatpush1.bf16.msra.mxu0 %v2031
    %9021 = vmatprep.subr.bf16.mxu0 %v2040
    %9022 = vmatpush1.bf16.msra.mxu0 %v2039
    %9023 = vmatprep.subr.bf16.mxu0 %v2048
    %9024 = vmatpush1.bf16.msra.mxu0 %v2047
    %9025 = vmatprep.subr.bf16.mxu0 %v2056
    %9026 = vmatpush1.bf16.msra.mxu0 %v2055
    %9027 = vmatprep.subr.bf16.mxu0 %v2064
    %9028 = vmatpush1.bf16.msra.mxu0 %v2063
    %9029 = vmatprep.subr.bf16.mxu0 %v2072
    %9030 = vmatpush1.bf16.msra.mxu0 %v2071
    %9031 = vmatprep.subr.bf16.mxu0 %v2080
    %9032 = vmatpush1.bf16.msra.mxu0 %v2079
    %9033 = vmatprep.subr.bf16.mxu0 %v2088
    %9034 = vmatpush1.bf16.msra.mxu0 %v2087
    %9035 = vmatprep.subr.bf16.mxu0 %v2096
    %9036 = vmatpush1.bf16.msra.mxu0 %v2095
    %9037 = vmatprep.subr.bf16.mxu0 %v2104
    %9038 = vmatpush1.bf16.msra.mxu0 %v2103
    %9039 = vmatprep.subr.bf16.mxu0 %v2112
    %9040 = vmatpush1.bf16.msra.mxu0 %v2111
    %9041 = vmatprep.subr.bf16.mxu0 %v2120
    %9042 = vmatpush1.bf16.msra.mxu0 %v2119
    %9043 = vmatprep.subr.bf16.mxu0 %v2128
    %9044 = vmatpush1.bf16.msra.mxu0 %v2127
    %9045 = vmatprep.mubr.bf16.mxu0 %v9001
    %9046 = vmatmul.mubr.bf16.gmra.mrb[0].mxu0 %v9000
    %v9047 = vpop.f32.mrb[0].mxu0
    %v9048 = vadd.f32 %v9005, %v9047
    %v9049 = vpop.f32.mrb[0].mxu0
    %v9050 = vadd.f32 %v9006, %v9049
    %v9051 = vpop.f32.mrb[0].mxu0
    %v9052 = vpop.f32.mrb[0].mxu0
    %9053 = vdwg.mxu0
    %9054 = vmatprep.subr.bf16.mxu0 %v2010
    %9055 = vmatpush1.bf16.msra.mxu0 %v2009
    %9056 = vmatprep.subr.bf16.mxu0 %v2018
    %9057 = vmatpush1.bf16.msra.mxu0 %v2017
    %9058 = vmatprep.subr.bf16.mxu0 %v2026
    %9059 = vmatpush1.bf16.msra.mxu0 %v2025
    %9060 = vmatprep.subr.bf16.mxu0 %v2034
    %9061 = vmatpush1.bf16.msra.mxu0 %v2033
    %9062 = vmatprep.subr.bf16.mxu0 %v2042
    %9063 = vmatpush1.bf16.msra.mxu0 %v2041
    %9064 = vmatprep.subr.bf16.mxu0 %v2050
    %9065 = vmatpush1.bf16.msra.mxu0 %v2049
    %9066 = vmatprep.subr.bf16.mxu0 %v2058
    %9067 = vmatpush1.bf16.msra.mxu0 %v2057
    %9068 = vmatprep.subr.bf16.mxu0 %v2066
    %9069 = vmatpush1.bf16.msra.mxu0 %v2065
    %9070 = vmatprep.subr.bf16.mxu0 %v2074
    %9071 = vmatpush1.bf16.msra.mxu0 %v2073
    %9072 = vmatprep.subr.bf16.mxu0 %v2082
    %9073 = vmatpush1.bf16.msra.mxu0 %v2081
    %9074 = vmatprep.subr.bf16.mxu0 %v2090
    %9075 = vmatpush1.bf16.msra.mxu0 %v2089
    %9076 = vmatprep.subr.bf16.mxu0 %v2098
    %9077 = vmatpush1.bf16.msra.mxu0 %v2097
    %9078 = vmatprep.subr.bf16.mxu0 %v2106
    %9079 = vmatpush1.bf16.msra.mxu0 %v2105
    %9080 = vmatprep.subr.bf16.mxu0 %v2114
    %9081 = vmatpush1.bf16.msra.mxu0 %v2113
    %9082 = vmatprep.subr.bf16.mxu0 %v2122
    %9083 = vmatpush1.bf16.msra.mxu0 %v2121
    %9084 = vmatprep.subr.bf16.mxu0 %v2130
    %9085 = vmatpush1.bf16.msra.mxu0 %v2129
    %9086 = vmatprep.mubr.bf16.mxu0 %v9001
    %9087 = vmatmul.mubr.bf16.gmra.mrb[0].mxu0 %v9000
    %v9088 = vpop.f32.mrb[0].mxu0
    %v9089 = vadd.f32 %v9007, %v9088
    %v9090 = vpop.f32.mrb[0].mxu0
    %v9091 = vadd.f32 %v9008, %v9090
    %v9092 = vpop.f32.mrb[0].mxu0
    %v9093 = vpop.f32.mrb[0].mxu0
    %9094 = vdwg.mxu0
    %9095 = vmatprep.subr.bf16.mxu0 %v2012
    %9096 = vmatpush1.bf16.msra.mxu0 %v2011
    %9097 = vmatprep.subr.bf16.mxu0 %v2020
    %9098 = vmatpush1.bf16.msra.mxu0 %v2019
    %9099 = vmatprep.subr.bf16.mxu0 %v2028
    %9100 = vmatpush1.bf16.msra.mxu0 %v2027
    %9101 = vmatprep.subr.bf16.mxu0 %v2036
    %9102 = vmatpush1.bf16.msra.mxu0 %v2035
    %9103 = vmatprep.subr.bf16.mxu0 %v2044
    %9104 = vmatpush1.bf16.msra.mxu0 %v2043
    %9105 = vmatprep.subr.bf16.mxu0 %v2052
    %9106 = vmatpush1.bf16.msra.mxu0 %v2051
    %9107 = vmatprep.subr.bf16.mxu0 %v2060
    %9108 = vmatpush1.bf16.msra.mxu0 %v2059
    %9109 = vmatprep.subr.bf16.mxu0 %v2068
    %9110 = vmatpush1.bf16.msra.mxu0 %v2067
    %9111 = vmatprep.subr.bf16.mxu0 %v2076
    %9112 = vmatpush1.bf16.msra.mxu0 %v2075
    %9113 = vmatprep.subr.bf16.mxu0 %v2084
    %9114 = vmatpush1.bf16.msra.mxu0 %v2083
    %9115 = vmatprep.subr.bf16.mxu0 %v2092
    %9116 = vmatpush1.bf16.msra.mxu0 %v2091
    %9117 = vmatprep.subr.bf16.mxu0 %v2100
    %9118 = vmatpush1.bf16.msra.mxu0 %v2099
    %9119 = vmatprep.subr.bf16.mxu0 %v2108
    %9120 = vmatpush1.bf16.msra.mxu0 %v2107
    %9121 = vmatprep.subr.bf16.mxu0 %v2116
    %9122 = vmatpush1.bf16.msra.mxu0 %v2115
    %9123 = vmatprep.subr.bf16.mxu0 %v2124
    %9124 = vmatpush1.bf16.msra.mxu0 %v2123
    %9125 = vmatprep.subr.bf16.mxu0 %v2132
    %9126 = vmatpush1.bf16.msra.mxu0 %v2131
    %9127 = vmatprep.mubr.bf16.mxu0 %v9001
    %9128 = vmatmul.mubr.bf16.gmra.mrb[0].mxu0 %v9000
    %v9129 = vpop.f32.mrb[0].mxu0
    %v9130 = vadd.f32 %v9009, %v9129
    %v9131 = vpop.f32.mrb[0].mxu0
    %v9132 = vadd.f32 %v9010, %v9131
    %v9133 = vpop.f32.mrb[0].mxu0
    %v9134 = vpop.f32.mrb[0].mxu0
    %9135 = vdwg.mxu0
    %9136 = vmatprep.subr.bf16.mxu0 %v2014
    %9137 = vmatpush1.bf16.msra.mxu0 %v2013
    %9138 = vmatprep.subr.bf16.mxu0 %v2022
    %9139 = vmatpush1.bf16.msra.mxu0 %v2021
    %9140 = vmatprep.subr.bf16.mxu0 %v2030
    %9141 = vmatpush1.bf16.msra.mxu0 %v2029
    %9142 = vmatprep.subr.bf16.mxu0 %v2038
    %9143 = vmatpush1.bf16.msra.mxu0 %v2037
    %9144 = vmatprep.subr.bf16.mxu0 %v2046
    %9145 = vmatpush1.bf16.msra.mxu0 %v2045
    %9146 = vmatprep.subr.bf16.mxu0 %v2054
    %9147 = vmatpush1.bf16.msra.mxu0 %v2053
    %9148 = vmatprep.subr.bf16.mxu0 %v2062
    %9149 = vmatpush1.bf16.msra.mxu0 %v2061
    %9150 = vmatprep.subr.bf16.mxu0 %v2070
    %9151 = vmatpush1.bf16.msra.mxu0 %v2069
    %9152 = vmatprep.subr.bf16.mxu0 %v2078
    %9153 = vmatpush1.bf16.msra.mxu0 %v2077
    %9154 = vmatprep.subr.bf16.mxu0 %v2086
    %9155 = vmatpush1.bf16.msra.mxu0 %v2085
    %9156 = vmatprep.subr.bf16.mxu0 %v2094
    %9157 = vmatpush1.bf16.msra.mxu0 %v2093
    %9158 = vmatprep.subr.bf16.mxu0 %v2102
    %9159 = vmatpush1.bf16.msra.mxu0 %v2101
    %9160 = vmatprep.subr.bf16.mxu0 %v2110
    %9161 = vmatpush1.bf16.msra.mxu0 %v2109
    %9162 = vmatprep.subr.bf16.mxu0 %v2118
    %9163 = vmatpush1.bf16.msra.mxu0 %v2117
    %9164 = vmatprep.subr.bf16.mxu0 %v2126
    %9165 = vmatpush1.bf16.msra.mxu0 %v2125
    %9166 = vmatprep.subr.bf16.mxu0 %v2134
    %9167 = vmatpush1.bf16.msra.mxu0 %v2133
    %9168 = vmatprep.mubr.bf16.mxu0 %v9001
    %9169 = vmatmul.mubr.bf16.gmra.mrb[0].mxu0 %v9000
    %v9170 = vpop.f32.mrb[0].mxu0
    %v9171 = vadd.f32 %v9011, %v9170
    %v9172 = vpop.f32.mrb[0].mxu0
    %v9173 = vadd.f32 %v9012, %v9172
    %v9174 = vpop.f32.mrb[0].mxu0
    %v9175 = vpop.f32.mrb[0].mxu0
    %9176 = vdwg.mxu0
    %v9177 = vxor.u32 %v9048, 2147483648
    %v9178 = vxor.u32 %v9050, 2147483648
    %v9179 = vxor.u32 %v9089, 2147483648
    %v9180 = vxor.u32 %v9091, 2147483648
    %v9181 = vxor.u32 %v9130, 2147483648
    %v9182 = vxor.u32 %v9132, 2147483648
    %v9183 = vmul.f32 %v9177, 1.442695
    %v9184 = vpow.pop %v9183
    %v9185 = vmul.f32 %v9178, 1.442695
    %v9186 = vpow.pop %v9185
    %v9187 = vmul.f32 %v9179, 1.442695
    %v9188 = vpow.pop %v9187
    %v9189 = vmul.f32 %v9180, 1.442695
    %v9190 = vpow.pop %v9189
    %v9191 = vmul.f32 %v9181, 1.442695
    %v9192 = vpow.pop %v9191
    %v9193 = vmul.f32 %v9182, 1.442695
    %v9194 = vpow.pop %v9193
    %v9195 = vadd.f32 %v9184, 1.0
    %v9196 = vadd.f32 %v9186, 1.0
    %v9197 = vadd.f32 %v9188, 1.0
    %v9198 = vadd.f32 %v9190, 1.0
    %v9199 = vadd.f32 %v9192, 1.0
    %v9200 = vadd.f32 %v9194, 1.0
    %v9201 = vrcp.pop %v9195
    %v9202 = vmul.f32 1.0, %v9201
    %v9203 = vrcp.pop %v9196
    %v9204 = vmul.f32 1.0, %v9203
    %v9205 = vrcp.pop %v9197
    %v9206 = vmul.f32 1.0, %v9205
    %v9207 = vrcp.pop %v9198
    %v9208 = vmul.f32 1.0, %v9207
    %v9209 = vrcp.pop %v9199
    %v9210 = vmul.f32 1.0, %v9209
    %v9211 = vrcp.pop %v9200
    %v9212 = vmul.f32 1.0, %v9211
    %v9213 = vtanh.pop %v9171
    %v9214 = vtanh.pop %v9173
    %v9215 = vmul.f32 %v9206, %v8994
    %v9216 = vmul.f32 %v9208, %v8995
    %v9217 = vmul.f32 %v9202, %v9213
    %v9218 = vmul.f32 %v9204, %v9214
    %v9219 = vadd.f32 %v9215, %v9217
    %v9220 = vadd.f32 %v9216, %v9218
    %v9221 = vtanh.pop %v9219
    %v9222 = vtanh.pop %v9220
    %v9223 = vmul.f32 %v9210, %v9221
    %v9224 = vmul.f32 %v9212, %v9222
    %v9225 = vpack.c.bf16 %v9223, %v9223
    %v9226 = vpack.c.bf16 %v9224, %v9224
    %s9227 = smul.u32 32, 8
    %s9228 = smul.addr %s9227, 8
    %s9229 = scalar_lea.vmem [#allocation2], %s9228
    %v9230 = vld [vmem:[%s9229 + $0x8] sm:$0x3]
    %v9231 = vld [vmem:[%s9229 + $0x18] sm:$0x3]
    %v9232 = vld [vmem:[%s9229 + $0x28] sm:$0x3]
    %v9233 = vld [vmem:[%s9229 + $0x38] sm:$0x3]
    %9234 = vmatprep.subr.bf16.mxu0 %v2008
    %9235 = vmatpush1.bf16.msra.mxu0 %v2007
    %9236 = vmatprep.subr.bf16.mxu0 %v2016
    %9237 = vmatpush1.bf16.msra.mxu0 %v2015
    %9238 = vmatprep.subr.bf16.mxu0 %v2024
    %9239 = vmatpush1.bf16.msra.mxu0 %v2023
    %9240 = vmatprep.subr.bf16.mxu0 %v2032
    %9241 = vmatpush1.bf16.msra.mxu0 %v2031
    %9242 = vmatprep.subr.bf16.mxu0 %v2040
    %9243 = vmatpush1.bf16.msra.mxu0 %v2039
    %9244 = vmatprep.subr.bf16.mxu0 %v2048
    %9245 = vmatpush1.bf16.msra.mxu0 %v2047
    %9246 = vmatprep.subr.bf16.mxu0 %v2056
    %9247 = vmatpush1.bf16.msra.mxu0 %v2055
    %9248 = vmatprep.subr.bf16.mxu0 %v2064
    %9249 = vmatpush1.bf16.msra.mxu0 %v2063
    %9250 = vmatprep.subr.bf16.mxu0 %v2072
    %9251 = vmatpush1.bf16.msra.mxu0 %v2071
    %9252 = vmatprep.subr.bf16.mxu0 %v2080
    %9253 = vmatpush1.bf16.msra.mxu0 %v2079
    %9254 = vmatprep.subr.bf16.mxu0 %v2088
    %9255 = vmatpush1.bf16.msra.mxu0 %v2087
    %9256 = vmatprep.subr.bf16.mxu0 %v2096
    %9257 = vmatpush1.bf16.msra.mxu0 %v2095
    %9258 = vmatprep.subr.bf16.mxu0 %v2104
    %9259 = vmatpush1.bf16.msra.mxu0 %v2103
    %9260 = vmatprep.subr.bf16.mxu0 %v2112
    %9261 = vmatpush1.bf16.msra.mxu0 %v2111
    %9262 = vmatprep.subr.bf16.mxu0 %v2120
    %9263 = vmatpush1.bf16.msra.mxu0 %v2119
    %9264 = vmatprep.subr.bf16.mxu0 %v2128
    %9265 = vmatpush1.bf16.msra.mxu0 %v2127
    %9266 = vmatprep.mubr.bf16.mxu0 %v9226
    %9267 = vmatmul.mubr.bf16.gmra.mrb[0].mxu0 %v9225
    %v9268 = vpop.f32.mrb[0].mxu0
    %v9269 = vpop.f32.mrb[0].mxu0
    %v9270 = vadd.f32 %v9230, %v9269
    %v9271 = vpop.f32.mrb[0].mxu0
    %v9272 = vpop.f32.mrb[0].mxu0
    %9273 = vdwg.mxu0
    %9274 = vmatprep.subr.bf16.mxu0 %v2010
    %9275 = vmatpush1.bf16.msra.mxu0 %v2009
    %9276 = vmatprep.subr.bf16.mxu0 %v2018
    %9277 = vmatpush1.bf16.msra.mxu0 %v2017
    %9278 = vmatprep.subr.bf16.mxu0 %v2026
    %9279 = vmatpush1.bf16.msra.mxu0 %v2025
    %9280 = vmatprep.subr.bf16.mxu0 %v2034
    %9281 = vmatpush1.bf16.msra.mxu0 %v2033
    %9282 = vmatprep.subr.bf16.mxu0 %v2042
    %9283 = vmatpush1.bf16.msra.mxu0 %v2041
    %9284 = vmatprep.subr.bf16.mxu0 %v2050
    %9285 = vmatpush1.bf16.msra.mxu0 %v2049
    %9286 = vmatprep.subr.bf16.mxu0 %v2058
    %9287 = vmatpush1.bf16.msra.mxu0 %v2057
    %9288 = vmatprep.subr.bf16.mxu0 %v2066
    %9289 = vmatpush1.bf16.msra.mxu0 %v2065
    %9290 = vmatprep.subr.bf16.mxu0 %v2074
    %9291 = vmatpush1.bf16.msra.mxu0 %v2073
    %9292 = vmatprep.subr.bf16.mxu0 %v2082
    %9293 = vmatpush1.bf16.msra.mxu0 %v2081
    %9294 = vmatprep.subr.bf16.mxu0 %v2090
    %9295 = vmatpush1.bf16.msra.mxu0 %v2089
    %9296 = vmatprep.subr.bf16.mxu0 %v2098
    %9297 = vmatpush1.bf16.msra.mxu0 %v2097
    %9298 = vmatprep.subr.bf16.mxu0 %v2106
    %9299 = vmatpush1.bf16.msra.mxu0 %v2105
    %9300 = vmatprep.subr.bf16.mxu0 %v2114
    %9301 = vmatpush1.bf16.msra.mxu0 %v2113
    %9302 = vmatprep.subr.bf16.mxu0 %v2122
    %9303 = vmatpush1.bf16.msra.mxu0 %v2121
    %9304 = vmatprep.subr.bf16.mxu0 %v2130
    %9305 = vmatpush1.bf16.msra.mxu0 %v2129
    %9306 = vmatprep.mubr.bf16.mxu0 %v9226
    %9307 = vmatmul.mubr.bf16.gmra.mrb[0].mxu0 %v9225
    %v9308 = vpop.f32.mrb[0].mxu0
    %v9309 = vpop.f32.mrb[0].mxu0
    %v9310 = vadd.f32 %v9231, %v9309
    %v9311 = vpop.f32.mrb[0].mxu0
    %v9312 = vpop.f32.mrb[0].mxu0
    %9313 = vdwg.mxu0
    %9314 = vmatprep.subr.bf16.mxu0 %v2012
    %9315 = vmatpush1.bf16.msra.mxu0 %v2011
    %9316 = vmatprep.subr.bf16.mxu0 %v2020
    %9317 = vmatpush1.bf16.msra.mxu0 %v2019
    %9318 = vmatprep.subr.bf16.mxu0 %v2028
    %9319 = vmatpush1.bf16.msra.mxu0 %v2027
    %9320 = vmatprep.subr.bf16.mxu0 %v2036
    %9321 = vmatpush1.bf16.msra.mxu0 %v2035
    %9322 = vmatprep.subr.bf16.mxu0 %v2044
    %9323 = vmatpush1.bf16.msra.mxu0 %v2043
    %9324 = vmatprep.subr.bf16.mxu0 %v2052
    %9325 = vmatpush1.bf16.msra.mxu0 %v2051
    %9326 = vmatprep.subr.bf16.mxu0 %v2060
    %9327 = vmatpush1.bf16.msra.mxu0 %v2059
    %9328 = vmatprep.subr.bf16.mxu0 %v2068
    %9329 = vmatpush1.bf16.msra.mxu0 %v2067
    %9330 = vmatprep.subr.bf16.mxu0 %v2076
    %9331 = vmatpush1.bf16.msra.mxu0 %v2075
    %9332 = vmatprep.subr.bf16.mxu0 %v2084
    %9333 = vmatpush1.bf16.msra.mxu0 %v2083
    %9334 = vmatprep.subr.bf16.mxu0 %v2092
    %9335 = vmatpush1.bf16.msra.mxu0 %v2091
    %9336 = vmatprep.subr.bf16.mxu0 %v2100
    %9337 = vmatpush1.bf16.msra.mxu0 %v2099
    %9338 = vmatprep.subr.bf16.mxu0 %v2108
    %9339 = vmatpush1.bf16.msra.mxu0 %v2107
    %9340 = vmatprep.subr.bf16.mxu0 %v2116
    %9341 = vmatpush1.bf16.msra.mxu0 %v2115
    %9342 = vmatprep.subr.bf16.mxu0 %v2124
    %9343 = vmatpush1.bf16.msra.mxu0 %v2123
    %9344 = vmatprep.subr.bf16.mxu0 %v2132
    %9345 = vmatpush1.bf16.msra.mxu0 %v2131
    %9346 = vmatprep.mubr.bf16.mxu0 %v9226
    %9347 = vmatmul.mubr.bf16.gmra.mrb[0].mxu0 %v9225
    %v9348 = vpop.f32.mrb[0].mxu0
    %v9349 = vpop.f32.mrb[0].mxu0
    %v9350 = vadd.f32 %v9232, %v9349
    %v9351 = vpop.f32.mrb[0].mxu0
    %v9352 = vpop.f32.mrb[0].mxu0
    %9353 = vdwg.mxu0
    %9354 = vmatprep.subr.bf16.mxu0 %v2014
    %9355 = vmatpush1.bf16.msra.mxu0 %v2013
    %9356 = vmatprep.subr.bf16.mxu0 %v2022
    %9357 = vmatpush1.bf16.msra.mxu0 %v2021
    %9358 = vmatprep.subr.bf16.mxu0 %v2030
    %9359 = vmatpush1.bf16.msra.mxu0 %v2029
    %9360 = vmatprep.subr.bf16.mxu0 %v2038
    %9361 = vmatpush1.bf16.msra.mxu0 %v2037
    %9362 = vmatprep.subr.bf16.mxu0 %v2046
    %9363 = vmatpush1.bf16.msra.mxu0 %v2045
    %9364 = vmatprep.subr.bf16.mxu0 %v2054
    %9365 = vmatpush1.bf16.msra.mxu0 %v2053
    %9366 = vmatprep.subr.bf16.mxu0 %v2062
    %9367 = vmatpush1.bf16.msra.mxu0 %v2061
    %9368 = vmatprep.subr.bf16.mxu0 %v2070
    %9369 = vmatpush1.bf16.msra.mxu0 %v2069
    %9370 = vmatprep.subr.bf16.mxu0 %v2078
    %9371 = vmatpush1.bf16.msra.mxu0 %v2077
    %9372 = vmatprep.subr.bf16.mxu0 %v2086
    %9373 = vmatpush1.bf16.msra.mxu0 %v2085
    %9374 = vmatprep.subr.bf16.mxu0 %v2094
    %9375 = vmatpush1.bf16.msra.mxu0 %v2093
    %9376 = vmatprep.subr.bf16.mxu0 %v2102
    %9377 = vmatpush1.bf16.msra.mxu0 %v2101
    %9378 = vmatprep.subr.bf16.mxu0 %v2110
    %9379 = vmatpush1.bf16.msra.mxu0 %v2109
    %9380 = vmatprep.subr.bf16.mxu0 %v2118
    %9381 = vmatpush1.bf16.msra.mxu0 %v2117
    %9382 = vmatprep.subr.bf16.mxu0 %v2126
    %9383 = vmatpush1.bf16.msra.mxu0 %v2125
    %9384 = vmatprep.subr.bf16.mxu0 %v2134
    %9385 = vmatpush1.bf16.msra.mxu0 %v2133
    %9386 = vmatprep.mubr.bf16.mxu0 %v9226
    %9387 = vmatmul.mubr.bf16.gmra.mrb[0].mxu0 %v9225
    %v9388 = vpop.f32.mrb[0].mxu0
    %v9389 = vpop.f32.mrb[0].mxu0
    %v9390 = vadd.f32 %v9233, %v9389
    %v9391 = vpop.f32.mrb[0].mxu0
    %v9392 = vpop.f32.mrb[0].mxu0
    %9393 = vdwg.mxu0
    %v9394 = vxor.u32 %v9270, 2147483648
    %v9395 = vxor.u32 %v9310, 2147483648
    %v9396 = vxor.u32 %v9350, 2147483648
    %v9397 = vmul.f32 %v9394, 1.442695
    %v9398 = vpow.pop %v9397
    %v9399 = vmul.f32 %v9395, 1.442695
    %v9400 = vpow.pop %v9399
    %v9401 = vmul.f32 %v9396, 1.442695
    %v9402 = vpow.pop %v9401
    %v9403 = vadd.f32 %v9398, 1.0
    %v9404 = vadd.f32 %v9400, 1.0
    %v9405 = vadd.f32 %v9402, 1.0
    %v9406 = vrcp.pop %v9403
    %v9407 = vmul.f32 1.0, %v9406
    %v9408 = vrcp.pop %v9404
    %v9409 = vmul.f32 1.0, %v9408
    %v9410 = vrcp.pop %v9405
    %v9411 = vmul.f32 1.0, %v9410
    %v9412 = vtanh.pop %v9390
    %v9413 = vmul.f32 %v9409, %v9220
    %v9414 = vmul.f32 %v9407, %v9412
    %v9415 = vadd.f32 %v9413, %v9414
    %v9416 = vtanh.pop %v9415
    %v9417 = vmul.f32 %v9411, %v9416
    %v9418 = vpack.c.bf16 %v9417, %v9417
    %v9419 = vld [vmem:[%s4] sm:$0xf]
    %v9420 = vld [vmem:[%s4 + $0x4] sm:$0xf]
    %v9421 = vld [vmem:[%s4 + $0x8] sm:$0xf]
    %v9422 = vld [vmem:[%s4 + $0xc] sm:$0xf]
    %v9423 = vld [vmem:[%s4 + $0x10] sm:$0xf]
    %v9424 = vld [vmem:[%s4 + $0x14] sm:$0xf]
    %v9425 = vld [vmem:[%s4 + $0x18] sm:$0xf]
    %v9426 = vld [vmem:[%s4 + $0x1c] sm:$0xf]
    %v9427 = vld [vmem:[%s4 + $0x20] sm:$0xf]
    %v9428 = vld [vmem:[%s4 + $0x24] sm:$0xf]
    %v9429 = vld [vmem:[%s4 + $0x28] sm:$0xf]
    %v9430 = vld [vmem:[%s4 + $0x2c] sm:$0xf]
    %v9431 = vld [vmem:[%s4 + $0x30] sm:$0xf]
    %v9432 = vld [vmem:[%s4 + $0x34] sm:$0xf]
    %v9433 = vld [vmem:[%s4 + $0x38] sm:$0xf]
    %v9434 = vld [vmem:[%s4 + $0x3c] sm:$0xf]
    %v9435 = vld [vmem:[%s5] sm:$0x1]
    %v9437 = vlaneseq
    %v9438 = vshrl.u32 %v9437, 7
    %v9439 = vsub.s32 0, %v9438
    %v9440 = vrot.slane %v9435, %v9439
    %v9458 = vunpack.c.l.b16 %v9419
    %v9459 = vunpack.c.l.b16 %v9420
    %v9460 = vunpack.c.l.b16 %v9421
    %v9461 = vunpack.c.l.b16 %v9422
    %v9462 = vunpack.c.l.b16 %v9423
    %v9463 = vunpack.c.l.b16 %v9424
    %v9464 = vunpack.c.l.b16 %v9425
    %v9465 = vunpack.c.l.b16 %v9426
    %v9466 = vunpack.c.l.b16 %v9427
    %v9467 = vunpack.c.l.b16 %v9428
    %v9468 = vunpack.c.l.b16 %v9429
    %v9469 = vunpack.c.l.b16 %v9430
    %v9470 = vunpack.c.l.b16 %v9431
    %v9471 = vunpack.c.l.b16 %v9432
    %v9472 = vunpack.c.l.b16 %v9433
    %v9473 = vunpack.c.l.b16 %v9434
    %v9474 = vpack.c.b16 %v9459, %v9458
    %v9475 = vpack.c.b16 %v9461, %v9460
    %v9476 = vpack.c.b16 %v9463, %v9462
    %v9477 = vpack.c.b16 %v9465, %v9464
    %v9478 = vpack.c.b16 %v9467, %v9466
    %v9479 = vpack.c.b16 %v9469, %v9468
    %v9480 = vpack.c.b16 %v9471, %v9470
    %v9481 = vpack.c.b16 %v9473, %v9472
    %9490 = vmatprep.subr.bf16.mxu0 0
    %9491 = vmatpush1.bf16.msra.mxu0 %v9474
    %9492 = vmatprep.subr.bf16.mxu0 0
    %9493 = vmatpush1.bf16.msra.mxu0 %v9475
    %9494 = vmatprep.subr.bf16.mxu0 0
    %9495 = vmatpush1.bf16.msra.mxu0 %v9476
    %9496 = vmatprep.subr.bf16.mxu0 0
    %9497 = vmatpush1.bf16.msra.mxu0 %v9477
    %9498 = vmatprep.subr.bf16.mxu0 0
    %9499 = vmatpush1.bf16.msra.mxu0 %v9478
    %9500 = vmatprep.subr.bf16.mxu0 0
    %9501 = vmatpush1.bf16.msra.mxu0 %v9479
    %9502 = vmatprep.subr.bf16.mxu0 0
    %9503 = vmatpush1.bf16.msra.mxu0 %v9480
    %9504 = vmatprep.subr.bf16.mxu0 0
    %9505 = vmatpush1.bf16.msra.mxu0 %v9481
    %9506 = vmatprep.subr.bf16.mxu0 0
    %9507 = vmatpush1.bf16.msra.mxu0 0
    %9508 = vmatprep.subr.bf16.mxu0 0
    %9509 = vmatpush1.bf16.msra.mxu0 0
    %9510 = vmatprep.subr.bf16.mxu0 0
    %9511 = vmatpush1.bf16.msra.mxu0 0
    %9512 = vmatprep.subr.bf16.mxu0 0
    %9513 = vmatpush1.bf16.msra.mxu0 0
    %9514 = vmatprep.subr.bf16.mxu0 0
    %9515 = vmatpush1.bf16.msra.mxu0 0
    %9516 = vmatprep.subr.bf16.mxu0 0
    %9517 = vmatpush1.bf16.msra.mxu0 0
    %9518 = vmatprep.subr.bf16.mxu0 0
    %9519 = vmatpush1.bf16.msra.mxu0 0
    %9520 = vmatprep.subr.bf16.mxu0 0
    %9521 = vmatpush1.bf16.msra.mxu0 0
    %9522 = vmatprep.mubr.bf16.mxu0 0
    %9523 = vmatmul.mubr.bf16.gmra.mrb[0].mxu0 %v9418
    %v9524 = vpop.f32.mrb[0].mxu0
    %v9525 = vadd.f32 %v9440, %v9524
    %v9526 = vpop.f32.mrb[0].mxu0
    %v9527 = vpop.f32.mrb[0].mxu0
    %v9528 = vpop.f32.mrb[0].mxu0
    %9529 = vdwg.mxu0
    %vm9530 = vcmask 74752
    %9531 = vst.msk [vmem:[#allocation6] sm:$0x3] %vm9530, %v9525
    // Predicated region
    $region30: #{tpu_custom_call.1} parent=1 // pred_check
      _
    $region31: #{tpu_custom_call.1} parent=1 // pred_check_branch
      %9533 = sbr.rel (0) target = $region33
    $region32: #{tpu_custom_call.1} parent=1 // pred_region
      %s9535 = ssub.s32 32, 32
      %9536 = vsyncadd [#allocation5], %s9535
      %s9538 = sshll.u32 [#allocation6], 4
      %s9539 = int_to_ptr.vmem [resolvable:$true] %s9538
      %9541 = dma.vmem_to_hbm [thread:$0]  %s9539, 32, %s6, [#allocation5]
    $region33: #{tpu_custom_call.1} parent=1 // pred_fallthru
      _
    // Predicated region
    $region34: #{tpu_custom_call.1} parent=1 // pred_check
      _
    $region35: #{tpu_custom_call.1} parent=1 // pred_check_branch
      %9543 = sbr.rel (0) target = $region37
    $region36: #{tpu_custom_call.1} parent=1 // pred_region
      %9544 = dma.done [#allocation5], 32
    $region37: #{tpu_custom_call.1} parent=1 // pred_fallthru
      _
    %9545 = vsyncpa [#allocation4], 1
    %9546 = vsyncpa [#allocation5], 1

</llo_original>
